<compile_context>
chip_gen: v6e
topology: v6e:2x2x1
jax: 0.10.0
libtpu: 0.0.40
codegen_flags: <defaults>
</compile_context>

<pallas_src>
import functools

import jax
import jax.numpy as jnp
from jax.experimental import pallas as pl
from jax.experimental.pallas import tpu as pltpu


def _classifier_kernel(S, TB, inv_s,
                       ids_ref, emb_hbm_ref, w1t_ref, b1_ref, w2t_ref, b2_ref,
                       out_ref, rows_ref, sems):
    # ids_ref     : (B_pad, S) int32 in SMEM (scalar prefetch)
    # emb_hbm_ref : (V, Dp) f32 embedding table, left in HBM (pl.ANY)
    # w1t_ref     : (Dp, Hp) f32  fc1.weight.T zero-padded
    # b1_ref      : (1, Hp)  f32
    # w2t_ref     : (Hp, Cp) f32  fc2.weight.T zero-padded
    # b2_ref      : (1, Cp)  f32
    # out_ref     : (TB, Cp) f32  logits tile (lane-dense, sublane-aligned)
    # rows_ref    : (TB, S, Dp) f32 VMEM scratch holding the gathered embedding rows
    # sems        : (TB, S) DMA semaphores
    bt = pl.program_id(0)

    # Issue every row gather for this batch tile up front so the DMAs overlap
    # each other, then wait once.  (Loops are statically unrolled: TB*S is small.)
    copies = []
    for b in range(TB):
        for s in range(S):
            tok = ids_ref[bt * TB + b, s]
            cp = pltpu.make_async_copy(emb_hbm_ref.at[tok],
                                       rows_ref.at[b, s],
                                       sems.at[b, s])
            cp.start()
            copies.append(cp)
    for cp in copies:
        cp.wait()

    # Mean over the sequence axis (XLU cross-sublane reduce), then the 2-layer MLP.
    pooled = jnp.sum(rows_ref[...], axis=1) * inv_s                        # (TB, Dp)
    h = jnp.dot(pooled, w1t_ref[...],
                preferred_element_type=jnp.float32) + b1_ref[...]          # (TB, Hp)
    h = jnp.maximum(h, 0.0)                                                # ReLU
    out_ref[...] = (jnp.dot(h, w2t_ref[...],
                            preferred_element_type=jnp.float32)
                    + b2_ref[...])                                         # (TB, Cp)


def text_classifier_forward(token_ids, emb_table, w1, b1, w2, b2, *, batch_tile=8):
    """token_ids: (B, S) int32; returns logits (B, num_classes) f32."""
    B, S = token_ids.shape
    V, D = emb_table.shape
    H = w1.shape[0]
    C = w2.shape[0]

    LANE = 128
    Dp = ((D + LANE - 1) // LANE) * LANE
    Hp = ((H + LANE - 1) // LANE) * LANE
    Cp = ((C + LANE - 1) // LANE) * LANE
    TB = batch_tile
    B_pad = ((B + TB - 1) // TB) * TB

    f32 = jnp.float32
    # Zero-pad to lane/MXU alignment.  Padded rows/cols are exactly zero so they
    # contribute nothing; logits are sliced back to (B, C) below.
    emb_p = jnp.zeros((V, Dp), f32).at[:, :D].set(emb_table.astype(f32))
    w1t_p = jnp.zeros((Dp, Hp), f32).at[:D, :H].set(w1.T.astype(f32))
    b1_p = jnp.zeros((1, Hp), f32).at[:, :H].set(b1.reshape(1, H).astype(f32))
    w2t_p = jnp.zeros((Hp, Cp), f32).at[:H, :C].set(w2.T.astype(f32))
    b2_p = jnp.zeros((1, Cp), f32).at[:, :C].set(b2.reshape(1, C).astype(f32))

    # Padded batch rows use token id 0 (a valid index); their outputs are discarded.
    ids = jnp.zeros((B_pad, S), jnp.int32).at[:B, :].set(token_ids.astype(jnp.int32))

    grid_spec = pltpu.PrefetchScalarGridSpec(
        num_scalar_prefetch=1,
        grid=(B_pad // TB,),
        in_specs=[
            pl.BlockSpec(memory_space=pl.ANY),                      # emb table in HBM
            pl.BlockSpec((Dp, Hp), lambda bt, ids_sm: (0, 0)),      # resident weights
            pl.BlockSpec((1, Hp), lambda bt, ids_sm: (0, 0)),
            pl.BlockSpec((Hp, Cp), lambda bt, ids_sm: (0, 0)),
            pl.BlockSpec((1, Cp), lambda bt, ids_sm: (0, 0)),
        ],
        out_specs=pl.BlockSpec((TB, Cp), lambda bt, ids_sm: (bt, 0)),
        scratch_shapes=[
            pltpu.VMEM((TB, S, Dp), jnp.float32),
            pltpu.SemaphoreType.DMA((TB, S)),
        ],
    )

    logits_p = pl.pallas_call(
        functools.partial(_classifier_kernel, S, TB, float(1.0 / S)),
        out_shape=jax.ShapeDtypeStruct((B_pad, Cp), jnp.float32),
        grid_spec=grid_spec,
        compiler_params=pltpu.CompilerParams(
            dimension_semantics=("parallel",)),
    )(ids, emb_p, w1t_p, b1_p, w2t_p, b2_p)

    return logits_p[:B, :C]


def _reference_forward(token_ids, emb_table, w1, b1, w2, b2):
    e = jnp.take(emb_table, token_ids, axis=0)      # (B, S, D)
    x = jnp.mean(e, axis=1)                         # (B, D)
    x = jnp.maximum(x @ w1.T + b1, 0.0)             # (B, H)
    return x @ w2.T + b2                            # (B, C)


if __name__ == "__main__":
    B, S = 2, 8            # batch, sequence length
    V, D = 50, 100         # vocab size, GloVe embedding dim (100 per fc1 in_features)
    H = 128                # fc1 out_features
    C = 4                  # num_classes

    key = jax.random.PRNGKey(0)
    k_ids, k_emb, k_w1, k_b1, k_w2, k_b2 = jax.random.split(key, 6)

    token_ids = jax.random.randint(k_ids, (B, S), 0, V, dtype=jnp.int32)
    emb_table = jax.random.normal(k_emb, (V, D), dtype=jnp.float32)
    w1 = jax.random.normal(k_w1, (H, D), dtype=jnp.float32) * 0.05   # fc1.weight
    b1 = jax.random.normal(k_b1, (H,), dtype=jnp.float32) * 0.05     # fc1.bias
    w2 = jax.random.normal(k_w2, (C, H), dtype=jnp.float32) * 0.05   # fc2.weight
    b2 = jax.random.normal(k_b2, (C,), dtype=jnp.float32) * 0.05     # fc2.bias

    out = text_classifier_forward(token_ids, emb_table, w1, b1, w2, b2)
    out = jax.block_until_ready(out)

    ref = _reference_forward(token_ids, emb_table, w1, b1, w2, b2)
    assert out.shape == (B, C)
    assert jnp.allclose(out, ref, atol=1e-4, rtol=1e-4)

    print("KERNEL_OK")
</pallas_src>

<mosaic_0001>
module attributes {stable_mosaic.version = 11 : i64} {
  func.func @_classifier_kernel(%arg0: i32, %arg1: memref<8x8xi32, #tpu.memory_space<smem>>, %arg2: memref<50x128xf32, #tpu.memory_space<any>>, %arg3: memref<128x128xf32, #tpu.memory_space<vmem>>, %arg4: memref<1x128xf32, #tpu.memory_space<vmem>>, %arg5: memref<128x128xf32, #tpu.memory_space<vmem>>, %arg6: memref<1x128xf32, #tpu.memory_space<vmem>>, %arg7: memref<8x128xf32, #tpu.memory_space<vmem>>, %arg8: memref<8x8x128xf32, #tpu.memory_space<vmem>>, %arg9: memref<8x8x!tpu.dma_semaphore, #tpu.memory_space<semaphore_mem>>) attributes {dimension_semantics = [#tpu.dimension_semantics<parallel>], iteration_bounds = array<i64: 1>, scalar_prefetch = 1 : i64, scratch_operands = 2 : i64, tpu.core_type = #tpu.core_type<tc>, window_params = [{}, {pipeline_mode = #tpu.pipeline_mode<synchronous>, transform_indices = @transform_1, window_bounds = array<i64: 128, 128>}, {pipeline_mode = #tpu.pipeline_mode<synchronous>, transform_indices = @transform_2, window_bounds = array<i64: 1, 128>}, {pipeline_mode = #tpu.pipeline_mode<synchronous>, transform_indices = @transform_3, window_bounds = array<i64: 128, 128>}, {pipeline_mode = #tpu.pipeline_mode<synchronous>, transform_indices = @transform_4, window_bounds = array<i64: 1, 128>}, {transform_indices = @transform_5, window_bounds = array<i64: 8, 128>}]} {
    %c8_i32 = arith.constant 8 : i32
    %0 = arith.muli %arg0, %c8_i32 : i32
    %c0_i32 = arith.constant 0 : i32
    %1 = arith.addi %0, %c0_i32 : i32
    %2 = arith.index_cast %1 : i32 to index
    %c0 = arith.constant 0 : index
    %3 = memref.load %arg1[%2, %c0] : memref<8x8xi32, #tpu.memory_space<smem>>
    %c0_i32_0 = arith.constant 0 : i32
    %c0_i32_1 = arith.constant 0 : i32
    %c0_i32_2 = arith.constant 0 : i32
    %c0_i32_3 = arith.constant 0 : i32
    %c0_i32_4 = arith.constant 0 : i32
    %4 = tpu.memref_slice %arg2[%3, %c0_i32_4] : memref<50x128xf32, #tpu.memory_space<any>> -> memref<1x128xf32, #tpu.memory_space<any>>
    %5 = tpu.memref_squeeze %4 : memref<1x128xf32, #tpu.memory_space<any>> -> memref<128xf32, #tpu.memory_space<any>>
    %c0_i32_5 = arith.constant 0 : i32
    %6 = tpu.memref_slice %arg8[%c0_i32_0, %c0_i32_1, %c0_i32_5] : memref<8x8x128xf32, #tpu.memory_space<vmem>> -> memref<1x1x128xf32, #tpu.memory_space<vmem>>
    %7 = tpu.memref_squeeze %6 : memref<1x1x128xf32, #tpu.memory_space<vmem>> -> memref<128xf32, #tpu.memory_space<vmem>>
    %8 = tpu.memref_slice %arg9[%c0_i32_2, %c0_i32_3] : memref<8x8x!tpu.dma_semaphore, #tpu.memory_space<semaphore_mem>> -> memref<1x1x!tpu.dma_semaphore, #tpu.memory_space<semaphore_mem>>
    %9 = tpu.memref_squeeze %8 : memref<1x1x!tpu.dma_semaphore, #tpu.memory_space<semaphore_mem>> -> memref<!tpu.dma_semaphore, #tpu.memory_space<semaphore_mem>>
    tpu.enqueue_dma source(%5 : memref<128xf32, #tpu.memory_space<any>>) target(%7 : memref<128xf32, #tpu.memory_space<vmem>>) target_semaphore(%9 : memref<!tpu.dma_semaphore, #tpu.memory_space<semaphore_mem>>)
    %c8_i32_6 = arith.constant 8 : i32
    %10 = arith.muli %arg0, %c8_i32_6 : i32
    %c0_i32_7 = arith.constant 0 : i32
    %11 = arith.addi %10, %c0_i32_7 : i32
    %12 = arith.index_cast %11 : i32 to index
    %c1 = arith.constant 1 : index
    %13 = memref.load %arg1[%12, %c1] : memref<8x8xi32, #tpu.memory_space<smem>>
    %c0_i32_8 = arith.constant 0 : i32
    %c1_i32 = arith.constant 1 : i32
    %c0_i32_9 = arith.constant 0 : i32
    %c1_i32_10 = arith.constant 1 : i32
    %c0_i32_11 = arith.constant 0 : i32
    %14 = tpu.memref_slice %arg2[%13, %c0_i32_11] : memref<50x128xf32, #tpu.memory_space<any>> -> memref<1x128xf32, #tpu.memory_space<any>>
    %15 = tpu.memref_squeeze %14 : memref<1x128xf32, #tpu.memory_space<any>> -> memref<128xf32, #tpu.memory_space<any>>
    %c0_i32_12 = arith.constant 0 : i32
    %16 = tpu.memref_slice %arg8[%c0_i32_8, %c1_i32, %c0_i32_12] : memref<8x8x128xf32, #tpu.memory_space<vmem>> -> memref<1x1x128xf32, #tpu.memory_space<vmem>>
    %17 = tpu.memref_squeeze %16 : memref<1x1x128xf32, #tpu.memory_space<vmem>> -> memref<128xf32, #tpu.memory_space<vmem>>
    %18 = tpu.memref_slice %arg9[%c0_i32_9, %c1_i32_10] : memref<8x8x!tpu.dma_semaphore, #tpu.memory_space<semaphore_mem>> -> memref<1x1x!tpu.dma_semaphore, #tpu.memory_space<semaphore_mem>>
    %19 = tpu.memref_squeeze %18 : memref<1x1x!tpu.dma_semaphore, #tpu.memory_space<semaphore_mem>> -> memref<!tpu.dma_semaphore, #tpu.memory_space<semaphore_mem>>
    tpu.enqueue_dma source(%15 : memref<128xf32, #tpu.memory_space<any>>) target(%17 : memref<128xf32, #tpu.memory_space<vmem>>) target_semaphore(%19 : memref<!tpu.dma_semaphore, #tpu.memory_space<semaphore_mem>>)
    %c8_i32_13 = arith.constant 8 : i32
    %20 = arith.muli %arg0, %c8_i32_13 : i32
    %c0_i32_14 = arith.constant 0 : i32
    %21 = arith.addi %20, %c0_i32_14 : i32
    %22 = arith.index_cast %21 : i32 to index
    %c2 = arith.constant 2 : index
    %23 = memref.load %arg1[%22, %c2] : memref<8x8xi32, #tpu.memory_space<smem>>
    %c0_i32_15 = arith.constant 0 : i32
    %c2_i32 = arith.constant 2 : i32
    %c0_i32_16 = arith.constant 0 : i32
    %c2_i32_17 = arith.constant 2 : i32
    %c0_i32_18 = arith.constant 0 : i32
    %24 = tpu.memref_slice %arg2[%23, %c0_i32_18] : memref<50x128xf32, #tpu.memory_space<any>> -> memref<1x128xf32, #tpu.memory_space<any>>
    %25 = tpu.memref_squeeze %24 : memref<1x128xf32, #tpu.memory_space<any>> -> memref<128xf32, #tpu.memory_space<any>>
    %c0_i32_19 = arith.constant 0 : i32
    %26 = tpu.memref_slice %arg8[%c0_i32_15, %c2_i32, %c0_i32_19] : memref<8x8x128xf32, #tpu.memory_space<vmem>> -> memref<1x1x128xf32, #tpu.memory_space<vmem>>
    %27 = tpu.memref_squeeze %26 : memref<1x1x128xf32, #tpu.memory_space<vmem>> -> memref<128xf32, #tpu.memory_space<vmem>>
    %28 = tpu.memref_slice %arg9[%c0_i32_16, %c2_i32_17] : memref<8x8x!tpu.dma_semaphore, #tpu.memory_space<semaphore_mem>> -> memref<1x1x!tpu.dma_semaphore, #tpu.memory_space<semaphore_mem>>
    %29 = tpu.memref_squeeze %28 : memref<1x1x!tpu.dma_semaphore, #tpu.memory_space<semaphore_mem>> -> memref<!tpu.dma_semaphore, #tpu.memory_space<semaphore_mem>>
    tpu.enqueue_dma source(%25 : memref<128xf32, #tpu.memory_space<any>>) target(%27 : memref<128xf32, #tpu.memory_space<vmem>>) target_semaphore(%29 : memref<!tpu.dma_semaphore, #tpu.memory_space<semaphore_mem>>)
    %c8_i32_20 = arith.constant 8 : i32
    %30 = arith.muli %arg0, %c8_i32_20 : i32
    %c0_i32_21 = arith.constant 0 : i32
    %31 = arith.addi %30, %c0_i32_21 : i32
    %32 = arith.index_cast %31 : i32 to index
    %c3 = arith.constant 3 : index
    %33 = memref.load %arg1[%32, %c3] : memref<8x8xi32, #tpu.memory_space<smem>>
    %c0_i32_22 = arith.constant 0 : i32
    %c3_i32 = arith.constant 3 : i32
    %c0_i32_23 = arith.constant 0 : i32
    %c3_i32_24 = arith.constant 3 : i32
    %c0_i32_25 = arith.constant 0 : i32
    %34 = tpu.memref_slice %arg2[%33, %c0_i32_25] : memref<50x128xf32, #tpu.memory_space<any>> -> memref<1x128xf32, #tpu.memory_space<any>>
    %35 = tpu.memref_squeeze %34 : memref<1x128xf32, #tpu.memory_space<any>> -> memref<128xf32, #tpu.memory_space<any>>
    %c0_i32_26 = arith.constant 0 : i32
    %36 = tpu.memref_slice %arg8[%c0_i32_22, %c3_i32, %c0_i32_26] : memref<8x8x128xf32, #tpu.memory_space<vmem>> -> memref<1x1x128xf32, #tpu.memory_space<vmem>>
    %37 = tpu.memref_squeeze %36 : memref<1x1x128xf32, #tpu.memory_space<vmem>> -> memref<128xf32, #tpu.memory_space<vmem>>
    %38 = tpu.memref_slice %arg9[%c0_i32_23, %c3_i32_24] : memref<8x8x!tpu.dma_semaphore, #tpu.memory_space<semaphore_mem>> -> memref<1x1x!tpu.dma_semaphore, #tpu.memory_space<semaphore_mem>>
    %39 = tpu.memref_squeeze %38 : memref<1x1x!tpu.dma_semaphore, #tpu.memory_space<semaphore_mem>> -> memref<!tpu.dma_semaphore, #tpu.memory_space<semaphore_mem>>
    tpu.enqueue_dma source(%35 : memref<128xf32, #tpu.memory_space<any>>) target(%37 : memref<128xf32, #tpu.memory_space<vmem>>) target_semaphore(%39 : memref<!tpu.dma_semaphore, #tpu.memory_space<semaphore_mem>>)
    %c8_i32_27 = arith.constant 8 : i32
    %40 = arith.muli %arg0, %c8_i32_27 : i32
    %c0_i32_28 = arith.constant 0 : i32
    %41 = arith.addi %40, %c0_i32_28 : i32
    %42 = arith.index_cast %41 : i32 to index
    %c4 = arith.constant 4 : index
    %43 = memref.load %arg1[%42, %c4] : memref<8x8xi32, #tpu.memory_space<smem>>
    %c0_i32_29 = arith.constant 0 : i32
    %c4_i32 = arith.constant 4 : i32
    %c0_i32_30 = arith.constant 0 : i32
    %c4_i32_31 = arith.constant 4 : i32
    %c0_i32_32 = arith.constant 0 : i32
    %44 = tpu.memref_slice %arg2[%43, %c0_i32_32] : memref<50x128xf32, #tpu.memory_space<any>> -> memref<1x128xf32, #tpu.memory_space<any>>
    %45 = tpu.memref_squeeze %44 : memref<1x128xf32, #tpu.memory_space<any>> -> memref<128xf32, #tpu.memory_space<any>>
    %c0_i32_33 = arith.constant 0 : i32
    %46 = tpu.memref_slice %arg8[%c0_i32_29, %c4_i32, %c0_i32_33] : memref<8x8x128xf32, #tpu.memory_space<vmem>> -> memref<1x1x128xf32, #tpu.memory_space<vmem>>
    %47 = tpu.memref_squeeze %46 : memref<1x1x128xf32, #tpu.memory_space<vmem>> -> memref<128xf32, #tpu.memory_space<vmem>>
    %48 = tpu.memref_slice %arg9[%c0_i32_30, %c4_i32_31] : memref<8x8x!tpu.dma_semaphore, #tpu.memory_space<semaphore_mem>> -> memref<1x1x!tpu.dma_semaphore, #tpu.memory_space<semaphore_mem>>
    %49 = tpu.memref_squeeze %48 : memref<1x1x!tpu.dma_semaphore, #tpu.memory_space<semaphore_mem>> -> memref<!tpu.dma_semaphore, #tpu.memory_space<semaphore_mem>>
    tpu.enqueue_dma source(%45 : memref<128xf32, #tpu.memory_space<any>>) target(%47 : memref<128xf32, #tpu.memory_space<vmem>>) target_semaphore(%49 : memref<!tpu.dma_semaphore, #tpu.memory_space<semaphore_mem>>)
    %c8_i32_34 = arith.constant 8 : i32
    %50 = arith.muli %arg0, %c8_i32_34 : i32
    %c0_i32_35 = arith.constant 0 : i32
    %51 = arith.addi %50, %c0_i32_35 : i32
    %52 = arith.index_cast %51 : i32 to index
    %c5 = arith.constant 5 : index
    %53 = memref.load %arg1[%52, %c5] : memref<8x8xi32, #tpu.memory_space<smem>>
    %c0_i32_36 = arith.constant 0 : i32
    %c5_i32 = arith.constant 5 : i32
    %c0_i32_37 = arith.constant 0 : i32
    %c5_i32_38 = arith.constant 5 : i32
    %c0_i32_39 = arith.constant 0 : i32
    %54 = tpu.memref_slice %arg2[%53, %c0_i32_39] : memref<50x128xf32, #tpu.memory_space<any>> -> memref<1x128xf32, #tpu.memory_space<any>>
    %55 = tpu.memref_squeeze %54 : memref<1x128xf32, #tpu.memory_space<any>> -> memref<128xf32, #tpu.memory_space<any>>
    %c0_i32_40 = arith.constant 0 : i32
    %56 = tpu.memref_slice %arg8[%c0_i32_36, %c5_i32, %c0_i32_40] : memref<8x8x128xf32, #tpu.memory_space<vmem>> -> memref<1x1x128xf32, #tpu.memory_space<vmem>>
    %57 = tpu.memref_squeeze %56 : memref<1x1x128xf32, #tpu.memory_space<vmem>> -> memref<128xf32, #tpu.memory_space<vmem>>
    %58 = tpu.memref_slice %arg9[%c0_i32_37, %c5_i32_38] : memref<8x8x!tpu.dma_semaphore, #tpu.memory_space<semaphore_mem>> -> memref<1x1x!tpu.dma_semaphore, #tpu.memory_space<semaphore_mem>>
    %59 = tpu.memref_squeeze %58 : memref<1x1x!tpu.dma_semaphore, #tpu.memory_space<semaphore_mem>> -> memref<!tpu.dma_semaphore, #tpu.memory_space<semaphore_mem>>
    tpu.enqueue_dma source(%55 : memref<128xf32, #tpu.memory_space<any>>) target(%57 : memref<128xf32, #tpu.memory_space<vmem>>) target_semaphore(%59 : memref<!tpu.dma_semaphore, #tpu.memory_space<semaphore_mem>>)
    %c8_i32_41 = arith.constant 8 : i32
    %60 = arith.muli %arg0, %c8_i32_41 : i32
    %c0_i32_42 = arith.constant 0 : i32
    %61 = arith.addi %60, %c0_i32_42 : i32
    %62 = arith.index_cast %61 : i32 to index
    %c6 = arith.constant 6 : index
    %63 = memref.load %arg1[%62, %c6] : memref<8x8xi32, #tpu.memory_space<smem>>
    %c0_i32_43 = arith.constant 0 : i32
    %c6_i32 = arith.constant 6 : i32
    %c0_i32_44 = arith.constant 0 : i32
    %c6_i32_45 = arith.constant 6 : i32
    %c0_i32_46 = arith.constant 0 : i32
    %64 = tpu.memref_slice %arg2[%63, %c0_i32_46] : memref<50x128xf32, #tpu.memory_space<any>> -> memref<1x128xf32, #tpu.memory_space<any>>
    %65 = tpu.memref_squeeze %64 : memref<1x128xf32, #tpu.memory_space<any>> -> memref<128xf32, #tpu.memory_space<any>>
    %c0_i32_47 = arith.constant 0 : i32
    %66 = tpu.memref_slice %arg8[%c0_i32_43, %c6_i32, %c0_i32_47] : memref<8x8x128xf32, #tpu.memory_space<vmem>> -> memref<1x1x128xf32, #tpu.memory_space<vmem>>
    %67 = tpu.memref_squeeze %66 : memref<1x1x128xf32, #tpu.memory_space<vmem>> -> memref<128xf32, #tpu.memory_space<vmem>>
    %68 = tpu.memref_slice %arg9[%c0_i32_44, %c6_i32_45] : memref<8x8x!tpu.dma_semaphore, #tpu.memory_space<semaphore_mem>> -> memref<1x1x!tpu.dma_semaphore, #tpu.memory_space<semaphore_mem>>
    %69 = tpu.memref_squeeze %68 : memref<1x1x!tpu.dma_semaphore, #tpu.memory_space<semaphore_mem>> -> memref<!tpu.dma_semaphore, #tpu.memory_space<semaphore_mem>>
    tpu.enqueue_dma source(%65 : memref<128xf32, #tpu.memory_space<any>>) target(%67 : memref<128xf32, #tpu.memory_space<vmem>>) target_semaphore(%69 : memref<!tpu.dma_semaphore, #tpu.memory_space<semaphore_mem>>)
    %c8_i32_48 = arith.constant 8 : i32
    %70 = arith.muli %arg0, %c8_i32_48 : i32
    %c0_i32_49 = arith.constant 0 : i32
    %71 = arith.addi %70, %c0_i32_49 : i32
    %72 = arith.index_cast %71 : i32 to index
    %c7 = arith.constant 7 : index
    %73 = memref.load %arg1[%72, %c7] : memref<8x8xi32, #tpu.memory_space<smem>>
    %c0_i32_50 = arith.constant 0 : i32
    %c7_i32 = arith.constant 7 : i32
    %c0_i32_51 = arith.constant 0 : i32
    %c7_i32_52 = arith.constant 7 : i32
    %c0_i32_53 = arith.constant 0 : i32
    %74 = tpu.memref_slice %arg2[%73, %c0_i32_53] : memref<50x128xf32, #tpu.memory_space<any>> -> memref<1x128xf32, #tpu.memory_space<any>>
    %75 = tpu.memref_squeeze %74 : memref<1x128xf32, #tpu.memory_space<any>> -> memref<128xf32, #tpu.memory_space<any>>
    %c0_i32_54 = arith.constant 0 : i32
    %76 = tpu.memref_slice %arg8[%c0_i32_50, %c7_i32, %c0_i32_54] : memref<8x8x128xf32, #tpu.memory_space<vmem>> -> memref<1x1x128xf32, #tpu.memory_space<vmem>>
    %77 = tpu.memref_squeeze %76 : memref<1x1x128xf32, #tpu.memory_space<vmem>> -> memref<128xf32, #tpu.memory_space<vmem>>
    %78 = tpu.memref_slice %arg9[%c0_i32_51, %c7_i32_52] : memref<8x8x!tpu.dma_semaphore, #tpu.memory_space<semaphore_mem>> -> memref<1x1x!tpu.dma_semaphore, #tpu.memory_space<semaphore_mem>>
    %79 = tpu.memref_squeeze %78 : memref<1x1x!tpu.dma_semaphore, #tpu.memory_space<semaphore_mem>> -> memref<!tpu.dma_semaphore, #tpu.memory_space<semaphore_mem>>
    tpu.enqueue_dma source(%75 : memref<128xf32, #tpu.memory_space<any>>) target(%77 : memref<128xf32, #tpu.memory_space<vmem>>) target_semaphore(%79 : memref<!tpu.dma_semaphore, #tpu.memory_space<semaphore_mem>>)
    %c8_i32_55 = arith.constant 8 : i32
    %80 = arith.muli %arg0, %c8_i32_55 : i32
    %c1_i32_56 = arith.constant 1 : i32
    %81 = arith.addi %80, %c1_i32_56 : i32
    %82 = arith.index_cast %81 : i32 to index
    %c0_57 = arith.constant 0 : index
    %83 = memref.load %arg1[%82, %c0_57] : memref<8x8xi32, #tpu.memory_space<smem>>
    %c1_i32_58 = arith.constant 1 : i32
    %c0_i32_59 = arith.constant 0 : i32
    %c1_i32_60 = arith.constant 1 : i32
    %c0_i32_61 = arith.constant 0 : i32
    %c0_i32_62 = arith.constant 0 : i32
    %84 = tpu.memref_slice %arg2[%83, %c0_i32_62] : memref<50x128xf32, #tpu.memory_space<any>> -> memref<1x128xf32, #tpu.memory_space<any>>
    %85 = tpu.memref_squeeze %84 : memref<1x128xf32, #tpu.memory_space<any>> -> memref<128xf32, #tpu.memory_space<any>>
    %c0_i32_63 = arith.constant 0 : i32
    %86 = tpu.memref_slice %arg8[%c1_i32_58, %c0_i32_59, %c0_i32_63] : memref<8x8x128xf32, #tpu.memory_space<vmem>> -> memref<1x1x128xf32, #tpu.memory_space<vmem>>
    %87 = tpu.memref_squeeze %86 : memref<1x1x128xf32, #tpu.memory_space<vmem>> -> memref<128xf32, #tpu.memory_space<vmem>>
    %88 = tpu.memref_slice %arg9[%c1_i32_60, %c0_i32_61] : memref<8x8x!tpu.dma_semaphore, #tpu.memory_space<semaphore_mem>> -> memref<1x1x!tpu.dma_semaphore, #tpu.memory_space<semaphore_mem>>
    %89 = tpu.memref_squeeze %88 : memref<1x1x!tpu.dma_semaphore, #tpu.memory_space<semaphore_mem>> -> memref<!tpu.dma_semaphore, #tpu.memory_space<semaphore_mem>>
    tpu.enqueue_dma source(%85 : memref<128xf32, #tpu.memory_space<any>>) target(%87 : memref<128xf32, #tpu.memory_space<vmem>>) target_semaphore(%89 : memref<!tpu.dma_semaphore, #tpu.memory_space<semaphore_mem>>)
    %c8_i32_64 = arith.constant 8 : i32
    %90 = arith.muli %arg0, %c8_i32_64 : i32
    %c1_i32_65 = arith.constant 1 : i32
    %91 = arith.addi %90, %c1_i32_65 : i32
    %92 = arith.index_cast %91 : i32 to index
    %c1_66 = arith.constant 1 : index
    %93 = memref.load %arg1[%92, %c1_66] : memref<8x8xi32, #tpu.memory_space<smem>>
    %c1_i32_67 = arith.constant 1 : i32
    %c1_i32_68 = arith.constant 1 : i32
    %c1_i32_69 = arith.constant 1 : i32
    %c1_i32_70 = arith.constant 1 : i32
    %c0_i32_71 = arith.constant 0 : i32
    %94 = tpu.memref_slice %arg2[%93, %c0_i32_71] : memref<50x128xf32, #tpu.memory_space<any>> -> memref<1x128xf32, #tpu.memory_space<any>>
    %95 = tpu.memref_squeeze %94 : memref<1x128xf32, #tpu.memory_space<any>> -> memref<128xf32, #tpu.memory_space<any>>
    %c0_i32_72 = arith.constant 0 : i32
    %96 = tpu.memref_slice %arg8[%c1_i32_67, %c1_i32_68, %c0_i32_72] : memref<8x8x128xf32, #tpu.memory_space<vmem>> -> memref<1x1x128xf32, #tpu.memory_space<vmem>>
    %97 = tpu.memref_squeeze %96 : memref<1x1x128xf32, #tpu.memory_space<vmem>> -> memref<128xf32, #tpu.memory_space<vmem>>
    %98 = tpu.memref_slice %arg9[%c1_i32_69, %c1_i32_70] : memref<8x8x!tpu.dma_semaphore, #tpu.memory_space<semaphore_mem>> -> memref<1x1x!tpu.dma_semaphore, #tpu.memory_space<semaphore_mem>>
    %99 = tpu.memref_squeeze %98 : memref<1x1x!tpu.dma_semaphore, #tpu.memory_space<semaphore_mem>> -> memref<!tpu.dma_semaphore, #tpu.memory_space<semaphore_mem>>
    tpu.enqueue_dma source(%95 : memref<128xf32, #tpu.memory_space<any>>) target(%97 : memref<128xf32, #tpu.memory_space<vmem>>) target_semaphore(%99 : memref<!tpu.dma_semaphore, #tpu.memory_space<semaphore_mem>>)
    %c8_i32_73 = arith.constant 8 : i32
    %100 = arith.muli %arg0, %c8_i32_73 : i32
    %c1_i32_74 = arith.constant 1 : i32
    %101 = arith.addi %100, %c1_i32_74 : i32
    %102 = arith.index_cast %101 : i32 to index
    %c2_75 = arith.constant 2 : index
    %103 = memref.load %arg1[%102, %c2_75] : memref<8x8xi32, #tpu.memory_space<smem>>
    %c1_i32_76 = arith.constant 1 : i32
    %c2_i32_77 = arith.constant 2 : i32
    %c1_i32_78 = arith.constant 1 : i32
    %c2_i32_79 = arith.constant 2 : i32
    %c0_i32_80 = arith.constant 0 : i32
    %104 = tpu.memref_slice %arg2[%103, %c0_i32_80] : memref<50x128xf32, #tpu.memory_space<any>> -> memref<1x128xf32, #tpu.memory_space<any>>
    %105 = tpu.memref_squeeze %104 : memref<1x128xf32, #tpu.memory_space<any>> -> memref<128xf32, #tpu.memory_space<any>>
    %c0_i32_81 = arith.constant 0 : i32
    %106 = tpu.memref_slice %arg8[%c1_i32_76, %c2_i32_77, %c0_i32_81] : memref<8x8x128xf32, #tpu.memory_space<vmem>> -> memref<1x1x128xf32, #tpu.memory_space<vmem>>
    %107 = tpu.memref_squeeze %106 : memref<1x1x128xf32, #tpu.memory_space<vmem>> -> memref<128xf32, #tpu.memory_space<vmem>>
    %108 = tpu.memref_slice %arg9[%c1_i32_78, %c2_i32_79] : memref<8x8x!tpu.dma_semaphore, #tpu.memory_space<semaphore_mem>> -> memref<1x1x!tpu.dma_semaphore, #tpu.memory_space<semaphore_mem>>
    %109 = tpu.memref_squeeze %108 : memref<1x1x!tpu.dma_semaphore, #tpu.memory_space<semaphore_mem>> -> memref<!tpu.dma_semaphore, #tpu.memory_space<semaphore_mem>>
    tpu.enqueue_dma source(%105 : memref<128xf32, #tpu.memory_space<any>>) target(%107 : memref<128xf32, #tpu.memory_space<vmem>>) target_semaphore(%109 : memref<!tpu.dma_semaphore, #tpu.memory_space<semaphore_mem>>)
    %c8_i32_82 = arith.constant 8 : i32
    %110 = arith.muli %arg0, %c8_i32_82 : i32
    %c1_i32_83 = arith.constant 1 : i32
    %111 = arith.addi %110, %c1_i32_83 : i32
    %112 = arith.index_cast %111 : i32 to index
    %c3_84 = arith.constant 3 : index
    %113 = memref.load %arg1[%112, %c3_84] : memref<8x8xi32, #tpu.memory_space<smem>>
    %c1_i32_85 = arith.constant 1 : i32
    %c3_i32_86 = arith.constant 3 : i32
    %c1_i32_87 = arith.constant 1 : i32
    %c3_i32_88 = arith.constant 3 : i32
    %c0_i32_89 = arith.constant 0 : i32
    %114 = tpu.memref_slice %arg2[%113, %c0_i32_89] : memref<50x128xf32, #tpu.memory_space<any>> -> memref<1x128xf32, #tpu.memory_space<any>>
    %115 = tpu.memref_squeeze %114 : memref<1x128xf32, #tpu.memory_space<any>> -> memref<128xf32, #tpu.memory_space<any>>
    %c0_i32_90 = arith.constant 0 : i32
    %116 = tpu.memref_slice %arg8[%c1_i32_85, %c3_i32_86, %c0_i32_90] : memref<8x8x128xf32, #tpu.memory_space<vmem>> -> memref<1x1x128xf32, #tpu.memory_space<vmem>>
    %117 = tpu.memref_squeeze %116 : memref<1x1x128xf32, #tpu.memory_space<vmem>> -> memref<128xf32, #tpu.memory_space<vmem>>
    %118 = tpu.memref_slice %arg9[%c1_i32_87, %c3_i32_88] : memref<8x8x!tpu.dma_semaphore, #tpu.memory_space<semaphore_mem>> -> memref<1x1x!tpu.dma_semaphore, #tpu.memory_space<semaphore_mem>>
    %119 = tpu.memref_squeeze %118 : memref<1x1x!tpu.dma_semaphore, #tpu.memory_space<semaphore_mem>> -> memref<!tpu.dma_semaphore, #tpu.memory_space<semaphore_mem>>
    tpu.enqueue_dma source(%115 : memref<128xf32, #tpu.memory_space<any>>) target(%117 : memref<128xf32, #tpu.memory_space<vmem>>) target_semaphore(%119 : memref<!tpu.dma_semaphore, #tpu.memory_space<semaphore_mem>>)
    %c8_i32_91 = arith.constant 8 : i32
    %120 = arith.muli %arg0, %c8_i32_91 : i32
    %c1_i32_92 = arith.constant 1 : i32
    %121 = arith.addi %120, %c1_i32_92 : i32
    %122 = arith.index_cast %121 : i32 to index
    %c4_93 = arith.constant 4 : index
    %123 = memref.load %arg1[%122, %c4_93] : memref<8x8xi32, #tpu.memory_space<smem>>
    %c1_i32_94 = arith.constant 1 : i32
    %c4_i32_95 = arith.constant 4 : i32
    %c1_i32_96 = arith.constant 1 : i32
    %c4_i32_97 = arith.constant 4 : i32
    %c0_i32_98 = arith.constant 0 : i32
    %124 = tpu.memref_slice %arg2[%123, %c0_i32_98] : memref<50x128xf32, #tpu.memory_space<any>> -> memref<1x128xf32, #tpu.memory_space<any>>
    %125 = tpu.memref_squeeze %124 : memref<1x128xf32, #tpu.memory_space<any>> -> memref<128xf32, #tpu.memory_space<any>>
    %c0_i32_99 = arith.constant 0 : i32
    %126 = tpu.memref_slice %arg8[%c1_i32_94, %c4_i32_95, %c0_i32_99] : memref<8x8x128xf32, #tpu.memory_space<vmem>> -> memref<1x1x128xf32, #tpu.memory_space<vmem>>
    %127 = tpu.memref_squeeze %126 : memref<1x1x128xf32, #tpu.memory_space<vmem>> -> memref<128xf32, #tpu.memory_space<vmem>>
    %128 = tpu.memref_slice %arg9[%c1_i32_96, %c4_i32_97] : memref<8x8x!tpu.dma_semaphore, #tpu.memory_space<semaphore_mem>> -> memref<1x1x!tpu.dma_semaphore, #tpu.memory_space<semaphore_mem>>
    %129 = tpu.memref_squeeze %128 : memref<1x1x!tpu.dma_semaphore, #tpu.memory_space<semaphore_mem>> -> memref<!tpu.dma_semaphore, #tpu.memory_space<semaphore_mem>>
    tpu.enqueue_dma source(%125 : memref<128xf32, #tpu.memory_space<any>>) target(%127 : memref<128xf32, #tpu.memory_space<vmem>>) target_semaphore(%129 : memref<!tpu.dma_semaphore, #tpu.memory_space<semaphore_mem>>)
    %c8_i32_100 = arith.constant 8 : i32
    %130 = arith.muli %arg0, %c8_i32_100 : i32
    %c1_i32_101 = arith.constant 1 : i32
    %131 = arith.addi %130, %c1_i32_101 : i32
    %132 = arith.index_cast %131 : i32 to index
    %c5_102 = arith.constant 5 : index
    %133 = memref.load %arg1[%132, %c5_102] : memref<8x8xi32, #tpu.memory_space<smem>>
    %c1_i32_103 = arith.constant 1 : i32
    %c5_i32_104 = arith.constant 5 : i32
    %c1_i32_105 = arith.constant 1 : i32
    %c5_i32_106 = arith.constant 5 : i32
    %c0_i32_107 = arith.constant 0 : i32
    %134 = tpu.memref_slice %arg2[%133, %c0_i32_107] : memref<50x128xf32, #tpu.memory_space<any>> -> memref<1x128xf32, #tpu.memory_space<any>>
    %135 = tpu.memref_squeeze %134 : memref<1x128xf32, #tpu.memory_space<any>> -> memref<128xf32, #tpu.memory_space<any>>
    %c0_i32_108 = arith.constant 0 : i32
    %136 = tpu.memref_slice %arg8[%c1_i32_103, %c5_i32_104, %c0_i32_108] : memref<8x8x128xf32, #tpu.memory_space<vmem>> -> memref<1x1x128xf32, #tpu.memory_space<vmem>>
    %137 = tpu.memref_squeeze %136 : memref<1x1x128xf32, #tpu.memory_space<vmem>> -> memref<128xf32, #tpu.memory_space<vmem>>
    %138 = tpu.memref_slice %arg9[%c1_i32_105, %c5_i32_106] : memref<8x8x!tpu.dma_semaphore, #tpu.memory_space<semaphore_mem>> -> memref<1x1x!tpu.dma_semaphore, #tpu.memory_space<semaphore_mem>>
    %139 = tpu.memref_squeeze %138 : memref<1x1x!tpu.dma_semaphore, #tpu.memory_space<semaphore_mem>> -> memref<!tpu.dma_semaphore, #tpu.memory_space<semaphore_mem>>
    tpu.enqueue_dma source(%135 : memref<128xf32, #tpu.memory_space<any>>) target(%137 : memref<128xf32, #tpu.memory_space<vmem>>) target_semaphore(%139 : memref<!tpu.dma_semaphore, #tpu.memory_space<semaphore_mem>>)
    %c8_i32_109 = arith.constant 8 : i32
    %140 = arith.muli %arg0, %c8_i32_109 : i32
    %c1_i32_110 = arith.constant 1 : i32
    %141 = arith.addi %140, %c1_i32_110 : i32
    %142 = arith.index_cast %141 : i32 to index
    %c6_111 = arith.constant 6 : index
    %143 = memref.load %arg1[%142, %c6_111] : memref<8x8xi32, #tpu.memory_space<smem>>
    %c1_i32_112 = arith.constant 1 : i32
    %c6_i32_113 = arith.constant 6 : i32
    %c1_i32_114 = arith.constant 1 : i32
    %c6_i32_115 = arith.constant 6 : i32
    %c0_i32_116 = arith.constant 0 : i32
    %144 = tpu.memref_slice %arg2[%143, %c0_i32_116] : memref<50x128xf32, #tpu.memory_space<any>> -> memref<1x128xf32, #tpu.memory_space<any>>
    %145 = tpu.memref_squeeze %144 : memref<1x128xf32, #tpu.memory_space<any>> -> memref<128xf32, #tpu.memory_space<any>>
    %c0_i32_117 = arith.constant 0 : i32
    %146 = tpu.memref_slice %arg8[%c1_i32_112, %c6_i32_113, %c0_i32_117] : memref<8x8x128xf32, #tpu.memory_space<vmem>> -> memref<1x1x128xf32, #tpu.memory_space<vmem>>
    %147 = tpu.memref_squeeze %146 : memref<1x1x128xf32, #tpu.memory_space<vmem>> -> memref<128xf32, #tpu.memory_space<vmem>>
    %148 = tpu.memref_slice %arg9[%c1_i32_114, %c6_i32_115] : memref<8x8x!tpu.dma_semaphore, #tpu.memory_space<semaphore_mem>> -> memref<1x1x!tpu.dma_semaphore, #tpu.memory_space<semaphore_mem>>
    %149 = tpu.memref_squeeze %148 : memref<1x1x!tpu.dma_semaphore, #tpu.memory_space<semaphore_mem>> -> memref<!tpu.dma_semaphore, #tpu.memory_space<semaphore_mem>>
    tpu.enqueue_dma source(%145 : memref<128xf32, #tpu.memory_space<any>>) target(%147 : memref<128xf32, #tpu.memory_space<vmem>>) target_semaphore(%149 : memref<!tpu.dma_semaphore, #tpu.memory_space<semaphore_mem>>)
    %c8_i32_118 = arith.constant 8 : i32
    %150 = arith.muli %arg0, %c8_i32_118 : i32
    %c1_i32_119 = arith.constant 1 : i32
    %151 = arith.addi %150, %c1_i32_119 : i32
    %152 = arith.index_cast %151 : i32 to index
    %c7_120 = arith.constant 7 : index
    %153 = memref.load %arg1[%152, %c7_120] : memref<8x8xi32, #tpu.memory_space<smem>>
    %c1_i32_121 = arith.constant 1 : i32
    %c7_i32_122 = arith.constant 7 : i32
    %c1_i32_123 = arith.constant 1 : i32
    %c7_i32_124 = arith.constant 7 : i32
    %c0_i32_125 = arith.constant 0 : i32
    %154 = tpu.memref_slice %arg2[%153, %c0_i32_125] : memref<50x128xf32, #tpu.memory_space<any>> -> memref<1x128xf32, #tpu.memory_space<any>>
    %155 = tpu.memref_squeeze %154 : memref<1x128xf32, #tpu.memory_space<any>> -> memref<128xf32, #tpu.memory_space<any>>
    %c0_i32_126 = arith.constant 0 : i32
    %156 = tpu.memref_slice %arg8[%c1_i32_121, %c7_i32_122, %c0_i32_126] : memref<8x8x128xf32, #tpu.memory_space<vmem>> -> memref<1x1x128xf32, #tpu.memory_space<vmem>>
    %157 = tpu.memref_squeeze %156 : memref<1x1x128xf32, #tpu.memory_space<vmem>> -> memref<128xf32, #tpu.memory_space<vmem>>
    %158 = tpu.memref_slice %arg9[%c1_i32_123, %c7_i32_124] : memref<8x8x!tpu.dma_semaphore, #tpu.memory_space<semaphore_mem>> -> memref<1x1x!tpu.dma_semaphore, #tpu.memory_space<semaphore_mem>>
    %159 = tpu.memref_squeeze %158 : memref<1x1x!tpu.dma_semaphore, #tpu.memory_space<semaphore_mem>> -> memref<!tpu.dma_semaphore, #tpu.memory_space<semaphore_mem>>
    tpu.enqueue_dma source(%155 : memref<128xf32, #tpu.memory_space<any>>) target(%157 : memref<128xf32, #tpu.memory_space<vmem>>) target_semaphore(%159 : memref<!tpu.dma_semaphore, #tpu.memory_space<semaphore_mem>>)
    %c8_i32_127 = arith.constant 8 : i32
    %160 = arith.muli %arg0, %c8_i32_127 : i32
    %c2_i32_128 = arith.constant 2 : i32
    %161 = arith.addi %160, %c2_i32_128 : i32
    %162 = arith.index_cast %161 : i32 to index
    %c0_129 = arith.constant 0 : index
    %163 = memref.load %arg1[%162, %c0_129] : memref<8x8xi32, #tpu.memory_space<smem>>
    %c2_i32_130 = arith.constant 2 : i32
    %c0_i32_131 = arith.constant 0 : i32
    %c2_i32_132 = arith.constant 2 : i32
    %c0_i32_133 = arith.constant 0 : i32
    %c0_i32_134 = arith.constant 0 : i32
    %164 = tpu.memref_slice %arg2[%163, %c0_i32_134] : memref<50x128xf32, #tpu.memory_space<any>> -> memref<1x128xf32, #tpu.memory_space<any>>
    %165 = tpu.memref_squeeze %164 : memref<1x128xf32, #tpu.memory_space<any>> -> memref<128xf32, #tpu.memory_space<any>>
    %c0_i32_135 = arith.constant 0 : i32
    %166 = tpu.memref_slice %arg8[%c2_i32_130, %c0_i32_131, %c0_i32_135] : memref<8x8x128xf32, #tpu.memory_space<vmem>> -> memref<1x1x128xf32, #tpu.memory_space<vmem>>
    %167 = tpu.memref_squeeze %166 : memref<1x1x128xf32, #tpu.memory_space<vmem>> -> memref<128xf32, #tpu.memory_space<vmem>>
    %168 = tpu.memref_slice %arg9[%c2_i32_132, %c0_i32_133] : memref<8x8x!tpu.dma_semaphore, #tpu.memory_space<semaphore_mem>> -> memref<1x1x!tpu.dma_semaphore, #tpu.memory_space<semaphore_mem>>
    %169 = tpu.memref_squeeze %168 : memref<1x1x!tpu.dma_semaphore, #tpu.memory_space<semaphore_mem>> -> memref<!tpu.dma_semaphore, #tpu.memory_space<semaphore_mem>>
    tpu.enqueue_dma source(%165 : memref<128xf32, #tpu.memory_space<any>>) target(%167 : memref<128xf32, #tpu.memory_space<vmem>>) target_semaphore(%169 : memref<!tpu.dma_semaphore, #tpu.memory_space<semaphore_mem>>)
    %c8_i32_136 = arith.constant 8 : i32
    %170 = arith.muli %arg0, %c8_i32_136 : i32
    %c2_i32_137 = arith.constant 2 : i32
    %171 = arith.addi %170, %c2_i32_137 : i32
    %172 = arith.index_cast %171 : i32 to index
    %c1_138 = arith.constant 1 : index
    %173 = memref.load %arg1[%172, %c1_138] : memref<8x8xi32, #tpu.memory_space<smem>>
    %c2_i32_139 = arith.constant 2 : i32
    %c1_i32_140 = arith.constant 1 : i32
    %c2_i32_141 = arith.constant 2 : i32
    %c1_i32_142 = arith.constant 1 : i32
    %c0_i32_143 = arith.constant 0 : i32
    %174 = tpu.memref_slice %arg2[%173, %c0_i32_143] : memref<50x128xf32, #tpu.memory_space<any>> -> memref<1x128xf32, #tpu.memory_space<any>>
    %175 = tpu.memref_squeeze %174 : memref<1x128xf32, #tpu.memory_space<any>> -> memref<128xf32, #tpu.memory_space<any>>
    %c0_i32_144 = arith.constant 0 : i32
    %176 = tpu.memref_slice %arg8[%c2_i32_139, %c1_i32_140, %c0_i32_144] : memref<8x8x128xf32, #tpu.memory_space<vmem>> -> memref<1x1x128xf32, #tpu.memory_space<vmem>>
    %177 = tpu.memref_squeeze %176 : memref<1x1x128xf32, #tpu.memory_space<vmem>> -> memref<128xf32, #tpu.memory_space<vmem>>
    %178 = tpu.memref_slice %arg9[%c2_i32_141, %c1_i32_142] : memref<8x8x!tpu.dma_semaphore, #tpu.memory_space<semaphore_mem>> -> memref<1x1x!tpu.dma_semaphore, #tpu.memory_space<semaphore_mem>>
    %179 = tpu.memref_squeeze %178 : memref<1x1x!tpu.dma_semaphore, #tpu.memory_space<semaphore_mem>> -> memref<!tpu.dma_semaphore, #tpu.memory_space<semaphore_mem>>
    tpu.enqueue_dma source(%175 : memref<128xf32, #tpu.memory_space<any>>) target(%177 : memref<128xf32, #tpu.memory_space<vmem>>) target_semaphore(%179 : memref<!tpu.dma_semaphore, #tpu.memory_space<semaphore_mem>>)
    %c8_i32_145 = arith.constant 8 : i32
    %180 = arith.muli %arg0, %c8_i32_145 : i32
    %c2_i32_146 = arith.constant 2 : i32
    %181 = arith.addi %180, %c2_i32_146 : i32
    %182 = arith.index_cast %181 : i32 to index
    %c2_147 = arith.constant 2 : index
    %183 = memref.load %arg1[%182, %c2_147] : memref<8x8xi32, #tpu.memory_space<smem>>
    %c2_i32_148 = arith.constant 2 : i32
    %c2_i32_149 = arith.constant 2 : i32
    %c2_i32_150 = arith.constant 2 : i32
    %c2_i32_151 = arith.constant 2 : i32
    %c0_i32_152 = arith.constant 0 : i32
    %184 = tpu.memref_slice %arg2[%183, %c0_i32_152] : memref<50x128xf32, #tpu.memory_space<any>> -> memref<1x128xf32, #tpu.memory_space<any>>
    %185 = tpu.memref_squeeze %184 : memref<1x128xf32, #tpu.memory_space<any>> -> memref<128xf32, #tpu.memory_space<any>>
    %c0_i32_153 = arith.constant 0 : i32
    %186 = tpu.memref_slice %arg8[%c2_i32_148, %c2_i32_149, %c0_i32_153] : memref<8x8x128xf32, #tpu.memory_space<vmem>> -> memref<1x1x128xf32, #tpu.memory_space<vmem>>
    %187 = tpu.memref_squeeze %186 : memref<1x1x128xf32, #tpu.memory_space<vmem>> -> memref<128xf32, #tpu.memory_space<vmem>>
    %188 = tpu.memref_slice %arg9[%c2_i32_150, %c2_i32_151] : memref<8x8x!tpu.dma_semaphore, #tpu.memory_space<semaphore_mem>> -> memref<1x1x!tpu.dma_semaphore, #tpu.memory_space<semaphore_mem>>
    %189 = tpu.memref_squeeze %188 : memref<1x1x!tpu.dma_semaphore, #tpu.memory_space<semaphore_mem>> -> memref<!tpu.dma_semaphore, #tpu.memory_space<semaphore_mem>>
    tpu.enqueue_dma source(%185 : memref<128xf32, #tpu.memory_space<any>>) target(%187 : memref<128xf32, #tpu.memory_space<vmem>>) target_semaphore(%189 : memref<!tpu.dma_semaphore, #tpu.memory_space<semaphore_mem>>)
    %c8_i32_154 = arith.constant 8 : i32
    %190 = arith.muli %arg0, %c8_i32_154 : i32
    %c2_i32_155 = arith.constant 2 : i32
    %191 = arith.addi %190, %c2_i32_155 : i32
    %192 = arith.index_cast %191 : i32 to index
    %c3_156 = arith.constant 3 : index
    %193 = memref.load %arg1[%192, %c3_156] : memref<8x8xi32, #tpu.memory_space<smem>>
    %c2_i32_157 = arith.constant 2 : i32
    %c3_i32_158 = arith.constant 3 : i32
    %c2_i32_159 = arith.constant 2 : i32
    %c3_i32_160 = arith.constant 3 : i32
    %c0_i32_161 = arith.constant 0 : i32
    %194 = tpu.memref_slice %arg2[%193, %c0_i32_161] : memref<50x128xf32, #tpu.memory_space<any>> -> memref<1x128xf32, #tpu.memory_space<any>>
    %195 = tpu.memref_squeeze %194 : memref<1x128xf32, #tpu.memory_space<any>> -> memref<128xf32, #tpu.memory_space<any>>
    %c0_i32_162 = arith.constant 0 : i32
    %196 = tpu.memref_slice %arg8[%c2_i32_157, %c3_i32_158, %c0_i32_162] : memref<8x8x128xf32, #tpu.memory_space<vmem>> -> memref<1x1x128xf32, #tpu.memory_space<vmem>>
    %197 = tpu.memref_squeeze %196 : memref<1x1x128xf32, #tpu.memory_space<vmem>> -> memref<128xf32, #tpu.memory_space<vmem>>
    %198 = tpu.memref_slice %arg9[%c2_i32_159, %c3_i32_160] : memref<8x8x!tpu.dma_semaphore, #tpu.memory_space<semaphore_mem>> -> memref<1x1x!tpu.dma_semaphore, #tpu.memory_space<semaphore_mem>>
    %199 = tpu.memref_squeeze %198 : memref<1x1x!tpu.dma_semaphore, #tpu.memory_space<semaphore_mem>> -> memref<!tpu.dma_semaphore, #tpu.memory_space<semaphore_mem>>
    tpu.enqueue_dma source(%195 : memref<128xf32, #tpu.memory_space<any>>) target(%197 : memref<128xf32, #tpu.memory_space<vmem>>) target_semaphore(%199 : memref<!tpu.dma_semaphore, #tpu.memory_space<semaphore_mem>>)
    %c8_i32_163 = arith.constant 8 : i32
    %200 = arith.muli %arg0, %c8_i32_163 : i32
    %c2_i32_164 = arith.constant 2 : i32
    %201 = arith.addi %200, %c2_i32_164 : i32
    %202 = arith.index_cast %201 : i32 to index
    %c4_165 = arith.constant 4 : index
    %203 = memref.load %arg1[%202, %c4_165] : memref<8x8xi32, #tpu.memory_space<smem>>
    %c2_i32_166 = arith.constant 2 : i32
    %c4_i32_167 = arith.constant 4 : i32
    %c2_i32_168 = arith.constant 2 : i32
    %c4_i32_169 = arith.constant 4 : i32
    %c0_i32_170 = arith.constant 0 : i32
    %204 = tpu.memref_slice %arg2[%203, %c0_i32_170] : memref<50x128xf32, #tpu.memory_space<any>> -> memref<1x128xf32, #tpu.memory_space<any>>
    %205 = tpu.memref_squeeze %204 : memref<1x128xf32, #tpu.memory_space<any>> -> memref<128xf32, #tpu.memory_space<any>>
    %c0_i32_171 = arith.constant 0 : i32
    %206 = tpu.memref_slice %arg8[%c2_i32_166, %c4_i32_167, %c0_i32_171] : memref<8x8x128xf32, #tpu.memory_space<vmem>> -> memref<1x1x128xf32, #tpu.memory_space<vmem>>
    %207 = tpu.memref_squeeze %206 : memref<1x1x128xf32, #tpu.memory_space<vmem>> -> memref<128xf32, #tpu.memory_space<vmem>>
    %208 = tpu.memref_slice %arg9[%c2_i32_168, %c4_i32_169] : memref<8x8x!tpu.dma_semaphore, #tpu.memory_space<semaphore_mem>> -> memref<1x1x!tpu.dma_semaphore, #tpu.memory_space<semaphore_mem>>
    %209 = tpu.memref_squeeze %208 : memref<1x1x!tpu.dma_semaphore, #tpu.memory_space<semaphore_mem>> -> memref<!tpu.dma_semaphore, #tpu.memory_space<semaphore_mem>>
    tpu.enqueue_dma source(%205 : memref<128xf32, #tpu.memory_space<any>>) target(%207 : memref<128xf32, #tpu.memory_space<vmem>>) target_semaphore(%209 : memref<!tpu.dma_semaphore, #tpu.memory_space<semaphore_mem>>)
    %c8_i32_172 = arith.constant 8 : i32
    %210 = arith.muli %arg0, %c8_i32_172 : i32
    %c2_i32_173 = arith.constant 2 : i32
    %211 = arith.addi %210, %c2_i32_173 : i32
    %212 = arith.index_cast %211 : i32 to index
    %c5_174 = arith.constant 5 : index
    %213 = memref.load %arg1[%212, %c5_174] : memref<8x8xi32, #tpu.memory_space<smem>>
    %c2_i32_175 = arith.constant 2 : i32
    %c5_i32_176 = arith.constant 5 : i32
    %c2_i32_177 = arith.constant 2 : i32
    %c5_i32_178 = arith.constant 5 : i32
    %c0_i32_179 = arith.constant 0 : i32
    %214 = tpu.memref_slice %arg2[%213, %c0_i32_179] : memref<50x128xf32, #tpu.memory_space<any>> -> memref<1x128xf32, #tpu.memory_space<any>>
    %215 = tpu.memref_squeeze %214 : memref<1x128xf32, #tpu.memory_space<any>> -> memref<128xf32, #tpu.memory_space<any>>
    %c0_i32_180 = arith.constant 0 : i32
    %216 = tpu.memref_slice %arg8[%c2_i32_175, %c5_i32_176, %c0_i32_180] : memref<8x8x128xf32, #tpu.memory_space<vmem>> -> memref<1x1x128xf32, #tpu.memory_space<vmem>>
    %217 = tpu.memref_squeeze %216 : memref<1x1x128xf32, #tpu.memory_space<vmem>> -> memref<128xf32, #tpu.memory_space<vmem>>
    %218 = tpu.memref_slice %arg9[%c2_i32_177, %c5_i32_178] : memref<8x8x!tpu.dma_semaphore, #tpu.memory_space<semaphore_mem>> -> memref<1x1x!tpu.dma_semaphore, #tpu.memory_space<semaphore_mem>>
    %219 = tpu.memref_squeeze %218 : memref<1x1x!tpu.dma_semaphore, #tpu.memory_space<semaphore_mem>> -> memref<!tpu.dma_semaphore, #tpu.memory_space<semaphore_mem>>
    tpu.enqueue_dma source(%215 : memref<128xf32, #tpu.memory_space<any>>) target(%217 : memref<128xf32, #tpu.memory_space<vmem>>) target_semaphore(%219 : memref<!tpu.dma_semaphore, #tpu.memory_space<semaphore_mem>>)
    %c8_i32_181 = arith.constant 8 : i32
    %220 = arith.muli %arg0, %c8_i32_181 : i32
    %c2_i32_182 = arith.constant 2 : i32
    %221 = arith.addi %220, %c2_i32_182 : i32
    %222 = arith.index_cast %221 : i32 to index
    %c6_183 = arith.constant 6 : index
    %223 = memref.load %arg1[%222, %c6_183] : memref<8x8xi32, #tpu.memory_space<smem>>
    %c2_i32_184 = arith.constant 2 : i32
    %c6_i32_185 = arith.constant 6 : i32
    %c2_i32_186 = arith.constant 2 : i32
    %c6_i32_187 = arith.constant 6 : i32
    %c0_i32_188 = arith.constant 0 : i32
    %224 = tpu.memref_slice %arg2[%223, %c0_i32_188] : memref<50x128xf32, #tpu.memory_space<any>> -> memref<1x128xf32, #tpu.memory_space<any>>
    %225 = tpu.memref_squeeze %224 : memref<1x128xf32, #tpu.memory_space<any>> -> memref<128xf32, #tpu.memory_space<any>>
    %c0_i32_189 = arith.constant 0 : i32
    %226 = tpu.memref_slice %arg8[%c2_i32_184, %c6_i32_185, %c0_i32_189] : memref<8x8x128xf32, #tpu.memory_space<vmem>> -> memref<1x1x128xf32, #tpu.memory_space<vmem>>
    %227 = tpu.memref_squeeze %226 : memref<1x1x128xf32, #tpu.memory_space<vmem>> -> memref<128xf32, #tpu.memory_space<vmem>>
    %228 = tpu.memref_slice %arg9[%c2_i32_186, %c6_i32_187] : memref<8x8x!tpu.dma_semaphore, #tpu.memory_space<semaphore_mem>> -> memref<1x1x!tpu.dma_semaphore, #tpu.memory_space<semaphore_mem>>
    %229 = tpu.memref_squeeze %228 : memref<1x1x!tpu.dma_semaphore, #tpu.memory_space<semaphore_mem>> -> memref<!tpu.dma_semaphore, #tpu.memory_space<semaphore_mem>>
    tpu.enqueue_dma source(%225 : memref<128xf32, #tpu.memory_space<any>>) target(%227 : memref<128xf32, #tpu.memory_space<vmem>>) target_semaphore(%229 : memref<!tpu.dma_semaphore, #tpu.memory_space<semaphore_mem>>)
    %c8_i32_190 = arith.constant 8 : i32
    %230 = arith.muli %arg0, %c8_i32_190 : i32
    %c2_i32_191 = arith.constant 2 : i32
    %231 = arith.addi %230, %c2_i32_191 : i32
    %232 = arith.index_cast %231 : i32 to index
    %c7_192 = arith.constant 7 : index
    %233 = memref.load %arg1[%232, %c7_192] : memref<8x8xi32, #tpu.memory_space<smem>>
    %c2_i32_193 = arith.constant 2 : i32
    %c7_i32_194 = arith.constant 7 : i32
    %c2_i32_195 = arith.constant 2 : i32
    %c7_i32_196 = arith.constant 7 : i32
    %c0_i32_197 = arith.constant 0 : i32
    %234 = tpu.memref_slice %arg2[%233, %c0_i32_197] : memref<50x128xf32, #tpu.memory_space<any>> -> memref<1x128xf32, #tpu.memory_space<any>>
    %235 = tpu.memref_squeeze %234 : memref<1x128xf32, #tpu.memory_space<any>> -> memref<128xf32, #tpu.memory_space<any>>
    %c0_i32_198 = arith.constant 0 : i32
    %236 = tpu.memref_slice %arg8[%c2_i32_193, %c7_i32_194, %c0_i32_198] : memref<8x8x128xf32, #tpu.memory_space<vmem>> -> memref<1x1x128xf32, #tpu.memory_space<vmem>>
    %237 = tpu.memref_squeeze %236 : memref<1x1x128xf32, #tpu.memory_space<vmem>> -> memref<128xf32, #tpu.memory_space<vmem>>
    %238 = tpu.memref_slice %arg9[%c2_i32_195, %c7_i32_196] : memref<8x8x!tpu.dma_semaphore, #tpu.memory_space<semaphore_mem>> -> memref<1x1x!tpu.dma_semaphore, #tpu.memory_space<semaphore_mem>>
    %239 = tpu.memref_squeeze %238 : memref<1x1x!tpu.dma_semaphore, #tpu.memory_space<semaphore_mem>> -> memref<!tpu.dma_semaphore, #tpu.memory_space<semaphore_mem>>
    tpu.enqueue_dma source(%235 : memref<128xf32, #tpu.memory_space<any>>) target(%237 : memref<128xf32, #tpu.memory_space<vmem>>) target_semaphore(%239 : memref<!tpu.dma_semaphore, #tpu.memory_space<semaphore_mem>>)
    %c8_i32_199 = arith.constant 8 : i32
    %240 = arith.muli %arg0, %c8_i32_199 : i32
    %c3_i32_200 = arith.constant 3 : i32
    %241 = arith.addi %240, %c3_i32_200 : i32
    %242 = arith.index_cast %241 : i32 to index
    %c0_201 = arith.constant 0 : index
    %243 = memref.load %arg1[%242, %c0_201] : memref<8x8xi32, #tpu.memory_space<smem>>
    %c3_i32_202 = arith.constant 3 : i32
    %c0_i32_203 = arith.constant 0 : i32
    %c3_i32_204 = arith.constant 3 : i32
    %c0_i32_205 = arith.constant 0 : i32
    %c0_i32_206 = arith.constant 0 : i32
    %244 = tpu.memref_slice %arg2[%243, %c0_i32_206] : memref<50x128xf32, #tpu.memory_space<any>> -> memref<1x128xf32, #tpu.memory_space<any>>
    %245 = tpu.memref_squeeze %244 : memref<1x128xf32, #tpu.memory_space<any>> -> memref<128xf32, #tpu.memory_space<any>>
    %c0_i32_207 = arith.constant 0 : i32
    %246 = tpu.memref_slice %arg8[%c3_i32_202, %c0_i32_203, %c0_i32_207] : memref<8x8x128xf32, #tpu.memory_space<vmem>> -> memref<1x1x128xf32, #tpu.memory_space<vmem>>
    %247 = tpu.memref_squeeze %246 : memref<1x1x128xf32, #tpu.memory_space<vmem>> -> memref<128xf32, #tpu.memory_space<vmem>>
    %248 = tpu.memref_slice %arg9[%c3_i32_204, %c0_i32_205] : memref<8x8x!tpu.dma_semaphore, #tpu.memory_space<semaphore_mem>> -> memref<1x1x!tpu.dma_semaphore, #tpu.memory_space<semaphore_mem>>
    %249 = tpu.memref_squeeze %248 : memref<1x1x!tpu.dma_semaphore, #tpu.memory_space<semaphore_mem>> -> memref<!tpu.dma_semaphore, #tpu.memory_space<semaphore_mem>>
    tpu.enqueue_dma source(%245 : memref<128xf32, #tpu.memory_space<any>>) target(%247 : memref<128xf32, #tpu.memory_space<vmem>>) target_semaphore(%249 : memref<!tpu.dma_semaphore, #tpu.memory_space<semaphore_mem>>)
    %c8_i32_208 = arith.constant 8 : i32
    %250 = arith.muli %arg0, %c8_i32_208 : i32
    %c3_i32_209 = arith.constant 3 : i32
    %251 = arith.addi %250, %c3_i32_209 : i32
    %252 = arith.index_cast %251 : i32 to index
    %c1_210 = arith.constant 1 : index
    %253 = memref.load %arg1[%252, %c1_210] : memref<8x8xi32, #tpu.memory_space<smem>>
    %c3_i32_211 = arith.constant 3 : i32
    %c1_i32_212 = arith.constant 1 : i32
    %c3_i32_213 = arith.constant 3 : i32
    %c1_i32_214 = arith.constant 1 : i32
    %c0_i32_215 = arith.constant 0 : i32
    %254 = tpu.memref_slice %arg2[%253, %c0_i32_215] : memref<50x128xf32, #tpu.memory_space<any>> -> memref<1x128xf32, #tpu.memory_space<any>>
    %255 = tpu.memref_squeeze %254 : memref<1x128xf32, #tpu.memory_space<any>> -> memref<128xf32, #tpu.memory_space<any>>
    %c0_i32_216 = arith.constant 0 : i32
    %256 = tpu.memref_slice %arg8[%c3_i32_211, %c1_i32_212, %c0_i32_216] : memref<8x8x128xf32, #tpu.memory_space<vmem>> -> memref<1x1x128xf32, #tpu.memory_space<vmem>>
    %257 = tpu.memref_squeeze %256 : memref<1x1x128xf32, #tpu.memory_space<vmem>> -> memref<128xf32, #tpu.memory_space<vmem>>
    %258 = tpu.memref_slice %arg9[%c3_i32_213, %c1_i32_214] : memref<8x8x!tpu.dma_semaphore, #tpu.memory_space<semaphore_mem>> -> memref<1x1x!tpu.dma_semaphore, #tpu.memory_space<semaphore_mem>>
    %259 = tpu.memref_squeeze %258 : memref<1x1x!tpu.dma_semaphore, #tpu.memory_space<semaphore_mem>> -> memref<!tpu.dma_semaphore, #tpu.memory_space<semaphore_mem>>
    tpu.enqueue_dma source(%255 : memref<128xf32, #tpu.memory_space<any>>) target(%257 : memref<128xf32, #tpu.memory_space<vmem>>) target_semaphore(%259 : memref<!tpu.dma_semaphore, #tpu.memory_space<semaphore_mem>>)
    %c8_i32_217 = arith.constant 8 : i32
    %260 = arith.muli %arg0, %c8_i32_217 : i32
    %c3_i32_218 = arith.constant 3 : i32
    %261 = arith.addi %260, %c3_i32_218 : i32
    %262 = arith.index_cast %261 : i32 to index
    %c2_219 = arith.constant 2 : index
    %263 = memref.load %arg1[%262, %c2_219] : memref<8x8xi32, #tpu.memory_space<smem>>
    %c3_i32_220 = arith.constant 3 : i32
    %c2_i32_221 = arith.constant 2 : i32
    %c3_i32_222 = arith.constant 3 : i32
    %c2_i32_223 = arith.constant 2 : i32
    %c0_i32_224 = arith.constant 0 : i32
    %264 = tpu.memref_slice %arg2[%263, %c0_i32_224] : memref<50x128xf32, #tpu.memory_space<any>> -> memref<1x128xf32, #tpu.memory_space<any>>
    %265 = tpu.memref_squeeze %264 : memref<1x128xf32, #tpu.memory_space<any>> -> memref<128xf32, #tpu.memory_space<any>>
    %c0_i32_225 = arith.constant 0 : i32
    %266 = tpu.memref_slice %arg8[%c3_i32_220, %c2_i32_221, %c0_i32_225] : memref<8x8x128xf32, #tpu.memory_space<vmem>> -> memref<1x1x128xf32, #tpu.memory_space<vmem>>
    %267 = tpu.memref_squeeze %266 : memref<1x1x128xf32, #tpu.memory_space<vmem>> -> memref<128xf32, #tpu.memory_space<vmem>>
    %268 = tpu.memref_slice %arg9[%c3_i32_222, %c2_i32_223] : memref<8x8x!tpu.dma_semaphore, #tpu.memory_space<semaphore_mem>> -> memref<1x1x!tpu.dma_semaphore, #tpu.memory_space<semaphore_mem>>
    %269 = tpu.memref_squeeze %268 : memref<1x1x!tpu.dma_semaphore, #tpu.memory_space<semaphore_mem>> -> memref<!tpu.dma_semaphore, #tpu.memory_space<semaphore_mem>>
    tpu.enqueue_dma source(%265 : memref<128xf32, #tpu.memory_space<any>>) target(%267 : memref<128xf32, #tpu.memory_space<vmem>>) target_semaphore(%269 : memref<!tpu.dma_semaphore, #tpu.memory_space<semaphore_mem>>)
    %c8_i32_226 = arith.constant 8 : i32
    %270 = arith.muli %arg0, %c8_i32_226 : i32
    %c3_i32_227 = arith.constant 3 : i32
    %271 = arith.addi %270, %c3_i32_227 : i32
    %272 = arith.index_cast %271 : i32 to index
    %c3_228 = arith.constant 3 : index
    %273 = memref.load %arg1[%272, %c3_228] : memref<8x8xi32, #tpu.memory_space<smem>>
    %c3_i32_229 = arith.constant 3 : i32
    %c3_i32_230 = arith.constant 3 : i32
    %c3_i32_231 = arith.constant 3 : i32
    %c3_i32_232 = arith.constant 3 : i32
    %c0_i32_233 = arith.constant 0 : i32
    %274 = tpu.memref_slice %arg2[%273, %c0_i32_233] : memref<50x128xf32, #tpu.memory_space<any>> -> memref<1x128xf32, #tpu.memory_space<any>>
    %275 = tpu.memref_squeeze %274 : memref<1x128xf32, #tpu.memory_space<any>> -> memref<128xf32, #tpu.memory_space<any>>
    %c0_i32_234 = arith.constant 0 : i32
    %276 = tpu.memref_slice %arg8[%c3_i32_229, %c3_i32_230, %c0_i32_234] : memref<8x8x128xf32, #tpu.memory_space<vmem>> -> memref<1x1x128xf32, #tpu.memory_space<vmem>>
    %277 = tpu.memref_squeeze %276 : memref<1x1x128xf32, #tpu.memory_space<vmem>> -> memref<128xf32, #tpu.memory_space<vmem>>
    %278 = tpu.memref_slice %arg9[%c3_i32_231, %c3_i32_232] : memref<8x8x!tpu.dma_semaphore, #tpu.memory_space<semaphore_mem>> -> memref<1x1x!tpu.dma_semaphore, #tpu.memory_space<semaphore_mem>>
    %279 = tpu.memref_squeeze %278 : memref<1x1x!tpu.dma_semaphore, #tpu.memory_space<semaphore_mem>> -> memref<!tpu.dma_semaphore, #tpu.memory_space<semaphore_mem>>
    tpu.enqueue_dma source(%275 : memref<128xf32, #tpu.memory_space<any>>) target(%277 : memref<128xf32, #tpu.memory_space<vmem>>) target_semaphore(%279 : memref<!tpu.dma_semaphore, #tpu.memory_space<semaphore_mem>>)
    %c8_i32_235 = arith.constant 8 : i32
    %280 = arith.muli %arg0, %c8_i32_235 : i32
    %c3_i32_236 = arith.constant 3 : i32
    %281 = arith.addi %280, %c3_i32_236 : i32
    %282 = arith.index_cast %281 : i32 to index
    %c4_237 = arith.constant 4 : index
    %283 = memref.load %arg1[%282, %c4_237] : memref<8x8xi32, #tpu.memory_space<smem>>
    %c3_i32_238 = arith.constant 3 : i32
    %c4_i32_239 = arith.constant 4 : i32
    %c3_i32_240 = arith.constant 3 : i32
    %c4_i32_241 = arith.constant 4 : i32
    %c0_i32_242 = arith.constant 0 : i32
    %284 = tpu.memref_slice %arg2[%283, %c0_i32_242] : memref<50x128xf32, #tpu.memory_space<any>> -> memref<1x128xf32, #tpu.memory_space<any>>
    %285 = tpu.memref_squeeze %284 : memref<1x128xf32, #tpu.memory_space<any>> -> memref<128xf32, #tpu.memory_space<any>>
    %c0_i32_243 = arith.constant 0 : i32
    %286 = tpu.memref_slice %arg8[%c3_i32_238, %c4_i32_239, %c0_i32_243] : memref<8x8x128xf32, #tpu.memory_space<vmem>> -> memref<1x1x128xf32, #tpu.memory_space<vmem>>
    %287 = tpu.memref_squeeze %286 : memref<1x1x128xf32, #tpu.memory_space<vmem>> -> memref<128xf32, #tpu.memory_space<vmem>>
    %288 = tpu.memref_slice %arg9[%c3_i32_240, %c4_i32_241] : memref<8x8x!tpu.dma_semaphore, #tpu.memory_space<semaphore_mem>> -> memref<1x1x!tpu.dma_semaphore, #tpu.memory_space<semaphore_mem>>
    %289 = tpu.memref_squeeze %288 : memref<1x1x!tpu.dma_semaphore, #tpu.memory_space<semaphore_mem>> -> memref<!tpu.dma_semaphore, #tpu.memory_space<semaphore_mem>>
    tpu.enqueue_dma source(%285 : memref<128xf32, #tpu.memory_space<any>>) target(%287 : memref<128xf32, #tpu.memory_space<vmem>>) target_semaphore(%289 : memref<!tpu.dma_semaphore, #tpu.memory_space<semaphore_mem>>)
    %c8_i32_244 = arith.constant 8 : i32
    %290 = arith.muli %arg0, %c8_i32_244 : i32
    %c3_i32_245 = arith.constant 3 : i32
    %291 = arith.addi %290, %c3_i32_245 : i32
    %292 = arith.index_cast %291 : i32 to index
    %c5_246 = arith.constant 5 : index
    %293 = memref.load %arg1[%292, %c5_246] : memref<8x8xi32, #tpu.memory_space<smem>>
    %c3_i32_247 = arith.constant 3 : i32
    %c5_i32_248 = arith.constant 5 : i32
    %c3_i32_249 = arith.constant 3 : i32
    %c5_i32_250 = arith.constant 5 : i32
    %c0_i32_251 = arith.constant 0 : i32
    %294 = tpu.memref_slice %arg2[%293, %c0_i32_251] : memref<50x128xf32, #tpu.memory_space<any>> -> memref<1x128xf32, #tpu.memory_space<any>>
    %295 = tpu.memref_squeeze %294 : memref<1x128xf32, #tpu.memory_space<any>> -> memref<128xf32, #tpu.memory_space<any>>
    %c0_i32_252 = arith.constant 0 : i32
    %296 = tpu.memref_slice %arg8[%c3_i32_247, %c5_i32_248, %c0_i32_252] : memref<8x8x128xf32, #tpu.memory_space<vmem>> -> memref<1x1x128xf32, #tpu.memory_space<vmem>>
    %297 = tpu.memref_squeeze %296 : memref<1x1x128xf32, #tpu.memory_space<vmem>> -> memref<128xf32, #tpu.memory_space<vmem>>
    %298 = tpu.memref_slice %arg9[%c3_i32_249, %c5_i32_250] : memref<8x8x!tpu.dma_semaphore, #tpu.memory_space<semaphore_mem>> -> memref<1x1x!tpu.dma_semaphore, #tpu.memory_space<semaphore_mem>>
    %299 = tpu.memref_squeeze %298 : memref<1x1x!tpu.dma_semaphore, #tpu.memory_space<semaphore_mem>> -> memref<!tpu.dma_semaphore, #tpu.memory_space<semaphore_mem>>
    tpu.enqueue_dma source(%295 : memref<128xf32, #tpu.memory_space<any>>) target(%297 : memref<128xf32, #tpu.memory_space<vmem>>) target_semaphore(%299 : memref<!tpu.dma_semaphore, #tpu.memory_space<semaphore_mem>>)
    %c8_i32_253 = arith.constant 8 : i32
    %300 = arith.muli %arg0, %c8_i32_253 : i32
    %c3_i32_254 = arith.constant 3 : i32
    %301 = arith.addi %300, %c3_i32_254 : i32
    %302 = arith.index_cast %301 : i32 to index
    %c6_255 = arith.constant 6 : index
    %303 = memref.load %arg1[%302, %c6_255] : memref<8x8xi32, #tpu.memory_space<smem>>
    %c3_i32_256 = arith.constant 3 : i32
    %c6_i32_257 = arith.constant 6 : i32
    %c3_i32_258 = arith.constant 3 : i32
    %c6_i32_259 = arith.constant 6 : i32
    %c0_i32_260 = arith.constant 0 : i32
    %304 = tpu.memref_slice %arg2[%303, %c0_i32_260] : memref<50x128xf32, #tpu.memory_space<any>> -> memref<1x128xf32, #tpu.memory_space<any>>
    %305 = tpu.memref_squeeze %304 : memref<1x128xf32, #tpu.memory_space<any>> -> memref<128xf32, #tpu.memory_space<any>>
    %c0_i32_261 = arith.constant 0 : i32
    %306 = tpu.memref_slice %arg8[%c3_i32_256, %c6_i32_257, %c0_i32_261] : memref<8x8x128xf32, #tpu.memory_space<vmem>> -> memref<1x1x128xf32, #tpu.memory_space<vmem>>
    %307 = tpu.memref_squeeze %306 : memref<1x1x128xf32, #tpu.memory_space<vmem>> -> memref<128xf32, #tpu.memory_space<vmem>>
    %308 = tpu.memref_slice %arg9[%c3_i32_258, %c6_i32_259] : memref<8x8x!tpu.dma_semaphore, #tpu.memory_space<semaphore_mem>> -> memref<1x1x!tpu.dma_semaphore, #tpu.memory_space<semaphore_mem>>
    %309 = tpu.memref_squeeze %308 : memref<1x1x!tpu.dma_semaphore, #tpu.memory_space<semaphore_mem>> -> memref<!tpu.dma_semaphore, #tpu.memory_space<semaphore_mem>>
    tpu.enqueue_dma source(%305 : memref<128xf32, #tpu.memory_space<any>>) target(%307 : memref<128xf32, #tpu.memory_space<vmem>>) target_semaphore(%309 : memref<!tpu.dma_semaphore, #tpu.memory_space<semaphore_mem>>)
    %c8_i32_262 = arith.constant 8 : i32
    %310 = arith.muli %arg0, %c8_i32_262 : i32
    %c3_i32_263 = arith.constant 3 : i32
    %311 = arith.addi %310, %c3_i32_263 : i32
    %312 = arith.index_cast %311 : i32 to index
    %c7_264 = arith.constant 7 : index
    %313 = memref.load %arg1[%312, %c7_264] : memref<8x8xi32, #tpu.memory_space<smem>>
    %c3_i32_265 = arith.constant 3 : i32
    %c7_i32_266 = arith.constant 7 : i32
    %c3_i32_267 = arith.constant 3 : i32
    %c7_i32_268 = arith.constant 7 : i32
    %c0_i32_269 = arith.constant 0 : i32
    %314 = tpu.memref_slice %arg2[%313, %c0_i32_269] : memref<50x128xf32, #tpu.memory_space<any>> -> memref<1x128xf32, #tpu.memory_space<any>>
    %315 = tpu.memref_squeeze %314 : memref<1x128xf32, #tpu.memory_space<any>> -> memref<128xf32, #tpu.memory_space<any>>
    %c0_i32_270 = arith.constant 0 : i32
    %316 = tpu.memref_slice %arg8[%c3_i32_265, %c7_i32_266, %c0_i32_270] : memref<8x8x128xf32, #tpu.memory_space<vmem>> -> memref<1x1x128xf32, #tpu.memory_space<vmem>>
    %317 = tpu.memref_squeeze %316 : memref<1x1x128xf32, #tpu.memory_space<vmem>> -> memref<128xf32, #tpu.memory_space<vmem>>
    %318 = tpu.memref_slice %arg9[%c3_i32_267, %c7_i32_268] : memref<8x8x!tpu.dma_semaphore, #tpu.memory_space<semaphore_mem>> -> memref<1x1x!tpu.dma_semaphore, #tpu.memory_space<semaphore_mem>>
    %319 = tpu.memref_squeeze %318 : memref<1x1x!tpu.dma_semaphore, #tpu.memory_space<semaphore_mem>> -> memref<!tpu.dma_semaphore, #tpu.memory_space<semaphore_mem>>
    tpu.enqueue_dma source(%315 : memref<128xf32, #tpu.memory_space<any>>) target(%317 : memref<128xf32, #tpu.memory_space<vmem>>) target_semaphore(%319 : memref<!tpu.dma_semaphore, #tpu.memory_space<semaphore_mem>>)
    %c8_i32_271 = arith.constant 8 : i32
    %320 = arith.muli %arg0, %c8_i32_271 : i32
    %c4_i32_272 = arith.constant 4 : i32
    %321 = arith.addi %320, %c4_i32_272 : i32
    %322 = arith.index_cast %321 : i32 to index
    %c0_273 = arith.constant 0 : index
    %323 = memref.load %arg1[%322, %c0_273] : memref<8x8xi32, #tpu.memory_space<smem>>
    %c4_i32_274 = arith.constant 4 : i32
    %c0_i32_275 = arith.constant 0 : i32
    %c4_i32_276 = arith.constant 4 : i32
    %c0_i32_277 = arith.constant 0 : i32
    %c0_i32_278 = arith.constant 0 : i32
    %324 = tpu.memref_slice %arg2[%323, %c0_i32_278] : memref<50x128xf32, #tpu.memory_space<any>> -> memref<1x128xf32, #tpu.memory_space<any>>
    %325 = tpu.memref_squeeze %324 : memref<1x128xf32, #tpu.memory_space<any>> -> memref<128xf32, #tpu.memory_space<any>>
    %c0_i32_279 = arith.constant 0 : i32
    %326 = tpu.memref_slice %arg8[%c4_i32_274, %c0_i32_275, %c0_i32_279] : memref<8x8x128xf32, #tpu.memory_space<vmem>> -> memref<1x1x128xf32, #tpu.memory_space<vmem>>
    %327 = tpu.memref_squeeze %326 : memref<1x1x128xf32, #tpu.memory_space<vmem>> -> memref<128xf32, #tpu.memory_space<vmem>>
    %328 = tpu.memref_slice %arg9[%c4_i32_276, %c0_i32_277] : memref<8x8x!tpu.dma_semaphore, #tpu.memory_space<semaphore_mem>> -> memref<1x1x!tpu.dma_semaphore, #tpu.memory_space<semaphore_mem>>
    %329 = tpu.memref_squeeze %328 : memref<1x1x!tpu.dma_semaphore, #tpu.memory_space<semaphore_mem>> -> memref<!tpu.dma_semaphore, #tpu.memory_space<semaphore_mem>>
    tpu.enqueue_dma source(%325 : memref<128xf32, #tpu.memory_space<any>>) target(%327 : memref<128xf32, #tpu.memory_space<vmem>>) target_semaphore(%329 : memref<!tpu.dma_semaphore, #tpu.memory_space<semaphore_mem>>)
    %c8_i32_280 = arith.constant 8 : i32
    %330 = arith.muli %arg0, %c8_i32_280 : i32
    %c4_i32_281 = arith.constant 4 : i32
    %331 = arith.addi %330, %c4_i32_281 : i32
    %332 = arith.index_cast %331 : i32 to index
    %c1_282 = arith.constant 1 : index
    %333 = memref.load %arg1[%332, %c1_282] : memref<8x8xi32, #tpu.memory_space<smem>>
    %c4_i32_283 = arith.constant 4 : i32
    %c1_i32_284 = arith.constant 1 : i32
    %c4_i32_285 = arith.constant 4 : i32
    %c1_i32_286 = arith.constant 1 : i32
    %c0_i32_287 = arith.constant 0 : i32
    %334 = tpu.memref_slice %arg2[%333, %c0_i32_287] : memref<50x128xf32, #tpu.memory_space<any>> -> memref<1x128xf32, #tpu.memory_space<any>>
    %335 = tpu.memref_squeeze %334 : memref<1x128xf32, #tpu.memory_space<any>> -> memref<128xf32, #tpu.memory_space<any>>
    %c0_i32_288 = arith.constant 0 : i32
    %336 = tpu.memref_slice %arg8[%c4_i32_283, %c1_i32_284, %c0_i32_288] : memref<8x8x128xf32, #tpu.memory_space<vmem>> -> memref<1x1x128xf32, #tpu.memory_space<vmem>>
    %337 = tpu.memref_squeeze %336 : memref<1x1x128xf32, #tpu.memory_space<vmem>> -> memref<128xf32, #tpu.memory_space<vmem>>
    %338 = tpu.memref_slice %arg9[%c4_i32_285, %c1_i32_286] : memref<8x8x!tpu.dma_semaphore, #tpu.memory_space<semaphore_mem>> -> memref<1x1x!tpu.dma_semaphore, #tpu.memory_space<semaphore_mem>>
    %339 = tpu.memref_squeeze %338 : memref<1x1x!tpu.dma_semaphore, #tpu.memory_space<semaphore_mem>> -> memref<!tpu.dma_semaphore, #tpu.memory_space<semaphore_mem>>
    tpu.enqueue_dma source(%335 : memref<128xf32, #tpu.memory_space<any>>) target(%337 : memref<128xf32, #tpu.memory_space<vmem>>) target_semaphore(%339 : memref<!tpu.dma_semaphore, #tpu.memory_space<semaphore_mem>>)
    %c8_i32_289 = arith.constant 8 : i32
    %340 = arith.muli %arg0, %c8_i32_289 : i32
    %c4_i32_290 = arith.constant 4 : i32
    %341 = arith.addi %340, %c4_i32_290 : i32
    %342 = arith.index_cast %341 : i32 to index
    %c2_291 = arith.constant 2 : index
    %343 = memref.load %arg1[%342, %c2_291] : memref<8x8xi32, #tpu.memory_space<smem>>
    %c4_i32_292 = arith.constant 4 : i32
    %c2_i32_293 = arith.constant 2 : i32
    %c4_i32_294 = arith.constant 4 : i32
    %c2_i32_295 = arith.constant 2 : i32
    %c0_i32_296 = arith.constant 0 : i32
    %344 = tpu.memref_slice %arg2[%343, %c0_i32_296] : memref<50x128xf32, #tpu.memory_space<any>> -> memref<1x128xf32, #tpu.memory_space<any>>
    %345 = tpu.memref_squeeze %344 : memref<1x128xf32, #tpu.memory_space<any>> -> memref<128xf32, #tpu.memory_space<any>>
    %c0_i32_297 = arith.constant 0 : i32
    %346 = tpu.memref_slice %arg8[%c4_i32_292, %c2_i32_293, %c0_i32_297] : memref<8x8x128xf32, #tpu.memory_space<vmem>> -> memref<1x1x128xf32, #tpu.memory_space<vmem>>
    %347 = tpu.memref_squeeze %346 : memref<1x1x128xf32, #tpu.memory_space<vmem>> -> memref<128xf32, #tpu.memory_space<vmem>>
    %348 = tpu.memref_slice %arg9[%c4_i32_294, %c2_i32_295] : memref<8x8x!tpu.dma_semaphore, #tpu.memory_space<semaphore_mem>> -> memref<1x1x!tpu.dma_semaphore, #tpu.memory_space<semaphore_mem>>
    %349 = tpu.memref_squeeze %348 : memref<1x1x!tpu.dma_semaphore, #tpu.memory_space<semaphore_mem>> -> memref<!tpu.dma_semaphore, #tpu.memory_space<semaphore_mem>>
    tpu.enqueue_dma source(%345 : memref<128xf32, #tpu.memory_space<any>>) target(%347 : memref<128xf32, #tpu.memory_space<vmem>>) target_semaphore(%349 : memref<!tpu.dma_semaphore, #tpu.memory_space<semaphore_mem>>)
    %c8_i32_298 = arith.constant 8 : i32
    %350 = arith.muli %arg0, %c8_i32_298 : i32
    %c4_i32_299 = arith.constant 4 : i32
    %351 = arith.addi %350, %c4_i32_299 : i32
    %352 = arith.index_cast %351 : i32 to index
    %c3_300 = arith.constant 3 : index
    %353 = memref.load %arg1[%352, %c3_300] : memref<8x8xi32, #tpu.memory_space<smem>>
    %c4_i32_301 = arith.constant 4 : i32
    %c3_i32_302 = arith.constant 3 : i32
    %c4_i32_303 = arith.constant 4 : i32
    %c3_i32_304 = arith.constant 3 : i32
    %c0_i32_305 = arith.constant 0 : i32
    %354 = tpu.memref_slice %arg2[%353, %c0_i32_305] : memref<50x128xf32, #tpu.memory_space<any>> -> memref<1x128xf32, #tpu.memory_space<any>>
    %355 = tpu.memref_squeeze %354 : memref<1x128xf32, #tpu.memory_space<any>> -> memref<128xf32, #tpu.memory_space<any>>
    %c0_i32_306 = arith.constant 0 : i32
    %356 = tpu.memref_slice %arg8[%c4_i32_301, %c3_i32_302, %c0_i32_306] : memref<8x8x128xf32, #tpu.memory_space<vmem>> -> memref<1x1x128xf32, #tpu.memory_space<vmem>>
    %357 = tpu.memref_squeeze %356 : memref<1x1x128xf32, #tpu.memory_space<vmem>> -> memref<128xf32, #tpu.memory_space<vmem>>
    %358 = tpu.memref_slice %arg9[%c4_i32_303, %c3_i32_304] : memref<8x8x!tpu.dma_semaphore, #tpu.memory_space<semaphore_mem>> -> memref<1x1x!tpu.dma_semaphore, #tpu.memory_space<semaphore_mem>>
    %359 = tpu.memref_squeeze %358 : memref<1x1x!tpu.dma_semaphore, #tpu.memory_space<semaphore_mem>> -> memref<!tpu.dma_semaphore, #tpu.memory_space<semaphore_mem>>
    tpu.enqueue_dma source(%355 : memref<128xf32, #tpu.memory_space<any>>) target(%357 : memref<128xf32, #tpu.memory_space<vmem>>) target_semaphore(%359 : memref<!tpu.dma_semaphore, #tpu.memory_space<semaphore_mem>>)
    %c8_i32_307 = arith.constant 8 : i32
    %360 = arith.muli %arg0, %c8_i32_307 : i32
    %c4_i32_308 = arith.constant 4 : i32
    %361 = arith.addi %360, %c4_i32_308 : i32
    %362 = arith.index_cast %361 : i32 to index
    %c4_309 = arith.constant 4 : index
    %363 = memref.load %arg1[%362, %c4_309] : memref<8x8xi32, #tpu.memory_space<smem>>
    %c4_i32_310 = arith.constant 4 : i32
    %c4_i32_311 = arith.constant 4 : i32
    %c4_i32_312 = arith.constant 4 : i32
    %c4_i32_313 = arith.constant 4 : i32
    %c0_i32_314 = arith.constant 0 : i32
    %364 = tpu.memref_slice %arg2[%363, %c0_i32_314] : memref<50x128xf32, #tpu.memory_space<any>> -> memref<1x128xf32, #tpu.memory_space<any>>
    %365 = tpu.memref_squeeze %364 : memref<1x128xf32, #tpu.memory_space<any>> -> memref<128xf32, #tpu.memory_space<any>>
    %c0_i32_315 = arith.constant 0 : i32
    %366 = tpu.memref_slice %arg8[%c4_i32_310, %c4_i32_311, %c0_i32_315] : memref<8x8x128xf32, #tpu.memory_space<vmem>> -> memref<1x1x128xf32, #tpu.memory_space<vmem>>
    %367 = tpu.memref_squeeze %366 : memref<1x1x128xf32, #tpu.memory_space<vmem>> -> memref<128xf32, #tpu.memory_space<vmem>>
    %368 = tpu.memref_slice %arg9[%c4_i32_312, %c4_i32_313] : memref<8x8x!tpu.dma_semaphore, #tpu.memory_space<semaphore_mem>> -> memref<1x1x!tpu.dma_semaphore, #tpu.memory_space<semaphore_mem>>
    %369 = tpu.memref_squeeze %368 : memref<1x1x!tpu.dma_semaphore, #tpu.memory_space<semaphore_mem>> -> memref<!tpu.dma_semaphore, #tpu.memory_space<semaphore_mem>>
    tpu.enqueue_dma source(%365 : memref<128xf32, #tpu.memory_space<any>>) target(%367 : memref<128xf32, #tpu.memory_space<vmem>>) target_semaphore(%369 : memref<!tpu.dma_semaphore, #tpu.memory_space<semaphore_mem>>)
    %c8_i32_316 = arith.constant 8 : i32
    %370 = arith.muli %arg0, %c8_i32_316 : i32
    %c4_i32_317 = arith.constant 4 : i32
    %371 = arith.addi %370, %c4_i32_317 : i32
    %372 = arith.index_cast %371 : i32 to index
    %c5_318 = arith.constant 5 : index
    %373 = memref.load %arg1[%372, %c5_318] : memref<8x8xi32, #tpu.memory_space<smem>>
    %c4_i32_319 = arith.constant 4 : i32
    %c5_i32_320 = arith.constant 5 : i32
    %c4_i32_321 = arith.constant 4 : i32
    %c5_i32_322 = arith.constant 5 : i32
    %c0_i32_323 = arith.constant 0 : i32
    %374 = tpu.memref_slice %arg2[%373, %c0_i32_323] : memref<50x128xf32, #tpu.memory_space<any>> -> memref<1x128xf32, #tpu.memory_space<any>>
    %375 = tpu.memref_squeeze %374 : memref<1x128xf32, #tpu.memory_space<any>> -> memref<128xf32, #tpu.memory_space<any>>
    %c0_i32_324 = arith.constant 0 : i32
    %376 = tpu.memref_slice %arg8[%c4_i32_319, %c5_i32_320, %c0_i32_324] : memref<8x8x128xf32, #tpu.memory_space<vmem>> -> memref<1x1x128xf32, #tpu.memory_space<vmem>>
    %377 = tpu.memref_squeeze %376 : memref<1x1x128xf32, #tpu.memory_space<vmem>> -> memref<128xf32, #tpu.memory_space<vmem>>
    %378 = tpu.memref_slice %arg9[%c4_i32_321, %c5_i32_322] : memref<8x8x!tpu.dma_semaphore, #tpu.memory_space<semaphore_mem>> -> memref<1x1x!tpu.dma_semaphore, #tpu.memory_space<semaphore_mem>>
    %379 = tpu.memref_squeeze %378 : memref<1x1x!tpu.dma_semaphore, #tpu.memory_space<semaphore_mem>> -> memref<!tpu.dma_semaphore, #tpu.memory_space<semaphore_mem>>
    tpu.enqueue_dma source(%375 : memref<128xf32, #tpu.memory_space<any>>) target(%377 : memref<128xf32, #tpu.memory_space<vmem>>) target_semaphore(%379 : memref<!tpu.dma_semaphore, #tpu.memory_space<semaphore_mem>>)
    %c8_i32_325 = arith.constant 8 : i32
    %380 = arith.muli %arg0, %c8_i32_325 : i32
    %c4_i32_326 = arith.constant 4 : i32
    %381 = arith.addi %380, %c4_i32_326 : i32
    %382 = arith.index_cast %381 : i32 to index
    %c6_327 = arith.constant 6 : index
    %383 = memref.load %arg1[%382, %c6_327] : memref<8x8xi32, #tpu.memory_space<smem>>
    %c4_i32_328 = arith.constant 4 : i32
    %c6_i32_329 = arith.constant 6 : i32
    %c4_i32_330 = arith.constant 4 : i32
    %c6_i32_331 = arith.constant 6 : i32
    %c0_i32_332 = arith.constant 0 : i32
    %384 = tpu.memref_slice %arg2[%383, %c0_i32_332] : memref<50x128xf32, #tpu.memory_space<any>> -> memref<1x128xf32, #tpu.memory_space<any>>
    %385 = tpu.memref_squeeze %384 : memref<1x128xf32, #tpu.memory_space<any>> -> memref<128xf32, #tpu.memory_space<any>>
    %c0_i32_333 = arith.constant 0 : i32
    %386 = tpu.memref_slice %arg8[%c4_i32_328, %c6_i32_329, %c0_i32_333] : memref<8x8x128xf32, #tpu.memory_space<vmem>> -> memref<1x1x128xf32, #tpu.memory_space<vmem>>
    %387 = tpu.memref_squeeze %386 : memref<1x1x128xf32, #tpu.memory_space<vmem>> -> memref<128xf32, #tpu.memory_space<vmem>>
    %388 = tpu.memref_slice %arg9[%c4_i32_330, %c6_i32_331] : memref<8x8x!tpu.dma_semaphore, #tpu.memory_space<semaphore_mem>> -> memref<1x1x!tpu.dma_semaphore, #tpu.memory_space<semaphore_mem>>
    %389 = tpu.memref_squeeze %388 : memref<1x1x!tpu.dma_semaphore, #tpu.memory_space<semaphore_mem>> -> memref<!tpu.dma_semaphore, #tpu.memory_space<semaphore_mem>>
    tpu.enqueue_dma source(%385 : memref<128xf32, #tpu.memory_space<any>>) target(%387 : memref<128xf32, #tpu.memory_space<vmem>>) target_semaphore(%389 : memref<!tpu.dma_semaphore, #tpu.memory_space<semaphore_mem>>)
    %c8_i32_334 = arith.constant 8 : i32
    %390 = arith.muli %arg0, %c8_i32_334 : i32
    %c4_i32_335 = arith.constant 4 : i32
    %391 = arith.addi %390, %c4_i32_335 : i32
    %392 = arith.index_cast %391 : i32 to index
    %c7_336 = arith.constant 7 : index
    %393 = memref.load %arg1[%392, %c7_336] : memref<8x8xi32, #tpu.memory_space<smem>>
    %c4_i32_337 = arith.constant 4 : i32
    %c7_i32_338 = arith.constant 7 : i32
    %c4_i32_339 = arith.constant 4 : i32
    %c7_i32_340 = arith.constant 7 : i32
    %c0_i32_341 = arith.constant 0 : i32
    %394 = tpu.memref_slice %arg2[%393, %c0_i32_341] : memref<50x128xf32, #tpu.memory_space<any>> -> memref<1x128xf32, #tpu.memory_space<any>>
    %395 = tpu.memref_squeeze %394 : memref<1x128xf32, #tpu.memory_space<any>> -> memref<128xf32, #tpu.memory_space<any>>
    %c0_i32_342 = arith.constant 0 : i32
    %396 = tpu.memref_slice %arg8[%c4_i32_337, %c7_i32_338, %c0_i32_342] : memref<8x8x128xf32, #tpu.memory_space<vmem>> -> memref<1x1x128xf32, #tpu.memory_space<vmem>>
    %397 = tpu.memref_squeeze %396 : memref<1x1x128xf32, #tpu.memory_space<vmem>> -> memref<128xf32, #tpu.memory_space<vmem>>
    %398 = tpu.memref_slice %arg9[%c4_i32_339, %c7_i32_340] : memref<8x8x!tpu.dma_semaphore, #tpu.memory_space<semaphore_mem>> -> memref<1x1x!tpu.dma_semaphore, #tpu.memory_space<semaphore_mem>>
    %399 = tpu.memref_squeeze %398 : memref<1x1x!tpu.dma_semaphore, #tpu.memory_space<semaphore_mem>> -> memref<!tpu.dma_semaphore, #tpu.memory_space<semaphore_mem>>
    tpu.enqueue_dma source(%395 : memref<128xf32, #tpu.memory_space<any>>) target(%397 : memref<128xf32, #tpu.memory_space<vmem>>) target_semaphore(%399 : memref<!tpu.dma_semaphore, #tpu.memory_space<semaphore_mem>>)
    %c8_i32_343 = arith.constant 8 : i32
    %400 = arith.muli %arg0, %c8_i32_343 : i32
    %c5_i32_344 = arith.constant 5 : i32
    %401 = arith.addi %400, %c5_i32_344 : i32
    %402 = arith.index_cast %401 : i32 to index
    %c0_345 = arith.constant 0 : index
    %403 = memref.load %arg1[%402, %c0_345] : memref<8x8xi32, #tpu.memory_space<smem>>
    %c5_i32_346 = arith.constant 5 : i32
    %c0_i32_347 = arith.constant 0 : i32
    %c5_i32_348 = arith.constant 5 : i32
    %c0_i32_349 = arith.constant 0 : i32
    %c0_i32_350 = arith.constant 0 : i32
    %404 = tpu.memref_slice %arg2[%403, %c0_i32_350] : memref<50x128xf32, #tpu.memory_space<any>> -> memref<1x128xf32, #tpu.memory_space<any>>
    %405 = tpu.memref_squeeze %404 : memref<1x128xf32, #tpu.memory_space<any>> -> memref<128xf32, #tpu.memory_space<any>>
    %c0_i32_351 = arith.constant 0 : i32
    %406 = tpu.memref_slice %arg8[%c5_i32_346, %c0_i32_347, %c0_i32_351] : memref<8x8x128xf32, #tpu.memory_space<vmem>> -> memref<1x1x128xf32, #tpu.memory_space<vmem>>
    %407 = tpu.memref_squeeze %406 : memref<1x1x128xf32, #tpu.memory_space<vmem>> -> memref<128xf32, #tpu.memory_space<vmem>>
    %408 = tpu.memref_slice %arg9[%c5_i32_348, %c0_i32_349] : memref<8x8x!tpu.dma_semaphore, #tpu.memory_space<semaphore_mem>> -> memref<1x1x!tpu.dma_semaphore, #tpu.memory_space<semaphore_mem>>
    %409 = tpu.memref_squeeze %408 : memref<1x1x!tpu.dma_semaphore, #tpu.memory_space<semaphore_mem>> -> memref<!tpu.dma_semaphore, #tpu.memory_space<semaphore_mem>>
    tpu.enqueue_dma source(%405 : memref<128xf32, #tpu.memory_space<any>>) target(%407 : memref<128xf32, #tpu.memory_space<vmem>>) target_semaphore(%409 : memref<!tpu.dma_semaphore, #tpu.memory_space<semaphore_mem>>)
    %c8_i32_352 = arith.constant 8 : i32
    %410 = arith.muli %arg0, %c8_i32_352 : i32
    %c5_i32_353 = arith.constant 5 : i32
    %411 = arith.addi %410, %c5_i32_353 : i32
    %412 = arith.index_cast %411 : i32 to index
    %c1_354 = arith.constant 1 : index
    %413 = memref.load %arg1[%412, %c1_354] : memref<8x8xi32, #tpu.memory_space<smem>>
    %c5_i32_355 = arith.constant 5 : i32
    %c1_i32_356 = arith.constant 1 : i32
    %c5_i32_357 = arith.constant 5 : i32
    %c1_i32_358 = arith.constant 1 : i32
    %c0_i32_359 = arith.constant 0 : i32
    %414 = tpu.memref_slice %arg2[%413, %c0_i32_359] : memref<50x128xf32, #tpu.memory_space<any>> -> memref<1x128xf32, #tpu.memory_space<any>>
    %415 = tpu.memref_squeeze %414 : memref<1x128xf32, #tpu.memory_space<any>> -> memref<128xf32, #tpu.memory_space<any>>
    %c0_i32_360 = arith.constant 0 : i32
    %416 = tpu.memref_slice %arg8[%c5_i32_355, %c1_i32_356, %c0_i32_360] : memref<8x8x128xf32, #tpu.memory_space<vmem>> -> memref<1x1x128xf32, #tpu.memory_space<vmem>>
    %417 = tpu.memref_squeeze %416 : memref<1x1x128xf32, #tpu.memory_space<vmem>> -> memref<128xf32, #tpu.memory_space<vmem>>
    %418 = tpu.memref_slice %arg9[%c5_i32_357, %c1_i32_358] : memref<8x8x!tpu.dma_semaphore, #tpu.memory_space<semaphore_mem>> -> memref<1x1x!tpu.dma_semaphore, #tpu.memory_space<semaphore_mem>>
    %419 = tpu.memref_squeeze %418 : memref<1x1x!tpu.dma_semaphore, #tpu.memory_space<semaphore_mem>> -> memref<!tpu.dma_semaphore, #tpu.memory_space<semaphore_mem>>
    tpu.enqueue_dma source(%415 : memref<128xf32, #tpu.memory_space<any>>) target(%417 : memref<128xf32, #tpu.memory_space<vmem>>) target_semaphore(%419 : memref<!tpu.dma_semaphore, #tpu.memory_space<semaphore_mem>>)
    %c8_i32_361 = arith.constant 8 : i32
    %420 = arith.muli %arg0, %c8_i32_361 : i32
    %c5_i32_362 = arith.constant 5 : i32
    %421 = arith.addi %420, %c5_i32_362 : i32
    %422 = arith.index_cast %421 : i32 to index
    %c2_363 = arith.constant 2 : index
    %423 = memref.load %arg1[%422, %c2_363] : memref<8x8xi32, #tpu.memory_space<smem>>
    %c5_i32_364 = arith.constant 5 : i32
    %c2_i32_365 = arith.constant 2 : i32
    %c5_i32_366 = arith.constant 5 : i32
    %c2_i32_367 = arith.constant 2 : i32
    %c0_i32_368 = arith.constant 0 : i32
    %424 = tpu.memref_slice %arg2[%423, %c0_i32_368] : memref<50x128xf32, #tpu.memory_space<any>> -> memref<1x128xf32, #tpu.memory_space<any>>
    %425 = tpu.memref_squeeze %424 : memref<1x128xf32, #tpu.memory_space<any>> -> memref<128xf32, #tpu.memory_space<any>>
    %c0_i32_369 = arith.constant 0 : i32
    %426 = tpu.memref_slice %arg8[%c5_i32_364, %c2_i32_365, %c0_i32_369] : memref<8x8x128xf32, #tpu.memory_space<vmem>> -> memref<1x1x128xf32, #tpu.memory_space<vmem>>
    %427 = tpu.memref_squeeze %426 : memref<1x1x128xf32, #tpu.memory_space<vmem>> -> memref<128xf32, #tpu.memory_space<vmem>>
    %428 = tpu.memref_slice %arg9[%c5_i32_366, %c2_i32_367] : memref<8x8x!tpu.dma_semaphore, #tpu.memory_space<semaphore_mem>> -> memref<1x1x!tpu.dma_semaphore, #tpu.memory_space<semaphore_mem>>
    %429 = tpu.memref_squeeze %428 : memref<1x1x!tpu.dma_semaphore, #tpu.memory_space<semaphore_mem>> -> memref<!tpu.dma_semaphore, #tpu.memory_space<semaphore_mem>>
    tpu.enqueue_dma source(%425 : memref<128xf32, #tpu.memory_space<any>>) target(%427 : memref<128xf32, #tpu.memory_space<vmem>>) target_semaphore(%429 : memref<!tpu.dma_semaphore, #tpu.memory_space<semaphore_mem>>)
    %c8_i32_370 = arith.constant 8 : i32
    %430 = arith.muli %arg0, %c8_i32_370 : i32
    %c5_i32_371 = arith.constant 5 : i32
    %431 = arith.addi %430, %c5_i32_371 : i32
    %432 = arith.index_cast %431 : i32 to index
    %c3_372 = arith.constant 3 : index
    %433 = memref.load %arg1[%432, %c3_372] : memref<8x8xi32, #tpu.memory_space<smem>>
    %c5_i32_373 = arith.constant 5 : i32
    %c3_i32_374 = arith.constant 3 : i32
    %c5_i32_375 = arith.constant 5 : i32
    %c3_i32_376 = arith.constant 3 : i32
    %c0_i32_377 = arith.constant 0 : i32
    %434 = tpu.memref_slice %arg2[%433, %c0_i32_377] : memref<50x128xf32, #tpu.memory_space<any>> -> memref<1x128xf32, #tpu.memory_space<any>>
    %435 = tpu.memref_squeeze %434 : memref<1x128xf32, #tpu.memory_space<any>> -> memref<128xf32, #tpu.memory_space<any>>
    %c0_i32_378 = arith.constant 0 : i32
    %436 = tpu.memref_slice %arg8[%c5_i32_373, %c3_i32_374, %c0_i32_378] : memref<8x8x128xf32, #tpu.memory_space<vmem>> -> memref<1x1x128xf32, #tpu.memory_space<vmem>>
    %437 = tpu.memref_squeeze %436 : memref<1x1x128xf32, #tpu.memory_space<vmem>> -> memref<128xf32, #tpu.memory_space<vmem>>
    %438 = tpu.memref_slice %arg9[%c5_i32_375, %c3_i32_376] : memref<8x8x!tpu.dma_semaphore, #tpu.memory_space<semaphore_mem>> -> memref<1x1x!tpu.dma_semaphore, #tpu.memory_space<semaphore_mem>>
    %439 = tpu.memref_squeeze %438 : memref<1x1x!tpu.dma_semaphore, #tpu.memory_space<semaphore_mem>> -> memref<!tpu.dma_semaphore, #tpu.memory_space<semaphore_mem>>
    tpu.enqueue_dma source(%435 : memref<128xf32, #tpu.memory_space<any>>) target(%437 : memref<128xf32, #tpu.memory_space<vmem>>) target_semaphore(%439 : memref<!tpu.dma_semaphore, #tpu.memory_space<semaphore_mem>>)
    %c8_i32_379 = arith.constant 8 : i32
    %440 = arith.muli %arg0, %c8_i32_379 : i32
    %c5_i32_380 = arith.constant 5 : i32
    %441 = arith.addi %440, %c5_i32_380 : i32
    %442 = arith.index_cast %441 : i32 to index
    %c4_381 = arith.constant 4 : index
    %443 = memref.load %arg1[%442, %c4_381] : memref<8x8xi32, #tpu.memory_space<smem>>
    %c5_i32_382 = arith.constant 5 : i32
    %c4_i32_383 = arith.constant 4 : i32
    %c5_i32_384 = arith.constant 5 : i32
    %c4_i32_385 = arith.constant 4 : i32
    %c0_i32_386 = arith.constant 0 : i32
    %444 = tpu.memref_slice %arg2[%443, %c0_i32_386] : memref<50x128xf32, #tpu.memory_space<any>> -> memref<1x128xf32, #tpu.memory_space<any>>
    %445 = tpu.memref_squeeze %444 : memref<1x128xf32, #tpu.memory_space<any>> -> memref<128xf32, #tpu.memory_space<any>>
    %c0_i32_387 = arith.constant 0 : i32
    %446 = tpu.memref_slice %arg8[%c5_i32_382, %c4_i32_383, %c0_i32_387] : memref<8x8x128xf32, #tpu.memory_space<vmem>> -> memref<1x1x128xf32, #tpu.memory_space<vmem>>
    %447 = tpu.memref_squeeze %446 : memref<1x1x128xf32, #tpu.memory_space<vmem>> -> memref<128xf32, #tpu.memory_space<vmem>>
    %448 = tpu.memref_slice %arg9[%c5_i32_384, %c4_i32_385] : memref<8x8x!tpu.dma_semaphore, #tpu.memory_space<semaphore_mem>> -> memref<1x1x!tpu.dma_semaphore, #tpu.memory_space<semaphore_mem>>
    %449 = tpu.memref_squeeze %448 : memref<1x1x!tpu.dma_semaphore, #tpu.memory_space<semaphore_mem>> -> memref<!tpu.dma_semaphore, #tpu.memory_space<semaphore_mem>>
    tpu.enqueue_dma source(%445 : memref<128xf32, #tpu.memory_space<any>>) target(%447 : memref<128xf32, #tpu.memory_space<vmem>>) target_semaphore(%449 : memref<!tpu.dma_semaphore, #tpu.memory_space<semaphore_mem>>)
    %c8_i32_388 = arith.constant 8 : i32
    %450 = arith.muli %arg0, %c8_i32_388 : i32
    %c5_i32_389 = arith.constant 5 : i32
    %451 = arith.addi %450, %c5_i32_389 : i32
    %452 = arith.index_cast %451 : i32 to index
    %c5_390 = arith.constant 5 : index
    %453 = memref.load %arg1[%452, %c5_390] : memref<8x8xi32, #tpu.memory_space<smem>>
    %c5_i32_391 = arith.constant 5 : i32
    %c5_i32_392 = arith.constant 5 : i32
    %c5_i32_393 = arith.constant 5 : i32
    %c5_i32_394 = arith.constant 5 : i32
    %c0_i32_395 = arith.constant 0 : i32
    %454 = tpu.memref_slice %arg2[%453, %c0_i32_395] : memref<50x128xf32, #tpu.memory_space<any>> -> memref<1x128xf32, #tpu.memory_space<any>>
    %455 = tpu.memref_squeeze %454 : memref<1x128xf32, #tpu.memory_space<any>> -> memref<128xf32, #tpu.memory_space<any>>
    %c0_i32_396 = arith.constant 0 : i32
    %456 = tpu.memref_slice %arg8[%c5_i32_391, %c5_i32_392, %c0_i32_396] : memref<8x8x128xf32, #tpu.memory_space<vmem>> -> memref<1x1x128xf32, #tpu.memory_space<vmem>>
    %457 = tpu.memref_squeeze %456 : memref<1x1x128xf32, #tpu.memory_space<vmem>> -> memref<128xf32, #tpu.memory_space<vmem>>
    %458 = tpu.memref_slice %arg9[%c5_i32_393, %c5_i32_394] : memref<8x8x!tpu.dma_semaphore, #tpu.memory_space<semaphore_mem>> -> memref<1x1x!tpu.dma_semaphore, #tpu.memory_space<semaphore_mem>>
    %459 = tpu.memref_squeeze %458 : memref<1x1x!tpu.dma_semaphore, #tpu.memory_space<semaphore_mem>> -> memref<!tpu.dma_semaphore, #tpu.memory_space<semaphore_mem>>
    tpu.enqueue_dma source(%455 : memref<128xf32, #tpu.memory_space<any>>) target(%457 : memref<128xf32, #tpu.memory_space<vmem>>) target_semaphore(%459 : memref<!tpu.dma_semaphore, #tpu.memory_space<semaphore_mem>>)
    %c8_i32_397 = arith.constant 8 : i32
    %460 = arith.muli %arg0, %c8_i32_397 : i32
    %c5_i32_398 = arith.constant 5 : i32
    %461 = arith.addi %460, %c5_i32_398 : i32
    %462 = arith.index_cast %461 : i32 to index
    %c6_399 = arith.constant 6 : index
    %463 = memref.load %arg1[%462, %c6_399] : memref<8x8xi32, #tpu.memory_space<smem>>
    %c5_i32_400 = arith.constant 5 : i32
    %c6_i32_401 = arith.constant 6 : i32
    %c5_i32_402 = arith.constant 5 : i32
    %c6_i32_403 = arith.constant 6 : i32
    %c0_i32_404 = arith.constant 0 : i32
    %464 = tpu.memref_slice %arg2[%463, %c0_i32_404] : memref<50x128xf32, #tpu.memory_space<any>> -> memref<1x128xf32, #tpu.memory_space<any>>
    %465 = tpu.memref_squeeze %464 : memref<1x128xf32, #tpu.memory_space<any>> -> memref<128xf32, #tpu.memory_space<any>>
    %c0_i32_405 = arith.constant 0 : i32
    %466 = tpu.memref_slice %arg8[%c5_i32_400, %c6_i32_401, %c0_i32_405] : memref<8x8x128xf32, #tpu.memory_space<vmem>> -> memref<1x1x128xf32, #tpu.memory_space<vmem>>
    %467 = tpu.memref_squeeze %466 : memref<1x1x128xf32, #tpu.memory_space<vmem>> -> memref<128xf32, #tpu.memory_space<vmem>>
    %468 = tpu.memref_slice %arg9[%c5_i32_402, %c6_i32_403] : memref<8x8x!tpu.dma_semaphore, #tpu.memory_space<semaphore_mem>> -> memref<1x1x!tpu.dma_semaphore, #tpu.memory_space<semaphore_mem>>
    %469 = tpu.memref_squeeze %468 : memref<1x1x!tpu.dma_semaphore, #tpu.memory_space<semaphore_mem>> -> memref<!tpu.dma_semaphore, #tpu.memory_space<semaphore_mem>>
    tpu.enqueue_dma source(%465 : memref<128xf32, #tpu.memory_space<any>>) target(%467 : memref<128xf32, #tpu.memory_space<vmem>>) target_semaphore(%469 : memref<!tpu.dma_semaphore, #tpu.memory_space<semaphore_mem>>)
    %c8_i32_406 = arith.constant 8 : i32
    %470 = arith.muli %arg0, %c8_i32_406 : i32
    %c5_i32_407 = arith.constant 5 : i32
    %471 = arith.addi %470, %c5_i32_407 : i32
    %472 = arith.index_cast %471 : i32 to index
    %c7_408 = arith.constant 7 : index
    %473 = memref.load %arg1[%472, %c7_408] : memref<8x8xi32, #tpu.memory_space<smem>>
    %c5_i32_409 = arith.constant 5 : i32
    %c7_i32_410 = arith.constant 7 : i32
    %c5_i32_411 = arith.constant 5 : i32
    %c7_i32_412 = arith.constant 7 : i32
    %c0_i32_413 = arith.constant 0 : i32
    %474 = tpu.memref_slice %arg2[%473, %c0_i32_413] : memref<50x128xf32, #tpu.memory_space<any>> -> memref<1x128xf32, #tpu.memory_space<any>>
    %475 = tpu.memref_squeeze %474 : memref<1x128xf32, #tpu.memory_space<any>> -> memref<128xf32, #tpu.memory_space<any>>
    %c0_i32_414 = arith.constant 0 : i32
    %476 = tpu.memref_slice %arg8[%c5_i32_409, %c7_i32_410, %c0_i32_414] : memref<8x8x128xf32, #tpu.memory_space<vmem>> -> memref<1x1x128xf32, #tpu.memory_space<vmem>>
    %477 = tpu.memref_squeeze %476 : memref<1x1x128xf32, #tpu.memory_space<vmem>> -> memref<128xf32, #tpu.memory_space<vmem>>
    %478 = tpu.memref_slice %arg9[%c5_i32_411, %c7_i32_412] : memref<8x8x!tpu.dma_semaphore, #tpu.memory_space<semaphore_mem>> -> memref<1x1x!tpu.dma_semaphore, #tpu.memory_space<semaphore_mem>>
    %479 = tpu.memref_squeeze %478 : memref<1x1x!tpu.dma_semaphore, #tpu.memory_space<semaphore_mem>> -> memref<!tpu.dma_semaphore, #tpu.memory_space<semaphore_mem>>
    tpu.enqueue_dma source(%475 : memref<128xf32, #tpu.memory_space<any>>) target(%477 : memref<128xf32, #tpu.memory_space<vmem>>) target_semaphore(%479 : memref<!tpu.dma_semaphore, #tpu.memory_space<semaphore_mem>>)
    %c8_i32_415 = arith.constant 8 : i32
    %480 = arith.muli %arg0, %c8_i32_415 : i32
    %c6_i32_416 = arith.constant 6 : i32
    %481 = arith.addi %480, %c6_i32_416 : i32
    %482 = arith.index_cast %481 : i32 to index
    %c0_417 = arith.constant 0 : index
    %483 = memref.load %arg1[%482, %c0_417] : memref<8x8xi32, #tpu.memory_space<smem>>
    %c6_i32_418 = arith.constant 6 : i32
    %c0_i32_419 = arith.constant 0 : i32
    %c6_i32_420 = arith.constant 6 : i32
    %c0_i32_421 = arith.constant 0 : i32
    %c0_i32_422 = arith.constant 0 : i32
    %484 = tpu.memref_slice %arg2[%483, %c0_i32_422] : memref<50x128xf32, #tpu.memory_space<any>> -> memref<1x128xf32, #tpu.memory_space<any>>
    %485 = tpu.memref_squeeze %484 : memref<1x128xf32, #tpu.memory_space<any>> -> memref<128xf32, #tpu.memory_space<any>>
    %c0_i32_423 = arith.constant 0 : i32
    %486 = tpu.memref_slice %arg8[%c6_i32_418, %c0_i32_419, %c0_i32_423] : memref<8x8x128xf32, #tpu.memory_space<vmem>> -> memref<1x1x128xf32, #tpu.memory_space<vmem>>
    %487 = tpu.memref_squeeze %486 : memref<1x1x128xf32, #tpu.memory_space<vmem>> -> memref<128xf32, #tpu.memory_space<vmem>>
    %488 = tpu.memref_slice %arg9[%c6_i32_420, %c0_i32_421] : memref<8x8x!tpu.dma_semaphore, #tpu.memory_space<semaphore_mem>> -> memref<1x1x!tpu.dma_semaphore, #tpu.memory_space<semaphore_mem>>
    %489 = tpu.memref_squeeze %488 : memref<1x1x!tpu.dma_semaphore, #tpu.memory_space<semaphore_mem>> -> memref<!tpu.dma_semaphore, #tpu.memory_space<semaphore_mem>>
    tpu.enqueue_dma source(%485 : memref<128xf32, #tpu.memory_space<any>>) target(%487 : memref<128xf32, #tpu.memory_space<vmem>>) target_semaphore(%489 : memref<!tpu.dma_semaphore, #tpu.memory_space<semaphore_mem>>)
    %c8_i32_424 = arith.constant 8 : i32
    %490 = arith.muli %arg0, %c8_i32_424 : i32
    %c6_i32_425 = arith.constant 6 : i32
    %491 = arith.addi %490, %c6_i32_425 : i32
    %492 = arith.index_cast %491 : i32 to index
    %c1_426 = arith.constant 1 : index
    %493 = memref.load %arg1[%492, %c1_426] : memref<8x8xi32, #tpu.memory_space<smem>>
    %c6_i32_427 = arith.constant 6 : i32
    %c1_i32_428 = arith.constant 1 : i32
    %c6_i32_429 = arith.constant 6 : i32
    %c1_i32_430 = arith.constant 1 : i32
    %c0_i32_431 = arith.constant 0 : i32
    %494 = tpu.memref_slice %arg2[%493, %c0_i32_431] : memref<50x128xf32, #tpu.memory_space<any>> -> memref<1x128xf32, #tpu.memory_space<any>>
    %495 = tpu.memref_squeeze %494 : memref<1x128xf32, #tpu.memory_space<any>> -> memref<128xf32, #tpu.memory_space<any>>
    %c0_i32_432 = arith.constant 0 : i32
    %496 = tpu.memref_slice %arg8[%c6_i32_427, %c1_i32_428, %c0_i32_432] : memref<8x8x128xf32, #tpu.memory_space<vmem>> -> memref<1x1x128xf32, #tpu.memory_space<vmem>>
    %497 = tpu.memref_squeeze %496 : memref<1x1x128xf32, #tpu.memory_space<vmem>> -> memref<128xf32, #tpu.memory_space<vmem>>
    %498 = tpu.memref_slice %arg9[%c6_i32_429, %c1_i32_430] : memref<8x8x!tpu.dma_semaphore, #tpu.memory_space<semaphore_mem>> -> memref<1x1x!tpu.dma_semaphore, #tpu.memory_space<semaphore_mem>>
    %499 = tpu.memref_squeeze %498 : memref<1x1x!tpu.dma_semaphore, #tpu.memory_space<semaphore_mem>> -> memref<!tpu.dma_semaphore, #tpu.memory_space<semaphore_mem>>
    tpu.enqueue_dma source(%495 : memref<128xf32, #tpu.memory_space<any>>) target(%497 : memref<128xf32, #tpu.memory_space<vmem>>) target_semaphore(%499 : memref<!tpu.dma_semaphore, #tpu.memory_space<semaphore_mem>>)
    %c8_i32_433 = arith.constant 8 : i32
    %500 = arith.muli %arg0, %c8_i32_433 : i32
    %c6_i32_434 = arith.constant 6 : i32
    %501 = arith.addi %500, %c6_i32_434 : i32
    %502 = arith.index_cast %501 : i32 to index
    %c2_435 = arith.constant 2 : index
    %503 = memref.load %arg1[%502, %c2_435] : memref<8x8xi32, #tpu.memory_space<smem>>
    %c6_i32_436 = arith.constant 6 : i32
    %c2_i32_437 = arith.constant 2 : i32
    %c6_i32_438 = arith.constant 6 : i32
    %c2_i32_439 = arith.constant 2 : i32
    %c0_i32_440 = arith.constant 0 : i32
    %504 = tpu.memref_slice %arg2[%503, %c0_i32_440] : memref<50x128xf32, #tpu.memory_space<any>> -> memref<1x128xf32, #tpu.memory_space<any>>
    %505 = tpu.memref_squeeze %504 : memref<1x128xf32, #tpu.memory_space<any>> -> memref<128xf32, #tpu.memory_space<any>>
    %c0_i32_441 = arith.constant 0 : i32
    %506 = tpu.memref_slice %arg8[%c6_i32_436, %c2_i32_437, %c0_i32_441] : memref<8x8x128xf32, #tpu.memory_space<vmem>> -> memref<1x1x128xf32, #tpu.memory_space<vmem>>
    %507 = tpu.memref_squeeze %506 : memref<1x1x128xf32, #tpu.memory_space<vmem>> -> memref<128xf32, #tpu.memory_space<vmem>>
    %508 = tpu.memref_slice %arg9[%c6_i32_438, %c2_i32_439] : memref<8x8x!tpu.dma_semaphore, #tpu.memory_space<semaphore_mem>> -> memref<1x1x!tpu.dma_semaphore, #tpu.memory_space<semaphore_mem>>
    %509 = tpu.memref_squeeze %508 : memref<1x1x!tpu.dma_semaphore, #tpu.memory_space<semaphore_mem>> -> memref<!tpu.dma_semaphore, #tpu.memory_space<semaphore_mem>>
    tpu.enqueue_dma source(%505 : memref<128xf32, #tpu.memory_space<any>>) target(%507 : memref<128xf32, #tpu.memory_space<vmem>>) target_semaphore(%509 : memref<!tpu.dma_semaphore, #tpu.memory_space<semaphore_mem>>)
    %c8_i32_442 = arith.constant 8 : i32
    %510 = arith.muli %arg0, %c8_i32_442 : i32
    %c6_i32_443 = arith.constant 6 : i32
    %511 = arith.addi %510, %c6_i32_443 : i32
    %512 = arith.index_cast %511 : i32 to index
    %c3_444 = arith.constant 3 : index
    %513 = memref.load %arg1[%512, %c3_444] : memref<8x8xi32, #tpu.memory_space<smem>>
    %c6_i32_445 = arith.constant 6 : i32
    %c3_i32_446 = arith.constant 3 : i32
    %c6_i32_447 = arith.constant 6 : i32
    %c3_i32_448 = arith.constant 3 : i32
    %c0_i32_449 = arith.constant 0 : i32
    %514 = tpu.memref_slice %arg2[%513, %c0_i32_449] : memref<50x128xf32, #tpu.memory_space<any>> -> memref<1x128xf32, #tpu.memory_space<any>>
    %515 = tpu.memref_squeeze %514 : memref<1x128xf32, #tpu.memory_space<any>> -> memref<128xf32, #tpu.memory_space<any>>
    %c0_i32_450 = arith.constant 0 : i32
    %516 = tpu.memref_slice %arg8[%c6_i32_445, %c3_i32_446, %c0_i32_450] : memref<8x8x128xf32, #tpu.memory_space<vmem>> -> memref<1x1x128xf32, #tpu.memory_space<vmem>>
    %517 = tpu.memref_squeeze %516 : memref<1x1x128xf32, #tpu.memory_space<vmem>> -> memref<128xf32, #tpu.memory_space<vmem>>
    %518 = tpu.memref_slice %arg9[%c6_i32_447, %c3_i32_448] : memref<8x8x!tpu.dma_semaphore, #tpu.memory_space<semaphore_mem>> -> memref<1x1x!tpu.dma_semaphore, #tpu.memory_space<semaphore_mem>>
    %519 = tpu.memref_squeeze %518 : memref<1x1x!tpu.dma_semaphore, #tpu.memory_space<semaphore_mem>> -> memref<!tpu.dma_semaphore, #tpu.memory_space<semaphore_mem>>
    tpu.enqueue_dma source(%515 : memref<128xf32, #tpu.memory_space<any>>) target(%517 : memref<128xf32, #tpu.memory_space<vmem>>) target_semaphore(%519 : memref<!tpu.dma_semaphore, #tpu.memory_space<semaphore_mem>>)
    %c8_i32_451 = arith.constant 8 : i32
    %520 = arith.muli %arg0, %c8_i32_451 : i32
    %c6_i32_452 = arith.constant 6 : i32
    %521 = arith.addi %520, %c6_i32_452 : i32
    %522 = arith.index_cast %521 : i32 to index
    %c4_453 = arith.constant 4 : index
    %523 = memref.load %arg1[%522, %c4_453] : memref<8x8xi32, #tpu.memory_space<smem>>
    %c6_i32_454 = arith.constant 6 : i32
    %c4_i32_455 = arith.constant 4 : i32
    %c6_i32_456 = arith.constant 6 : i32
    %c4_i32_457 = arith.constant 4 : i32
    %c0_i32_458 = arith.constant 0 : i32
    %524 = tpu.memref_slice %arg2[%523, %c0_i32_458] : memref<50x128xf32, #tpu.memory_space<any>> -> memref<1x128xf32, #tpu.memory_space<any>>
    %525 = tpu.memref_squeeze %524 : memref<1x128xf32, #tpu.memory_space<any>> -> memref<128xf32, #tpu.memory_space<any>>
    %c0_i32_459 = arith.constant 0 : i32
    %526 = tpu.memref_slice %arg8[%c6_i32_454, %c4_i32_455, %c0_i32_459] : memref<8x8x128xf32, #tpu.memory_space<vmem>> -> memref<1x1x128xf32, #tpu.memory_space<vmem>>
    %527 = tpu.memref_squeeze %526 : memref<1x1x128xf32, #tpu.memory_space<vmem>> -> memref<128xf32, #tpu.memory_space<vmem>>
    %528 = tpu.memref_slice %arg9[%c6_i32_456, %c4_i32_457] : memref<8x8x!tpu.dma_semaphore, #tpu.memory_space<semaphore_mem>> -> memref<1x1x!tpu.dma_semaphore, #tpu.memory_space<semaphore_mem>>
    %529 = tpu.memref_squeeze %528 : memref<1x1x!tpu.dma_semaphore, #tpu.memory_space<semaphore_mem>> -> memref<!tpu.dma_semaphore, #tpu.memory_space<semaphore_mem>>
    tpu.enqueue_dma source(%525 : memref<128xf32, #tpu.memory_space<any>>) target(%527 : memref<128xf32, #tpu.memory_space<vmem>>) target_semaphore(%529 : memref<!tpu.dma_semaphore, #tpu.memory_space<semaphore_mem>>)
    %c8_i32_460 = arith.constant 8 : i32
    %530 = arith.muli %arg0, %c8_i32_460 : i32
    %c6_i32_461 = arith.constant 6 : i32
    %531 = arith.addi %530, %c6_i32_461 : i32
    %532 = arith.index_cast %531 : i32 to index
    %c5_462 = arith.constant 5 : index
    %533 = memref.load %arg1[%532, %c5_462] : memref<8x8xi32, #tpu.memory_space<smem>>
    %c6_i32_463 = arith.constant 6 : i32
    %c5_i32_464 = arith.constant 5 : i32
    %c6_i32_465 = arith.constant 6 : i32
    %c5_i32_466 = arith.constant 5 : i32
    %c0_i32_467 = arith.constant 0 : i32
    %534 = tpu.memref_slice %arg2[%533, %c0_i32_467] : memref<50x128xf32, #tpu.memory_space<any>> -> memref<1x128xf32, #tpu.memory_space<any>>
    %535 = tpu.memref_squeeze %534 : memref<1x128xf32, #tpu.memory_space<any>> -> memref<128xf32, #tpu.memory_space<any>>
    %c0_i32_468 = arith.constant 0 : i32
    %536 = tpu.memref_slice %arg8[%c6_i32_463, %c5_i32_464, %c0_i32_468] : memref<8x8x128xf32, #tpu.memory_space<vmem>> -> memref<1x1x128xf32, #tpu.memory_space<vmem>>
    %537 = tpu.memref_squeeze %536 : memref<1x1x128xf32, #tpu.memory_space<vmem>> -> memref<128xf32, #tpu.memory_space<vmem>>
    %538 = tpu.memref_slice %arg9[%c6_i32_465, %c5_i32_466] : memref<8x8x!tpu.dma_semaphore, #tpu.memory_space<semaphore_mem>> -> memref<1x1x!tpu.dma_semaphore, #tpu.memory_space<semaphore_mem>>
    %539 = tpu.memref_squeeze %538 : memref<1x1x!tpu.dma_semaphore, #tpu.memory_space<semaphore_mem>> -> memref<!tpu.dma_semaphore, #tpu.memory_space<semaphore_mem>>
    tpu.enqueue_dma source(%535 : memref<128xf32, #tpu.memory_space<any>>) target(%537 : memref<128xf32, #tpu.memory_space<vmem>>) target_semaphore(%539 : memref<!tpu.dma_semaphore, #tpu.memory_space<semaphore_mem>>)
    %c8_i32_469 = arith.constant 8 : i32
    %540 = arith.muli %arg0, %c8_i32_469 : i32
    %c6_i32_470 = arith.constant 6 : i32
    %541 = arith.addi %540, %c6_i32_470 : i32
    %542 = arith.index_cast %541 : i32 to index
    %c6_471 = arith.constant 6 : index
    %543 = memref.load %arg1[%542, %c6_471] : memref<8x8xi32, #tpu.memory_space<smem>>
    %c6_i32_472 = arith.constant 6 : i32
    %c6_i32_473 = arith.constant 6 : i32
    %c6_i32_474 = arith.constant 6 : i32
    %c6_i32_475 = arith.constant 6 : i32
    %c0_i32_476 = arith.constant 0 : i32
    %544 = tpu.memref_slice %arg2[%543, %c0_i32_476] : memref<50x128xf32, #tpu.memory_space<any>> -> memref<1x128xf32, #tpu.memory_space<any>>
    %545 = tpu.memref_squeeze %544 : memref<1x128xf32, #tpu.memory_space<any>> -> memref<128xf32, #tpu.memory_space<any>>
    %c0_i32_477 = arith.constant 0 : i32
    %546 = tpu.memref_slice %arg8[%c6_i32_472, %c6_i32_473, %c0_i32_477] : memref<8x8x128xf32, #tpu.memory_space<vmem>> -> memref<1x1x128xf32, #tpu.memory_space<vmem>>
    %547 = tpu.memref_squeeze %546 : memref<1x1x128xf32, #tpu.memory_space<vmem>> -> memref<128xf32, #tpu.memory_space<vmem>>
    %548 = tpu.memref_slice %arg9[%c6_i32_474, %c6_i32_475] : memref<8x8x!tpu.dma_semaphore, #tpu.memory_space<semaphore_mem>> -> memref<1x1x!tpu.dma_semaphore, #tpu.memory_space<semaphore_mem>>
    %549 = tpu.memref_squeeze %548 : memref<1x1x!tpu.dma_semaphore, #tpu.memory_space<semaphore_mem>> -> memref<!tpu.dma_semaphore, #tpu.memory_space<semaphore_mem>>
    tpu.enqueue_dma source(%545 : memref<128xf32, #tpu.memory_space<any>>) target(%547 : memref<128xf32, #tpu.memory_space<vmem>>) target_semaphore(%549 : memref<!tpu.dma_semaphore, #tpu.memory_space<semaphore_mem>>)
    %c8_i32_478 = arith.constant 8 : i32
    %550 = arith.muli %arg0, %c8_i32_478 : i32
    %c6_i32_479 = arith.constant 6 : i32
    %551 = arith.addi %550, %c6_i32_479 : i32
    %552 = arith.index_cast %551 : i32 to index
    %c7_480 = arith.constant 7 : index
    %553 = memref.load %arg1[%552, %c7_480] : memref<8x8xi32, #tpu.memory_space<smem>>
    %c6_i32_481 = arith.constant 6 : i32
    %c7_i32_482 = arith.constant 7 : i32
    %c6_i32_483 = arith.constant 6 : i32
    %c7_i32_484 = arith.constant 7 : i32
    %c0_i32_485 = arith.constant 0 : i32
    %554 = tpu.memref_slice %arg2[%553, %c0_i32_485] : memref<50x128xf32, #tpu.memory_space<any>> -> memref<1x128xf32, #tpu.memory_space<any>>
    %555 = tpu.memref_squeeze %554 : memref<1x128xf32, #tpu.memory_space<any>> -> memref<128xf32, #tpu.memory_space<any>>
    %c0_i32_486 = arith.constant 0 : i32
    %556 = tpu.memref_slice %arg8[%c6_i32_481, %c7_i32_482, %c0_i32_486] : memref<8x8x128xf32, #tpu.memory_space<vmem>> -> memref<1x1x128xf32, #tpu.memory_space<vmem>>
    %557 = tpu.memref_squeeze %556 : memref<1x1x128xf32, #tpu.memory_space<vmem>> -> memref<128xf32, #tpu.memory_space<vmem>>
    %558 = tpu.memref_slice %arg9[%c6_i32_483, %c7_i32_484] : memref<8x8x!tpu.dma_semaphore, #tpu.memory_space<semaphore_mem>> -> memref<1x1x!tpu.dma_semaphore, #tpu.memory_space<semaphore_mem>>
    %559 = tpu.memref_squeeze %558 : memref<1x1x!tpu.dma_semaphore, #tpu.memory_space<semaphore_mem>> -> memref<!tpu.dma_semaphore, #tpu.memory_space<semaphore_mem>>
    tpu.enqueue_dma source(%555 : memref<128xf32, #tpu.memory_space<any>>) target(%557 : memref<128xf32, #tpu.memory_space<vmem>>) target_semaphore(%559 : memref<!tpu.dma_semaphore, #tpu.memory_space<semaphore_mem>>)
    %c8_i32_487 = arith.constant 8 : i32
    %560 = arith.muli %arg0, %c8_i32_487 : i32
    %c7_i32_488 = arith.constant 7 : i32
    %561 = arith.addi %560, %c7_i32_488 : i32
    %562 = arith.index_cast %561 : i32 to index
    %c0_489 = arith.constant 0 : index
    %563 = memref.load %arg1[%562, %c0_489] : memref<8x8xi32, #tpu.memory_space<smem>>
    %c7_i32_490 = arith.constant 7 : i32
    %c0_i32_491 = arith.constant 0 : i32
    %c7_i32_492 = arith.constant 7 : i32
    %c0_i32_493 = arith.constant 0 : i32
    %c0_i32_494 = arith.constant 0 : i32
    %564 = tpu.memref_slice %arg2[%563, %c0_i32_494] : memref<50x128xf32, #tpu.memory_space<any>> -> memref<1x128xf32, #tpu.memory_space<any>>
    %565 = tpu.memref_squeeze %564 : memref<1x128xf32, #tpu.memory_space<any>> -> memref<128xf32, #tpu.memory_space<any>>
    %c0_i32_495 = arith.constant 0 : i32
    %566 = tpu.memref_slice %arg8[%c7_i32_490, %c0_i32_491, %c0_i32_495] : memref<8x8x128xf32, #tpu.memory_space<vmem>> -> memref<1x1x128xf32, #tpu.memory_space<vmem>>
    %567 = tpu.memref_squeeze %566 : memref<1x1x128xf32, #tpu.memory_space<vmem>> -> memref<128xf32, #tpu.memory_space<vmem>>
    %568 = tpu.memref_slice %arg9[%c7_i32_492, %c0_i32_493] : memref<8x8x!tpu.dma_semaphore, #tpu.memory_space<semaphore_mem>> -> memref<1x1x!tpu.dma_semaphore, #tpu.memory_space<semaphore_mem>>
    %569 = tpu.memref_squeeze %568 : memref<1x1x!tpu.dma_semaphore, #tpu.memory_space<semaphore_mem>> -> memref<!tpu.dma_semaphore, #tpu.memory_space<semaphore_mem>>
    tpu.enqueue_dma source(%565 : memref<128xf32, #tpu.memory_space<any>>) target(%567 : memref<128xf32, #tpu.memory_space<vmem>>) target_semaphore(%569 : memref<!tpu.dma_semaphore, #tpu.memory_space<semaphore_mem>>)
    %c8_i32_496 = arith.constant 8 : i32
    %570 = arith.muli %arg0, %c8_i32_496 : i32
    %c7_i32_497 = arith.constant 7 : i32
    %571 = arith.addi %570, %c7_i32_497 : i32
    %572 = arith.index_cast %571 : i32 to index
    %c1_498 = arith.constant 1 : index
    %573 = memref.load %arg1[%572, %c1_498] : memref<8x8xi32, #tpu.memory_space<smem>>
    %c7_i32_499 = arith.constant 7 : i32
    %c1_i32_500 = arith.constant 1 : i32
    %c7_i32_501 = arith.constant 7 : i32
    %c1_i32_502 = arith.constant 1 : i32
    %c0_i32_503 = arith.constant 0 : i32
    %574 = tpu.memref_slice %arg2[%573, %c0_i32_503] : memref<50x128xf32, #tpu.memory_space<any>> -> memref<1x128xf32, #tpu.memory_space<any>>
    %575 = tpu.memref_squeeze %574 : memref<1x128xf32, #tpu.memory_space<any>> -> memref<128xf32, #tpu.memory_space<any>>
    %c0_i32_504 = arith.constant 0 : i32
    %576 = tpu.memref_slice %arg8[%c7_i32_499, %c1_i32_500, %c0_i32_504] : memref<8x8x128xf32, #tpu.memory_space<vmem>> -> memref<1x1x128xf32, #tpu.memory_space<vmem>>
    %577 = tpu.memref_squeeze %576 : memref<1x1x128xf32, #tpu.memory_space<vmem>> -> memref<128xf32, #tpu.memory_space<vmem>>
    %578 = tpu.memref_slice %arg9[%c7_i32_501, %c1_i32_502] : memref<8x8x!tpu.dma_semaphore, #tpu.memory_space<semaphore_mem>> -> memref<1x1x!tpu.dma_semaphore, #tpu.memory_space<semaphore_mem>>
    %579 = tpu.memref_squeeze %578 : memref<1x1x!tpu.dma_semaphore, #tpu.memory_space<semaphore_mem>> -> memref<!tpu.dma_semaphore, #tpu.memory_space<semaphore_mem>>
    tpu.enqueue_dma source(%575 : memref<128xf32, #tpu.memory_space<any>>) target(%577 : memref<128xf32, #tpu.memory_space<vmem>>) target_semaphore(%579 : memref<!tpu.dma_semaphore, #tpu.memory_space<semaphore_mem>>)
    %c8_i32_505 = arith.constant 8 : i32
    %580 = arith.muli %arg0, %c8_i32_505 : i32
    %c7_i32_506 = arith.constant 7 : i32
    %581 = arith.addi %580, %c7_i32_506 : i32
    %582 = arith.index_cast %581 : i32 to index
    %c2_507 = arith.constant 2 : index
    %583 = memref.load %arg1[%582, %c2_507] : memref<8x8xi32, #tpu.memory_space<smem>>
    %c7_i32_508 = arith.constant 7 : i32
    %c2_i32_509 = arith.constant 2 : i32
    %c7_i32_510 = arith.constant 7 : i32
    %c2_i32_511 = arith.constant 2 : i32
    %c0_i32_512 = arith.constant 0 : i32
    %584 = tpu.memref_slice %arg2[%583, %c0_i32_512] : memref<50x128xf32, #tpu.memory_space<any>> -> memref<1x128xf32, #tpu.memory_space<any>>
    %585 = tpu.memref_squeeze %584 : memref<1x128xf32, #tpu.memory_space<any>> -> memref<128xf32, #tpu.memory_space<any>>
    %c0_i32_513 = arith.constant 0 : i32
    %586 = tpu.memref_slice %arg8[%c7_i32_508, %c2_i32_509, %c0_i32_513] : memref<8x8x128xf32, #tpu.memory_space<vmem>> -> memref<1x1x128xf32, #tpu.memory_space<vmem>>
    %587 = tpu.memref_squeeze %586 : memref<1x1x128xf32, #tpu.memory_space<vmem>> -> memref<128xf32, #tpu.memory_space<vmem>>
    %588 = tpu.memref_slice %arg9[%c7_i32_510, %c2_i32_511] : memref<8x8x!tpu.dma_semaphore, #tpu.memory_space<semaphore_mem>> -> memref<1x1x!tpu.dma_semaphore, #tpu.memory_space<semaphore_mem>>
    %589 = tpu.memref_squeeze %588 : memref<1x1x!tpu.dma_semaphore, #tpu.memory_space<semaphore_mem>> -> memref<!tpu.dma_semaphore, #tpu.memory_space<semaphore_mem>>
    tpu.enqueue_dma source(%585 : memref<128xf32, #tpu.memory_space<any>>) target(%587 : memref<128xf32, #tpu.memory_space<vmem>>) target_semaphore(%589 : memref<!tpu.dma_semaphore, #tpu.memory_space<semaphore_mem>>)
    %c8_i32_514 = arith.constant 8 : i32
    %590 = arith.muli %arg0, %c8_i32_514 : i32
    %c7_i32_515 = arith.constant 7 : i32
    %591 = arith.addi %590, %c7_i32_515 : i32
    %592 = arith.index_cast %591 : i32 to index
    %c3_516 = arith.constant 3 : index
    %593 = memref.load %arg1[%592, %c3_516] : memref<8x8xi32, #tpu.memory_space<smem>>
    %c7_i32_517 = arith.constant 7 : i32
    %c3_i32_518 = arith.constant 3 : i32
    %c7_i32_519 = arith.constant 7 : i32
    %c3_i32_520 = arith.constant 3 : i32
    %c0_i32_521 = arith.constant 0 : i32
    %594 = tpu.memref_slice %arg2[%593, %c0_i32_521] : memref<50x128xf32, #tpu.memory_space<any>> -> memref<1x128xf32, #tpu.memory_space<any>>
    %595 = tpu.memref_squeeze %594 : memref<1x128xf32, #tpu.memory_space<any>> -> memref<128xf32, #tpu.memory_space<any>>
    %c0_i32_522 = arith.constant 0 : i32
    %596 = tpu.memref_slice %arg8[%c7_i32_517, %c3_i32_518, %c0_i32_522] : memref<8x8x128xf32, #tpu.memory_space<vmem>> -> memref<1x1x128xf32, #tpu.memory_space<vmem>>
    %597 = tpu.memref_squeeze %596 : memref<1x1x128xf32, #tpu.memory_space<vmem>> -> memref<128xf32, #tpu.memory_space<vmem>>
    %598 = tpu.memref_slice %arg9[%c7_i32_519, %c3_i32_520] : memref<8x8x!tpu.dma_semaphore, #tpu.memory_space<semaphore_mem>> -> memref<1x1x!tpu.dma_semaphore, #tpu.memory_space<semaphore_mem>>
    %599 = tpu.memref_squeeze %598 : memref<1x1x!tpu.dma_semaphore, #tpu.memory_space<semaphore_mem>> -> memref<!tpu.dma_semaphore, #tpu.memory_space<semaphore_mem>>
    tpu.enqueue_dma source(%595 : memref<128xf32, #tpu.memory_space<any>>) target(%597 : memref<128xf32, #tpu.memory_space<vmem>>) target_semaphore(%599 : memref<!tpu.dma_semaphore, #tpu.memory_space<semaphore_mem>>)
    %c8_i32_523 = arith.constant 8 : i32
    %600 = arith.muli %arg0, %c8_i32_523 : i32
    %c7_i32_524 = arith.constant 7 : i32
    %601 = arith.addi %600, %c7_i32_524 : i32
    %602 = arith.index_cast %601 : i32 to index
    %c4_525 = arith.constant 4 : index
    %603 = memref.load %arg1[%602, %c4_525] : memref<8x8xi32, #tpu.memory_space<smem>>
    %c7_i32_526 = arith.constant 7 : i32
    %c4_i32_527 = arith.constant 4 : i32
    %c7_i32_528 = arith.constant 7 : i32
    %c4_i32_529 = arith.constant 4 : i32
    %c0_i32_530 = arith.constant 0 : i32
    %604 = tpu.memref_slice %arg2[%603, %c0_i32_530] : memref<50x128xf32, #tpu.memory_space<any>> -> memref<1x128xf32, #tpu.memory_space<any>>
    %605 = tpu.memref_squeeze %604 : memref<1x128xf32, #tpu.memory_space<any>> -> memref<128xf32, #tpu.memory_space<any>>
    %c0_i32_531 = arith.constant 0 : i32
    %606 = tpu.memref_slice %arg8[%c7_i32_526, %c4_i32_527, %c0_i32_531] : memref<8x8x128xf32, #tpu.memory_space<vmem>> -> memref<1x1x128xf32, #tpu.memory_space<vmem>>
    %607 = tpu.memref_squeeze %606 : memref<1x1x128xf32, #tpu.memory_space<vmem>> -> memref<128xf32, #tpu.memory_space<vmem>>
    %608 = tpu.memref_slice %arg9[%c7_i32_528, %c4_i32_529] : memref<8x8x!tpu.dma_semaphore, #tpu.memory_space<semaphore_mem>> -> memref<1x1x!tpu.dma_semaphore, #tpu.memory_space<semaphore_mem>>
    %609 = tpu.memref_squeeze %608 : memref<1x1x!tpu.dma_semaphore, #tpu.memory_space<semaphore_mem>> -> memref<!tpu.dma_semaphore, #tpu.memory_space<semaphore_mem>>
    tpu.enqueue_dma source(%605 : memref<128xf32, #tpu.memory_space<any>>) target(%607 : memref<128xf32, #tpu.memory_space<vmem>>) target_semaphore(%609 : memref<!tpu.dma_semaphore, #tpu.memory_space<semaphore_mem>>)
    %c8_i32_532 = arith.constant 8 : i32
    %610 = arith.muli %arg0, %c8_i32_532 : i32
    %c7_i32_533 = arith.constant 7 : i32
    %611 = arith.addi %610, %c7_i32_533 : i32
    %612 = arith.index_cast %611 : i32 to index
    %c5_534 = arith.constant 5 : index
    %613 = memref.load %arg1[%612, %c5_534] : memref<8x8xi32, #tpu.memory_space<smem>>
    %c7_i32_535 = arith.constant 7 : i32
    %c5_i32_536 = arith.constant 5 : i32
    %c7_i32_537 = arith.constant 7 : i32
    %c5_i32_538 = arith.constant 5 : i32
    %c0_i32_539 = arith.constant 0 : i32
    %614 = tpu.memref_slice %arg2[%613, %c0_i32_539] : memref<50x128xf32, #tpu.memory_space<any>> -> memref<1x128xf32, #tpu.memory_space<any>>
    %615 = tpu.memref_squeeze %614 : memref<1x128xf32, #tpu.memory_space<any>> -> memref<128xf32, #tpu.memory_space<any>>
    %c0_i32_540 = arith.constant 0 : i32
    %616 = tpu.memref_slice %arg8[%c7_i32_535, %c5_i32_536, %c0_i32_540] : memref<8x8x128xf32, #tpu.memory_space<vmem>> -> memref<1x1x128xf32, #tpu.memory_space<vmem>>
    %617 = tpu.memref_squeeze %616 : memref<1x1x128xf32, #tpu.memory_space<vmem>> -> memref<128xf32, #tpu.memory_space<vmem>>
    %618 = tpu.memref_slice %arg9[%c7_i32_537, %c5_i32_538] : memref<8x8x!tpu.dma_semaphore, #tpu.memory_space<semaphore_mem>> -> memref<1x1x!tpu.dma_semaphore, #tpu.memory_space<semaphore_mem>>
    %619 = tpu.memref_squeeze %618 : memref<1x1x!tpu.dma_semaphore, #tpu.memory_space<semaphore_mem>> -> memref<!tpu.dma_semaphore, #tpu.memory_space<semaphore_mem>>
    tpu.enqueue_dma source(%615 : memref<128xf32, #tpu.memory_space<any>>) target(%617 : memref<128xf32, #tpu.memory_space<vmem>>) target_semaphore(%619 : memref<!tpu.dma_semaphore, #tpu.memory_space<semaphore_mem>>)
    %c8_i32_541 = arith.constant 8 : i32
    %620 = arith.muli %arg0, %c8_i32_541 : i32
    %c7_i32_542 = arith.constant 7 : i32
    %621 = arith.addi %620, %c7_i32_542 : i32
    %622 = arith.index_cast %621 : i32 to index
    %c6_543 = arith.constant 6 : index
    %623 = memref.load %arg1[%622, %c6_543] : memref<8x8xi32, #tpu.memory_space<smem>>
    %c7_i32_544 = arith.constant 7 : i32
    %c6_i32_545 = arith.constant 6 : i32
    %c7_i32_546 = arith.constant 7 : i32
    %c6_i32_547 = arith.constant 6 : i32
    %c0_i32_548 = arith.constant 0 : i32
    %624 = tpu.memref_slice %arg2[%623, %c0_i32_548] : memref<50x128xf32, #tpu.memory_space<any>> -> memref<1x128xf32, #tpu.memory_space<any>>
    %625 = tpu.memref_squeeze %624 : memref<1x128xf32, #tpu.memory_space<any>> -> memref<128xf32, #tpu.memory_space<any>>
    %c0_i32_549 = arith.constant 0 : i32
    %626 = tpu.memref_slice %arg8[%c7_i32_544, %c6_i32_545, %c0_i32_549] : memref<8x8x128xf32, #tpu.memory_space<vmem>> -> memref<1x1x128xf32, #tpu.memory_space<vmem>>
    %627 = tpu.memref_squeeze %626 : memref<1x1x128xf32, #tpu.memory_space<vmem>> -> memref<128xf32, #tpu.memory_space<vmem>>
    %628 = tpu.memref_slice %arg9[%c7_i32_546, %c6_i32_547] : memref<8x8x!tpu.dma_semaphore, #tpu.memory_space<semaphore_mem>> -> memref<1x1x!tpu.dma_semaphore, #tpu.memory_space<semaphore_mem>>
    %629 = tpu.memref_squeeze %628 : memref<1x1x!tpu.dma_semaphore, #tpu.memory_space<semaphore_mem>> -> memref<!tpu.dma_semaphore, #tpu.memory_space<semaphore_mem>>
    tpu.enqueue_dma source(%625 : memref<128xf32, #tpu.memory_space<any>>) target(%627 : memref<128xf32, #tpu.memory_space<vmem>>) target_semaphore(%629 : memref<!tpu.dma_semaphore, #tpu.memory_space<semaphore_mem>>)
    %c8_i32_550 = arith.constant 8 : i32
    %630 = arith.muli %arg0, %c8_i32_550 : i32
    %c7_i32_551 = arith.constant 7 : i32
    %631 = arith.addi %630, %c7_i32_551 : i32
    %632 = arith.index_cast %631 : i32 to index
    %c7_552 = arith.constant 7 : index
    %633 = memref.load %arg1[%632, %c7_552] : memref<8x8xi32, #tpu.memory_space<smem>>
    %c7_i32_553 = arith.constant 7 : i32
    %c7_i32_554 = arith.constant 7 : i32
    %c7_i32_555 = arith.constant 7 : i32
    %c7_i32_556 = arith.constant 7 : i32
    %c0_i32_557 = arith.constant 0 : i32
    %634 = tpu.memref_slice %arg2[%633, %c0_i32_557] : memref<50x128xf32, #tpu.memory_space<any>> -> memref<1x128xf32, #tpu.memory_space<any>>
    %635 = tpu.memref_squeeze %634 : memref<1x128xf32, #tpu.memory_space<any>> -> memref<128xf32, #tpu.memory_space<any>>
    %c0_i32_558 = arith.constant 0 : i32
    %636 = tpu.memref_slice %arg8[%c7_i32_553, %c7_i32_554, %c0_i32_558] : memref<8x8x128xf32, #tpu.memory_space<vmem>> -> memref<1x1x128xf32, #tpu.memory_space<vmem>>
    %637 = tpu.memref_squeeze %636 : memref<1x1x128xf32, #tpu.memory_space<vmem>> -> memref<128xf32, #tpu.memory_space<vmem>>
    %638 = tpu.memref_slice %arg9[%c7_i32_555, %c7_i32_556] : memref<8x8x!tpu.dma_semaphore, #tpu.memory_space<semaphore_mem>> -> memref<1x1x!tpu.dma_semaphore, #tpu.memory_space<semaphore_mem>>
    %639 = tpu.memref_squeeze %638 : memref<1x1x!tpu.dma_semaphore, #tpu.memory_space<semaphore_mem>> -> memref<!tpu.dma_semaphore, #tpu.memory_space<semaphore_mem>>
    tpu.enqueue_dma source(%635 : memref<128xf32, #tpu.memory_space<any>>) target(%637 : memref<128xf32, #tpu.memory_space<vmem>>) target_semaphore(%639 : memref<!tpu.dma_semaphore, #tpu.memory_space<semaphore_mem>>)
    %c0_i32_559 = arith.constant 0 : i32
    %c0_i32_560 = arith.constant 0 : i32
    %c0_i32_561 = arith.constant 0 : i32
    %c0_i32_562 = arith.constant 0 : i32
    %c0_i32_563 = arith.constant 0 : i32
    %640 = tpu.memref_slice %arg2[%3, %c0_i32_563] : memref<50x128xf32, #tpu.memory_space<any>> -> memref<1x128xf32, #tpu.memory_space<any>>
    %641 = tpu.memref_squeeze %640 : memref<1x128xf32, #tpu.memory_space<any>> -> memref<128xf32, #tpu.memory_space<any>>
    %c0_i32_564 = arith.constant 0 : i32
    %642 = tpu.memref_slice %arg8[%c0_i32_559, %c0_i32_560, %c0_i32_564] : memref<8x8x128xf32, #tpu.memory_space<vmem>> -> memref<1x1x128xf32, #tpu.memory_space<vmem>>
    %643 = tpu.memref_squeeze %642 : memref<1x1x128xf32, #tpu.memory_space<vmem>> -> memref<128xf32, #tpu.memory_space<vmem>>
    %644 = tpu.memref_slice %arg9[%c0_i32_561, %c0_i32_562] : memref<8x8x!tpu.dma_semaphore, #tpu.memory_space<semaphore_mem>> -> memref<1x1x!tpu.dma_semaphore, #tpu.memory_space<semaphore_mem>>
    %645 = tpu.memref_squeeze %644 : memref<1x1x!tpu.dma_semaphore, #tpu.memory_space<semaphore_mem>> -> memref<!tpu.dma_semaphore, #tpu.memory_space<semaphore_mem>>
    tpu.wait_dma2 semaphore(%645 : memref<!tpu.dma_semaphore, #tpu.memory_space<semaphore_mem>>) src(%641 : memref<128xf32, #tpu.memory_space<any>>) dst(%643 : memref<128xf32, #tpu.memory_space<vmem>>)
    %c0_i32_565 = arith.constant 0 : i32
    %c1_i32_566 = arith.constant 1 : i32
    %c0_i32_567 = arith.constant 0 : i32
    %c1_i32_568 = arith.constant 1 : i32
    %c0_i32_569 = arith.constant 0 : i32
    %646 = tpu.memref_slice %arg2[%13, %c0_i32_569] : memref<50x128xf32, #tpu.memory_space<any>> -> memref<1x128xf32, #tpu.memory_space<any>>
    %647 = tpu.memref_squeeze %646 : memref<1x128xf32, #tpu.memory_space<any>> -> memref<128xf32, #tpu.memory_space<any>>
    %c0_i32_570 = arith.constant 0 : i32
    %648 = tpu.memref_slice %arg8[%c0_i32_565, %c1_i32_566, %c0_i32_570] : memref<8x8x128xf32, #tpu.memory_space<vmem>> -> memref<1x1x128xf32, #tpu.memory_space<vmem>>
    %649 = tpu.memref_squeeze %648 : memref<1x1x128xf32, #tpu.memory_space<vmem>> -> memref<128xf32, #tpu.memory_space<vmem>>
    %650 = tpu.memref_slice %arg9[%c0_i32_567, %c1_i32_568] : memref<8x8x!tpu.dma_semaphore, #tpu.memory_space<semaphore_mem>> -> memref<1x1x!tpu.dma_semaphore, #tpu.memory_space<semaphore_mem>>
    %651 = tpu.memref_squeeze %650 : memref<1x1x!tpu.dma_semaphore, #tpu.memory_space<semaphore_mem>> -> memref<!tpu.dma_semaphore, #tpu.memory_space<semaphore_mem>>
    tpu.wait_dma2 semaphore(%651 : memref<!tpu.dma_semaphore, #tpu.memory_space<semaphore_mem>>) src(%647 : memref<128xf32, #tpu.memory_space<any>>) dst(%649 : memref<128xf32, #tpu.memory_space<vmem>>)
    %c0_i32_571 = arith.constant 0 : i32
    %c2_i32_572 = arith.constant 2 : i32
    %c0_i32_573 = arith.constant 0 : i32
    %c2_i32_574 = arith.constant 2 : i32
    %c0_i32_575 = arith.constant 0 : i32
    %652 = tpu.memref_slice %arg2[%23, %c0_i32_575] : memref<50x128xf32, #tpu.memory_space<any>> -> memref<1x128xf32, #tpu.memory_space<any>>
    %653 = tpu.memref_squeeze %652 : memref<1x128xf32, #tpu.memory_space<any>> -> memref<128xf32, #tpu.memory_space<any>>
    %c0_i32_576 = arith.constant 0 : i32
    %654 = tpu.memref_slice %arg8[%c0_i32_571, %c2_i32_572, %c0_i32_576] : memref<8x8x128xf32, #tpu.memory_space<vmem>> -> memref<1x1x128xf32, #tpu.memory_space<vmem>>
    %655 = tpu.memref_squeeze %654 : memref<1x1x128xf32, #tpu.memory_space<vmem>> -> memref<128xf32, #tpu.memory_space<vmem>>
    %656 = tpu.memref_slice %arg9[%c0_i32_573, %c2_i32_574] : memref<8x8x!tpu.dma_semaphore, #tpu.memory_space<semaphore_mem>> -> memref<1x1x!tpu.dma_semaphore, #tpu.memory_space<semaphore_mem>>
    %657 = tpu.memref_squeeze %656 : memref<1x1x!tpu.dma_semaphore, #tpu.memory_space<semaphore_mem>> -> memref<!tpu.dma_semaphore, #tpu.memory_space<semaphore_mem>>
    tpu.wait_dma2 semaphore(%657 : memref<!tpu.dma_semaphore, #tpu.memory_space<semaphore_mem>>) src(%653 : memref<128xf32, #tpu.memory_space<any>>) dst(%655 : memref<128xf32, #tpu.memory_space<vmem>>)
    %c0_i32_577 = arith.constant 0 : i32
    %c3_i32_578 = arith.constant 3 : i32
    %c0_i32_579 = arith.constant 0 : i32
    %c3_i32_580 = arith.constant 3 : i32
    %c0_i32_581 = arith.constant 0 : i32
    %658 = tpu.memref_slice %arg2[%33, %c0_i32_581] : memref<50x128xf32, #tpu.memory_space<any>> -> memref<1x128xf32, #tpu.memory_space<any>>
    %659 = tpu.memref_squeeze %658 : memref<1x128xf32, #tpu.memory_space<any>> -> memref<128xf32, #tpu.memory_space<any>>
    %c0_i32_582 = arith.constant 0 : i32
    %660 = tpu.memref_slice %arg8[%c0_i32_577, %c3_i32_578, %c0_i32_582] : memref<8x8x128xf32, #tpu.memory_space<vmem>> -> memref<1x1x128xf32, #tpu.memory_space<vmem>>
    %661 = tpu.memref_squeeze %660 : memref<1x1x128xf32, #tpu.memory_space<vmem>> -> memref<128xf32, #tpu.memory_space<vmem>>
    %662 = tpu.memref_slice %arg9[%c0_i32_579, %c3_i32_580] : memref<8x8x!tpu.dma_semaphore, #tpu.memory_space<semaphore_mem>> -> memref<1x1x!tpu.dma_semaphore, #tpu.memory_space<semaphore_mem>>
    %663 = tpu.memref_squeeze %662 : memref<1x1x!tpu.dma_semaphore, #tpu.memory_space<semaphore_mem>> -> memref<!tpu.dma_semaphore, #tpu.memory_space<semaphore_mem>>
    tpu.wait_dma2 semaphore(%663 : memref<!tpu.dma_semaphore, #tpu.memory_space<semaphore_mem>>) src(%659 : memref<128xf32, #tpu.memory_space<any>>) dst(%661 : memref<128xf32, #tpu.memory_space<vmem>>)
    %c0_i32_583 = arith.constant 0 : i32
    %c4_i32_584 = arith.constant 4 : i32
    %c0_i32_585 = arith.constant 0 : i32
    %c4_i32_586 = arith.constant 4 : i32
    %c0_i32_587 = arith.constant 0 : i32
    %664 = tpu.memref_slice %arg2[%43, %c0_i32_587] : memref<50x128xf32, #tpu.memory_space<any>> -> memref<1x128xf32, #tpu.memory_space<any>>
    %665 = tpu.memref_squeeze %664 : memref<1x128xf32, #tpu.memory_space<any>> -> memref<128xf32, #tpu.memory_space<any>>
    %c0_i32_588 = arith.constant 0 : i32
    %666 = tpu.memref_slice %arg8[%c0_i32_583, %c4_i32_584, %c0_i32_588] : memref<8x8x128xf32, #tpu.memory_space<vmem>> -> memref<1x1x128xf32, #tpu.memory_space<vmem>>
    %667 = tpu.memref_squeeze %666 : memref<1x1x128xf32, #tpu.memory_space<vmem>> -> memref<128xf32, #tpu.memory_space<vmem>>
    %668 = tpu.memref_slice %arg9[%c0_i32_585, %c4_i32_586] : memref<8x8x!tpu.dma_semaphore, #tpu.memory_space<semaphore_mem>> -> memref<1x1x!tpu.dma_semaphore, #tpu.memory_space<semaphore_mem>>
    %669 = tpu.memref_squeeze %668 : memref<1x1x!tpu.dma_semaphore, #tpu.memory_space<semaphore_mem>> -> memref<!tpu.dma_semaphore, #tpu.memory_space<semaphore_mem>>
    tpu.wait_dma2 semaphore(%669 : memref<!tpu.dma_semaphore, #tpu.memory_space<semaphore_mem>>) src(%665 : memref<128xf32, #tpu.memory_space<any>>) dst(%667 : memref<128xf32, #tpu.memory_space<vmem>>)
    %c0_i32_589 = arith.constant 0 : i32
    %c5_i32_590 = arith.constant 5 : i32
    %c0_i32_591 = arith.constant 0 : i32
    %c5_i32_592 = arith.constant 5 : i32
    %c0_i32_593 = arith.constant 0 : i32
    %670 = tpu.memref_slice %arg2[%53, %c0_i32_593] : memref<50x128xf32, #tpu.memory_space<any>> -> memref<1x128xf32, #tpu.memory_space<any>>
    %671 = tpu.memref_squeeze %670 : memref<1x128xf32, #tpu.memory_space<any>> -> memref<128xf32, #tpu.memory_space<any>>
    %c0_i32_594 = arith.constant 0 : i32
    %672 = tpu.memref_slice %arg8[%c0_i32_589, %c5_i32_590, %c0_i32_594] : memref<8x8x128xf32, #tpu.memory_space<vmem>> -> memref<1x1x128xf32, #tpu.memory_space<vmem>>
    %673 = tpu.memref_squeeze %672 : memref<1x1x128xf32, #tpu.memory_space<vmem>> -> memref<128xf32, #tpu.memory_space<vmem>>
    %674 = tpu.memref_slice %arg9[%c0_i32_591, %c5_i32_592] : memref<8x8x!tpu.dma_semaphore, #tpu.memory_space<semaphore_mem>> -> memref<1x1x!tpu.dma_semaphore, #tpu.memory_space<semaphore_mem>>
    %675 = tpu.memref_squeeze %674 : memref<1x1x!tpu.dma_semaphore, #tpu.memory_space<semaphore_mem>> -> memref<!tpu.dma_semaphore, #tpu.memory_space<semaphore_mem>>
    tpu.wait_dma2 semaphore(%675 : memref<!tpu.dma_semaphore, #tpu.memory_space<semaphore_mem>>) src(%671 : memref<128xf32, #tpu.memory_space<any>>) dst(%673 : memref<128xf32, #tpu.memory_space<vmem>>)
    %c0_i32_595 = arith.constant 0 : i32
    %c6_i32_596 = arith.constant 6 : i32
    %c0_i32_597 = arith.constant 0 : i32
    %c6_i32_598 = arith.constant 6 : i32
    %c0_i32_599 = arith.constant 0 : i32
    %676 = tpu.memref_slice %arg2[%63, %c0_i32_599] : memref<50x128xf32, #tpu.memory_space<any>> -> memref<1x128xf32, #tpu.memory_space<any>>
    %677 = tpu.memref_squeeze %676 : memref<1x128xf32, #tpu.memory_space<any>> -> memref<128xf32, #tpu.memory_space<any>>
    %c0_i32_600 = arith.constant 0 : i32
    %678 = tpu.memref_slice %arg8[%c0_i32_595, %c6_i32_596, %c0_i32_600] : memref<8x8x128xf32, #tpu.memory_space<vmem>> -> memref<1x1x128xf32, #tpu.memory_space<vmem>>
    %679 = tpu.memref_squeeze %678 : memref<1x1x128xf32, #tpu.memory_space<vmem>> -> memref<128xf32, #tpu.memory_space<vmem>>
    %680 = tpu.memref_slice %arg9[%c0_i32_597, %c6_i32_598] : memref<8x8x!tpu.dma_semaphore, #tpu.memory_space<semaphore_mem>> -> memref<1x1x!tpu.dma_semaphore, #tpu.memory_space<semaphore_mem>>
    %681 = tpu.memref_squeeze %680 : memref<1x1x!tpu.dma_semaphore, #tpu.memory_space<semaphore_mem>> -> memref<!tpu.dma_semaphore, #tpu.memory_space<semaphore_mem>>
    tpu.wait_dma2 semaphore(%681 : memref<!tpu.dma_semaphore, #tpu.memory_space<semaphore_mem>>) src(%677 : memref<128xf32, #tpu.memory_space<any>>) dst(%679 : memref<128xf32, #tpu.memory_space<vmem>>)
    %c0_i32_601 = arith.constant 0 : i32
    %c7_i32_602 = arith.constant 7 : i32
    %c0_i32_603 = arith.constant 0 : i32
    %c7_i32_604 = arith.constant 7 : i32
    %c0_i32_605 = arith.constant 0 : i32
    %682 = tpu.memref_slice %arg2[%73, %c0_i32_605] : memref<50x128xf32, #tpu.memory_space<any>> -> memref<1x128xf32, #tpu.memory_space<any>>
    %683 = tpu.memref_squeeze %682 : memref<1x128xf32, #tpu.memory_space<any>> -> memref<128xf32, #tpu.memory_space<any>>
    %c0_i32_606 = arith.constant 0 : i32
    %684 = tpu.memref_slice %arg8[%c0_i32_601, %c7_i32_602, %c0_i32_606] : memref<8x8x128xf32, #tpu.memory_space<vmem>> -> memref<1x1x128xf32, #tpu.memory_space<vmem>>
    %685 = tpu.memref_squeeze %684 : memref<1x1x128xf32, #tpu.memory_space<vmem>> -> memref<128xf32, #tpu.memory_space<vmem>>
    %686 = tpu.memref_slice %arg9[%c0_i32_603, %c7_i32_604] : memref<8x8x!tpu.dma_semaphore, #tpu.memory_space<semaphore_mem>> -> memref<1x1x!tpu.dma_semaphore, #tpu.memory_space<semaphore_mem>>
    %687 = tpu.memref_squeeze %686 : memref<1x1x!tpu.dma_semaphore, #tpu.memory_space<semaphore_mem>> -> memref<!tpu.dma_semaphore, #tpu.memory_space<semaphore_mem>>
    tpu.wait_dma2 semaphore(%687 : memref<!tpu.dma_semaphore, #tpu.memory_space<semaphore_mem>>) src(%683 : memref<128xf32, #tpu.memory_space<any>>) dst(%685 : memref<128xf32, #tpu.memory_space<vmem>>)
    %c1_i32_607 = arith.constant 1 : i32
    %c0_i32_608 = arith.constant 0 : i32
    %c1_i32_609 = arith.constant 1 : i32
    %c0_i32_610 = arith.constant 0 : i32
    %c0_i32_611 = arith.constant 0 : i32
    %688 = tpu.memref_slice %arg2[%83, %c0_i32_611] : memref<50x128xf32, #tpu.memory_space<any>> -> memref<1x128xf32, #tpu.memory_space<any>>
    %689 = tpu.memref_squeeze %688 : memref<1x128xf32, #tpu.memory_space<any>> -> memref<128xf32, #tpu.memory_space<any>>
    %c0_i32_612 = arith.constant 0 : i32
    %690 = tpu.memref_slice %arg8[%c1_i32_607, %c0_i32_608, %c0_i32_612] : memref<8x8x128xf32, #tpu.memory_space<vmem>> -> memref<1x1x128xf32, #tpu.memory_space<vmem>>
    %691 = tpu.memref_squeeze %690 : memref<1x1x128xf32, #tpu.memory_space<vmem>> -> memref<128xf32, #tpu.memory_space<vmem>>
    %692 = tpu.memref_slice %arg9[%c1_i32_609, %c0_i32_610] : memref<8x8x!tpu.dma_semaphore, #tpu.memory_space<semaphore_mem>> -> memref<1x1x!tpu.dma_semaphore, #tpu.memory_space<semaphore_mem>>
    %693 = tpu.memref_squeeze %692 : memref<1x1x!tpu.dma_semaphore, #tpu.memory_space<semaphore_mem>> -> memref<!tpu.dma_semaphore, #tpu.memory_space<semaphore_mem>>
    tpu.wait_dma2 semaphore(%693 : memref<!tpu.dma_semaphore, #tpu.memory_space<semaphore_mem>>) src(%689 : memref<128xf32, #tpu.memory_space<any>>) dst(%691 : memref<128xf32, #tpu.memory_space<vmem>>)
    %c1_i32_613 = arith.constant 1 : i32
    %c1_i32_614 = arith.constant 1 : i32
    %c1_i32_615 = arith.constant 1 : i32
    %c1_i32_616 = arith.constant 1 : i32
    %c0_i32_617 = arith.constant 0 : i32
    %694 = tpu.memref_slice %arg2[%93, %c0_i32_617] : memref<50x128xf32, #tpu.memory_space<any>> -> memref<1x128xf32, #tpu.memory_space<any>>
    %695 = tpu.memref_squeeze %694 : memref<1x128xf32, #tpu.memory_space<any>> -> memref<128xf32, #tpu.memory_space<any>>
    %c0_i32_618 = arith.constant 0 : i32
    %696 = tpu.memref_slice %arg8[%c1_i32_613, %c1_i32_614, %c0_i32_618] : memref<8x8x128xf32, #tpu.memory_space<vmem>> -> memref<1x1x128xf32, #tpu.memory_space<vmem>>
    %697 = tpu.memref_squeeze %696 : memref<1x1x128xf32, #tpu.memory_space<vmem>> -> memref<128xf32, #tpu.memory_space<vmem>>
    %698 = tpu.memref_slice %arg9[%c1_i32_615, %c1_i32_616] : memref<8x8x!tpu.dma_semaphore, #tpu.memory_space<semaphore_mem>> -> memref<1x1x!tpu.dma_semaphore, #tpu.memory_space<semaphore_mem>>
    %699 = tpu.memref_squeeze %698 : memref<1x1x!tpu.dma_semaphore, #tpu.memory_space<semaphore_mem>> -> memref<!tpu.dma_semaphore, #tpu.memory_space<semaphore_mem>>
    tpu.wait_dma2 semaphore(%699 : memref<!tpu.dma_semaphore, #tpu.memory_space<semaphore_mem>>) src(%695 : memref<128xf32, #tpu.memory_space<any>>) dst(%697 : memref<128xf32, #tpu.memory_space<vmem>>)
    %c1_i32_619 = arith.constant 1 : i32
    %c2_i32_620 = arith.constant 2 : i32
    %c1_i32_621 = arith.constant 1 : i32
    %c2_i32_622 = arith.constant 2 : i32
    %c0_i32_623 = arith.constant 0 : i32
    %700 = tpu.memref_slice %arg2[%103, %c0_i32_623] : memref<50x128xf32, #tpu.memory_space<any>> -> memref<1x128xf32, #tpu.memory_space<any>>
    %701 = tpu.memref_squeeze %700 : memref<1x128xf32, #tpu.memory_space<any>> -> memref<128xf32, #tpu.memory_space<any>>
    %c0_i32_624 = arith.constant 0 : i32
    %702 = tpu.memref_slice %arg8[%c1_i32_619, %c2_i32_620, %c0_i32_624] : memref<8x8x128xf32, #tpu.memory_space<vmem>> -> memref<1x1x128xf32, #tpu.memory_space<vmem>>
    %703 = tpu.memref_squeeze %702 : memref<1x1x128xf32, #tpu.memory_space<vmem>> -> memref<128xf32, #tpu.memory_space<vmem>>
    %704 = tpu.memref_slice %arg9[%c1_i32_621, %c2_i32_622] : memref<8x8x!tpu.dma_semaphore, #tpu.memory_space<semaphore_mem>> -> memref<1x1x!tpu.dma_semaphore, #tpu.memory_space<semaphore_mem>>
    %705 = tpu.memref_squeeze %704 : memref<1x1x!tpu.dma_semaphore, #tpu.memory_space<semaphore_mem>> -> memref<!tpu.dma_semaphore, #tpu.memory_space<semaphore_mem>>
    tpu.wait_dma2 semaphore(%705 : memref<!tpu.dma_semaphore, #tpu.memory_space<semaphore_mem>>) src(%701 : memref<128xf32, #tpu.memory_space<any>>) dst(%703 : memref<128xf32, #tpu.memory_space<vmem>>)
    %c1_i32_625 = arith.constant 1 : i32
    %c3_i32_626 = arith.constant 3 : i32
    %c1_i32_627 = arith.constant 1 : i32
    %c3_i32_628 = arith.constant 3 : i32
    %c0_i32_629 = arith.constant 0 : i32
    %706 = tpu.memref_slice %arg2[%113, %c0_i32_629] : memref<50x128xf32, #tpu.memory_space<any>> -> memref<1x128xf32, #tpu.memory_space<any>>
    %707 = tpu.memref_squeeze %706 : memref<1x128xf32, #tpu.memory_space<any>> -> memref<128xf32, #tpu.memory_space<any>>
    %c0_i32_630 = arith.constant 0 : i32
    %708 = tpu.memref_slice %arg8[%c1_i32_625, %c3_i32_626, %c0_i32_630] : memref<8x8x128xf32, #tpu.memory_space<vmem>> -> memref<1x1x128xf32, #tpu.memory_space<vmem>>
    %709 = tpu.memref_squeeze %708 : memref<1x1x128xf32, #tpu.memory_space<vmem>> -> memref<128xf32, #tpu.memory_space<vmem>>
    %710 = tpu.memref_slice %arg9[%c1_i32_627, %c3_i32_628] : memref<8x8x!tpu.dma_semaphore, #tpu.memory_space<semaphore_mem>> -> memref<1x1x!tpu.dma_semaphore, #tpu.memory_space<semaphore_mem>>
    %711 = tpu.memref_squeeze %710 : memref<1x1x!tpu.dma_semaphore, #tpu.memory_space<semaphore_mem>> -> memref<!tpu.dma_semaphore, #tpu.memory_space<semaphore_mem>>
    tpu.wait_dma2 semaphore(%711 : memref<!tpu.dma_semaphore, #tpu.memory_space<semaphore_mem>>) src(%707 : memref<128xf32, #tpu.memory_space<any>>) dst(%709 : memref<128xf32, #tpu.memory_space<vmem>>)
    %c1_i32_631 = arith.constant 1 : i32
    %c4_i32_632 = arith.constant 4 : i32
    %c1_i32_633 = arith.constant 1 : i32
    %c4_i32_634 = arith.constant 4 : i32
    %c0_i32_635 = arith.constant 0 : i32
    %712 = tpu.memref_slice %arg2[%123, %c0_i32_635] : memref<50x128xf32, #tpu.memory_space<any>> -> memref<1x128xf32, #tpu.memory_space<any>>
    %713 = tpu.memref_squeeze %712 : memref<1x128xf32, #tpu.memory_space<any>> -> memref<128xf32, #tpu.memory_space<any>>
    %c0_i32_636 = arith.constant 0 : i32
    %714 = tpu.memref_slice %arg8[%c1_i32_631, %c4_i32_632, %c0_i32_636] : memref<8x8x128xf32, #tpu.memory_space<vmem>> -> memref<1x1x128xf32, #tpu.memory_space<vmem>>
    %715 = tpu.memref_squeeze %714 : memref<1x1x128xf32, #tpu.memory_space<vmem>> -> memref<128xf32, #tpu.memory_space<vmem>>
    %716 = tpu.memref_slice %arg9[%c1_i32_633, %c4_i32_634] : memref<8x8x!tpu.dma_semaphore, #tpu.memory_space<semaphore_mem>> -> memref<1x1x!tpu.dma_semaphore, #tpu.memory_space<semaphore_mem>>
    %717 = tpu.memref_squeeze %716 : memref<1x1x!tpu.dma_semaphore, #tpu.memory_space<semaphore_mem>> -> memref<!tpu.dma_semaphore, #tpu.memory_space<semaphore_mem>>
    tpu.wait_dma2 semaphore(%717 : memref<!tpu.dma_semaphore, #tpu.memory_space<semaphore_mem>>) src(%713 : memref<128xf32, #tpu.memory_space<any>>) dst(%715 : memref<128xf32, #tpu.memory_space<vmem>>)
    %c1_i32_637 = arith.constant 1 : i32
    %c5_i32_638 = arith.constant 5 : i32
    %c1_i32_639 = arith.constant 1 : i32
    %c5_i32_640 = arith.constant 5 : i32
    %c0_i32_641 = arith.constant 0 : i32
    %718 = tpu.memref_slice %arg2[%133, %c0_i32_641] : memref<50x128xf32, #tpu.memory_space<any>> -> memref<1x128xf32, #tpu.memory_space<any>>
    %719 = tpu.memref_squeeze %718 : memref<1x128xf32, #tpu.memory_space<any>> -> memref<128xf32, #tpu.memory_space<any>>
    %c0_i32_642 = arith.constant 0 : i32
    %720 = tpu.memref_slice %arg8[%c1_i32_637, %c5_i32_638, %c0_i32_642] : memref<8x8x128xf32, #tpu.memory_space<vmem>> -> memref<1x1x128xf32, #tpu.memory_space<vmem>>
    %721 = tpu.memref_squeeze %720 : memref<1x1x128xf32, #tpu.memory_space<vmem>> -> memref<128xf32, #tpu.memory_space<vmem>>
    %722 = tpu.memref_slice %arg9[%c1_i32_639, %c5_i32_640] : memref<8x8x!tpu.dma_semaphore, #tpu.memory_space<semaphore_mem>> -> memref<1x1x!tpu.dma_semaphore, #tpu.memory_space<semaphore_mem>>
    %723 = tpu.memref_squeeze %722 : memref<1x1x!tpu.dma_semaphore, #tpu.memory_space<semaphore_mem>> -> memref<!tpu.dma_semaphore, #tpu.memory_space<semaphore_mem>>
    tpu.wait_dma2 semaphore(%723 : memref<!tpu.dma_semaphore, #tpu.memory_space<semaphore_mem>>) src(%719 : memref<128xf32, #tpu.memory_space<any>>) dst(%721 : memref<128xf32, #tpu.memory_space<vmem>>)
    %c1_i32_643 = arith.constant 1 : i32
    %c6_i32_644 = arith.constant 6 : i32
    %c1_i32_645 = arith.constant 1 : i32
    %c6_i32_646 = arith.constant 6 : i32
    %c0_i32_647 = arith.constant 0 : i32
    %724 = tpu.memref_slice %arg2[%143, %c0_i32_647] : memref<50x128xf32, #tpu.memory_space<any>> -> memref<1x128xf32, #tpu.memory_space<any>>
    %725 = tpu.memref_squeeze %724 : memref<1x128xf32, #tpu.memory_space<any>> -> memref<128xf32, #tpu.memory_space<any>>
    %c0_i32_648 = arith.constant 0 : i32
    %726 = tpu.memref_slice %arg8[%c1_i32_643, %c6_i32_644, %c0_i32_648] : memref<8x8x128xf32, #tpu.memory_space<vmem>> -> memref<1x1x128xf32, #tpu.memory_space<vmem>>
    %727 = tpu.memref_squeeze %726 : memref<1x1x128xf32, #tpu.memory_space<vmem>> -> memref<128xf32, #tpu.memory_space<vmem>>
    %728 = tpu.memref_slice %arg9[%c1_i32_645, %c6_i32_646] : memref<8x8x!tpu.dma_semaphore, #tpu.memory_space<semaphore_mem>> -> memref<1x1x!tpu.dma_semaphore, #tpu.memory_space<semaphore_mem>>
    %729 = tpu.memref_squeeze %728 : memref<1x1x!tpu.dma_semaphore, #tpu.memory_space<semaphore_mem>> -> memref<!tpu.dma_semaphore, #tpu.memory_space<semaphore_mem>>
    tpu.wait_dma2 semaphore(%729 : memref<!tpu.dma_semaphore, #tpu.memory_space<semaphore_mem>>) src(%725 : memref<128xf32, #tpu.memory_space<any>>) dst(%727 : memref<128xf32, #tpu.memory_space<vmem>>)
    %c1_i32_649 = arith.constant 1 : i32
    %c7_i32_650 = arith.constant 7 : i32
    %c1_i32_651 = arith.constant 1 : i32
    %c7_i32_652 = arith.constant 7 : i32
    %c0_i32_653 = arith.constant 0 : i32
    %730 = tpu.memref_slice %arg2[%153, %c0_i32_653] : memref<50x128xf32, #tpu.memory_space<any>> -> memref<1x128xf32, #tpu.memory_space<any>>
    %731 = tpu.memref_squeeze %730 : memref<1x128xf32, #tpu.memory_space<any>> -> memref<128xf32, #tpu.memory_space<any>>
    %c0_i32_654 = arith.constant 0 : i32
    %732 = tpu.memref_slice %arg8[%c1_i32_649, %c7_i32_650, %c0_i32_654] : memref<8x8x128xf32, #tpu.memory_space<vmem>> -> memref<1x1x128xf32, #tpu.memory_space<vmem>>
    %733 = tpu.memref_squeeze %732 : memref<1x1x128xf32, #tpu.memory_space<vmem>> -> memref<128xf32, #tpu.memory_space<vmem>>
    %734 = tpu.memref_slice %arg9[%c1_i32_651, %c7_i32_652] : memref<8x8x!tpu.dma_semaphore, #tpu.memory_space<semaphore_mem>> -> memref<1x1x!tpu.dma_semaphore, #tpu.memory_space<semaphore_mem>>
    %735 = tpu.memref_squeeze %734 : memref<1x1x!tpu.dma_semaphore, #tpu.memory_space<semaphore_mem>> -> memref<!tpu.dma_semaphore, #tpu.memory_space<semaphore_mem>>
    tpu.wait_dma2 semaphore(%735 : memref<!tpu.dma_semaphore, #tpu.memory_space<semaphore_mem>>) src(%731 : memref<128xf32, #tpu.memory_space<any>>) dst(%733 : memref<128xf32, #tpu.memory_space<vmem>>)
    %c2_i32_655 = arith.constant 2 : i32
    %c0_i32_656 = arith.constant 0 : i32
    %c2_i32_657 = arith.constant 2 : i32
    %c0_i32_658 = arith.constant 0 : i32
    %c0_i32_659 = arith.constant 0 : i32
    %736 = tpu.memref_slice %arg2[%163, %c0_i32_659] : memref<50x128xf32, #tpu.memory_space<any>> -> memref<1x128xf32, #tpu.memory_space<any>>
    %737 = tpu.memref_squeeze %736 : memref<1x128xf32, #tpu.memory_space<any>> -> memref<128xf32, #tpu.memory_space<any>>
    %c0_i32_660 = arith.constant 0 : i32
    %738 = tpu.memref_slice %arg8[%c2_i32_655, %c0_i32_656, %c0_i32_660] : memref<8x8x128xf32, #tpu.memory_space<vmem>> -> memref<1x1x128xf32, #tpu.memory_space<vmem>>
    %739 = tpu.memref_squeeze %738 : memref<1x1x128xf32, #tpu.memory_space<vmem>> -> memref<128xf32, #tpu.memory_space<vmem>>
    %740 = tpu.memref_slice %arg9[%c2_i32_657, %c0_i32_658] : memref<8x8x!tpu.dma_semaphore, #tpu.memory_space<semaphore_mem>> -> memref<1x1x!tpu.dma_semaphore, #tpu.memory_space<semaphore_mem>>
    %741 = tpu.memref_squeeze %740 : memref<1x1x!tpu.dma_semaphore, #tpu.memory_space<semaphore_mem>> -> memref<!tpu.dma_semaphore, #tpu.memory_space<semaphore_mem>>
    tpu.wait_dma2 semaphore(%741 : memref<!tpu.dma_semaphore, #tpu.memory_space<semaphore_mem>>) src(%737 : memref<128xf32, #tpu.memory_space<any>>) dst(%739 : memref<128xf32, #tpu.memory_space<vmem>>)
    %c2_i32_661 = arith.constant 2 : i32
    %c1_i32_662 = arith.constant 1 : i32
    %c2_i32_663 = arith.constant 2 : i32
    %c1_i32_664 = arith.constant 1 : i32
    %c0_i32_665 = arith.constant 0 : i32
    %742 = tpu.memref_slice %arg2[%173, %c0_i32_665] : memref<50x128xf32, #tpu.memory_space<any>> -> memref<1x128xf32, #tpu.memory_space<any>>
    %743 = tpu.memref_squeeze %742 : memref<1x128xf32, #tpu.memory_space<any>> -> memref<128xf32, #tpu.memory_space<any>>
    %c0_i32_666 = arith.constant 0 : i32
    %744 = tpu.memref_slice %arg8[%c2_i32_661, %c1_i32_662, %c0_i32_666] : memref<8x8x128xf32, #tpu.memory_space<vmem>> -> memref<1x1x128xf32, #tpu.memory_space<vmem>>
    %745 = tpu.memref_squeeze %744 : memref<1x1x128xf32, #tpu.memory_space<vmem>> -> memref<128xf32, #tpu.memory_space<vmem>>
    %746 = tpu.memref_slice %arg9[%c2_i32_663, %c1_i32_664] : memref<8x8x!tpu.dma_semaphore, #tpu.memory_space<semaphore_mem>> -> memref<1x1x!tpu.dma_semaphore, #tpu.memory_space<semaphore_mem>>
    %747 = tpu.memref_squeeze %746 : memref<1x1x!tpu.dma_semaphore, #tpu.memory_space<semaphore_mem>> -> memref<!tpu.dma_semaphore, #tpu.memory_space<semaphore_mem>>
    tpu.wait_dma2 semaphore(%747 : memref<!tpu.dma_semaphore, #tpu.memory_space<semaphore_mem>>) src(%743 : memref<128xf32, #tpu.memory_space<any>>) dst(%745 : memref<128xf32, #tpu.memory_space<vmem>>)
    %c2_i32_667 = arith.constant 2 : i32
    %c2_i32_668 = arith.constant 2 : i32
    %c2_i32_669 = arith.constant 2 : i32
    %c2_i32_670 = arith.constant 2 : i32
    %c0_i32_671 = arith.constant 0 : i32
    %748 = tpu.memref_slice %arg2[%183, %c0_i32_671] : memref<50x128xf32, #tpu.memory_space<any>> -> memref<1x128xf32, #tpu.memory_space<any>>
    %749 = tpu.memref_squeeze %748 : memref<1x128xf32, #tpu.memory_space<any>> -> memref<128xf32, #tpu.memory_space<any>>
    %c0_i32_672 = arith.constant 0 : i32
    %750 = tpu.memref_slice %arg8[%c2_i32_667, %c2_i32_668, %c0_i32_672] : memref<8x8x128xf32, #tpu.memory_space<vmem>> -> memref<1x1x128xf32, #tpu.memory_space<vmem>>
    %751 = tpu.memref_squeeze %750 : memref<1x1x128xf32, #tpu.memory_space<vmem>> -> memref<128xf32, #tpu.memory_space<vmem>>
    %752 = tpu.memref_slice %arg9[%c2_i32_669, %c2_i32_670] : memref<8x8x!tpu.dma_semaphore, #tpu.memory_space<semaphore_mem>> -> memref<1x1x!tpu.dma_semaphore, #tpu.memory_space<semaphore_mem>>
    %753 = tpu.memref_squeeze %752 : memref<1x1x!tpu.dma_semaphore, #tpu.memory_space<semaphore_mem>> -> memref<!tpu.dma_semaphore, #tpu.memory_space<semaphore_mem>>
    tpu.wait_dma2 semaphore(%753 : memref<!tpu.dma_semaphore, #tpu.memory_space<semaphore_mem>>) src(%749 : memref<128xf32, #tpu.memory_space<any>>) dst(%751 : memref<128xf32, #tpu.memory_space<vmem>>)
    %c2_i32_673 = arith.constant 2 : i32
    %c3_i32_674 = arith.constant 3 : i32
    %c2_i32_675 = arith.constant 2 : i32
    %c3_i32_676 = arith.constant 3 : i32
    %c0_i32_677 = arith.constant 0 : i32
    %754 = tpu.memref_slice %arg2[%193, %c0_i32_677] : memref<50x128xf32, #tpu.memory_space<any>> -> memref<1x128xf32, #tpu.memory_space<any>>
    %755 = tpu.memref_squeeze %754 : memref<1x128xf32, #tpu.memory_space<any>> -> memref<128xf32, #tpu.memory_space<any>>
    %c0_i32_678 = arith.constant 0 : i32
    %756 = tpu.memref_slice %arg8[%c2_i32_673, %c3_i32_674, %c0_i32_678] : memref<8x8x128xf32, #tpu.memory_space<vmem>> -> memref<1x1x128xf32, #tpu.memory_space<vmem>>
    %757 = tpu.memref_squeeze %756 : memref<1x1x128xf32, #tpu.memory_space<vmem>> -> memref<128xf32, #tpu.memory_space<vmem>>
    %758 = tpu.memref_slice %arg9[%c2_i32_675, %c3_i32_676] : memref<8x8x!tpu.dma_semaphore, #tpu.memory_space<semaphore_mem>> -> memref<1x1x!tpu.dma_semaphore, #tpu.memory_space<semaphore_mem>>
    %759 = tpu.memref_squeeze %758 : memref<1x1x!tpu.dma_semaphore, #tpu.memory_space<semaphore_mem>> -> memref<!tpu.dma_semaphore, #tpu.memory_space<semaphore_mem>>
    tpu.wait_dma2 semaphore(%759 : memref<!tpu.dma_semaphore, #tpu.memory_space<semaphore_mem>>) src(%755 : memref<128xf32, #tpu.memory_space<any>>) dst(%757 : memref<128xf32, #tpu.memory_space<vmem>>)
    %c2_i32_679 = arith.constant 2 : i32
    %c4_i32_680 = arith.constant 4 : i32
    %c2_i32_681 = arith.constant 2 : i32
    %c4_i32_682 = arith.constant 4 : i32
    %c0_i32_683 = arith.constant 0 : i32
    %760 = tpu.memref_slice %arg2[%203, %c0_i32_683] : memref<50x128xf32, #tpu.memory_space<any>> -> memref<1x128xf32, #tpu.memory_space<any>>
    %761 = tpu.memref_squeeze %760 : memref<1x128xf32, #tpu.memory_space<any>> -> memref<128xf32, #tpu.memory_space<any>>
    %c0_i32_684 = arith.constant 0 : i32
    %762 = tpu.memref_slice %arg8[%c2_i32_679, %c4_i32_680, %c0_i32_684] : memref<8x8x128xf32, #tpu.memory_space<vmem>> -> memref<1x1x128xf32, #tpu.memory_space<vmem>>
    %763 = tpu.memref_squeeze %762 : memref<1x1x128xf32, #tpu.memory_space<vmem>> -> memref<128xf32, #tpu.memory_space<vmem>>
    %764 = tpu.memref_slice %arg9[%c2_i32_681, %c4_i32_682] : memref<8x8x!tpu.dma_semaphore, #tpu.memory_space<semaphore_mem>> -> memref<1x1x!tpu.dma_semaphore, #tpu.memory_space<semaphore_mem>>
    %765 = tpu.memref_squeeze %764 : memref<1x1x!tpu.dma_semaphore, #tpu.memory_space<semaphore_mem>> -> memref<!tpu.dma_semaphore, #tpu.memory_space<semaphore_mem>>
    tpu.wait_dma2 semaphore(%765 : memref<!tpu.dma_semaphore, #tpu.memory_space<semaphore_mem>>) src(%761 : memref<128xf32, #tpu.memory_space<any>>) dst(%763 : memref<128xf32, #tpu.memory_space<vmem>>)
    %c2_i32_685 = arith.constant 2 : i32
    %c5_i32_686 = arith.constant 5 : i32
    %c2_i32_687 = arith.constant 2 : i32
    %c5_i32_688 = arith.constant 5 : i32
    %c0_i32_689 = arith.constant 0 : i32
    %766 = tpu.memref_slice %arg2[%213, %c0_i32_689] : memref<50x128xf32, #tpu.memory_space<any>> -> memref<1x128xf32, #tpu.memory_space<any>>
    %767 = tpu.memref_squeeze %766 : memref<1x128xf32, #tpu.memory_space<any>> -> memref<128xf32, #tpu.memory_space<any>>
    %c0_i32_690 = arith.constant 0 : i32
    %768 = tpu.memref_slice %arg8[%c2_i32_685, %c5_i32_686, %c0_i32_690] : memref<8x8x128xf32, #tpu.memory_space<vmem>> -> memref<1x1x128xf32, #tpu.memory_space<vmem>>
    %769 = tpu.memref_squeeze %768 : memref<1x1x128xf32, #tpu.memory_space<vmem>> -> memref<128xf32, #tpu.memory_space<vmem>>
    %770 = tpu.memref_slice %arg9[%c2_i32_687, %c5_i32_688] : memref<8x8x!tpu.dma_semaphore, #tpu.memory_space<semaphore_mem>> -> memref<1x1x!tpu.dma_semaphore, #tpu.memory_space<semaphore_mem>>
    %771 = tpu.memref_squeeze %770 : memref<1x1x!tpu.dma_semaphore, #tpu.memory_space<semaphore_mem>> -> memref<!tpu.dma_semaphore, #tpu.memory_space<semaphore_mem>>
    tpu.wait_dma2 semaphore(%771 : memref<!tpu.dma_semaphore, #tpu.memory_space<semaphore_mem>>) src(%767 : memref<128xf32, #tpu.memory_space<any>>) dst(%769 : memref<128xf32, #tpu.memory_space<vmem>>)
    %c2_i32_691 = arith.constant 2 : i32
    %c6_i32_692 = arith.constant 6 : i32
    %c2_i32_693 = arith.constant 2 : i32
    %c6_i32_694 = arith.constant 6 : i32
    %c0_i32_695 = arith.constant 0 : i32
    %772 = tpu.memref_slice %arg2[%223, %c0_i32_695] : memref<50x128xf32, #tpu.memory_space<any>> -> memref<1x128xf32, #tpu.memory_space<any>>
    %773 = tpu.memref_squeeze %772 : memref<1x128xf32, #tpu.memory_space<any>> -> memref<128xf32, #tpu.memory_space<any>>
    %c0_i32_696 = arith.constant 0 : i32
    %774 = tpu.memref_slice %arg8[%c2_i32_691, %c6_i32_692, %c0_i32_696] : memref<8x8x128xf32, #tpu.memory_space<vmem>> -> memref<1x1x128xf32, #tpu.memory_space<vmem>>
    %775 = tpu.memref_squeeze %774 : memref<1x1x128xf32, #tpu.memory_space<vmem>> -> memref<128xf32, #tpu.memory_space<vmem>>
    %776 = tpu.memref_slice %arg9[%c2_i32_693, %c6_i32_694] : memref<8x8x!tpu.dma_semaphore, #tpu.memory_space<semaphore_mem>> -> memref<1x1x!tpu.dma_semaphore, #tpu.memory_space<semaphore_mem>>
    %777 = tpu.memref_squeeze %776 : memref<1x1x!tpu.dma_semaphore, #tpu.memory_space<semaphore_mem>> -> memref<!tpu.dma_semaphore, #tpu.memory_space<semaphore_mem>>
    tpu.wait_dma2 semaphore(%777 : memref<!tpu.dma_semaphore, #tpu.memory_space<semaphore_mem>>) src(%773 : memref<128xf32, #tpu.memory_space<any>>) dst(%775 : memref<128xf32, #tpu.memory_space<vmem>>)
    %c2_i32_697 = arith.constant 2 : i32
    %c7_i32_698 = arith.constant 7 : i32
    %c2_i32_699 = arith.constant 2 : i32
    %c7_i32_700 = arith.constant 7 : i32
    %c0_i32_701 = arith.constant 0 : i32
    %778 = tpu.memref_slice %arg2[%233, %c0_i32_701] : memref<50x128xf32, #tpu.memory_space<any>> -> memref<1x128xf32, #tpu.memory_space<any>>
    %779 = tpu.memref_squeeze %778 : memref<1x128xf32, #tpu.memory_space<any>> -> memref<128xf32, #tpu.memory_space<any>>
    %c0_i32_702 = arith.constant 0 : i32
    %780 = tpu.memref_slice %arg8[%c2_i32_697, %c7_i32_698, %c0_i32_702] : memref<8x8x128xf32, #tpu.memory_space<vmem>> -> memref<1x1x128xf32, #tpu.memory_space<vmem>>
    %781 = tpu.memref_squeeze %780 : memref<1x1x128xf32, #tpu.memory_space<vmem>> -> memref<128xf32, #tpu.memory_space<vmem>>
    %782 = tpu.memref_slice %arg9[%c2_i32_699, %c7_i32_700] : memref<8x8x!tpu.dma_semaphore, #tpu.memory_space<semaphore_mem>> -> memref<1x1x!tpu.dma_semaphore, #tpu.memory_space<semaphore_mem>>
    %783 = tpu.memref_squeeze %782 : memref<1x1x!tpu.dma_semaphore, #tpu.memory_space<semaphore_mem>> -> memref<!tpu.dma_semaphore, #tpu.memory_space<semaphore_mem>>
    tpu.wait_dma2 semaphore(%783 : memref<!tpu.dma_semaphore, #tpu.memory_space<semaphore_mem>>) src(%779 : memref<128xf32, #tpu.memory_space<any>>) dst(%781 : memref<128xf32, #tpu.memory_space<vmem>>)
    %c3_i32_703 = arith.constant 3 : i32
    %c0_i32_704 = arith.constant 0 : i32
    %c3_i32_705 = arith.constant 3 : i32
    %c0_i32_706 = arith.constant 0 : i32
    %c0_i32_707 = arith.constant 0 : i32
    %784 = tpu.memref_slice %arg2[%243, %c0_i32_707] : memref<50x128xf32, #tpu.memory_space<any>> -> memref<1x128xf32, #tpu.memory_space<any>>
    %785 = tpu.memref_squeeze %784 : memref<1x128xf32, #tpu.memory_space<any>> -> memref<128xf32, #tpu.memory_space<any>>
    %c0_i32_708 = arith.constant 0 : i32
    %786 = tpu.memref_slice %arg8[%c3_i32_703, %c0_i32_704, %c0_i32_708] : memref<8x8x128xf32, #tpu.memory_space<vmem>> -> memref<1x1x128xf32, #tpu.memory_space<vmem>>
    %787 = tpu.memref_squeeze %786 : memref<1x1x128xf32, #tpu.memory_space<vmem>> -> memref<128xf32, #tpu.memory_space<vmem>>
    %788 = tpu.memref_slice %arg9[%c3_i32_705, %c0_i32_706] : memref<8x8x!tpu.dma_semaphore, #tpu.memory_space<semaphore_mem>> -> memref<1x1x!tpu.dma_semaphore, #tpu.memory_space<semaphore_mem>>
    %789 = tpu.memref_squeeze %788 : memref<1x1x!tpu.dma_semaphore, #tpu.memory_space<semaphore_mem>> -> memref<!tpu.dma_semaphore, #tpu.memory_space<semaphore_mem>>
    tpu.wait_dma2 semaphore(%789 : memref<!tpu.dma_semaphore, #tpu.memory_space<semaphore_mem>>) src(%785 : memref<128xf32, #tpu.memory_space<any>>) dst(%787 : memref<128xf32, #tpu.memory_space<vmem>>)
    %c3_i32_709 = arith.constant 3 : i32
    %c1_i32_710 = arith.constant 1 : i32
    %c3_i32_711 = arith.constant 3 : i32
    %c1_i32_712 = arith.constant 1 : i32
    %c0_i32_713 = arith.constant 0 : i32
    %790 = tpu.memref_slice %arg2[%253, %c0_i32_713] : memref<50x128xf32, #tpu.memory_space<any>> -> memref<1x128xf32, #tpu.memory_space<any>>
    %791 = tpu.memref_squeeze %790 : memref<1x128xf32, #tpu.memory_space<any>> -> memref<128xf32, #tpu.memory_space<any>>
    %c0_i32_714 = arith.constant 0 : i32
    %792 = tpu.memref_slice %arg8[%c3_i32_709, %c1_i32_710, %c0_i32_714] : memref<8x8x128xf32, #tpu.memory_space<vmem>> -> memref<1x1x128xf32, #tpu.memory_space<vmem>>
    %793 = tpu.memref_squeeze %792 : memref<1x1x128xf32, #tpu.memory_space<vmem>> -> memref<128xf32, #tpu.memory_space<vmem>>
    %794 = tpu.memref_slice %arg9[%c3_i32_711, %c1_i32_712] : memref<8x8x!tpu.dma_semaphore, #tpu.memory_space<semaphore_mem>> -> memref<1x1x!tpu.dma_semaphore, #tpu.memory_space<semaphore_mem>>
    %795 = tpu.memref_squeeze %794 : memref<1x1x!tpu.dma_semaphore, #tpu.memory_space<semaphore_mem>> -> memref<!tpu.dma_semaphore, #tpu.memory_space<semaphore_mem>>
    tpu.wait_dma2 semaphore(%795 : memref<!tpu.dma_semaphore, #tpu.memory_space<semaphore_mem>>) src(%791 : memref<128xf32, #tpu.memory_space<any>>) dst(%793 : memref<128xf32, #tpu.memory_space<vmem>>)
    %c3_i32_715 = arith.constant 3 : i32
    %c2_i32_716 = arith.constant 2 : i32
    %c3_i32_717 = arith.constant 3 : i32
    %c2_i32_718 = arith.constant 2 : i32
    %c0_i32_719 = arith.constant 0 : i32
    %796 = tpu.memref_slice %arg2[%263, %c0_i32_719] : memref<50x128xf32, #tpu.memory_space<any>> -> memref<1x128xf32, #tpu.memory_space<any>>
    %797 = tpu.memref_squeeze %796 : memref<1x128xf32, #tpu.memory_space<any>> -> memref<128xf32, #tpu.memory_space<any>>
    %c0_i32_720 = arith.constant 0 : i32
    %798 = tpu.memref_slice %arg8[%c3_i32_715, %c2_i32_716, %c0_i32_720] : memref<8x8x128xf32, #tpu.memory_space<vmem>> -> memref<1x1x128xf32, #tpu.memory_space<vmem>>
    %799 = tpu.memref_squeeze %798 : memref<1x1x128xf32, #tpu.memory_space<vmem>> -> memref<128xf32, #tpu.memory_space<vmem>>
    %800 = tpu.memref_slice %arg9[%c3_i32_717, %c2_i32_718] : memref<8x8x!tpu.dma_semaphore, #tpu.memory_space<semaphore_mem>> -> memref<1x1x!tpu.dma_semaphore, #tpu.memory_space<semaphore_mem>>
    %801 = tpu.memref_squeeze %800 : memref<1x1x!tpu.dma_semaphore, #tpu.memory_space<semaphore_mem>> -> memref<!tpu.dma_semaphore, #tpu.memory_space<semaphore_mem>>
    tpu.wait_dma2 semaphore(%801 : memref<!tpu.dma_semaphore, #tpu.memory_space<semaphore_mem>>) src(%797 : memref<128xf32, #tpu.memory_space<any>>) dst(%799 : memref<128xf32, #tpu.memory_space<vmem>>)
    %c3_i32_721 = arith.constant 3 : i32
    %c3_i32_722 = arith.constant 3 : i32
    %c3_i32_723 = arith.constant 3 : i32
    %c3_i32_724 = arith.constant 3 : i32
    %c0_i32_725 = arith.constant 0 : i32
    %802 = tpu.memref_slice %arg2[%273, %c0_i32_725] : memref<50x128xf32, #tpu.memory_space<any>> -> memref<1x128xf32, #tpu.memory_space<any>>
    %803 = tpu.memref_squeeze %802 : memref<1x128xf32, #tpu.memory_space<any>> -> memref<128xf32, #tpu.memory_space<any>>
    %c0_i32_726 = arith.constant 0 : i32
    %804 = tpu.memref_slice %arg8[%c3_i32_721, %c3_i32_722, %c0_i32_726] : memref<8x8x128xf32, #tpu.memory_space<vmem>> -> memref<1x1x128xf32, #tpu.memory_space<vmem>>
    %805 = tpu.memref_squeeze %804 : memref<1x1x128xf32, #tpu.memory_space<vmem>> -> memref<128xf32, #tpu.memory_space<vmem>>
    %806 = tpu.memref_slice %arg9[%c3_i32_723, %c3_i32_724] : memref<8x8x!tpu.dma_semaphore, #tpu.memory_space<semaphore_mem>> -> memref<1x1x!tpu.dma_semaphore, #tpu.memory_space<semaphore_mem>>
    %807 = tpu.memref_squeeze %806 : memref<1x1x!tpu.dma_semaphore, #tpu.memory_space<semaphore_mem>> -> memref<!tpu.dma_semaphore, #tpu.memory_space<semaphore_mem>>
    tpu.wait_dma2 semaphore(%807 : memref<!tpu.dma_semaphore, #tpu.memory_space<semaphore_mem>>) src(%803 : memref<128xf32, #tpu.memory_space<any>>) dst(%805 : memref<128xf32, #tpu.memory_space<vmem>>)
    %c3_i32_727 = arith.constant 3 : i32
    %c4_i32_728 = arith.constant 4 : i32
    %c3_i32_729 = arith.constant 3 : i32
    %c4_i32_730 = arith.constant 4 : i32
    %c0_i32_731 = arith.constant 0 : i32
    %808 = tpu.memref_slice %arg2[%283, %c0_i32_731] : memref<50x128xf32, #tpu.memory_space<any>> -> memref<1x128xf32, #tpu.memory_space<any>>
    %809 = tpu.memref_squeeze %808 : memref<1x128xf32, #tpu.memory_space<any>> -> memref<128xf32, #tpu.memory_space<any>>
    %c0_i32_732 = arith.constant 0 : i32
    %810 = tpu.memref_slice %arg8[%c3_i32_727, %c4_i32_728, %c0_i32_732] : memref<8x8x128xf32, #tpu.memory_space<vmem>> -> memref<1x1x128xf32, #tpu.memory_space<vmem>>
    %811 = tpu.memref_squeeze %810 : memref<1x1x128xf32, #tpu.memory_space<vmem>> -> memref<128xf32, #tpu.memory_space<vmem>>
    %812 = tpu.memref_slice %arg9[%c3_i32_729, %c4_i32_730] : memref<8x8x!tpu.dma_semaphore, #tpu.memory_space<semaphore_mem>> -> memref<1x1x!tpu.dma_semaphore, #tpu.memory_space<semaphore_mem>>
    %813 = tpu.memref_squeeze %812 : memref<1x1x!tpu.dma_semaphore, #tpu.memory_space<semaphore_mem>> -> memref<!tpu.dma_semaphore, #tpu.memory_space<semaphore_mem>>
    tpu.wait_dma2 semaphore(%813 : memref<!tpu.dma_semaphore, #tpu.memory_space<semaphore_mem>>) src(%809 : memref<128xf32, #tpu.memory_space<any>>) dst(%811 : memref<128xf32, #tpu.memory_space<vmem>>)
    %c3_i32_733 = arith.constant 3 : i32
    %c5_i32_734 = arith.constant 5 : i32
    %c3_i32_735 = arith.constant 3 : i32
    %c5_i32_736 = arith.constant 5 : i32
    %c0_i32_737 = arith.constant 0 : i32
    %814 = tpu.memref_slice %arg2[%293, %c0_i32_737] : memref<50x128xf32, #tpu.memory_space<any>> -> memref<1x128xf32, #tpu.memory_space<any>>
    %815 = tpu.memref_squeeze %814 : memref<1x128xf32, #tpu.memory_space<any>> -> memref<128xf32, #tpu.memory_space<any>>
    %c0_i32_738 = arith.constant 0 : i32
    %816 = tpu.memref_slice %arg8[%c3_i32_733, %c5_i32_734, %c0_i32_738] : memref<8x8x128xf32, #tpu.memory_space<vmem>> -> memref<1x1x128xf32, #tpu.memory_space<vmem>>
    %817 = tpu.memref_squeeze %816 : memref<1x1x128xf32, #tpu.memory_space<vmem>> -> memref<128xf32, #tpu.memory_space<vmem>>
    %818 = tpu.memref_slice %arg9[%c3_i32_735, %c5_i32_736] : memref<8x8x!tpu.dma_semaphore, #tpu.memory_space<semaphore_mem>> -> memref<1x1x!tpu.dma_semaphore, #tpu.memory_space<semaphore_mem>>
    %819 = tpu.memref_squeeze %818 : memref<1x1x!tpu.dma_semaphore, #tpu.memory_space<semaphore_mem>> -> memref<!tpu.dma_semaphore, #tpu.memory_space<semaphore_mem>>
    tpu.wait_dma2 semaphore(%819 : memref<!tpu.dma_semaphore, #tpu.memory_space<semaphore_mem>>) src(%815 : memref<128xf32, #tpu.memory_space<any>>) dst(%817 : memref<128xf32, #tpu.memory_space<vmem>>)
    %c3_i32_739 = arith.constant 3 : i32
    %c6_i32_740 = arith.constant 6 : i32
    %c3_i32_741 = arith.constant 3 : i32
    %c6_i32_742 = arith.constant 6 : i32
    %c0_i32_743 = arith.constant 0 : i32
    %820 = tpu.memref_slice %arg2[%303, %c0_i32_743] : memref<50x128xf32, #tpu.memory_space<any>> -> memref<1x128xf32, #tpu.memory_space<any>>
    %821 = tpu.memref_squeeze %820 : memref<1x128xf32, #tpu.memory_space<any>> -> memref<128xf32, #tpu.memory_space<any>>
    %c0_i32_744 = arith.constant 0 : i32
    %822 = tpu.memref_slice %arg8[%c3_i32_739, %c6_i32_740, %c0_i32_744] : memref<8x8x128xf32, #tpu.memory_space<vmem>> -> memref<1x1x128xf32, #tpu.memory_space<vmem>>
    %823 = tpu.memref_squeeze %822 : memref<1x1x128xf32, #tpu.memory_space<vmem>> -> memref<128xf32, #tpu.memory_space<vmem>>
    %824 = tpu.memref_slice %arg9[%c3_i32_741, %c6_i32_742] : memref<8x8x!tpu.dma_semaphore, #tpu.memory_space<semaphore_mem>> -> memref<1x1x!tpu.dma_semaphore, #tpu.memory_space<semaphore_mem>>
    %825 = tpu.memref_squeeze %824 : memref<1x1x!tpu.dma_semaphore, #tpu.memory_space<semaphore_mem>> -> memref<!tpu.dma_semaphore, #tpu.memory_space<semaphore_mem>>
    tpu.wait_dma2 semaphore(%825 : memref<!tpu.dma_semaphore, #tpu.memory_space<semaphore_mem>>) src(%821 : memref<128xf32, #tpu.memory_space<any>>) dst(%823 : memref<128xf32, #tpu.memory_space<vmem>>)
    %c3_i32_745 = arith.constant 3 : i32
    %c7_i32_746 = arith.constant 7 : i32
    %c3_i32_747 = arith.constant 3 : i32
    %c7_i32_748 = arith.constant 7 : i32
    %c0_i32_749 = arith.constant 0 : i32
    %826 = tpu.memref_slice %arg2[%313, %c0_i32_749] : memref<50x128xf32, #tpu.memory_space<any>> -> memref<1x128xf32, #tpu.memory_space<any>>
    %827 = tpu.memref_squeeze %826 : memref<1x128xf32, #tpu.memory_space<any>> -> memref<128xf32, #tpu.memory_space<any>>
    %c0_i32_750 = arith.constant 0 : i32
    %828 = tpu.memref_slice %arg8[%c3_i32_745, %c7_i32_746, %c0_i32_750] : memref<8x8x128xf32, #tpu.memory_space<vmem>> -> memref<1x1x128xf32, #tpu.memory_space<vmem>>
    %829 = tpu.memref_squeeze %828 : memref<1x1x128xf32, #tpu.memory_space<vmem>> -> memref<128xf32, #tpu.memory_space<vmem>>
    %830 = tpu.memref_slice %arg9[%c3_i32_747, %c7_i32_748] : memref<8x8x!tpu.dma_semaphore, #tpu.memory_space<semaphore_mem>> -> memref<1x1x!tpu.dma_semaphore, #tpu.memory_space<semaphore_mem>>
    %831 = tpu.memref_squeeze %830 : memref<1x1x!tpu.dma_semaphore, #tpu.memory_space<semaphore_mem>> -> memref<!tpu.dma_semaphore, #tpu.memory_space<semaphore_mem>>
    tpu.wait_dma2 semaphore(%831 : memref<!tpu.dma_semaphore, #tpu.memory_space<semaphore_mem>>) src(%827 : memref<128xf32, #tpu.memory_space<any>>) dst(%829 : memref<128xf32, #tpu.memory_space<vmem>>)
    %c4_i32_751 = arith.constant 4 : i32
    %c0_i32_752 = arith.constant 0 : i32
    %c4_i32_753 = arith.constant 4 : i32
    %c0_i32_754 = arith.constant 0 : i32
    %c0_i32_755 = arith.constant 0 : i32
    %832 = tpu.memref_slice %arg2[%323, %c0_i32_755] : memref<50x128xf32, #tpu.memory_space<any>> -> memref<1x128xf32, #tpu.memory_space<any>>
    %833 = tpu.memref_squeeze %832 : memref<1x128xf32, #tpu.memory_space<any>> -> memref<128xf32, #tpu.memory_space<any>>
    %c0_i32_756 = arith.constant 0 : i32
    %834 = tpu.memref_slice %arg8[%c4_i32_751, %c0_i32_752, %c0_i32_756] : memref<8x8x128xf32, #tpu.memory_space<vmem>> -> memref<1x1x128xf32, #tpu.memory_space<vmem>>
    %835 = tpu.memref_squeeze %834 : memref<1x1x128xf32, #tpu.memory_space<vmem>> -> memref<128xf32, #tpu.memory_space<vmem>>
    %836 = tpu.memref_slice %arg9[%c4_i32_753, %c0_i32_754] : memref<8x8x!tpu.dma_semaphore, #tpu.memory_space<semaphore_mem>> -> memref<1x1x!tpu.dma_semaphore, #tpu.memory_space<semaphore_mem>>
    %837 = tpu.memref_squeeze %836 : memref<1x1x!tpu.dma_semaphore, #tpu.memory_space<semaphore_mem>> -> memref<!tpu.dma_semaphore, #tpu.memory_space<semaphore_mem>>
    tpu.wait_dma2 semaphore(%837 : memref<!tpu.dma_semaphore, #tpu.memory_space<semaphore_mem>>) src(%833 : memref<128xf32, #tpu.memory_space<any>>) dst(%835 : memref<128xf32, #tpu.memory_space<vmem>>)
    %c4_i32_757 = arith.constant 4 : i32
    %c1_i32_758 = arith.constant 1 : i32
    %c4_i32_759 = arith.constant 4 : i32
    %c1_i32_760 = arith.constant 1 : i32
    %c0_i32_761 = arith.constant 0 : i32
    %838 = tpu.memref_slice %arg2[%333, %c0_i32_761] : memref<50x128xf32, #tpu.memory_space<any>> -> memref<1x128xf32, #tpu.memory_space<any>>
    %839 = tpu.memref_squeeze %838 : memref<1x128xf32, #tpu.memory_space<any>> -> memref<128xf32, #tpu.memory_space<any>>
    %c0_i32_762 = arith.constant 0 : i32
    %840 = tpu.memref_slice %arg8[%c4_i32_757, %c1_i32_758, %c0_i32_762] : memref<8x8x128xf32, #tpu.memory_space<vmem>> -> memref<1x1x128xf32, #tpu.memory_space<vmem>>
    %841 = tpu.memref_squeeze %840 : memref<1x1x128xf32, #tpu.memory_space<vmem>> -> memref<128xf32, #tpu.memory_space<vmem>>
    %842 = tpu.memref_slice %arg9[%c4_i32_759, %c1_i32_760] : memref<8x8x!tpu.dma_semaphore, #tpu.memory_space<semaphore_mem>> -> memref<1x1x!tpu.dma_semaphore, #tpu.memory_space<semaphore_mem>>
    %843 = tpu.memref_squeeze %842 : memref<1x1x!tpu.dma_semaphore, #tpu.memory_space<semaphore_mem>> -> memref<!tpu.dma_semaphore, #tpu.memory_space<semaphore_mem>>
    tpu.wait_dma2 semaphore(%843 : memref<!tpu.dma_semaphore, #tpu.memory_space<semaphore_mem>>) src(%839 : memref<128xf32, #tpu.memory_space<any>>) dst(%841 : memref<128xf32, #tpu.memory_space<vmem>>)
    %c4_i32_763 = arith.constant 4 : i32
    %c2_i32_764 = arith.constant 2 : i32
    %c4_i32_765 = arith.constant 4 : i32
    %c2_i32_766 = arith.constant 2 : i32
    %c0_i32_767 = arith.constant 0 : i32
    %844 = tpu.memref_slice %arg2[%343, %c0_i32_767] : memref<50x128xf32, #tpu.memory_space<any>> -> memref<1x128xf32, #tpu.memory_space<any>>
    %845 = tpu.memref_squeeze %844 : memref<1x128xf32, #tpu.memory_space<any>> -> memref<128xf32, #tpu.memory_space<any>>
    %c0_i32_768 = arith.constant 0 : i32
    %846 = tpu.memref_slice %arg8[%c4_i32_763, %c2_i32_764, %c0_i32_768] : memref<8x8x128xf32, #tpu.memory_space<vmem>> -> memref<1x1x128xf32, #tpu.memory_space<vmem>>
    %847 = tpu.memref_squeeze %846 : memref<1x1x128xf32, #tpu.memory_space<vmem>> -> memref<128xf32, #tpu.memory_space<vmem>>
    %848 = tpu.memref_slice %arg9[%c4_i32_765, %c2_i32_766] : memref<8x8x!tpu.dma_semaphore, #tpu.memory_space<semaphore_mem>> -> memref<1x1x!tpu.dma_semaphore, #tpu.memory_space<semaphore_mem>>
    %849 = tpu.memref_squeeze %848 : memref<1x1x!tpu.dma_semaphore, #tpu.memory_space<semaphore_mem>> -> memref<!tpu.dma_semaphore, #tpu.memory_space<semaphore_mem>>
    tpu.wait_dma2 semaphore(%849 : memref<!tpu.dma_semaphore, #tpu.memory_space<semaphore_mem>>) src(%845 : memref<128xf32, #tpu.memory_space<any>>) dst(%847 : memref<128xf32, #tpu.memory_space<vmem>>)
    %c4_i32_769 = arith.constant 4 : i32
    %c3_i32_770 = arith.constant 3 : i32
    %c4_i32_771 = arith.constant 4 : i32
    %c3_i32_772 = arith.constant 3 : i32
    %c0_i32_773 = arith.constant 0 : i32
    %850 = tpu.memref_slice %arg2[%353, %c0_i32_773] : memref<50x128xf32, #tpu.memory_space<any>> -> memref<1x128xf32, #tpu.memory_space<any>>
    %851 = tpu.memref_squeeze %850 : memref<1x128xf32, #tpu.memory_space<any>> -> memref<128xf32, #tpu.memory_space<any>>
    %c0_i32_774 = arith.constant 0 : i32
    %852 = tpu.memref_slice %arg8[%c4_i32_769, %c3_i32_770, %c0_i32_774] : memref<8x8x128xf32, #tpu.memory_space<vmem>> -> memref<1x1x128xf32, #tpu.memory_space<vmem>>
    %853 = tpu.memref_squeeze %852 : memref<1x1x128xf32, #tpu.memory_space<vmem>> -> memref<128xf32, #tpu.memory_space<vmem>>
    %854 = tpu.memref_slice %arg9[%c4_i32_771, %c3_i32_772] : memref<8x8x!tpu.dma_semaphore, #tpu.memory_space<semaphore_mem>> -> memref<1x1x!tpu.dma_semaphore, #tpu.memory_space<semaphore_mem>>
    %855 = tpu.memref_squeeze %854 : memref<1x1x!tpu.dma_semaphore, #tpu.memory_space<semaphore_mem>> -> memref<!tpu.dma_semaphore, #tpu.memory_space<semaphore_mem>>
    tpu.wait_dma2 semaphore(%855 : memref<!tpu.dma_semaphore, #tpu.memory_space<semaphore_mem>>) src(%851 : memref<128xf32, #tpu.memory_space<any>>) dst(%853 : memref<128xf32, #tpu.memory_space<vmem>>)
    %c4_i32_775 = arith.constant 4 : i32
    %c4_i32_776 = arith.constant 4 : i32
    %c4_i32_777 = arith.constant 4 : i32
    %c4_i32_778 = arith.constant 4 : i32
    %c0_i32_779 = arith.constant 0 : i32
    %856 = tpu.memref_slice %arg2[%363, %c0_i32_779] : memref<50x128xf32, #tpu.memory_space<any>> -> memref<1x128xf32, #tpu.memory_space<any>>
    %857 = tpu.memref_squeeze %856 : memref<1x128xf32, #tpu.memory_space<any>> -> memref<128xf32, #tpu.memory_space<any>>
    %c0_i32_780 = arith.constant 0 : i32
    %858 = tpu.memref_slice %arg8[%c4_i32_775, %c4_i32_776, %c0_i32_780] : memref<8x8x128xf32, #tpu.memory_space<vmem>> -> memref<1x1x128xf32, #tpu.memory_space<vmem>>
    %859 = tpu.memref_squeeze %858 : memref<1x1x128xf32, #tpu.memory_space<vmem>> -> memref<128xf32, #tpu.memory_space<vmem>>
    %860 = tpu.memref_slice %arg9[%c4_i32_777, %c4_i32_778] : memref<8x8x!tpu.dma_semaphore, #tpu.memory_space<semaphore_mem>> -> memref<1x1x!tpu.dma_semaphore, #tpu.memory_space<semaphore_mem>>
    %861 = tpu.memref_squeeze %860 : memref<1x1x!tpu.dma_semaphore, #tpu.memory_space<semaphore_mem>> -> memref<!tpu.dma_semaphore, #tpu.memory_space<semaphore_mem>>
    tpu.wait_dma2 semaphore(%861 : memref<!tpu.dma_semaphore, #tpu.memory_space<semaphore_mem>>) src(%857 : memref<128xf32, #tpu.memory_space<any>>) dst(%859 : memref<128xf32, #tpu.memory_space<vmem>>)
    %c4_i32_781 = arith.constant 4 : i32
    %c5_i32_782 = arith.constant 5 : i32
    %c4_i32_783 = arith.constant 4 : i32
    %c5_i32_784 = arith.constant 5 : i32
    %c0_i32_785 = arith.constant 0 : i32
    %862 = tpu.memref_slice %arg2[%373, %c0_i32_785] : memref<50x128xf32, #tpu.memory_space<any>> -> memref<1x128xf32, #tpu.memory_space<any>>
    %863 = tpu.memref_squeeze %862 : memref<1x128xf32, #tpu.memory_space<any>> -> memref<128xf32, #tpu.memory_space<any>>
    %c0_i32_786 = arith.constant 0 : i32
    %864 = tpu.memref_slice %arg8[%c4_i32_781, %c5_i32_782, %c0_i32_786] : memref<8x8x128xf32, #tpu.memory_space<vmem>> -> memref<1x1x128xf32, #tpu.memory_space<vmem>>
    %865 = tpu.memref_squeeze %864 : memref<1x1x128xf32, #tpu.memory_space<vmem>> -> memref<128xf32, #tpu.memory_space<vmem>>
    %866 = tpu.memref_slice %arg9[%c4_i32_783, %c5_i32_784] : memref<8x8x!tpu.dma_semaphore, #tpu.memory_space<semaphore_mem>> -> memref<1x1x!tpu.dma_semaphore, #tpu.memory_space<semaphore_mem>>
    %867 = tpu.memref_squeeze %866 : memref<1x1x!tpu.dma_semaphore, #tpu.memory_space<semaphore_mem>> -> memref<!tpu.dma_semaphore, #tpu.memory_space<semaphore_mem>>
    tpu.wait_dma2 semaphore(%867 : memref<!tpu.dma_semaphore, #tpu.memory_space<semaphore_mem>>) src(%863 : memref<128xf32, #tpu.memory_space<any>>) dst(%865 : memref<128xf32, #tpu.memory_space<vmem>>)
    %c4_i32_787 = arith.constant 4 : i32
    %c6_i32_788 = arith.constant 6 : i32
    %c4_i32_789 = arith.constant 4 : i32
    %c6_i32_790 = arith.constant 6 : i32
    %c0_i32_791 = arith.constant 0 : i32
    %868 = tpu.memref_slice %arg2[%383, %c0_i32_791] : memref<50x128xf32, #tpu.memory_space<any>> -> memref<1x128xf32, #tpu.memory_space<any>>
    %869 = tpu.memref_squeeze %868 : memref<1x128xf32, #tpu.memory_space<any>> -> memref<128xf32, #tpu.memory_space<any>>
    %c0_i32_792 = arith.constant 0 : i32
    %870 = tpu.memref_slice %arg8[%c4_i32_787, %c6_i32_788, %c0_i32_792] : memref<8x8x128xf32, #tpu.memory_space<vmem>> -> memref<1x1x128xf32, #tpu.memory_space<vmem>>
    %871 = tpu.memref_squeeze %870 : memref<1x1x128xf32, #tpu.memory_space<vmem>> -> memref<128xf32, #tpu.memory_space<vmem>>
    %872 = tpu.memref_slice %arg9[%c4_i32_789, %c6_i32_790] : memref<8x8x!tpu.dma_semaphore, #tpu.memory_space<semaphore_mem>> -> memref<1x1x!tpu.dma_semaphore, #tpu.memory_space<semaphore_mem>>
    %873 = tpu.memref_squeeze %872 : memref<1x1x!tpu.dma_semaphore, #tpu.memory_space<semaphore_mem>> -> memref<!tpu.dma_semaphore, #tpu.memory_space<semaphore_mem>>
    tpu.wait_dma2 semaphore(%873 : memref<!tpu.dma_semaphore, #tpu.memory_space<semaphore_mem>>) src(%869 : memref<128xf32, #tpu.memory_space<any>>) dst(%871 : memref<128xf32, #tpu.memory_space<vmem>>)
    %c4_i32_793 = arith.constant 4 : i32
    %c7_i32_794 = arith.constant 7 : i32
    %c4_i32_795 = arith.constant 4 : i32
    %c7_i32_796 = arith.constant 7 : i32
    %c0_i32_797 = arith.constant 0 : i32
    %874 = tpu.memref_slice %arg2[%393, %c0_i32_797] : memref<50x128xf32, #tpu.memory_space<any>> -> memref<1x128xf32, #tpu.memory_space<any>>
    %875 = tpu.memref_squeeze %874 : memref<1x128xf32, #tpu.memory_space<any>> -> memref<128xf32, #tpu.memory_space<any>>
    %c0_i32_798 = arith.constant 0 : i32
    %876 = tpu.memref_slice %arg8[%c4_i32_793, %c7_i32_794, %c0_i32_798] : memref<8x8x128xf32, #tpu.memory_space<vmem>> -> memref<1x1x128xf32, #tpu.memory_space<vmem>>
    %877 = tpu.memref_squeeze %876 : memref<1x1x128xf32, #tpu.memory_space<vmem>> -> memref<128xf32, #tpu.memory_space<vmem>>
    %878 = tpu.memref_slice %arg9[%c4_i32_795, %c7_i32_796] : memref<8x8x!tpu.dma_semaphore, #tpu.memory_space<semaphore_mem>> -> memref<1x1x!tpu.dma_semaphore, #tpu.memory_space<semaphore_mem>>
    %879 = tpu.memref_squeeze %878 : memref<1x1x!tpu.dma_semaphore, #tpu.memory_space<semaphore_mem>> -> memref<!tpu.dma_semaphore, #tpu.memory_space<semaphore_mem>>
    tpu.wait_dma2 semaphore(%879 : memref<!tpu.dma_semaphore, #tpu.memory_space<semaphore_mem>>) src(%875 : memref<128xf32, #tpu.memory_space<any>>) dst(%877 : memref<128xf32, #tpu.memory_space<vmem>>)
    %c5_i32_799 = arith.constant 5 : i32
    %c0_i32_800 = arith.constant 0 : i32
    %c5_i32_801 = arith.constant 5 : i32
    %c0_i32_802 = arith.constant 0 : i32
    %c0_i32_803 = arith.constant 0 : i32
    %880 = tpu.memref_slice %arg2[%403, %c0_i32_803] : memref<50x128xf32, #tpu.memory_space<any>> -> memref<1x128xf32, #tpu.memory_space<any>>
    %881 = tpu.memref_squeeze %880 : memref<1x128xf32, #tpu.memory_space<any>> -> memref<128xf32, #tpu.memory_space<any>>
    %c0_i32_804 = arith.constant 0 : i32
    %882 = tpu.memref_slice %arg8[%c5_i32_799, %c0_i32_800, %c0_i32_804] : memref<8x8x128xf32, #tpu.memory_space<vmem>> -> memref<1x1x128xf32, #tpu.memory_space<vmem>>
    %883 = tpu.memref_squeeze %882 : memref<1x1x128xf32, #tpu.memory_space<vmem>> -> memref<128xf32, #tpu.memory_space<vmem>>
    %884 = tpu.memref_slice %arg9[%c5_i32_801, %c0_i32_802] : memref<8x8x!tpu.dma_semaphore, #tpu.memory_space<semaphore_mem>> -> memref<1x1x!tpu.dma_semaphore, #tpu.memory_space<semaphore_mem>>
    %885 = tpu.memref_squeeze %884 : memref<1x1x!tpu.dma_semaphore, #tpu.memory_space<semaphore_mem>> -> memref<!tpu.dma_semaphore, #tpu.memory_space<semaphore_mem>>
    tpu.wait_dma2 semaphore(%885 : memref<!tpu.dma_semaphore, #tpu.memory_space<semaphore_mem>>) src(%881 : memref<128xf32, #tpu.memory_space<any>>) dst(%883 : memref<128xf32, #tpu.memory_space<vmem>>)
    %c5_i32_805 = arith.constant 5 : i32
    %c1_i32_806 = arith.constant 1 : i32
    %c5_i32_807 = arith.constant 5 : i32
    %c1_i32_808 = arith.constant 1 : i32
    %c0_i32_809 = arith.constant 0 : i32
    %886 = tpu.memref_slice %arg2[%413, %c0_i32_809] : memref<50x128xf32, #tpu.memory_space<any>> -> memref<1x128xf32, #tpu.memory_space<any>>
    %887 = tpu.memref_squeeze %886 : memref<1x128xf32, #tpu.memory_space<any>> -> memref<128xf32, #tpu.memory_space<any>>
    %c0_i32_810 = arith.constant 0 : i32
    %888 = tpu.memref_slice %arg8[%c5_i32_805, %c1_i32_806, %c0_i32_810] : memref<8x8x128xf32, #tpu.memory_space<vmem>> -> memref<1x1x128xf32, #tpu.memory_space<vmem>>
    %889 = tpu.memref_squeeze %888 : memref<1x1x128xf32, #tpu.memory_space<vmem>> -> memref<128xf32, #tpu.memory_space<vmem>>
    %890 = tpu.memref_slice %arg9[%c5_i32_807, %c1_i32_808] : memref<8x8x!tpu.dma_semaphore, #tpu.memory_space<semaphore_mem>> -> memref<1x1x!tpu.dma_semaphore, #tpu.memory_space<semaphore_mem>>
    %891 = tpu.memref_squeeze %890 : memref<1x1x!tpu.dma_semaphore, #tpu.memory_space<semaphore_mem>> -> memref<!tpu.dma_semaphore, #tpu.memory_space<semaphore_mem>>
    tpu.wait_dma2 semaphore(%891 : memref<!tpu.dma_semaphore, #tpu.memory_space<semaphore_mem>>) src(%887 : memref<128xf32, #tpu.memory_space<any>>) dst(%889 : memref<128xf32, #tpu.memory_space<vmem>>)
    %c5_i32_811 = arith.constant 5 : i32
    %c2_i32_812 = arith.constant 2 : i32
    %c5_i32_813 = arith.constant 5 : i32
    %c2_i32_814 = arith.constant 2 : i32
    %c0_i32_815 = arith.constant 0 : i32
    %892 = tpu.memref_slice %arg2[%423, %c0_i32_815] : memref<50x128xf32, #tpu.memory_space<any>> -> memref<1x128xf32, #tpu.memory_space<any>>
    %893 = tpu.memref_squeeze %892 : memref<1x128xf32, #tpu.memory_space<any>> -> memref<128xf32, #tpu.memory_space<any>>
    %c0_i32_816 = arith.constant 0 : i32
    %894 = tpu.memref_slice %arg8[%c5_i32_811, %c2_i32_812, %c0_i32_816] : memref<8x8x128xf32, #tpu.memory_space<vmem>> -> memref<1x1x128xf32, #tpu.memory_space<vmem>>
    %895 = tpu.memref_squeeze %894 : memref<1x1x128xf32, #tpu.memory_space<vmem>> -> memref<128xf32, #tpu.memory_space<vmem>>
    %896 = tpu.memref_slice %arg9[%c5_i32_813, %c2_i32_814] : memref<8x8x!tpu.dma_semaphore, #tpu.memory_space<semaphore_mem>> -> memref<1x1x!tpu.dma_semaphore, #tpu.memory_space<semaphore_mem>>
    %897 = tpu.memref_squeeze %896 : memref<1x1x!tpu.dma_semaphore, #tpu.memory_space<semaphore_mem>> -> memref<!tpu.dma_semaphore, #tpu.memory_space<semaphore_mem>>
    tpu.wait_dma2 semaphore(%897 : memref<!tpu.dma_semaphore, #tpu.memory_space<semaphore_mem>>) src(%893 : memref<128xf32, #tpu.memory_space<any>>) dst(%895 : memref<128xf32, #tpu.memory_space<vmem>>)
    %c5_i32_817 = arith.constant 5 : i32
    %c3_i32_818 = arith.constant 3 : i32
    %c5_i32_819 = arith.constant 5 : i32
    %c3_i32_820 = arith.constant 3 : i32
    %c0_i32_821 = arith.constant 0 : i32
    %898 = tpu.memref_slice %arg2[%433, %c0_i32_821] : memref<50x128xf32, #tpu.memory_space<any>> -> memref<1x128xf32, #tpu.memory_space<any>>
    %899 = tpu.memref_squeeze %898 : memref<1x128xf32, #tpu.memory_space<any>> -> memref<128xf32, #tpu.memory_space<any>>
    %c0_i32_822 = arith.constant 0 : i32
    %900 = tpu.memref_slice %arg8[%c5_i32_817, %c3_i32_818, %c0_i32_822] : memref<8x8x128xf32, #tpu.memory_space<vmem>> -> memref<1x1x128xf32, #tpu.memory_space<vmem>>
    %901 = tpu.memref_squeeze %900 : memref<1x1x128xf32, #tpu.memory_space<vmem>> -> memref<128xf32, #tpu.memory_space<vmem>>
    %902 = tpu.memref_slice %arg9[%c5_i32_819, %c3_i32_820] : memref<8x8x!tpu.dma_semaphore, #tpu.memory_space<semaphore_mem>> -> memref<1x1x!tpu.dma_semaphore, #tpu.memory_space<semaphore_mem>>
    %903 = tpu.memref_squeeze %902 : memref<1x1x!tpu.dma_semaphore, #tpu.memory_space<semaphore_mem>> -> memref<!tpu.dma_semaphore, #tpu.memory_space<semaphore_mem>>
    tpu.wait_dma2 semaphore(%903 : memref<!tpu.dma_semaphore, #tpu.memory_space<semaphore_mem>>) src(%899 : memref<128xf32, #tpu.memory_space<any>>) dst(%901 : memref<128xf32, #tpu.memory_space<vmem>>)
    %c5_i32_823 = arith.constant 5 : i32
    %c4_i32_824 = arith.constant 4 : i32
    %c5_i32_825 = arith.constant 5 : i32
    %c4_i32_826 = arith.constant 4 : i32
    %c0_i32_827 = arith.constant 0 : i32
    %904 = tpu.memref_slice %arg2[%443, %c0_i32_827] : memref<50x128xf32, #tpu.memory_space<any>> -> memref<1x128xf32, #tpu.memory_space<any>>
    %905 = tpu.memref_squeeze %904 : memref<1x128xf32, #tpu.memory_space<any>> -> memref<128xf32, #tpu.memory_space<any>>
    %c0_i32_828 = arith.constant 0 : i32
    %906 = tpu.memref_slice %arg8[%c5_i32_823, %c4_i32_824, %c0_i32_828] : memref<8x8x128xf32, #tpu.memory_space<vmem>> -> memref<1x1x128xf32, #tpu.memory_space<vmem>>
    %907 = tpu.memref_squeeze %906 : memref<1x1x128xf32, #tpu.memory_space<vmem>> -> memref<128xf32, #tpu.memory_space<vmem>>
    %908 = tpu.memref_slice %arg9[%c5_i32_825, %c4_i32_826] : memref<8x8x!tpu.dma_semaphore, #tpu.memory_space<semaphore_mem>> -> memref<1x1x!tpu.dma_semaphore, #tpu.memory_space<semaphore_mem>>
    %909 = tpu.memref_squeeze %908 : memref<1x1x!tpu.dma_semaphore, #tpu.memory_space<semaphore_mem>> -> memref<!tpu.dma_semaphore, #tpu.memory_space<semaphore_mem>>
    tpu.wait_dma2 semaphore(%909 : memref<!tpu.dma_semaphore, #tpu.memory_space<semaphore_mem>>) src(%905 : memref<128xf32, #tpu.memory_space<any>>) dst(%907 : memref<128xf32, #tpu.memory_space<vmem>>)
    %c5_i32_829 = arith.constant 5 : i32
    %c5_i32_830 = arith.constant 5 : i32
    %c5_i32_831 = arith.constant 5 : i32
    %c5_i32_832 = arith.constant 5 : i32
    %c0_i32_833 = arith.constant 0 : i32
    %910 = tpu.memref_slice %arg2[%453, %c0_i32_833] : memref<50x128xf32, #tpu.memory_space<any>> -> memref<1x128xf32, #tpu.memory_space<any>>
    %911 = tpu.memref_squeeze %910 : memref<1x128xf32, #tpu.memory_space<any>> -> memref<128xf32, #tpu.memory_space<any>>
    %c0_i32_834 = arith.constant 0 : i32
    %912 = tpu.memref_slice %arg8[%c5_i32_829, %c5_i32_830, %c0_i32_834] : memref<8x8x128xf32, #tpu.memory_space<vmem>> -> memref<1x1x128xf32, #tpu.memory_space<vmem>>
    %913 = tpu.memref_squeeze %912 : memref<1x1x128xf32, #tpu.memory_space<vmem>> -> memref<128xf32, #tpu.memory_space<vmem>>
    %914 = tpu.memref_slice %arg9[%c5_i32_831, %c5_i32_832] : memref<8x8x!tpu.dma_semaphore, #tpu.memory_space<semaphore_mem>> -> memref<1x1x!tpu.dma_semaphore, #tpu.memory_space<semaphore_mem>>
    %915 = tpu.memref_squeeze %914 : memref<1x1x!tpu.dma_semaphore, #tpu.memory_space<semaphore_mem>> -> memref<!tpu.dma_semaphore, #tpu.memory_space<semaphore_mem>>
    tpu.wait_dma2 semaphore(%915 : memref<!tpu.dma_semaphore, #tpu.memory_space<semaphore_mem>>) src(%911 : memref<128xf32, #tpu.memory_space<any>>) dst(%913 : memref<128xf32, #tpu.memory_space<vmem>>)
    %c5_i32_835 = arith.constant 5 : i32
    %c6_i32_836 = arith.constant 6 : i32
    %c5_i32_837 = arith.constant 5 : i32
    %c6_i32_838 = arith.constant 6 : i32
    %c0_i32_839 = arith.constant 0 : i32
    %916 = tpu.memref_slice %arg2[%463, %c0_i32_839] : memref<50x128xf32, #tpu.memory_space<any>> -> memref<1x128xf32, #tpu.memory_space<any>>
    %917 = tpu.memref_squeeze %916 : memref<1x128xf32, #tpu.memory_space<any>> -> memref<128xf32, #tpu.memory_space<any>>
    %c0_i32_840 = arith.constant 0 : i32
    %918 = tpu.memref_slice %arg8[%c5_i32_835, %c6_i32_836, %c0_i32_840] : memref<8x8x128xf32, #tpu.memory_space<vmem>> -> memref<1x1x128xf32, #tpu.memory_space<vmem>>
    %919 = tpu.memref_squeeze %918 : memref<1x1x128xf32, #tpu.memory_space<vmem>> -> memref<128xf32, #tpu.memory_space<vmem>>
    %920 = tpu.memref_slice %arg9[%c5_i32_837, %c6_i32_838] : memref<8x8x!tpu.dma_semaphore, #tpu.memory_space<semaphore_mem>> -> memref<1x1x!tpu.dma_semaphore, #tpu.memory_space<semaphore_mem>>
    %921 = tpu.memref_squeeze %920 : memref<1x1x!tpu.dma_semaphore, #tpu.memory_space<semaphore_mem>> -> memref<!tpu.dma_semaphore, #tpu.memory_space<semaphore_mem>>
    tpu.wait_dma2 semaphore(%921 : memref<!tpu.dma_semaphore, #tpu.memory_space<semaphore_mem>>) src(%917 : memref<128xf32, #tpu.memory_space<any>>) dst(%919 : memref<128xf32, #tpu.memory_space<vmem>>)
    %c5_i32_841 = arith.constant 5 : i32
    %c7_i32_842 = arith.constant 7 : i32
    %c5_i32_843 = arith.constant 5 : i32
    %c7_i32_844 = arith.constant 7 : i32
    %c0_i32_845 = arith.constant 0 : i32
    %922 = tpu.memref_slice %arg2[%473, %c0_i32_845] : memref<50x128xf32, #tpu.memory_space<any>> -> memref<1x128xf32, #tpu.memory_space<any>>
    %923 = tpu.memref_squeeze %922 : memref<1x128xf32, #tpu.memory_space<any>> -> memref<128xf32, #tpu.memory_space<any>>
    %c0_i32_846 = arith.constant 0 : i32
    %924 = tpu.memref_slice %arg8[%c5_i32_841, %c7_i32_842, %c0_i32_846] : memref<8x8x128xf32, #tpu.memory_space<vmem>> -> memref<1x1x128xf32, #tpu.memory_space<vmem>>
    %925 = tpu.memref_squeeze %924 : memref<1x1x128xf32, #tpu.memory_space<vmem>> -> memref<128xf32, #tpu.memory_space<vmem>>
    %926 = tpu.memref_slice %arg9[%c5_i32_843, %c7_i32_844] : memref<8x8x!tpu.dma_semaphore, #tpu.memory_space<semaphore_mem>> -> memref<1x1x!tpu.dma_semaphore, #tpu.memory_space<semaphore_mem>>
    %927 = tpu.memref_squeeze %926 : memref<1x1x!tpu.dma_semaphore, #tpu.memory_space<semaphore_mem>> -> memref<!tpu.dma_semaphore, #tpu.memory_space<semaphore_mem>>
    tpu.wait_dma2 semaphore(%927 : memref<!tpu.dma_semaphore, #tpu.memory_space<semaphore_mem>>) src(%923 : memref<128xf32, #tpu.memory_space<any>>) dst(%925 : memref<128xf32, #tpu.memory_space<vmem>>)
    %c6_i32_847 = arith.constant 6 : i32
    %c0_i32_848 = arith.constant 0 : i32
    %c6_i32_849 = arith.constant 6 : i32
    %c0_i32_850 = arith.constant 0 : i32
    %c0_i32_851 = arith.constant 0 : i32
    %928 = tpu.memref_slice %arg2[%483, %c0_i32_851] : memref<50x128xf32, #tpu.memory_space<any>> -> memref<1x128xf32, #tpu.memory_space<any>>
    %929 = tpu.memref_squeeze %928 : memref<1x128xf32, #tpu.memory_space<any>> -> memref<128xf32, #tpu.memory_space<any>>
    %c0_i32_852 = arith.constant 0 : i32
    %930 = tpu.memref_slice %arg8[%c6_i32_847, %c0_i32_848, %c0_i32_852] : memref<8x8x128xf32, #tpu.memory_space<vmem>> -> memref<1x1x128xf32, #tpu.memory_space<vmem>>
    %931 = tpu.memref_squeeze %930 : memref<1x1x128xf32, #tpu.memory_space<vmem>> -> memref<128xf32, #tpu.memory_space<vmem>>
    %932 = tpu.memref_slice %arg9[%c6_i32_849, %c0_i32_850] : memref<8x8x!tpu.dma_semaphore, #tpu.memory_space<semaphore_mem>> -> memref<1x1x!tpu.dma_semaphore, #tpu.memory_space<semaphore_mem>>
    %933 = tpu.memref_squeeze %932 : memref<1x1x!tpu.dma_semaphore, #tpu.memory_space<semaphore_mem>> -> memref<!tpu.dma_semaphore, #tpu.memory_space<semaphore_mem>>
    tpu.wait_dma2 semaphore(%933 : memref<!tpu.dma_semaphore, #tpu.memory_space<semaphore_mem>>) src(%929 : memref<128xf32, #tpu.memory_space<any>>) dst(%931 : memref<128xf32, #tpu.memory_space<vmem>>)
    %c6_i32_853 = arith.constant 6 : i32
    %c1_i32_854 = arith.constant 1 : i32
    %c6_i32_855 = arith.constant 6 : i32
    %c1_i32_856 = arith.constant 1 : i32
    %c0_i32_857 = arith.constant 0 : i32
    %934 = tpu.memref_slice %arg2[%493, %c0_i32_857] : memref<50x128xf32, #tpu.memory_space<any>> -> memref<1x128xf32, #tpu.memory_space<any>>
    %935 = tpu.memref_squeeze %934 : memref<1x128xf32, #tpu.memory_space<any>> -> memref<128xf32, #tpu.memory_space<any>>
    %c0_i32_858 = arith.constant 0 : i32
    %936 = tpu.memref_slice %arg8[%c6_i32_853, %c1_i32_854, %c0_i32_858] : memref<8x8x128xf32, #tpu.memory_space<vmem>> -> memref<1x1x128xf32, #tpu.memory_space<vmem>>
    %937 = tpu.memref_squeeze %936 : memref<1x1x128xf32, #tpu.memory_space<vmem>> -> memref<128xf32, #tpu.memory_space<vmem>>
    %938 = tpu.memref_slice %arg9[%c6_i32_855, %c1_i32_856] : memref<8x8x!tpu.dma_semaphore, #tpu.memory_space<semaphore_mem>> -> memref<1x1x!tpu.dma_semaphore, #tpu.memory_space<semaphore_mem>>
    %939 = tpu.memref_squeeze %938 : memref<1x1x!tpu.dma_semaphore, #tpu.memory_space<semaphore_mem>> -> memref<!tpu.dma_semaphore, #tpu.memory_space<semaphore_mem>>
    tpu.wait_dma2 semaphore(%939 : memref<!tpu.dma_semaphore, #tpu.memory_space<semaphore_mem>>) src(%935 : memref<128xf32, #tpu.memory_space<any>>) dst(%937 : memref<128xf32, #tpu.memory_space<vmem>>)
    %c6_i32_859 = arith.constant 6 : i32
    %c2_i32_860 = arith.constant 2 : i32
    %c6_i32_861 = arith.constant 6 : i32
    %c2_i32_862 = arith.constant 2 : i32
    %c0_i32_863 = arith.constant 0 : i32
    %940 = tpu.memref_slice %arg2[%503, %c0_i32_863] : memref<50x128xf32, #tpu.memory_space<any>> -> memref<1x128xf32, #tpu.memory_space<any>>
    %941 = tpu.memref_squeeze %940 : memref<1x128xf32, #tpu.memory_space<any>> -> memref<128xf32, #tpu.memory_space<any>>
    %c0_i32_864 = arith.constant 0 : i32
    %942 = tpu.memref_slice %arg8[%c6_i32_859, %c2_i32_860, %c0_i32_864] : memref<8x8x128xf32, #tpu.memory_space<vmem>> -> memref<1x1x128xf32, #tpu.memory_space<vmem>>
    %943 = tpu.memref_squeeze %942 : memref<1x1x128xf32, #tpu.memory_space<vmem>> -> memref<128xf32, #tpu.memory_space<vmem>>
    %944 = tpu.memref_slice %arg9[%c6_i32_861, %c2_i32_862] : memref<8x8x!tpu.dma_semaphore, #tpu.memory_space<semaphore_mem>> -> memref<1x1x!tpu.dma_semaphore, #tpu.memory_space<semaphore_mem>>
    %945 = tpu.memref_squeeze %944 : memref<1x1x!tpu.dma_semaphore, #tpu.memory_space<semaphore_mem>> -> memref<!tpu.dma_semaphore, #tpu.memory_space<semaphore_mem>>
    tpu.wait_dma2 semaphore(%945 : memref<!tpu.dma_semaphore, #tpu.memory_space<semaphore_mem>>) src(%941 : memref<128xf32, #tpu.memory_space<any>>) dst(%943 : memref<128xf32, #tpu.memory_space<vmem>>)
    %c6_i32_865 = arith.constant 6 : i32
    %c3_i32_866 = arith.constant 3 : i32
    %c6_i32_867 = arith.constant 6 : i32
    %c3_i32_868 = arith.constant 3 : i32
    %c0_i32_869 = arith.constant 0 : i32
    %946 = tpu.memref_slice %arg2[%513, %c0_i32_869] : memref<50x128xf32, #tpu.memory_space<any>> -> memref<1x128xf32, #tpu.memory_space<any>>
    %947 = tpu.memref_squeeze %946 : memref<1x128xf32, #tpu.memory_space<any>> -> memref<128xf32, #tpu.memory_space<any>>
    %c0_i32_870 = arith.constant 0 : i32
    %948 = tpu.memref_slice %arg8[%c6_i32_865, %c3_i32_866, %c0_i32_870] : memref<8x8x128xf32, #tpu.memory_space<vmem>> -> memref<1x1x128xf32, #tpu.memory_space<vmem>>
    %949 = tpu.memref_squeeze %948 : memref<1x1x128xf32, #tpu.memory_space<vmem>> -> memref<128xf32, #tpu.memory_space<vmem>>
    %950 = tpu.memref_slice %arg9[%c6_i32_867, %c3_i32_868] : memref<8x8x!tpu.dma_semaphore, #tpu.memory_space<semaphore_mem>> -> memref<1x1x!tpu.dma_semaphore, #tpu.memory_space<semaphore_mem>>
    %951 = tpu.memref_squeeze %950 : memref<1x1x!tpu.dma_semaphore, #tpu.memory_space<semaphore_mem>> -> memref<!tpu.dma_semaphore, #tpu.memory_space<semaphore_mem>>
    tpu.wait_dma2 semaphore(%951 : memref<!tpu.dma_semaphore, #tpu.memory_space<semaphore_mem>>) src(%947 : memref<128xf32, #tpu.memory_space<any>>) dst(%949 : memref<128xf32, #tpu.memory_space<vmem>>)
    %c6_i32_871 = arith.constant 6 : i32
    %c4_i32_872 = arith.constant 4 : i32
    %c6_i32_873 = arith.constant 6 : i32
    %c4_i32_874 = arith.constant 4 : i32
    %c0_i32_875 = arith.constant 0 : i32
    %952 = tpu.memref_slice %arg2[%523, %c0_i32_875] : memref<50x128xf32, #tpu.memory_space<any>> -> memref<1x128xf32, #tpu.memory_space<any>>
    %953 = tpu.memref_squeeze %952 : memref<1x128xf32, #tpu.memory_space<any>> -> memref<128xf32, #tpu.memory_space<any>>
    %c0_i32_876 = arith.constant 0 : i32
    %954 = tpu.memref_slice %arg8[%c6_i32_871, %c4_i32_872, %c0_i32_876] : memref<8x8x128xf32, #tpu.memory_space<vmem>> -> memref<1x1x128xf32, #tpu.memory_space<vmem>>
    %955 = tpu.memref_squeeze %954 : memref<1x1x128xf32, #tpu.memory_space<vmem>> -> memref<128xf32, #tpu.memory_space<vmem>>
    %956 = tpu.memref_slice %arg9[%c6_i32_873, %c4_i32_874] : memref<8x8x!tpu.dma_semaphore, #tpu.memory_space<semaphore_mem>> -> memref<1x1x!tpu.dma_semaphore, #tpu.memory_space<semaphore_mem>>
    %957 = tpu.memref_squeeze %956 : memref<1x1x!tpu.dma_semaphore, #tpu.memory_space<semaphore_mem>> -> memref<!tpu.dma_semaphore, #tpu.memory_space<semaphore_mem>>
    tpu.wait_dma2 semaphore(%957 : memref<!tpu.dma_semaphore, #tpu.memory_space<semaphore_mem>>) src(%953 : memref<128xf32, #tpu.memory_space<any>>) dst(%955 : memref<128xf32, #tpu.memory_space<vmem>>)
    %c6_i32_877 = arith.constant 6 : i32
    %c5_i32_878 = arith.constant 5 : i32
    %c6_i32_879 = arith.constant 6 : i32
    %c5_i32_880 = arith.constant 5 : i32
    %c0_i32_881 = arith.constant 0 : i32
    %958 = tpu.memref_slice %arg2[%533, %c0_i32_881] : memref<50x128xf32, #tpu.memory_space<any>> -> memref<1x128xf32, #tpu.memory_space<any>>
    %959 = tpu.memref_squeeze %958 : memref<1x128xf32, #tpu.memory_space<any>> -> memref<128xf32, #tpu.memory_space<any>>
    %c0_i32_882 = arith.constant 0 : i32
    %960 = tpu.memref_slice %arg8[%c6_i32_877, %c5_i32_878, %c0_i32_882] : memref<8x8x128xf32, #tpu.memory_space<vmem>> -> memref<1x1x128xf32, #tpu.memory_space<vmem>>
    %961 = tpu.memref_squeeze %960 : memref<1x1x128xf32, #tpu.memory_space<vmem>> -> memref<128xf32, #tpu.memory_space<vmem>>
    %962 = tpu.memref_slice %arg9[%c6_i32_879, %c5_i32_880] : memref<8x8x!tpu.dma_semaphore, #tpu.memory_space<semaphore_mem>> -> memref<1x1x!tpu.dma_semaphore, #tpu.memory_space<semaphore_mem>>
    %963 = tpu.memref_squeeze %962 : memref<1x1x!tpu.dma_semaphore, #tpu.memory_space<semaphore_mem>> -> memref<!tpu.dma_semaphore, #tpu.memory_space<semaphore_mem>>
    tpu.wait_dma2 semaphore(%963 : memref<!tpu.dma_semaphore, #tpu.memory_space<semaphore_mem>>) src(%959 : memref<128xf32, #tpu.memory_space<any>>) dst(%961 : memref<128xf32, #tpu.memory_space<vmem>>)
    %c6_i32_883 = arith.constant 6 : i32
    %c6_i32_884 = arith.constant 6 : i32
    %c6_i32_885 = arith.constant 6 : i32
    %c6_i32_886 = arith.constant 6 : i32
    %c0_i32_887 = arith.constant 0 : i32
    %964 = tpu.memref_slice %arg2[%543, %c0_i32_887] : memref<50x128xf32, #tpu.memory_space<any>> -> memref<1x128xf32, #tpu.memory_space<any>>
    %965 = tpu.memref_squeeze %964 : memref<1x128xf32, #tpu.memory_space<any>> -> memref<128xf32, #tpu.memory_space<any>>
    %c0_i32_888 = arith.constant 0 : i32
    %966 = tpu.memref_slice %arg8[%c6_i32_883, %c6_i32_884, %c0_i32_888] : memref<8x8x128xf32, #tpu.memory_space<vmem>> -> memref<1x1x128xf32, #tpu.memory_space<vmem>>
    %967 = tpu.memref_squeeze %966 : memref<1x1x128xf32, #tpu.memory_space<vmem>> -> memref<128xf32, #tpu.memory_space<vmem>>
    %968 = tpu.memref_slice %arg9[%c6_i32_885, %c6_i32_886] : memref<8x8x!tpu.dma_semaphore, #tpu.memory_space<semaphore_mem>> -> memref<1x1x!tpu.dma_semaphore, #tpu.memory_space<semaphore_mem>>
    %969 = tpu.memref_squeeze %968 : memref<1x1x!tpu.dma_semaphore, #tpu.memory_space<semaphore_mem>> -> memref<!tpu.dma_semaphore, #tpu.memory_space<semaphore_mem>>
    tpu.wait_dma2 semaphore(%969 : memref<!tpu.dma_semaphore, #tpu.memory_space<semaphore_mem>>) src(%965 : memref<128xf32, #tpu.memory_space<any>>) dst(%967 : memref<128xf32, #tpu.memory_space<vmem>>)
    %c6_i32_889 = arith.constant 6 : i32
    %c7_i32_890 = arith.constant 7 : i32
    %c6_i32_891 = arith.constant 6 : i32
    %c7_i32_892 = arith.constant 7 : i32
    %c0_i32_893 = arith.constant 0 : i32
    %970 = tpu.memref_slice %arg2[%553, %c0_i32_893] : memref<50x128xf32, #tpu.memory_space<any>> -> memref<1x128xf32, #tpu.memory_space<any>>
    %971 = tpu.memref_squeeze %970 : memref<1x128xf32, #tpu.memory_space<any>> -> memref<128xf32, #tpu.memory_space<any>>
    %c0_i32_894 = arith.constant 0 : i32
    %972 = tpu.memref_slice %arg8[%c6_i32_889, %c7_i32_890, %c0_i32_894] : memref<8x8x128xf32, #tpu.memory_space<vmem>> -> memref<1x1x128xf32, #tpu.memory_space<vmem>>
    %973 = tpu.memref_squeeze %972 : memref<1x1x128xf32, #tpu.memory_space<vmem>> -> memref<128xf32, #tpu.memory_space<vmem>>
    %974 = tpu.memref_slice %arg9[%c6_i32_891, %c7_i32_892] : memref<8x8x!tpu.dma_semaphore, #tpu.memory_space<semaphore_mem>> -> memref<1x1x!tpu.dma_semaphore, #tpu.memory_space<semaphore_mem>>
    %975 = tpu.memref_squeeze %974 : memref<1x1x!tpu.dma_semaphore, #tpu.memory_space<semaphore_mem>> -> memref<!tpu.dma_semaphore, #tpu.memory_space<semaphore_mem>>
    tpu.wait_dma2 semaphore(%975 : memref<!tpu.dma_semaphore, #tpu.memory_space<semaphore_mem>>) src(%971 : memref<128xf32, #tpu.memory_space<any>>) dst(%973 : memref<128xf32, #tpu.memory_space<vmem>>)
    %c7_i32_895 = arith.constant 7 : i32
    %c0_i32_896 = arith.constant 0 : i32
    %c7_i32_897 = arith.constant 7 : i32
    %c0_i32_898 = arith.constant 0 : i32
    %c0_i32_899 = arith.constant 0 : i32
    %976 = tpu.memref_slice %arg2[%563, %c0_i32_899] : memref<50x128xf32, #tpu.memory_space<any>> -> memref<1x128xf32, #tpu.memory_space<any>>
    %977 = tpu.memref_squeeze %976 : memref<1x128xf32, #tpu.memory_space<any>> -> memref<128xf32, #tpu.memory_space<any>>
    %c0_i32_900 = arith.constant 0 : i32
    %978 = tpu.memref_slice %arg8[%c7_i32_895, %c0_i32_896, %c0_i32_900] : memref<8x8x128xf32, #tpu.memory_space<vmem>> -> memref<1x1x128xf32, #tpu.memory_space<vmem>>
    %979 = tpu.memref_squeeze %978 : memref<1x1x128xf32, #tpu.memory_space<vmem>> -> memref<128xf32, #tpu.memory_space<vmem>>
    %980 = tpu.memref_slice %arg9[%c7_i32_897, %c0_i32_898] : memref<8x8x!tpu.dma_semaphore, #tpu.memory_space<semaphore_mem>> -> memref<1x1x!tpu.dma_semaphore, #tpu.memory_space<semaphore_mem>>
    %981 = tpu.memref_squeeze %980 : memref<1x1x!tpu.dma_semaphore, #tpu.memory_space<semaphore_mem>> -> memref<!tpu.dma_semaphore, #tpu.memory_space<semaphore_mem>>
    tpu.wait_dma2 semaphore(%981 : memref<!tpu.dma_semaphore, #tpu.memory_space<semaphore_mem>>) src(%977 : memref<128xf32, #tpu.memory_space<any>>) dst(%979 : memref<128xf32, #tpu.memory_space<vmem>>)
    %c7_i32_901 = arith.constant 7 : i32
    %c1_i32_902 = arith.constant 1 : i32
    %c7_i32_903 = arith.constant 7 : i32
    %c1_i32_904 = arith.constant 1 : i32
    %c0_i32_905 = arith.constant 0 : i32
    %982 = tpu.memref_slice %arg2[%573, %c0_i32_905] : memref<50x128xf32, #tpu.memory_space<any>> -> memref<1x128xf32, #tpu.memory_space<any>>
    %983 = tpu.memref_squeeze %982 : memref<1x128xf32, #tpu.memory_space<any>> -> memref<128xf32, #tpu.memory_space<any>>
    %c0_i32_906 = arith.constant 0 : i32
    %984 = tpu.memref_slice %arg8[%c7_i32_901, %c1_i32_902, %c0_i32_906] : memref<8x8x128xf32, #tpu.memory_space<vmem>> -> memref<1x1x128xf32, #tpu.memory_space<vmem>>
    %985 = tpu.memref_squeeze %984 : memref<1x1x128xf32, #tpu.memory_space<vmem>> -> memref<128xf32, #tpu.memory_space<vmem>>
    %986 = tpu.memref_slice %arg9[%c7_i32_903, %c1_i32_904] : memref<8x8x!tpu.dma_semaphore, #tpu.memory_space<semaphore_mem>> -> memref<1x1x!tpu.dma_semaphore, #tpu.memory_space<semaphore_mem>>
    %987 = tpu.memref_squeeze %986 : memref<1x1x!tpu.dma_semaphore, #tpu.memory_space<semaphore_mem>> -> memref<!tpu.dma_semaphore, #tpu.memory_space<semaphore_mem>>
    tpu.wait_dma2 semaphore(%987 : memref<!tpu.dma_semaphore, #tpu.memory_space<semaphore_mem>>) src(%983 : memref<128xf32, #tpu.memory_space<any>>) dst(%985 : memref<128xf32, #tpu.memory_space<vmem>>)
    %c7_i32_907 = arith.constant 7 : i32
    %c2_i32_908 = arith.constant 2 : i32
    %c7_i32_909 = arith.constant 7 : i32
    %c2_i32_910 = arith.constant 2 : i32
    %c0_i32_911 = arith.constant 0 : i32
    %988 = tpu.memref_slice %arg2[%583, %c0_i32_911] : memref<50x128xf32, #tpu.memory_space<any>> -> memref<1x128xf32, #tpu.memory_space<any>>
    %989 = tpu.memref_squeeze %988 : memref<1x128xf32, #tpu.memory_space<any>> -> memref<128xf32, #tpu.memory_space<any>>
    %c0_i32_912 = arith.constant 0 : i32
    %990 = tpu.memref_slice %arg8[%c7_i32_907, %c2_i32_908, %c0_i32_912] : memref<8x8x128xf32, #tpu.memory_space<vmem>> -> memref<1x1x128xf32, #tpu.memory_space<vmem>>
    %991 = tpu.memref_squeeze %990 : memref<1x1x128xf32, #tpu.memory_space<vmem>> -> memref<128xf32, #tpu.memory_space<vmem>>
    %992 = tpu.memref_slice %arg9[%c7_i32_909, %c2_i32_910] : memref<8x8x!tpu.dma_semaphore, #tpu.memory_space<semaphore_mem>> -> memref<1x1x!tpu.dma_semaphore, #tpu.memory_space<semaphore_mem>>
    %993 = tpu.memref_squeeze %992 : memref<1x1x!tpu.dma_semaphore, #tpu.memory_space<semaphore_mem>> -> memref<!tpu.dma_semaphore, #tpu.memory_space<semaphore_mem>>
    tpu.wait_dma2 semaphore(%993 : memref<!tpu.dma_semaphore, #tpu.memory_space<semaphore_mem>>) src(%989 : memref<128xf32, #tpu.memory_space<any>>) dst(%991 : memref<128xf32, #tpu.memory_space<vmem>>)
    %c7_i32_913 = arith.constant 7 : i32
    %c3_i32_914 = arith.constant 3 : i32
    %c7_i32_915 = arith.constant 7 : i32
    %c3_i32_916 = arith.constant 3 : i32
    %c0_i32_917 = arith.constant 0 : i32
    %994 = tpu.memref_slice %arg2[%593, %c0_i32_917] : memref<50x128xf32, #tpu.memory_space<any>> -> memref<1x128xf32, #tpu.memory_space<any>>
    %995 = tpu.memref_squeeze %994 : memref<1x128xf32, #tpu.memory_space<any>> -> memref<128xf32, #tpu.memory_space<any>>
    %c0_i32_918 = arith.constant 0 : i32
    %996 = tpu.memref_slice %arg8[%c7_i32_913, %c3_i32_914, %c0_i32_918] : memref<8x8x128xf32, #tpu.memory_space<vmem>> -> memref<1x1x128xf32, #tpu.memory_space<vmem>>
    %997 = tpu.memref_squeeze %996 : memref<1x1x128xf32, #tpu.memory_space<vmem>> -> memref<128xf32, #tpu.memory_space<vmem>>
    %998 = tpu.memref_slice %arg9[%c7_i32_915, %c3_i32_916] : memref<8x8x!tpu.dma_semaphore, #tpu.memory_space<semaphore_mem>> -> memref<1x1x!tpu.dma_semaphore, #tpu.memory_space<semaphore_mem>>
    %999 = tpu.memref_squeeze %998 : memref<1x1x!tpu.dma_semaphore, #tpu.memory_space<semaphore_mem>> -> memref<!tpu.dma_semaphore, #tpu.memory_space<semaphore_mem>>
    tpu.wait_dma2 semaphore(%999 : memref<!tpu.dma_semaphore, #tpu.memory_space<semaphore_mem>>) src(%995 : memref<128xf32, #tpu.memory_space<any>>) dst(%997 : memref<128xf32, #tpu.memory_space<vmem>>)
    %c7_i32_919 = arith.constant 7 : i32
    %c4_i32_920 = arith.constant 4 : i32
    %c7_i32_921 = arith.constant 7 : i32
    %c4_i32_922 = arith.constant 4 : i32
    %c0_i32_923 = arith.constant 0 : i32
    %1000 = tpu.memref_slice %arg2[%603, %c0_i32_923] : memref<50x128xf32, #tpu.memory_space<any>> -> memref<1x128xf32, #tpu.memory_space<any>>
    %1001 = tpu.memref_squeeze %1000 : memref<1x128xf32, #tpu.memory_space<any>> -> memref<128xf32, #tpu.memory_space<any>>
    %c0_i32_924 = arith.constant 0 : i32
    %1002 = tpu.memref_slice %arg8[%c7_i32_919, %c4_i32_920, %c0_i32_924] : memref<8x8x128xf32, #tpu.memory_space<vmem>> -> memref<1x1x128xf32, #tpu.memory_space<vmem>>
    %1003 = tpu.memref_squeeze %1002 : memref<1x1x128xf32, #tpu.memory_space<vmem>> -> memref<128xf32, #tpu.memory_space<vmem>>
    %1004 = tpu.memref_slice %arg9[%c7_i32_921, %c4_i32_922] : memref<8x8x!tpu.dma_semaphore, #tpu.memory_space<semaphore_mem>> -> memref<1x1x!tpu.dma_semaphore, #tpu.memory_space<semaphore_mem>>
    %1005 = tpu.memref_squeeze %1004 : memref<1x1x!tpu.dma_semaphore, #tpu.memory_space<semaphore_mem>> -> memref<!tpu.dma_semaphore, #tpu.memory_space<semaphore_mem>>
    tpu.wait_dma2 semaphore(%1005 : memref<!tpu.dma_semaphore, #tpu.memory_space<semaphore_mem>>) src(%1001 : memref<128xf32, #tpu.memory_space<any>>) dst(%1003 : memref<128xf32, #tpu.memory_space<vmem>>)
    %c7_i32_925 = arith.constant 7 : i32
    %c5_i32_926 = arith.constant 5 : i32
    %c7_i32_927 = arith.constant 7 : i32
    %c5_i32_928 = arith.constant 5 : i32
    %c0_i32_929 = arith.constant 0 : i32
    %1006 = tpu.memref_slice %arg2[%613, %c0_i32_929] : memref<50x128xf32, #tpu.memory_space<any>> -> memref<1x128xf32, #tpu.memory_space<any>>
    %1007 = tpu.memref_squeeze %1006 : memref<1x128xf32, #tpu.memory_space<any>> -> memref<128xf32, #tpu.memory_space<any>>
    %c0_i32_930 = arith.constant 0 : i32
    %1008 = tpu.memref_slice %arg8[%c7_i32_925, %c5_i32_926, %c0_i32_930] : memref<8x8x128xf32, #tpu.memory_space<vmem>> -> memref<1x1x128xf32, #tpu.memory_space<vmem>>
    %1009 = tpu.memref_squeeze %1008 : memref<1x1x128xf32, #tpu.memory_space<vmem>> -> memref<128xf32, #tpu.memory_space<vmem>>
    %1010 = tpu.memref_slice %arg9[%c7_i32_927, %c5_i32_928] : memref<8x8x!tpu.dma_semaphore, #tpu.memory_space<semaphore_mem>> -> memref<1x1x!tpu.dma_semaphore, #tpu.memory_space<semaphore_mem>>
    %1011 = tpu.memref_squeeze %1010 : memref<1x1x!tpu.dma_semaphore, #tpu.memory_space<semaphore_mem>> -> memref<!tpu.dma_semaphore, #tpu.memory_space<semaphore_mem>>
    tpu.wait_dma2 semaphore(%1011 : memref<!tpu.dma_semaphore, #tpu.memory_space<semaphore_mem>>) src(%1007 : memref<128xf32, #tpu.memory_space<any>>) dst(%1009 : memref<128xf32, #tpu.memory_space<vmem>>)
    %c7_i32_931 = arith.constant 7 : i32
    %c6_i32_932 = arith.constant 6 : i32
    %c7_i32_933 = arith.constant 7 : i32
    %c6_i32_934 = arith.constant 6 : i32
    %c0_i32_935 = arith.constant 0 : i32
    %1012 = tpu.memref_slice %arg2[%623, %c0_i32_935] : memref<50x128xf32, #tpu.memory_space<any>> -> memref<1x128xf32, #tpu.memory_space<any>>
    %1013 = tpu.memref_squeeze %1012 : memref<1x128xf32, #tpu.memory_space<any>> -> memref<128xf32, #tpu.memory_space<any>>
    %c0_i32_936 = arith.constant 0 : i32
    %1014 = tpu.memref_slice %arg8[%c7_i32_931, %c6_i32_932, %c0_i32_936] : memref<8x8x128xf32, #tpu.memory_space<vmem>> -> memref<1x1x128xf32, #tpu.memory_space<vmem>>
    %1015 = tpu.memref_squeeze %1014 : memref<1x1x128xf32, #tpu.memory_space<vmem>> -> memref<128xf32, #tpu.memory_space<vmem>>
    %1016 = tpu.memref_slice %arg9[%c7_i32_933, %c6_i32_934] : memref<8x8x!tpu.dma_semaphore, #tpu.memory_space<semaphore_mem>> -> memref<1x1x!tpu.dma_semaphore, #tpu.memory_space<semaphore_mem>>
    %1017 = tpu.memref_squeeze %1016 : memref<1x1x!tpu.dma_semaphore, #tpu.memory_space<semaphore_mem>> -> memref<!tpu.dma_semaphore, #tpu.memory_space<semaphore_mem>>
    tpu.wait_dma2 semaphore(%1017 : memref<!tpu.dma_semaphore, #tpu.memory_space<semaphore_mem>>) src(%1013 : memref<128xf32, #tpu.memory_space<any>>) dst(%1015 : memref<128xf32, #tpu.memory_space<vmem>>)
    %c7_i32_937 = arith.constant 7 : i32
    %c7_i32_938 = arith.constant 7 : i32
    %c7_i32_939 = arith.constant 7 : i32
    %c7_i32_940 = arith.constant 7 : i32
    %c0_i32_941 = arith.constant 0 : i32
    %1018 = tpu.memref_slice %arg2[%633, %c0_i32_941] : memref<50x128xf32, #tpu.memory_space<any>> -> memref<1x128xf32, #tpu.memory_space<any>>
    %1019 = tpu.memref_squeeze %1018 : memref<1x128xf32, #tpu.memory_space<any>> -> memref<128xf32, #tpu.memory_space<any>>
    %c0_i32_942 = arith.constant 0 : i32
    %1020 = tpu.memref_slice %arg8[%c7_i32_937, %c7_i32_938, %c0_i32_942] : memref<8x8x128xf32, #tpu.memory_space<vmem>> -> memref<1x1x128xf32, #tpu.memory_space<vmem>>
    %1021 = tpu.memref_squeeze %1020 : memref<1x1x128xf32, #tpu.memory_space<vmem>> -> memref<128xf32, #tpu.memory_space<vmem>>
    %1022 = tpu.memref_slice %arg9[%c7_i32_939, %c7_i32_940] : memref<8x8x!tpu.dma_semaphore, #tpu.memory_space<semaphore_mem>> -> memref<1x1x!tpu.dma_semaphore, #tpu.memory_space<semaphore_mem>>
    %1023 = tpu.memref_squeeze %1022 : memref<1x1x!tpu.dma_semaphore, #tpu.memory_space<semaphore_mem>> -> memref<!tpu.dma_semaphore, #tpu.memory_space<semaphore_mem>>
    tpu.wait_dma2 semaphore(%1023 : memref<!tpu.dma_semaphore, #tpu.memory_space<semaphore_mem>>) src(%1019 : memref<128xf32, #tpu.memory_space<any>>) dst(%1021 : memref<128xf32, #tpu.memory_space<vmem>>)
    %c0_943 = arith.constant 0 : index
    %c0_944 = arith.constant 0 : index
    %c0_945 = arith.constant 0 : index
    %1024 = vector.load %arg8[%c0_943, %c0_944, %c0_945] : memref<8x8x128xf32, #tpu.memory_space<vmem>>, vector<8x8x128xf32>
    %cst = arith.constant dense<0.000000e+00> : vector<8x128xf32>
    %1025 = vector.multi_reduction <add>, %1024, %cst [1] : vector<8x8x128xf32> to vector<8x128xf32>
    %cst_946 = arith.constant 1.250000e-01 : f32
    %1026 = vector.broadcast %cst_946 : f32 to vector<8x128xf32>
    %1027 = arith.mulf %1025, %1026 : vector<8x128xf32>
    %c0_947 = arith.constant 0 : index
    %c0_948 = arith.constant 0 : index
    %1028 = vector.load %arg3[%c0_947, %c0_948] : memref<128x128xf32, #tpu.memory_space<vmem>>, vector<128x128xf32>
    %cst_949 = arith.constant dense<0.000000e+00> : vector<8x128xf32>
    %1029 = tpu.matmul %1027, %1028, %cst_949 {dimension_numbers = #tpu.dot_dimension_numbers<[1], [0], [0], [1], [0, 0, 1, 1], [], []>} : vector<8x128xf32>, vector<128x128xf32>, vector<8x128xf32> -> vector<8x128xf32>
    %c0_950 = arith.constant 0 : index
    %c0_951 = arith.constant 0 : index
    %1030 = vector.load %arg4[%c0_950, %c0_951] : memref<1x128xf32, #tpu.memory_space<vmem>>, vector<1x128xf32>
    %1031 = vector.broadcast %1030 : vector<1x128xf32> to vector<8x128xf32>
    %1032 = arith.addf %1029, %1031 : vector<8x128xf32>
    %cst_952 = arith.constant 0.000000e+00 : f32
    %1033 = vector.broadcast %cst_952 : f32 to vector<8x128xf32>
    %1034 = arith.maximumf %1032, %1033 : vector<8x128xf32>
    %c0_953 = arith.constant 0 : index
    %c0_954 = arith.constant 0 : index
    %1035 = vector.load %arg5[%c0_953, %c0_954] : memref<128x128xf32, #tpu.memory_space<vmem>>, vector<128x128xf32>
    %cst_955 = arith.constant dense<0.000000e+00> : vector<8x128xf32>
    %1036 = tpu.matmul %1034, %1035, %cst_955 {dimension_numbers = #tpu.dot_dimension_numbers<[1], [0], [0], [1], [0, 0, 1, 1], [], []>} : vector<8x128xf32>, vector<128x128xf32>, vector<8x128xf32> -> vector<8x128xf32>
    %c0_956 = arith.constant 0 : index
    %c0_957 = arith.constant 0 : index
    %1037 = vector.load %arg6[%c0_956, %c0_957] : memref<1x128xf32, #tpu.memory_space<vmem>>, vector<1x128xf32>
    %1038 = vector.broadcast %1037 : vector<1x128xf32> to vector<8x128xf32>
    %1039 = arith.addf %1036, %1038 : vector<8x128xf32>
    %c0_958 = arith.constant 0 : index
    %c0_959 = arith.constant 0 : index
    %1040 = vector.load %arg7[%c0_958, %c0_959] : memref<8x128xf32, #tpu.memory_space<vmem>>, vector<8x128xf32>
    tpu.vector_store %arg7[%c0_958, %c0_959], %1039 {strides = array<i32>} : memref<8x128xf32, #tpu.memory_space<vmem>>, vector<8x128xf32>,
    return
  }
  func.func @transform_1(%arg0: i32, %arg1: memref<8x8xi32, #tpu.memory_space<smem>>) -> (i32, i32) {
    %c0_i32 = arith.constant 0 : i32
    %c0_i32_0 = arith.constant 0 : i32
    %c0_i32_1 = arith.constant 0 : i32
    return %c0_i32, %c0_i32_0 : i32, i32
  }
  func.func @transform_2(%arg0: i32, %arg1: memref<8x8xi32, #tpu.memory_space<smem>>) -> (i32, i32) {
    %c0_i32 = arith.constant 0 : i32
    %c0_i32_0 = arith.constant 0 : i32
    %c0_i32_1 = arith.constant 0 : i32
    return %c0_i32, %c0_i32_0 : i32, i32
  }
  func.func @transform_3(%arg0: i32, %arg1: memref<8x8xi32, #tpu.memory_space<smem>>) -> (i32, i32) {
    %c0_i32 = arith.constant 0 : i32
    %c0_i32_0 = arith.constant 0 : i32
    %c0_i32_1 = arith.constant 0 : i32
    return %c0_i32, %c0_i32_0 : i32, i32
  }
  func.func @transform_4(%arg0: i32, %arg1: memref<8x8xi32, #tpu.memory_space<smem>>) -> (i32, i32) {
    %c0_i32 = arith.constant 0 : i32
    %c0_i32_0 = arith.constant 0 : i32
    %c0_i32_1 = arith.constant 0 : i32
    return %c0_i32, %c0_i32_0 : i32, i32
  }
  func.func @transform_5(%arg0: i32, %arg1: memref<8x8xi32, #tpu.memory_space<smem>>) -> (i32, i32) {
    %c0_i32 = arith.constant 0 : i32
    %c0_i32_0 = arith.constant 0 : i32
    return %arg0, %c0_i32 : i32, i32
  }
}

</mosaic_0001>

<llo_original>
// kernel: tpu_custom_call.1
$region0: #{tpu_custom_call.1}
  #allocation0 [shape = 'u32[]', space=smem, size = 0x4, offset = 0x4, fixed_abs, tag = 'smem constant byte address 0x4 - core index']
  #allocation1 [shape = 'u32[144,128]{1,0:T(1,128)}', space=vmem, size = 0x12000, scoped, tag = 'internal scratch']
  #allocation2 [shape = 'f32[8,8,128]{2,1,0:T(8,128)}', space=vmem, size = 0x8000, scoped, tag = 'scratch operand']
  #allocation3 [shape = 's32[64]{0}', space=sflag, size = 0x100, scoped, tag = 'scratch operand']
  #allocation4 [shape = 's32[1]{0}', space=sflag, size = 0x4, scoped, tag = 'scoped memory for tpu_custom_call.1']
  #allocation5 [shape = 'u8[4096]{0}', space=smem, size = 0x1000, scoped, tag = 'prefetched SMEM operand 0']
  #allocation12 [shape = 's32[]', space=sflag, size = 0x4, offset = 0, fixed_abs, tag = 'sflag constant byte address 0x0 - dummy sync flag']
  #allocation13 [shape = 's32[]', space=sflag, size = 0x4, offset = 0, fixed_abs, tag = 'sflag constant byte address 0x0 - dummy sync flag']
  #allocation14 [shape = 'u32[]', space=smem, size = 0x4, offset = 0x44, fixed_abs, tag = 'smem constant byte address 0x44 - assertion arg 0']
  #allocation15 [shape = 'u32[]', space=smem, size = 0x4, offset = 0x48, fixed_abs, tag = 'smem constant byte address 0x48 - assertion arg 1']
  #allocation16 [shape = 's32[]', space=sflag, size = 0x4, offset = 0, fixed_abs, tag = 'sflag constant byte address 0x0 - dummy sync flag']
  #allocation17 [shape = 's32[]', space=sflag, size = 0x4, offset = 0, fixed_abs, tag = 'sflag constant byte address 0x0 - dummy sync flag']
  #allocation18 [shape = 's32[]', space=sflag, size = 0x4, offset = 0, fixed_abs, tag = 'sflag constant byte address 0x0 - dummy sync flag']
  #allocation19 [shape = 's32[]', space=sflag, size = 0x4, offset = 0, fixed_abs, tag = 'sflag constant byte address 0x0 - dummy sync flag']
  #allocation20 [shape = 's32[]', space=sflag, size = 0x4, offset = 0, fixed_abs, tag = 'sflag constant byte address 0x0 - dummy sync flag']
  #allocation21 [shape = 's32[]', space=sflag, size = 0x4, offset = 0, fixed_abs, tag = 'sflag constant byte address 0x0 - dummy sync flag']
  #allocation22 [shape = 's32[]', space=sflag, size = 0x4, offset = 0, fixed_abs, tag = 'sflag constant byte address 0x0 - dummy sync flag']
  #allocation23 [shape = 's32[]', space=sflag, size = 0x4, offset = 0, fixed_abs, tag = 'sflag constant byte address 0x0 - dummy sync flag']
  #allocation24 [shape = 's32[]', space=sflag, size = 0x4, offset = 0, fixed_abs, tag = 'sflag constant byte address 0x0 - dummy sync flag']
  #allocation25 [shape = 's32[]', space=sflag, size = 0x4, offset = 0, fixed_abs, tag = 'sflag constant byte address 0x0 - dummy sync flag']
  #allocation26 [shape = 's32[]', space=sflag, size = 0x4, offset = 0, fixed_abs, tag = 'sflag constant byte address 0x0 - dummy sync flag']
  #allocation27 [shape = 's32[]', space=sflag, size = 0x4, offset = 0, fixed_abs, tag = 'sflag constant byte address 0x0 - dummy sync flag']
  #allocation28 [shape = 's32[]', space=sflag, size = 0x4, offset = 0, fixed_abs, tag = 'sflag constant byte address 0x0 - dummy sync flag']
  #allocation29 [shape = 's32[]', space=sflag, size = 0x4, offset = 0, fixed_abs, tag = 'sflag constant byte address 0x0 - dummy sync flag']
  #allocation30 [shape = 's32[]', space=sflag, size = 0x4, offset = 0, fixed_abs, tag = 'sflag constant byte address 0x0 - dummy sync flag']
  #allocation31 [shape = 's32[]', space=sflag, size = 0x4, offset = 0, fixed_abs, tag = 'sflag constant byte address 0x0 - dummy sync flag']
  #allocation32 [shape = 's32[]', space=sflag, size = 0x4, offset = 0, fixed_abs, tag = 'sflag constant byte address 0x0 - dummy sync flag']
  #allocation33 [shape = 's32[]', space=sflag, size = 0x4, offset = 0, fixed_abs, tag = 'sflag constant byte address 0x0 - dummy sync flag']
  #allocation34 [shape = 's32[]', space=sflag, size = 0x4, offset = 0, fixed_abs, tag = 'sflag constant byte address 0x0 - dummy sync flag']
  #allocation35 [shape = 's32[]', space=sflag, size = 0x4, offset = 0, fixed_abs, tag = 'sflag constant byte address 0x0 - dummy sync flag']
  #allocation36 [shape = 's32[]', space=sflag, size = 0x4, offset = 0, fixed_abs, tag = 'sflag constant byte address 0x0 - dummy sync flag']
  #allocation37 [shape = 's32[]', space=sflag, size = 0x4, offset = 0, fixed_abs, tag = 'sflag constant byte address 0x0 - dummy sync flag']
  #allocation38 [shape = 's32[]', space=sflag, size = 0x4, offset = 0, fixed_abs, tag = 'sflag constant byte address 0x0 - dummy sync flag']
  #allocation39 [shape = 's32[]', space=sflag, size = 0x4, offset = 0, fixed_abs, tag = 'sflag constant byte address 0x0 - dummy sync flag']
  #allocation40 [shape = 's32[]', space=sflag, size = 0x4, offset = 0, fixed_abs, tag = 'sflag constant byte address 0x0 - dummy sync flag']
  #allocation41 [shape = 's32[]', space=sflag, size = 0x4, offset = 0, fixed_abs, tag = 'sflag constant byte address 0x0 - dummy sync flag']
  #allocation42 [shape = 's32[]', space=sflag, size = 0x4, offset = 0, fixed_abs, tag = 'sflag constant byte address 0x0 - dummy sync flag']
  #allocation43 [shape = 's32[]', space=sflag, size = 0x4, offset = 0, fixed_abs, tag = 'sflag constant byte address 0x0 - dummy sync flag']
  #allocation44 [shape = 's32[]', space=sflag, size = 0x4, offset = 0, fixed_abs, tag = 'sflag constant byte address 0x0 - dummy sync flag']
  #allocation45 [shape = 's32[]', space=sflag, size = 0x4, offset = 0, fixed_abs, tag = 'sflag constant byte address 0x0 - dummy sync flag']
  #allocation46 [shape = 's32[]', space=sflag, size = 0x4, offset = 0, fixed_abs, tag = 'sflag constant byte address 0x0 - dummy sync flag']
  #allocation47 [shape = 's32[]', space=sflag, size = 0x4, offset = 0, fixed_abs, tag = 'sflag constant byte address 0x0 - dummy sync flag']
  #allocation48 [shape = 's32[]', space=sflag, size = 0x4, offset = 0, fixed_abs, tag = 'sflag constant byte address 0x0 - dummy sync flag']
  #allocation49 [shape = 's32[]', space=sflag, size = 0x4, offset = 0, fixed_abs, tag = 'sflag constant byte address 0x0 - dummy sync flag']
  #allocation50 [shape = 's32[]', space=sflag, size = 0x4, offset = 0, fixed_abs, tag = 'sflag constant byte address 0x0 - dummy sync flag']
  #allocation51 [shape = 's32[]', space=sflag, size = 0x4, offset = 0, fixed_abs, tag = 'sflag constant byte address 0x0 - dummy sync flag']
  #allocation52 [shape = 's32[]', space=sflag, size = 0x4, offset = 0, fixed_abs, tag = 'sflag constant byte address 0x0 - dummy sync flag']
  #allocation53 [shape = 's32[]', space=sflag, size = 0x4, offset = 0, fixed_abs, tag = 'sflag constant byte address 0x0 - dummy sync flag']
  #allocation54 [shape = 's32[]', space=sflag, size = 0x4, offset = 0, fixed_abs, tag = 'sflag constant byte address 0x0 - dummy sync flag']
  #allocation55 [shape = 's32[]', space=sflag, size = 0x4, offset = 0, fixed_abs, tag = 'sflag constant byte address 0x0 - dummy sync flag']
  #allocation56 [shape = 's32[]', space=sflag, size = 0x4, offset = 0, fixed_abs, tag = 'sflag constant byte address 0x0 - dummy sync flag']
  #allocation57 [shape = 's32[]', space=sflag, size = 0x4, offset = 0, fixed_abs, tag = 'sflag constant byte address 0x0 - dummy sync flag']
  #allocation58 [shape = 's32[]', space=sflag, size = 0x4, offset = 0, fixed_abs, tag = 'sflag constant byte address 0x0 - dummy sync flag']
  #allocation59 [shape = 's32[]', space=sflag, size = 0x4, offset = 0, fixed_abs, tag = 'sflag constant byte address 0x0 - dummy sync flag']
  #allocation60 [shape = 's32[]', space=sflag, size = 0x4, offset = 0, fixed_abs, tag = 'sflag constant byte address 0x0 - dummy sync flag']
  #allocation61 [shape = 's32[]', space=sflag, size = 0x4, offset = 0, fixed_abs, tag = 'sflag constant byte address 0x0 - dummy sync flag']
  #allocation62 [shape = 's32[]', space=sflag, size = 0x4, offset = 0, fixed_abs, tag = 'sflag constant byte address 0x0 - dummy sync flag']
  #allocation63 [shape = 's32[]', space=sflag, size = 0x4, offset = 0, fixed_abs, tag = 'sflag constant byte address 0x0 - dummy sync flag']
  #allocation64 [shape = 's32[]', space=sflag, size = 0x4, offset = 0, fixed_abs, tag = 'sflag constant byte address 0x0 - dummy sync flag']
  #allocation65 [shape = 's32[]', space=sflag, size = 0x4, offset = 0, fixed_abs, tag = 'sflag constant byte address 0x0 - dummy sync flag']
  #allocation66 [shape = 's32[]', space=sflag, size = 0x4, offset = 0, fixed_abs, tag = 'sflag constant byte address 0x0 - dummy sync flag']
  #allocation67 [shape = 's32[]', space=sflag, size = 0x4, offset = 0, fixed_abs, tag = 'sflag constant byte address 0x0 - dummy sync flag']
  #allocation68 [shape = 's32[]', space=sflag, size = 0x4, offset = 0, fixed_abs, tag = 'sflag constant byte address 0x0 - dummy sync flag']
  #allocation69 [shape = 's32[]', space=sflag, size = 0x4, offset = 0, fixed_abs, tag = 'sflag constant byte address 0x0 - dummy sync flag']
  #allocation70 [shape = 's32[]', space=sflag, size = 0x4, offset = 0, fixed_abs, tag = 'sflag constant byte address 0x0 - dummy sync flag']
  #allocation71 [shape = 's32[]', space=sflag, size = 0x4, offset = 0, fixed_abs, tag = 'sflag constant byte address 0x0 - dummy sync flag']
  #allocation72 [shape = 's32[]', space=sflag, size = 0x4, offset = 0, fixed_abs, tag = 'sflag constant byte address 0x0 - dummy sync flag']
  #allocation73 [shape = 's32[]', space=sflag, size = 0x4, offset = 0, fixed_abs, tag = 'sflag constant byte address 0x0 - dummy sync flag']
  #allocation74 [shape = 's32[]', space=sflag, size = 0x4, offset = 0, fixed_abs, tag = 'sflag constant byte address 0x0 - dummy sync flag']
  #allocation75 [shape = 's32[]', space=sflag, size = 0x4, offset = 0, fixed_abs, tag = 'sflag constant byte address 0x0 - dummy sync flag']
  #allocation76 [shape = 's32[]', space=sflag, size = 0x4, offset = 0, fixed_abs, tag = 'sflag constant byte address 0x0 - dummy sync flag']
  #allocation77 [shape = 's32[]', space=sflag, size = 0x4, offset = 0, fixed_abs, tag = 'sflag constant byte address 0x0 - dummy sync flag']
  #allocation78 [shape = 's32[]', space=sflag, size = 0x4, offset = 0, fixed_abs, tag = 'sflag constant byte address 0x0 - dummy sync flag']
  #allocation79 [shape = 's32[]', space=sflag, size = 0x4, offset = 0, fixed_abs, tag = 'sflag constant byte address 0x0 - dummy sync flag']
  #allocation80 [shape = 's32[]', space=sflag, size = 0x4, offset = 0, fixed_abs, tag = 'sflag constant byte address 0x0 - dummy sync flag']
  #allocation81 [shape = 's32[]', space=sflag, size = 0x4, offset = 0, fixed_abs, tag = 'sflag constant byte address 0x0 - dummy sync flag']
  #allocation82 [shape = 's32[]', space=sflag, size = 0x4, offset = 0, fixed_abs, tag = 'sflag constant byte address 0x0 - dummy sync flag']
  #allocation83 [shape = 's32[]', space=sflag, size = 0x4, offset = 0, fixed_abs, tag = 'sflag constant byte address 0x0 - dummy sync flag']
  #allocation84 [shape = 's32[]', space=sflag, size = 0x4, offset = 0, fixed_abs, tag = 'sflag constant byte address 0x0 - dummy sync flag']
  #allocation85 [shape = 's32[]', space=sflag, size = 0x4, offset = 0, fixed_abs, tag = 'sflag constant byte address 0x0 - dummy sync flag']
  #allocation86 [shape = 's32[]', space=sflag, size = 0x4, offset = 0, fixed_abs, tag = 'sflag constant byte address 0x0 - dummy sync flag']
  #allocation87 [shape = 's32[]', space=sflag, size = 0x4, offset = 0, fixed_abs, tag = 'sflag constant byte address 0x0 - dummy sync flag']
  #allocation88 [shape = 's32[]', space=sflag, size = 0x4, offset = 0, fixed_abs, tag = 'sflag constant byte address 0x0 - dummy sync flag']
  #allocation89 [shape = 's32[]', space=sflag, size = 0x4, offset = 0, fixed_abs, tag = 'sflag constant byte address 0x0 - dummy sync flag']
  #allocation90 [shape = 's32[]', space=sflag, size = 0x4, offset = 0, fixed_abs, tag = 'sflag constant byte address 0x0 - dummy sync flag']
  #allocation91 [shape = 's32[]', space=sflag, size = 0x4, offset = 0, fixed_abs, tag = 'sflag constant byte address 0x0 - dummy sync flag']
  #allocation92 [shape = 's32[]', space=sflag, size = 0x4, offset = 0, fixed_abs, tag = 'sflag constant byte address 0x0 - dummy sync flag']
  #allocation93 [shape = 's32[]', space=sflag, size = 0x4, offset = 0, fixed_abs, tag = 'sflag constant byte address 0x0 - dummy sync flag']
  #allocation94 [shape = 's32[]', space=sflag, size = 0x4, offset = 0, fixed_abs, tag = 'sflag constant byte address 0x0 - dummy sync flag']
  #allocation95 [shape = 's32[]', space=sflag, size = 0x4, offset = 0, fixed_abs, tag = 'sflag constant byte address 0x0 - dummy sync flag']
  #allocation96 [shape = 's32[]', space=sflag, size = 0x4, offset = 0, fixed_abs, tag = 'sflag constant byte address 0x0 - dummy sync flag']
  #allocation97 [shape = 's32[]', space=sflag, size = 0x4, offset = 0, fixed_abs, tag = 'sflag constant byte address 0x0 - dummy sync flag']
  #allocation98 [shape = 's32[]', space=sflag, size = 0x4, offset = 0, fixed_abs, tag = 'sflag constant byte address 0x0 - dummy sync flag']
  #allocation99 [shape = 's32[]', space=sflag, size = 0x4, offset = 0, fixed_abs, tag = 'sflag constant byte address 0x0 - dummy sync flag']
  #allocation100 [shape = 's32[]', space=sflag, size = 0x4, offset = 0, fixed_abs, tag = 'sflag constant byte address 0x0 - dummy sync flag']
  #allocation101 [shape = 's32[]', space=sflag, size = 0x4, offset = 0, fixed_abs, tag = 'sflag constant byte address 0x0 - dummy sync flag']
  #allocation102 [shape = 's32[]', space=sflag, size = 0x4, offset = 0, fixed_abs, tag = 'sflag constant byte address 0x0 - dummy sync flag']
  #allocation103 [shape = 's32[]', space=sflag, size = 0x4, offset = 0, fixed_abs, tag = 'sflag constant byte address 0x0 - dummy sync flag']
  #allocation104 [shape = 's32[]', space=sflag, size = 0x4, offset = 0, fixed_abs, tag = 'sflag constant byte address 0x0 - dummy sync flag']
  #allocation105 [shape = 's32[]', space=sflag, size = 0x4, offset = 0, fixed_abs, tag = 'sflag constant byte address 0x0 - dummy sync flag']
  #allocation106 [shape = 's32[]', space=sflag, size = 0x4, offset = 0, fixed_abs, tag = 'sflag constant byte address 0x0 - dummy sync flag']
  #allocation107 [shape = 's32[]', space=sflag, size = 0x4, offset = 0, fixed_abs, tag = 'sflag constant byte address 0x0 - dummy sync flag']
  #allocation108 [shape = 's32[]', space=sflag, size = 0x4, offset = 0, fixed_abs, tag = 'sflag constant byte address 0x0 - dummy sync flag']
  #allocation109 [shape = 's32[]', space=sflag, size = 0x4, offset = 0, fixed_abs, tag = 'sflag constant byte address 0x0 - dummy sync flag']
  #allocation110 [shape = 's32[]', space=sflag, size = 0x4, offset = 0, fixed_abs, tag = 'sflag constant byte address 0x0 - dummy sync flag']
  #allocation111 [shape = 's32[]', space=sflag, size = 0x4, offset = 0, fixed_abs, tag = 'sflag constant byte address 0x0 - dummy sync flag']
  #allocation112 [shape = 's32[]', space=sflag, size = 0x4, offset = 0, fixed_abs, tag = 'sflag constant byte address 0x0 - dummy sync flag']
  #allocation113 [shape = 's32[]', space=sflag, size = 0x4, offset = 0, fixed_abs, tag = 'sflag constant byte address 0x0 - dummy sync flag']
  #allocation114 [shape = 's32[]', space=sflag, size = 0x4, offset = 0, fixed_abs, tag = 'sflag constant byte address 0x0 - dummy sync flag']
  #allocation115 [shape = 's32[]', space=sflag, size = 0x4, offset = 0, fixed_abs, tag = 'sflag constant byte address 0x0 - dummy sync flag']
  #allocation116 [shape = 's32[]', space=sflag, size = 0x4, offset = 0, fixed_abs, tag = 'sflag constant byte address 0x0 - dummy sync flag']
  #allocation117 [shape = 's32[]', space=sflag, size = 0x4, offset = 0, fixed_abs, tag = 'sflag constant byte address 0x0 - dummy sync flag']
  #allocation118 [shape = 's32[]', space=sflag, size = 0x4, offset = 0, fixed_abs, tag = 'sflag constant byte address 0x0 - dummy sync flag']
  #allocation119 [shape = 's32[]', space=sflag, size = 0x4, offset = 0, fixed_abs, tag = 'sflag constant byte address 0x0 - dummy sync flag']
  #allocation120 [shape = 's32[]', space=sflag, size = 0x4, offset = 0, fixed_abs, tag = 'sflag constant byte address 0x0 - dummy sync flag']
  #allocation121 [shape = 's32[]', space=sflag, size = 0x4, offset = 0, fixed_abs, tag = 'sflag constant byte address 0x0 - dummy sync flag']
  #allocation122 [shape = 's32[]', space=sflag, size = 0x4, offset = 0, fixed_abs, tag = 'sflag constant byte address 0x0 - dummy sync flag']
  #allocation123 [shape = 's32[]', space=sflag, size = 0x4, offset = 0, fixed_abs, tag = 'sflag constant byte address 0x0 - dummy sync flag']
  #allocation124 [shape = 's32[]', space=sflag, size = 0x4, offset = 0, fixed_abs, tag = 'sflag constant byte address 0x0 - dummy sync flag']
  #allocation125 [shape = 's32[]', space=sflag, size = 0x4, offset = 0, fixed_abs, tag = 'sflag constant byte address 0x0 - dummy sync flag']
  #allocation126 [shape = 's32[]', space=sflag, size = 0x4, offset = 0, fixed_abs, tag = 'sflag constant byte address 0x0 - dummy sync flag']
  #allocation127 [shape = 's32[]', space=sflag, size = 0x4, offset = 0, fixed_abs, tag = 'sflag constant byte address 0x0 - dummy sync flag']
  #allocation128 [shape = 's32[]', space=sflag, size = 0x4, offset = 0, fixed_abs, tag = 'sflag constant byte address 0x0 - dummy sync flag']
  #allocation129 [shape = 's32[]', space=sflag, size = 0x4, offset = 0, fixed_abs, tag = 'sflag constant byte address 0x0 - dummy sync flag']
  #allocation130 [shape = 's32[]', space=sflag, size = 0x4, offset = 0, fixed_abs, tag = 'sflag constant byte address 0x0 - dummy sync flag']
  #allocation131 [shape = 's32[]', space=sflag, size = 0x4, offset = 0, fixed_abs, tag = 'sflag constant byte address 0x0 - dummy sync flag']
  #allocation132 [shape = 's32[]', space=sflag, size = 0x4, offset = 0, fixed_abs, tag = 'sflag constant byte address 0x0 - dummy sync flag']
  #allocation133 [shape = 's32[]', space=sflag, size = 0x4, offset = 0, fixed_abs, tag = 'sflag constant byte address 0x0 - dummy sync flag']
  #allocation134 [shape = 's32[]', space=sflag, size = 0x4, offset = 0, fixed_abs, tag = 'sflag constant byte address 0x0 - dummy sync flag']
  #allocation135 [shape = 's32[]', space=sflag, size = 0x4, offset = 0, fixed_abs, tag = 'sflag constant byte address 0x0 - dummy sync flag']
  #allocation136 [shape = 's32[]', space=sflag, size = 0x4, offset = 0, fixed_abs, tag = 'sflag constant byte address 0x0 - dummy sync flag']
  #allocation137 [shape = 's32[]', space=sflag, size = 0x4, offset = 0, fixed_abs, tag = 'sflag constant byte address 0x0 - dummy sync flag']
  #allocation138 [shape = 's32[]', space=sflag, size = 0x4, offset = 0, fixed_abs, tag = 'sflag constant byte address 0x0 - dummy sync flag']
  #allocation139 [shape = 's32[]', space=sflag, size = 0x4, offset = 0, fixed_abs, tag = 'sflag constant byte address 0x0 - dummy sync flag']
  #allocation140 [shape = 's32[]', space=sflag, size = 0x4, offset = 0, fixed_abs, tag = 'sflag constant byte address 0x0 - dummy sync flag']
  #allocation141 [shape = 's32[]', space=sflag, size = 0x4, offset = 0, fixed_abs, tag = 'sflag constant byte address 0x0 - dummy sync flag']
  %s0 = inlined_call_operand.hbm [shape: s32[8,8], index: 0, kind: input, shape index: {}]
  %s1 = inlined_call_operand.hbm [shape: f32[50,128], index: 1, kind: input, shape index: {}]
  %s2 = inlined_call_operand.hbm [shape: f32[128,128], index: 2, kind: input, shape index: {}]
  %s3 = inlined_call_operand.vmem [shape: f32[1,128], index: 3, kind: input, shape index: {}]
  %s4 = inlined_call_operand.hbm [shape: f32[128,128], index: 4, kind: input, shape index: {}]
  %s5 = inlined_call_operand.vmem [shape: f32[1,128], index: 5, kind: input, shape index: {}]
  %s6 = inlined_call_operand.hbm [shape: f32[8,128], index: 6, kind: output, shape index: {}]
  %s7 = sld [smem:[#allocation0]]
  $region290: #{tpu_custom_call.1} parent=0
    _
  %s9 = ssub.s32 1, %s7
  %s10 = scalar_select 0, %s9, %s7
  %12 = dma.hbm_to_smem %s0, 128, [#allocation5], [#allocation4]
  %13 = dma.done [#allocation4], 128
  %14 = sfence
  $region1: #{tpu_custom_call.1} parent=0
    #allocation6 [shape = 'u8[65536]{0}', space=vmem, size = 0x10000, scoped, tag = 'input window, operand 2, single buffered']
    #allocation7 [shape = 's32[1]{0}', space=sflag, size = 0x4, scoped, tag = 'scoped memory for tpu_custom_call.1']
    #allocation8 [shape = 's32[1]{0}', space=sflag, size = 0x4, scoped, tag = 'scoped memory for tpu_custom_call.1']
    #allocation9 [shape = 'u8[65536]{0}', space=vmem, size = 0x10000, scoped, tag = 'input window, operand 4, single buffered']
    #allocation10 [shape = 's32[1]{0}', space=sflag, size = 0x4, scoped, tag = 'scoped memory for tpu_custom_call.1']
    #allocation11 [shape = 'u8[4096]{0}', space=vmem, size = 0x1000, scoped, tag = 'output window, operand 0, single buffered']
    %15 = vsyncpa [#allocation7], 0
    %16 = vsyncpa [#allocation10], 0
    %17 = vsyncpa [#allocation8], 0
    // Predicated region
    $region2: #{tpu_custom_call.1} parent=1 // pred_check
      _
    $region3: #{tpu_custom_call.1} parent=1 // pred_check_branch
      %19 = sbr.rel (0) target = $region5
    $region4: #{tpu_custom_call.1} parent=1 // pred_region
      %s21 = ssub.s32 2048, 2048
      %22 = vsyncadd [#allocation7], %s21
      %s23 = sshll.u32 [#allocation6], 4
      %s24 = int_to_ptr.vmem [resolvable:$true] %s23
      %29 = dma.hbm_to_vmem [thread:$0]  %s2, 2048, %s24, [#allocation7], 128, 128, 8
    $region5: #{tpu_custom_call.1} parent=1 // pred_fallthru
      _
    // Predicated region
    $region6: #{tpu_custom_call.1} parent=1 // pred_check
      _
    $region7: #{tpu_custom_call.1} parent=1 // pred_check_branch
      %31 = sbr.rel (0) target = $region9
    $region8: #{tpu_custom_call.1} parent=1 // pred_region
      _
    $region9: #{tpu_custom_call.1} parent=1 // pred_fallthru
      _
    // Predicated region
    $region10: #{tpu_custom_call.1} parent=1 // pred_check
      _
    $region11: #{tpu_custom_call.1} parent=1 // pred_check_branch
      %33 = sbr.rel (0) target = $region13
    $region12: #{tpu_custom_call.1} parent=1 // pred_region
      %s35 = ssub.s32 2048, 2048
      %36 = vsyncadd [#allocation10], %s35
      %s37 = sshll.u32 [#allocation9], 4
      %s38 = int_to_ptr.vmem [resolvable:$true] %s37
      %43 = dma.hbm_to_vmem [thread:$0]  %s4, 2048, %s38, [#allocation10], 128, 128, 8
    $region13: #{tpu_custom_call.1} parent=1 // pred_fallthru
      _
    // Predicated region
    $region14: #{tpu_custom_call.1} parent=1 // pred_check
      _
    $region15: #{tpu_custom_call.1} parent=1 // pred_check_branch
      %45 = sbr.rel (0) target = $region17
    $region16: #{tpu_custom_call.1} parent=1 // pred_region
      _
    $region17: #{tpu_custom_call.1} parent=1 // pred_fallthru
      _
    // Predicated region
    $region18: #{tpu_custom_call.1} parent=1 // pred_check
      _
    $region19: #{tpu_custom_call.1} parent=1 // pred_check_branch
      %47 = sbr.rel (0) target = $region21
    $region20: #{tpu_custom_call.1} parent=1 // pred_region
      %48 = dma.done [#allocation7], 2048
    $region21: #{tpu_custom_call.1} parent=1 // pred_fallthru
      _
    // Predicated region
    $region22: #{tpu_custom_call.1} parent=1 // pred_check
      _
    $region23: #{tpu_custom_call.1} parent=1 // pred_check_branch
      %50 = sbr.rel (0) target = $region25
    $region24: #{tpu_custom_call.1} parent=1 // pred_region
      %51 = dma.done [#allocation10], 2048
    $region25: #{tpu_custom_call.1} parent=1 // pred_fallthru
      _
    %s52 = smul.u32 0, 8
    %s53 = smul.u32 %s52, 128
    %s54 = sld [smem:[#allocation5 + %s53]]
    %s55 = smul.addr %s54, 16
    %s56 = scalar_lea.hbm %s1, %s55
    // Predicated region
    $region26: #{tpu_custom_call.1} parent=1 // pred_check
      _
    $region27: #{tpu_custom_call.1} parent=1 // pred_check_branch
      %58 = sbr.rel target = $region29
    $region28: #{tpu_custom_call.1} parent=1 // pred_region
      %59 = sst [smem:[#allocation14]] [#allocation13]
      %60 = sst [smem:[#allocation15]] [#allocation12]
    $region29: #{tpu_custom_call.1} parent=1 // pred_fallthru
      _
    %62 = shalt.err (0)
    %s64 = sshll.u32 [#allocation2], 4
    %s65 = int_to_ptr.vmem [resolvable:$true] %s64
    %67 = dma.hbm_to_vmem [thread:$0]  %s56, 16, %s65, [#allocation3]
    %s68 = sadd.s32 %s53, 1
    %s69 = sld [smem:[#allocation5 + %s68]]
    %s70 = smul.addr %s69, 16
    %s71 = scalar_lea.hbm %s1, %s70
    %s72 = scalar_lea.vmem [#allocation2], 1
    %s73 = scalar_lea.sflag [#allocation3], 1
    // Predicated region
    $region30: #{tpu_custom_call.1} parent=1 // pred_check
      _
    $region31: #{tpu_custom_call.1} parent=1 // pred_check_branch
      %75 = sbr.rel target = $region33
    $region32: #{tpu_custom_call.1} parent=1 // pred_region
      %76 = sst [smem:[#allocation14]] [#allocation17]
      %77 = sst [smem:[#allocation15]] [#allocation16]
    $region33: #{tpu_custom_call.1} parent=1 // pred_fallthru
      _
    %79 = shalt.err (0)
    %s81 = sshll.u32 %s72, 4
    %s82 = int_to_ptr.vmem [resolvable:$true] %s81
    %84 = dma.hbm_to_vmem [thread:$0]  %s71, 16, %s82, %s73
    %s85 = sadd.s32 %s53, 2
    %s86 = sld [smem:[#allocation5 + %s85]]
    %s87 = smul.addr %s86, 16
    %s88 = scalar_lea.hbm %s1, %s87
    %s89 = scalar_lea.vmem [#allocation2], 2
    %s90 = scalar_lea.sflag [#allocation3], 2
    // Predicated region
    $region34: #{tpu_custom_call.1} parent=1 // pred_check
      _
    $region35: #{tpu_custom_call.1} parent=1 // pred_check_branch
      %92 = sbr.rel target = $region37
    $region36: #{tpu_custom_call.1} parent=1 // pred_region
      %93 = sst [smem:[#allocation14]] [#allocation19]
      %94 = sst [smem:[#allocation15]] [#allocation18]
    $region37: #{tpu_custom_call.1} parent=1 // pred_fallthru
      _
    %96 = shalt.err (0)
    %s98 = sshll.u32 %s89, 4
    %s99 = int_to_ptr.vmem [resolvable:$true] %s98
    %101 = dma.hbm_to_vmem [thread:$0]  %s88, 16, %s99, %s90
    %s102 = sadd.s32 %s53, 3
    %s103 = sld [smem:[#allocation5 + %s102]]
    %s104 = smul.addr %s103, 16
    %s105 = scalar_lea.hbm %s1, %s104
    %s106 = scalar_lea.vmem [#allocation2], 3
    %s107 = scalar_lea.sflag [#allocation3], 3
    // Predicated region
    $region38: #{tpu_custom_call.1} parent=1 // pred_check
      _
    $region39: #{tpu_custom_call.1} parent=1 // pred_check_branch
      %109 = sbr.rel target = $region41
    $region40: #{tpu_custom_call.1} parent=1 // pred_region
      %110 = sst [smem:[#allocation14]] [#allocation21]
      %111 = sst [smem:[#allocation15]] [#allocation20]
    $region41: #{tpu_custom_call.1} parent=1 // pred_fallthru
      _
    %113 = shalt.err (0)
    %s115 = sshll.u32 %s106, 4
    %s116 = int_to_ptr.vmem [resolvable:$true] %s115
    %118 = dma.hbm_to_vmem [thread:$0]  %s105, 16, %s116, %s107
    %s119 = sadd.s32 %s53, 4
    %s120 = sld [smem:[#allocation5 + %s119]]
    %s121 = smul.addr %s120, 16
    %s122 = scalar_lea.hbm %s1, %s121
    %s123 = scalar_lea.vmem [#allocation2], 4
    %s124 = scalar_lea.sflag [#allocation3], 4
    // Predicated region
    $region42: #{tpu_custom_call.1} parent=1 // pred_check
      _
    $region43: #{tpu_custom_call.1} parent=1 // pred_check_branch
      %126 = sbr.rel target = $region45
    $region44: #{tpu_custom_call.1} parent=1 // pred_region
      %127 = sst [smem:[#allocation14]] [#allocation23]
      %128 = sst [smem:[#allocation15]] [#allocation22]
    $region45: #{tpu_custom_call.1} parent=1 // pred_fallthru
      _
    %130 = shalt.err (0)
    %s132 = sshll.u32 %s123, 4
    %s133 = int_to_ptr.vmem [resolvable:$true] %s132
    %135 = dma.hbm_to_vmem [thread:$0]  %s122, 16, %s133, %s124
    %s136 = sadd.s32 %s53, 5
    %s137 = sld [smem:[#allocation5 + %s136]]
    %s138 = smul.addr %s137, 16
    %s139 = scalar_lea.hbm %s1, %s138
    %s140 = scalar_lea.vmem [#allocation2], 5
    %s141 = scalar_lea.sflag [#allocation3], 5
    // Predicated region
    $region46: #{tpu_custom_call.1} parent=1 // pred_check
      _
    $region47: #{tpu_custom_call.1} parent=1 // pred_check_branch
      %143 = sbr.rel target = $region49
    $region48: #{tpu_custom_call.1} parent=1 // pred_region
      %144 = sst [smem:[#allocation14]] [#allocation25]
      %145 = sst [smem:[#allocation15]] [#allocation24]
    $region49: #{tpu_custom_call.1} parent=1 // pred_fallthru
      _
    %147 = shalt.err (0)
    %s149 = sshll.u32 %s140, 4
    %s150 = int_to_ptr.vmem [resolvable:$true] %s149
    %152 = dma.hbm_to_vmem [thread:$0]  %s139, 16, %s150, %s141
    %s153 = sadd.s32 %s53, 6
    %s154 = sld [smem:[#allocation5 + %s153]]
    %s155 = smul.addr %s154, 16
    %s156 = scalar_lea.hbm %s1, %s155
    %s157 = scalar_lea.vmem [#allocation2], 6
    %s158 = scalar_lea.sflag [#allocation3], 6
    // Predicated region
    $region50: #{tpu_custom_call.1} parent=1 // pred_check
      _
    $region51: #{tpu_custom_call.1} parent=1 // pred_check_branch
      %160 = sbr.rel target = $region53
    $region52: #{tpu_custom_call.1} parent=1 // pred_region
      %161 = sst [smem:[#allocation14]] [#allocation27]
      %162 = sst [smem:[#allocation15]] [#allocation26]
    $region53: #{tpu_custom_call.1} parent=1 // pred_fallthru
      _
    %164 = shalt.err (0)
    %s166 = sshll.u32 %s157, 4
    %s167 = int_to_ptr.vmem [resolvable:$true] %s166
    %169 = dma.hbm_to_vmem [thread:$0]  %s156, 16, %s167, %s158
    %s170 = sadd.s32 %s53, 7
    %s171 = sld [smem:[#allocation5 + %s170]]
    %s172 = smul.addr %s171, 16
    %s173 = scalar_lea.hbm %s1, %s172
    %s174 = scalar_lea.vmem [#allocation2], 7
    %s175 = scalar_lea.sflag [#allocation3], 7
    // Predicated region
    $region54: #{tpu_custom_call.1} parent=1 // pred_check
      _
    $region55: #{tpu_custom_call.1} parent=1 // pred_check_branch
      %177 = sbr.rel target = $region57
    $region56: #{tpu_custom_call.1} parent=1 // pred_region
      %178 = sst [smem:[#allocation14]] [#allocation29]
      %179 = sst [smem:[#allocation15]] [#allocation28]
    $region57: #{tpu_custom_call.1} parent=1 // pred_fallthru
      _
    %181 = shalt.err (0)
    %s183 = sshll.u32 %s174, 4
    %s184 = int_to_ptr.vmem [resolvable:$true] %s183
    %186 = dma.hbm_to_vmem [thread:$0]  %s173, 16, %s184, %s175
    %s187 = sadd.s32 %s52, 1
    %s188 = smul.u32 %s187, 128
    %s189 = sld [smem:[#allocation5 + %s188]]
    %s190 = smul.addr %s189, 16
    %s191 = scalar_lea.hbm %s1, %s190
    %s192 = scalar_lea.vmem [#allocation2], 8
    %s193 = scalar_lea.sflag [#allocation3], 8
    // Predicated region
    $region58: #{tpu_custom_call.1} parent=1 // pred_check
      _
    $region59: #{tpu_custom_call.1} parent=1 // pred_check_branch
      %195 = sbr.rel target = $region61
    $region60: #{tpu_custom_call.1} parent=1 // pred_region
      %196 = sst [smem:[#allocation14]] [#allocation31]
      %197 = sst [smem:[#allocation15]] [#allocation30]
    $region61: #{tpu_custom_call.1} parent=1 // pred_fallthru
      _
    %199 = shalt.err (0)
    %s201 = sshll.u32 %s192, 4
    %s202 = int_to_ptr.vmem [resolvable:$true] %s201
    %204 = dma.hbm_to_vmem [thread:$0]  %s191, 16, %s202, %s193
    %s205 = sadd.s32 %s188, 1
    %s206 = sld [smem:[#allocation5 + %s205]]
    %s207 = smul.addr %s206, 16
    %s208 = scalar_lea.hbm %s1, %s207
    %s209 = scalar_lea.vmem [#allocation2], 9
    %s210 = scalar_lea.sflag [#allocation3], 9
    // Predicated region
    $region62: #{tpu_custom_call.1} parent=1 // pred_check
      _
    $region63: #{tpu_custom_call.1} parent=1 // pred_check_branch
      %212 = sbr.rel target = $region65
    $region64: #{tpu_custom_call.1} parent=1 // pred_region
      %213 = sst [smem:[#allocation14]] [#allocation33]
      %214 = sst [smem:[#allocation15]] [#allocation32]
    $region65: #{tpu_custom_call.1} parent=1 // pred_fallthru
      _
    %216 = shalt.err (0)
    %s218 = sshll.u32 %s209, 4
    %s219 = int_to_ptr.vmem [resolvable:$true] %s218
    %221 = dma.hbm_to_vmem [thread:$0]  %s208, 16, %s219, %s210
    %s222 = sadd.s32 %s188, 2
    %s223 = sld [smem:[#allocation5 + %s222]]
    %s224 = smul.addr %s223, 16
    %s225 = scalar_lea.hbm %s1, %s224
    %s226 = scalar_lea.vmem [#allocation2], 10
    %s227 = scalar_lea.sflag [#allocation3], 10
    // Predicated region
    $region66: #{tpu_custom_call.1} parent=1 // pred_check
      _
    $region67: #{tpu_custom_call.1} parent=1 // pred_check_branch
      %229 = sbr.rel target = $region69
    $region68: #{tpu_custom_call.1} parent=1 // pred_region
      %230 = sst [smem:[#allocation14]] [#allocation35]
      %231 = sst [smem:[#allocation15]] [#allocation34]
    $region69: #{tpu_custom_call.1} parent=1 // pred_fallthru
      _
    %233 = shalt.err (0)
    %s235 = sshll.u32 %s226, 4
    %s236 = int_to_ptr.vmem [resolvable:$true] %s235
    %238 = dma.hbm_to_vmem [thread:$0]  %s225, 16, %s236, %s227
    %s239 = sadd.s32 %s188, 3
    %s240 = sld [smem:[#allocation5 + %s239]]
    %s241 = smul.addr %s240, 16
    %s242 = scalar_lea.hbm %s1, %s241
    %s243 = scalar_lea.vmem [#allocation2], 11
    %s244 = scalar_lea.sflag [#allocation3], 11
    // Predicated region
    $region70: #{tpu_custom_call.1} parent=1 // pred_check
      _
    $region71: #{tpu_custom_call.1} parent=1 // pred_check_branch
      %246 = sbr.rel target = $region73
    $region72: #{tpu_custom_call.1} parent=1 // pred_region
      %247 = sst [smem:[#allocation14]] [#allocation37]
      %248 = sst [smem:[#allocation15]] [#allocation36]
    $region73: #{tpu_custom_call.1} parent=1 // pred_fallthru
      _
    %250 = shalt.err (0)
    %s252 = sshll.u32 %s243, 4
    %s253 = int_to_ptr.vmem [resolvable:$true] %s252
    %255 = dma.hbm_to_vmem [thread:$0]  %s242, 16, %s253, %s244
    %s256 = sadd.s32 %s188, 4
    %s257 = sld [smem:[#allocation5 + %s256]]
    %s258 = smul.addr %s257, 16
    %s259 = scalar_lea.hbm %s1, %s258
    %s260 = scalar_lea.vmem [#allocation2], 12
    %s261 = scalar_lea.sflag [#allocation3], 12
    // Predicated region
    $region74: #{tpu_custom_call.1} parent=1 // pred_check
      _
    $region75: #{tpu_custom_call.1} parent=1 // pred_check_branch
      %263 = sbr.rel target = $region77
    $region76: #{tpu_custom_call.1} parent=1 // pred_region
      %264 = sst [smem:[#allocation14]] [#allocation39]
      %265 = sst [smem:[#allocation15]] [#allocation38]
    $region77: #{tpu_custom_call.1} parent=1 // pred_fallthru
      _
    %267 = shalt.err (0)
    %s269 = sshll.u32 %s260, 4
    %s270 = int_to_ptr.vmem [resolvable:$true] %s269
    %272 = dma.hbm_to_vmem [thread:$0]  %s259, 16, %s270, %s261
    %s273 = sadd.s32 %s188, 5
    %s274 = sld [smem:[#allocation5 + %s273]]
    %s275 = smul.addr %s274, 16
    %s276 = scalar_lea.hbm %s1, %s275
    %s277 = scalar_lea.vmem [#allocation2], 13
    %s278 = scalar_lea.sflag [#allocation3], 13
    // Predicated region
    $region78: #{tpu_custom_call.1} parent=1 // pred_check
      _
    $region79: #{tpu_custom_call.1} parent=1 // pred_check_branch
      %280 = sbr.rel target = $region81
    $region80: #{tpu_custom_call.1} parent=1 // pred_region
      %281 = sst [smem:[#allocation14]] [#allocation41]
      %282 = sst [smem:[#allocation15]] [#allocation40]
    $region81: #{tpu_custom_call.1} parent=1 // pred_fallthru
      _
    %284 = shalt.err (0)
    %s286 = sshll.u32 %s277, 4
    %s287 = int_to_ptr.vmem [resolvable:$true] %s286
    %289 = dma.hbm_to_vmem [thread:$0]  %s276, 16, %s287, %s278
    %s290 = sadd.s32 %s188, 6
    %s291 = sld [smem:[#allocation5 + %s290]]
    %s292 = smul.addr %s291, 16
    %s293 = scalar_lea.hbm %s1, %s292
    %s294 = scalar_lea.vmem [#allocation2], 14
    %s295 = scalar_lea.sflag [#allocation3], 14
    // Predicated region
    $region82: #{tpu_custom_call.1} parent=1 // pred_check
      _
    $region83: #{tpu_custom_call.1} parent=1 // pred_check_branch
      %297 = sbr.rel target = $region85
    $region84: #{tpu_custom_call.1} parent=1 // pred_region
      %298 = sst [smem:[#allocation14]] [#allocation43]
      %299 = sst [smem:[#allocation15]] [#allocation42]
    $region85: #{tpu_custom_call.1} parent=1 // pred_fallthru
      _
    %301 = shalt.err (0)
    %s303 = sshll.u32 %s294, 4
    %s304 = int_to_ptr.vmem [resolvable:$true] %s303
    %306 = dma.hbm_to_vmem [thread:$0]  %s293, 16, %s304, %s295
    %s307 = sadd.s32 %s188, 7
    %s308 = sld [smem:[#allocation5 + %s307]]
    %s309 = smul.addr %s308, 16
    %s310 = scalar_lea.hbm %s1, %s309
    %s311 = scalar_lea.vmem [#allocation2], 15
    %s312 = scalar_lea.sflag [#allocation3], 15
    // Predicated region
    $region86: #{tpu_custom_call.1} parent=1 // pred_check
      _
    $region87: #{tpu_custom_call.1} parent=1 // pred_check_branch
      %314 = sbr.rel target = $region89
    $region88: #{tpu_custom_call.1} parent=1 // pred_region
      %315 = sst [smem:[#allocation14]] [#allocation45]
      %316 = sst [smem:[#allocation15]] [#allocation44]
    $region89: #{tpu_custom_call.1} parent=1 // pred_fallthru
      _
    %318 = shalt.err (0)
    %s320 = sshll.u32 %s311, 4
    %s321 = int_to_ptr.vmem [resolvable:$true] %s320
    %323 = dma.hbm_to_vmem [thread:$0]  %s310, 16, %s321, %s312
    %s324 = sadd.s32 %s52, 2
    %s325 = smul.u32 %s324, 128
    %s326 = sld [smem:[#allocation5 + %s325]]
    %s327 = smul.addr %s326, 16
    %s328 = scalar_lea.hbm %s1, %s327
    %s329 = scalar_lea.vmem [#allocation2], 16
    %s330 = scalar_lea.sflag [#allocation3], 16
    // Predicated region
    $region90: #{tpu_custom_call.1} parent=1 // pred_check
      _
    $region91: #{tpu_custom_call.1} parent=1 // pred_check_branch
      %332 = sbr.rel target = $region93
    $region92: #{tpu_custom_call.1} parent=1 // pred_region
      %333 = sst [smem:[#allocation14]] [#allocation47]
      %334 = sst [smem:[#allocation15]] [#allocation46]
    $region93: #{tpu_custom_call.1} parent=1 // pred_fallthru
      _
    %336 = shalt.err (0)
    %s338 = sshll.u32 %s329, 4
    %s339 = int_to_ptr.vmem [resolvable:$true] %s338
    %341 = dma.hbm_to_vmem [thread:$0]  %s328, 16, %s339, %s330
    %s342 = sadd.s32 %s325, 1
    %s343 = sld [smem:[#allocation5 + %s342]]
    %s344 = smul.addr %s343, 16
    %s345 = scalar_lea.hbm %s1, %s344
    %s346 = scalar_lea.vmem [#allocation2], 17
    %s347 = scalar_lea.sflag [#allocation3], 17
    // Predicated region
    $region94: #{tpu_custom_call.1} parent=1 // pred_check
      _
    $region95: #{tpu_custom_call.1} parent=1 // pred_check_branch
      %349 = sbr.rel target = $region97
    $region96: #{tpu_custom_call.1} parent=1 // pred_region
      %350 = sst [smem:[#allocation14]] [#allocation49]
      %351 = sst [smem:[#allocation15]] [#allocation48]
    $region97: #{tpu_custom_call.1} parent=1 // pred_fallthru
      _
    %353 = shalt.err (0)
    %s355 = sshll.u32 %s346, 4
    %s356 = int_to_ptr.vmem [resolvable:$true] %s355
    %358 = dma.hbm_to_vmem [thread:$0]  %s345, 16, %s356, %s347
    %s359 = sadd.s32 %s325, 2
    %s360 = sld [smem:[#allocation5 + %s359]]
    %s361 = smul.addr %s360, 16
    %s362 = scalar_lea.hbm %s1, %s361
    %s363 = scalar_lea.vmem [#allocation2], 18
    %s364 = scalar_lea.sflag [#allocation3], 18
    // Predicated region
    $region98: #{tpu_custom_call.1} parent=1 // pred_check
      _
    $region99: #{tpu_custom_call.1} parent=1 // pred_check_branch
      %366 = sbr.rel target = $region101
    $region100: #{tpu_custom_call.1} parent=1 // pred_region
      %367 = sst [smem:[#allocation14]] [#allocation51]
      %368 = sst [smem:[#allocation15]] [#allocation50]
    $region101: #{tpu_custom_call.1} parent=1 // pred_fallthru
      _
    %370 = shalt.err (0)
    %s372 = sshll.u32 %s363, 4
    %s373 = int_to_ptr.vmem [resolvable:$true] %s372
    %375 = dma.hbm_to_vmem [thread:$0]  %s362, 16, %s373, %s364
    %s376 = sadd.s32 %s325, 3
    %s377 = sld [smem:[#allocation5 + %s376]]
    %s378 = smul.addr %s377, 16
    %s379 = scalar_lea.hbm %s1, %s378
    %s380 = scalar_lea.vmem [#allocation2], 19
    %s381 = scalar_lea.sflag [#allocation3], 19
    // Predicated region
    $region102: #{tpu_custom_call.1} parent=1 // pred_check
      _
    $region103: #{tpu_custom_call.1} parent=1 // pred_check_branch
      %383 = sbr.rel target = $region105
    $region104: #{tpu_custom_call.1} parent=1 // pred_region
      %384 = sst [smem:[#allocation14]] [#allocation53]
      %385 = sst [smem:[#allocation15]] [#allocation52]
    $region105: #{tpu_custom_call.1} parent=1 // pred_fallthru
      _
    %387 = shalt.err (0)
    %s389 = sshll.u32 %s380, 4
    %s390 = int_to_ptr.vmem [resolvable:$true] %s389
    %392 = dma.hbm_to_vmem [thread:$0]  %s379, 16, %s390, %s381
    %s393 = sadd.s32 %s325, 4
    %s394 = sld [smem:[#allocation5 + %s393]]
    %s395 = smul.addr %s394, 16
    %s396 = scalar_lea.hbm %s1, %s395
    %s397 = scalar_lea.vmem [#allocation2], 20
    %s398 = scalar_lea.sflag [#allocation3], 20
    // Predicated region
    $region106: #{tpu_custom_call.1} parent=1 // pred_check
      _
    $region107: #{tpu_custom_call.1} parent=1 // pred_check_branch
      %400 = sbr.rel target = $region109
    $region108: #{tpu_custom_call.1} parent=1 // pred_region
      %401 = sst [smem:[#allocation14]] [#allocation55]
      %402 = sst [smem:[#allocation15]] [#allocation54]
    $region109: #{tpu_custom_call.1} parent=1 // pred_fallthru
      _
    %404 = shalt.err (0)
    %s406 = sshll.u32 %s397, 4
    %s407 = int_to_ptr.vmem [resolvable:$true] %s406
    %409 = dma.hbm_to_vmem [thread:$0]  %s396, 16, %s407, %s398
    %s410 = sadd.s32 %s325, 5
    %s411 = sld [smem:[#allocation5 + %s410]]
    %s412 = smul.addr %s411, 16
    %s413 = scalar_lea.hbm %s1, %s412
    %s414 = scalar_lea.vmem [#allocation2], 21
    %s415 = scalar_lea.sflag [#allocation3], 21
    // Predicated region
    $region110: #{tpu_custom_call.1} parent=1 // pred_check
      _
    $region111: #{tpu_custom_call.1} parent=1 // pred_check_branch
      %417 = sbr.rel target = $region113
    $region112: #{tpu_custom_call.1} parent=1 // pred_region
      %418 = sst [smem:[#allocation14]] [#allocation57]
      %419 = sst [smem:[#allocation15]] [#allocation56]
    $region113: #{tpu_custom_call.1} parent=1 // pred_fallthru
      _
    %421 = shalt.err (0)
    %s423 = sshll.u32 %s414, 4
    %s424 = int_to_ptr.vmem [resolvable:$true] %s423
    %426 = dma.hbm_to_vmem [thread:$0]  %s413, 16, %s424, %s415
    %s427 = sadd.s32 %s325, 6
    %s428 = sld [smem:[#allocation5 + %s427]]
    %s429 = smul.addr %s428, 16
    %s430 = scalar_lea.hbm %s1, %s429
    %s431 = scalar_lea.vmem [#allocation2], 22
    %s432 = scalar_lea.sflag [#allocation3], 22
    // Predicated region
    $region114: #{tpu_custom_call.1} parent=1 // pred_check
      _
    $region115: #{tpu_custom_call.1} parent=1 // pred_check_branch
      %434 = sbr.rel target = $region117
    $region116: #{tpu_custom_call.1} parent=1 // pred_region
      %435 = sst [smem:[#allocation14]] [#allocation59]
      %436 = sst [smem:[#allocation15]] [#allocation58]
    $region117: #{tpu_custom_call.1} parent=1 // pred_fallthru
      _
    %438 = shalt.err (0)
    %s440 = sshll.u32 %s431, 4
    %s441 = int_to_ptr.vmem [resolvable:$true] %s440
    %443 = dma.hbm_to_vmem [thread:$0]  %s430, 16, %s441, %s432
    %s444 = sadd.s32 %s325, 7
    %s445 = sld [smem:[#allocation5 + %s444]]
    %s446 = smul.addr %s445, 16
    %s447 = scalar_lea.hbm %s1, %s446
    %s448 = scalar_lea.vmem [#allocation2], 23
    %s449 = scalar_lea.sflag [#allocation3], 23
    // Predicated region
    $region118: #{tpu_custom_call.1} parent=1 // pred_check
      _
    $region119: #{tpu_custom_call.1} parent=1 // pred_check_branch
      %451 = sbr.rel target = $region121
    $region120: #{tpu_custom_call.1} parent=1 // pred_region
      %452 = sst [smem:[#allocation14]] [#allocation61]
      %453 = sst [smem:[#allocation15]] [#allocation60]
    $region121: #{tpu_custom_call.1} parent=1 // pred_fallthru
      _
    %455 = shalt.err (0)
    %s457 = sshll.u32 %s448, 4
    %s458 = int_to_ptr.vmem [resolvable:$true] %s457
    %460 = dma.hbm_to_vmem [thread:$0]  %s447, 16, %s458, %s449
    %s461 = sadd.s32 %s52, 3
    %s462 = smul.u32 %s461, 128
    %s463 = sld [smem:[#allocation5 + %s462]]
    %s464 = smul.addr %s463, 16
    %s465 = scalar_lea.hbm %s1, %s464
    %s466 = scalar_lea.vmem [#allocation2], 24
    %s467 = scalar_lea.sflag [#allocation3], 24
    // Predicated region
    $region122: #{tpu_custom_call.1} parent=1 // pred_check
      _
    $region123: #{tpu_custom_call.1} parent=1 // pred_check_branch
      %469 = sbr.rel target = $region125
    $region124: #{tpu_custom_call.1} parent=1 // pred_region
      %470 = sst [smem:[#allocation14]] [#allocation63]
      %471 = sst [smem:[#allocation15]] [#allocation62]
    $region125: #{tpu_custom_call.1} parent=1 // pred_fallthru
      _
    %473 = shalt.err (0)
    %s475 = sshll.u32 %s466, 4
    %s476 = int_to_ptr.vmem [resolvable:$true] %s475
    %478 = dma.hbm_to_vmem [thread:$0]  %s465, 16, %s476, %s467
    %s479 = sadd.s32 %s462, 1
    %s480 = sld [smem:[#allocation5 + %s479]]
    %s481 = smul.addr %s480, 16
    %s482 = scalar_lea.hbm %s1, %s481
    %s483 = scalar_lea.vmem [#allocation2], 25
    %s484 = scalar_lea.sflag [#allocation3], 25
    // Predicated region
    $region126: #{tpu_custom_call.1} parent=1 // pred_check
      _
    $region127: #{tpu_custom_call.1} parent=1 // pred_check_branch
      %486 = sbr.rel target = $region129
    $region128: #{tpu_custom_call.1} parent=1 // pred_region
      %487 = sst [smem:[#allocation14]] [#allocation65]
      %488 = sst [smem:[#allocation15]] [#allocation64]
    $region129: #{tpu_custom_call.1} parent=1 // pred_fallthru
      _
    %490 = shalt.err (0)
    %s492 = sshll.u32 %s483, 4
    %s493 = int_to_ptr.vmem [resolvable:$true] %s492
    %495 = dma.hbm_to_vmem [thread:$0]  %s482, 16, %s493, %s484
    %s496 = sadd.s32 %s462, 2
    %s497 = sld [smem:[#allocation5 + %s496]]
    %s498 = smul.addr %s497, 16
    %s499 = scalar_lea.hbm %s1, %s498
    %s500 = scalar_lea.vmem [#allocation2], 26
    %s501 = scalar_lea.sflag [#allocation3], 26
    // Predicated region
    $region130: #{tpu_custom_call.1} parent=1 // pred_check
      _
    $region131: #{tpu_custom_call.1} parent=1 // pred_check_branch
      %503 = sbr.rel target = $region133
    $region132: #{tpu_custom_call.1} parent=1 // pred_region
      %504 = sst [smem:[#allocation14]] [#allocation67]
      %505 = sst [smem:[#allocation15]] [#allocation66]
    $region133: #{tpu_custom_call.1} parent=1 // pred_fallthru
      _
    %507 = shalt.err (0)
    %s509 = sshll.u32 %s500, 4
    %s510 = int_to_ptr.vmem [resolvable:$true] %s509
    %512 = dma.hbm_to_vmem [thread:$0]  %s499, 16, %s510, %s501
    %s513 = sadd.s32 %s462, 3
    %s514 = sld [smem:[#allocation5 + %s513]]
    %s515 = smul.addr %s514, 16
    %s516 = scalar_lea.hbm %s1, %s515
    %s517 = scalar_lea.vmem [#allocation2], 27
    %s518 = scalar_lea.sflag [#allocation3], 27
    // Predicated region
    $region134: #{tpu_custom_call.1} parent=1 // pred_check
      _
    $region135: #{tpu_custom_call.1} parent=1 // pred_check_branch
      %520 = sbr.rel target = $region137
    $region136: #{tpu_custom_call.1} parent=1 // pred_region
      %521 = sst [smem:[#allocation14]] [#allocation69]
      %522 = sst [smem:[#allocation15]] [#allocation68]
    $region137: #{tpu_custom_call.1} parent=1 // pred_fallthru
      _
    %524 = shalt.err (0)
    %s526 = sshll.u32 %s517, 4
    %s527 = int_to_ptr.vmem [resolvable:$true] %s526
    %529 = dma.hbm_to_vmem [thread:$0]  %s516, 16, %s527, %s518
    %s530 = sadd.s32 %s462, 4
    %s531 = sld [smem:[#allocation5 + %s530]]
    %s532 = smul.addr %s531, 16
    %s533 = scalar_lea.hbm %s1, %s532
    %s534 = scalar_lea.vmem [#allocation2], 28
    %s535 = scalar_lea.sflag [#allocation3], 28
    // Predicated region
    $region138: #{tpu_custom_call.1} parent=1 // pred_check
      _
    $region139: #{tpu_custom_call.1} parent=1 // pred_check_branch
      %537 = sbr.rel target = $region141
    $region140: #{tpu_custom_call.1} parent=1 // pred_region
      %538 = sst [smem:[#allocation14]] [#allocation71]
      %539 = sst [smem:[#allocation15]] [#allocation70]
    $region141: #{tpu_custom_call.1} parent=1 // pred_fallthru
      _
    %541 = shalt.err (0)
    %s543 = sshll.u32 %s534, 4
    %s544 = int_to_ptr.vmem [resolvable:$true] %s543
    %546 = dma.hbm_to_vmem [thread:$0]  %s533, 16, %s544, %s535
    %s547 = sadd.s32 %s462, 5
    %s548 = sld [smem:[#allocation5 + %s547]]
    %s549 = smul.addr %s548, 16
    %s550 = scalar_lea.hbm %s1, %s549
    %s551 = scalar_lea.vmem [#allocation2], 29
    %s552 = scalar_lea.sflag [#allocation3], 29
    // Predicated region
    $region142: #{tpu_custom_call.1} parent=1 // pred_check
      _
    $region143: #{tpu_custom_call.1} parent=1 // pred_check_branch
      %554 = sbr.rel target = $region145
    $region144: #{tpu_custom_call.1} parent=1 // pred_region
      %555 = sst [smem:[#allocation14]] [#allocation73]
      %556 = sst [smem:[#allocation15]] [#allocation72]
    $region145: #{tpu_custom_call.1} parent=1 // pred_fallthru
      _
    %558 = shalt.err (0)
    %s560 = sshll.u32 %s551, 4
    %s561 = int_to_ptr.vmem [resolvable:$true] %s560
    %563 = dma.hbm_to_vmem [thread:$0]  %s550, 16, %s561, %s552
    %s564 = sadd.s32 %s462, 6
    %s565 = sld [smem:[#allocation5 + %s564]]
    %s566 = smul.addr %s565, 16
    %s567 = scalar_lea.hbm %s1, %s566
    %s568 = scalar_lea.vmem [#allocation2], 30
    %s569 = scalar_lea.sflag [#allocation3], 30
    // Predicated region
    $region146: #{tpu_custom_call.1} parent=1 // pred_check
      _
    $region147: #{tpu_custom_call.1} parent=1 // pred_check_branch
      %571 = sbr.rel target = $region149
    $region148: #{tpu_custom_call.1} parent=1 // pred_region
      %572 = sst [smem:[#allocation14]] [#allocation75]
      %573 = sst [smem:[#allocation15]] [#allocation74]
    $region149: #{tpu_custom_call.1} parent=1 // pred_fallthru
      _
    %575 = shalt.err (0)
    %s577 = sshll.u32 %s568, 4
    %s578 = int_to_ptr.vmem [resolvable:$true] %s577
    %580 = dma.hbm_to_vmem [thread:$0]  %s567, 16, %s578, %s569
    %s581 = sadd.s32 %s462, 7
    %s582 = sld [smem:[#allocation5 + %s581]]
    %s583 = smul.addr %s582, 16
    %s584 = scalar_lea.hbm %s1, %s583
    %s585 = scalar_lea.vmem [#allocation2], 31
    %s586 = scalar_lea.sflag [#allocation3], 31
    // Predicated region
    $region150: #{tpu_custom_call.1} parent=1 // pred_check
      _
    $region151: #{tpu_custom_call.1} parent=1 // pred_check_branch
      %588 = sbr.rel target = $region153
    $region152: #{tpu_custom_call.1} parent=1 // pred_region
      %589 = sst [smem:[#allocation14]] [#allocation77]
      %590 = sst [smem:[#allocation15]] [#allocation76]
    $region153: #{tpu_custom_call.1} parent=1 // pred_fallthru
      _
    %592 = shalt.err (0)
    %s594 = sshll.u32 %s585, 4
    %s595 = int_to_ptr.vmem [resolvable:$true] %s594
    %597 = dma.hbm_to_vmem [thread:$0]  %s584, 16, %s595, %s586
    %s598 = sadd.s32 %s52, 4
    %s599 = smul.u32 %s598, 128
    %s600 = sld [smem:[#allocation5 + %s599]]
    %s601 = smul.addr %s600, 16
    %s602 = scalar_lea.hbm %s1, %s601
    %s603 = scalar_lea.vmem [#allocation2], 32
    %s604 = scalar_lea.sflag [#allocation3], 32
    // Predicated region
    $region154: #{tpu_custom_call.1} parent=1 // pred_check
      _
    $region155: #{tpu_custom_call.1} parent=1 // pred_check_branch
      %606 = sbr.rel target = $region157
    $region156: #{tpu_custom_call.1} parent=1 // pred_region
      %607 = sst [smem:[#allocation14]] [#allocation79]
      %608 = sst [smem:[#allocation15]] [#allocation78]
    $region157: #{tpu_custom_call.1} parent=1 // pred_fallthru
      _
    %610 = shalt.err (0)
    %s612 = sshll.u32 %s603, 4
    %s613 = int_to_ptr.vmem [resolvable:$true] %s612
    %615 = dma.hbm_to_vmem [thread:$0]  %s602, 16, %s613, %s604
    %s616 = sadd.s32 %s599, 1
    %s617 = sld [smem:[#allocation5 + %s616]]
    %s618 = smul.addr %s617, 16
    %s619 = scalar_lea.hbm %s1, %s618
    %s620 = scalar_lea.vmem [#allocation2], 33
    %s621 = scalar_lea.sflag [#allocation3], 33
    // Predicated region
    $region158: #{tpu_custom_call.1} parent=1 // pred_check
      _
    $region159: #{tpu_custom_call.1} parent=1 // pred_check_branch
      %623 = sbr.rel target = $region161
    $region160: #{tpu_custom_call.1} parent=1 // pred_region
      %624 = sst [smem:[#allocation14]] [#allocation81]
      %625 = sst [smem:[#allocation15]] [#allocation80]
    $region161: #{tpu_custom_call.1} parent=1 // pred_fallthru
      _
    %627 = shalt.err (0)
    %s629 = sshll.u32 %s620, 4
    %s630 = int_to_ptr.vmem [resolvable:$true] %s629
    %632 = dma.hbm_to_vmem [thread:$0]  %s619, 16, %s630, %s621
    %s633 = sadd.s32 %s599, 2
    %s634 = sld [smem:[#allocation5 + %s633]]
    %s635 = smul.addr %s634, 16
    %s636 = scalar_lea.hbm %s1, %s635
    %s637 = scalar_lea.vmem [#allocation2], 34
    %s638 = scalar_lea.sflag [#allocation3], 34
    // Predicated region
    $region162: #{tpu_custom_call.1} parent=1 // pred_check
      _
    $region163: #{tpu_custom_call.1} parent=1 // pred_check_branch
      %640 = sbr.rel target = $region165
    $region164: #{tpu_custom_call.1} parent=1 // pred_region
      %641 = sst [smem:[#allocation14]] [#allocation83]
      %642 = sst [smem:[#allocation15]] [#allocation82]
    $region165: #{tpu_custom_call.1} parent=1 // pred_fallthru
      _
    %644 = shalt.err (0)
    %s646 = sshll.u32 %s637, 4
    %s647 = int_to_ptr.vmem [resolvable:$true] %s646
    %649 = dma.hbm_to_vmem [thread:$0]  %s636, 16, %s647, %s638
    %s650 = sadd.s32 %s599, 3
    %s651 = sld [smem:[#allocation5 + %s650]]
    %s652 = smul.addr %s651, 16
    %s653 = scalar_lea.hbm %s1, %s652
    %s654 = scalar_lea.vmem [#allocation2], 35
    %s655 = scalar_lea.sflag [#allocation3], 35
    // Predicated region
    $region166: #{tpu_custom_call.1} parent=1 // pred_check
      _
    $region167: #{tpu_custom_call.1} parent=1 // pred_check_branch
      %657 = sbr.rel target = $region169
    $region168: #{tpu_custom_call.1} parent=1 // pred_region
      %658 = sst [smem:[#allocation14]] [#allocation85]
      %659 = sst [smem:[#allocation15]] [#allocation84]
    $region169: #{tpu_custom_call.1} parent=1 // pred_fallthru
      _
    %661 = shalt.err (0)
    %s663 = sshll.u32 %s654, 4
    %s664 = int_to_ptr.vmem [resolvable:$true] %s663
    %666 = dma.hbm_to_vmem [thread:$0]  %s653, 16, %s664, %s655
    %s667 = sadd.s32 %s599, 4
    %s668 = sld [smem:[#allocation5 + %s667]]
    %s669 = smul.addr %s668, 16
    %s670 = scalar_lea.hbm %s1, %s669
    %s671 = scalar_lea.vmem [#allocation2], 36
    %s672 = scalar_lea.sflag [#allocation3], 36
    // Predicated region
    $region170: #{tpu_custom_call.1} parent=1 // pred_check
      _
    $region171: #{tpu_custom_call.1} parent=1 // pred_check_branch
      %674 = sbr.rel target = $region173
    $region172: #{tpu_custom_call.1} parent=1 // pred_region
      %675 = sst [smem:[#allocation14]] [#allocation87]
      %676 = sst [smem:[#allocation15]] [#allocation86]
    $region173: #{tpu_custom_call.1} parent=1 // pred_fallthru
      _
    %678 = shalt.err (0)
    %s680 = sshll.u32 %s671, 4
    %s681 = int_to_ptr.vmem [resolvable:$true] %s680
    %683 = dma.hbm_to_vmem [thread:$0]  %s670, 16, %s681, %s672
    %s684 = sadd.s32 %s599, 5
    %s685 = sld [smem:[#allocation5 + %s684]]
    %s686 = smul.addr %s685, 16
    %s687 = scalar_lea.hbm %s1, %s686
    %s688 = scalar_lea.vmem [#allocation2], 37
    %s689 = scalar_lea.sflag [#allocation3], 37
    // Predicated region
    $region174: #{tpu_custom_call.1} parent=1 // pred_check
      _
    $region175: #{tpu_custom_call.1} parent=1 // pred_check_branch
      %691 = sbr.rel target = $region177
    $region176: #{tpu_custom_call.1} parent=1 // pred_region
      %692 = sst [smem:[#allocation14]] [#allocation89]
      %693 = sst [smem:[#allocation15]] [#allocation88]
    $region177: #{tpu_custom_call.1} parent=1 // pred_fallthru
      _
    %695 = shalt.err (0)
    %s697 = sshll.u32 %s688, 4
    %s698 = int_to_ptr.vmem [resolvable:$true] %s697
    %700 = dma.hbm_to_vmem [thread:$0]  %s687, 16, %s698, %s689
    %s701 = sadd.s32 %s599, 6
    %s702 = sld [smem:[#allocation5 + %s701]]
    %s703 = smul.addr %s702, 16
    %s704 = scalar_lea.hbm %s1, %s703
    %s705 = scalar_lea.vmem [#allocation2], 38
    %s706 = scalar_lea.sflag [#allocation3], 38
    // Predicated region
    $region178: #{tpu_custom_call.1} parent=1 // pred_check
      _
    $region179: #{tpu_custom_call.1} parent=1 // pred_check_branch
      %708 = sbr.rel target = $region181
    $region180: #{tpu_custom_call.1} parent=1 // pred_region
      %709 = sst [smem:[#allocation14]] [#allocation91]
      %710 = sst [smem:[#allocation15]] [#allocation90]
    $region181: #{tpu_custom_call.1} parent=1 // pred_fallthru
      _
    %712 = shalt.err (0)
    %s714 = sshll.u32 %s705, 4
    %s715 = int_to_ptr.vmem [resolvable:$true] %s714
    %717 = dma.hbm_to_vmem [thread:$0]  %s704, 16, %s715, %s706
    %s718 = sadd.s32 %s599, 7
    %s719 = sld [smem:[#allocation5 + %s718]]
    %s720 = smul.addr %s719, 16
    %s721 = scalar_lea.hbm %s1, %s720
    %s722 = scalar_lea.vmem [#allocation2], 39
    %s723 = scalar_lea.sflag [#allocation3], 39
    // Predicated region
    $region182: #{tpu_custom_call.1} parent=1 // pred_check
      _
    $region183: #{tpu_custom_call.1} parent=1 // pred_check_branch
      %725 = sbr.rel target = $region185
    $region184: #{tpu_custom_call.1} parent=1 // pred_region
      %726 = sst [smem:[#allocation14]] [#allocation93]
      %727 = sst [smem:[#allocation15]] [#allocation92]
    $region185: #{tpu_custom_call.1} parent=1 // pred_fallthru
      _
    %729 = shalt.err (0)
    %s731 = sshll.u32 %s722, 4
    %s732 = int_to_ptr.vmem [resolvable:$true] %s731
    %734 = dma.hbm_to_vmem [thread:$0]  %s721, 16, %s732, %s723
    %s735 = sadd.s32 %s52, 5
    %s736 = smul.u32 %s735, 128
    %s737 = sld [smem:[#allocation5 + %s736]]
    %s738 = smul.addr %s737, 16
    %s739 = scalar_lea.hbm %s1, %s738
    %s740 = scalar_lea.vmem [#allocation2], 40
    %s741 = scalar_lea.sflag [#allocation3], 40
    // Predicated region
    $region186: #{tpu_custom_call.1} parent=1 // pred_check
      _
    $region187: #{tpu_custom_call.1} parent=1 // pred_check_branch
      %743 = sbr.rel target = $region189
    $region188: #{tpu_custom_call.1} parent=1 // pred_region
      %744 = sst [smem:[#allocation14]] [#allocation95]
      %745 = sst [smem:[#allocation15]] [#allocation94]
    $region189: #{tpu_custom_call.1} parent=1 // pred_fallthru
      _
    %747 = shalt.err (0)
    %s749 = sshll.u32 %s740, 4
    %s750 = int_to_ptr.vmem [resolvable:$true] %s749
    %752 = dma.hbm_to_vmem [thread:$0]  %s739, 16, %s750, %s741
    %s753 = sadd.s32 %s736, 1
    %s754 = sld [smem:[#allocation5 + %s753]]
    %s755 = smul.addr %s754, 16
    %s756 = scalar_lea.hbm %s1, %s755
    %s757 = scalar_lea.vmem [#allocation2], 41
    %s758 = scalar_lea.sflag [#allocation3], 41
    // Predicated region
    $region190: #{tpu_custom_call.1} parent=1 // pred_check
      _
    $region191: #{tpu_custom_call.1} parent=1 // pred_check_branch
      %760 = sbr.rel target = $region193
    $region192: #{tpu_custom_call.1} parent=1 // pred_region
      %761 = sst [smem:[#allocation14]] [#allocation97]
      %762 = sst [smem:[#allocation15]] [#allocation96]
    $region193: #{tpu_custom_call.1} parent=1 // pred_fallthru
      _
    %764 = shalt.err (0)
    %s766 = sshll.u32 %s757, 4
    %s767 = int_to_ptr.vmem [resolvable:$true] %s766
    %769 = dma.hbm_to_vmem [thread:$0]  %s756, 16, %s767, %s758
    %s770 = sadd.s32 %s736, 2
    %s771 = sld [smem:[#allocation5 + %s770]]
    %s772 = smul.addr %s771, 16
    %s773 = scalar_lea.hbm %s1, %s772
    %s774 = scalar_lea.vmem [#allocation2], 42
    %s775 = scalar_lea.sflag [#allocation3], 42
    // Predicated region
    $region194: #{tpu_custom_call.1} parent=1 // pred_check
      _
    $region195: #{tpu_custom_call.1} parent=1 // pred_check_branch
      %777 = sbr.rel target = $region197
    $region196: #{tpu_custom_call.1} parent=1 // pred_region
      %778 = sst [smem:[#allocation14]] [#allocation99]
      %779 = sst [smem:[#allocation15]] [#allocation98]
    $region197: #{tpu_custom_call.1} parent=1 // pred_fallthru
      _
    %781 = shalt.err (0)
    %s783 = sshll.u32 %s774, 4
    %s784 = int_to_ptr.vmem [resolvable:$true] %s783
    %786 = dma.hbm_to_vmem [thread:$0]  %s773, 16, %s784, %s775
    %s787 = sadd.s32 %s736, 3
    %s788 = sld [smem:[#allocation5 + %s787]]
    %s789 = smul.addr %s788, 16
    %s790 = scalar_lea.hbm %s1, %s789
    %s791 = scalar_lea.vmem [#allocation2], 43
    %s792 = scalar_lea.sflag [#allocation3], 43
    // Predicated region
    $region198: #{tpu_custom_call.1} parent=1 // pred_check
      _
    $region199: #{tpu_custom_call.1} parent=1 // pred_check_branch
      %794 = sbr.rel target = $region201
    $region200: #{tpu_custom_call.1} parent=1 // pred_region
      %795 = sst [smem:[#allocation14]] [#allocation101]
      %796 = sst [smem:[#allocation15]] [#allocation100]
    $region201: #{tpu_custom_call.1} parent=1 // pred_fallthru
      _
    %798 = shalt.err (0)
    %s800 = sshll.u32 %s791, 4
    %s801 = int_to_ptr.vmem [resolvable:$true] %s800
    %803 = dma.hbm_to_vmem [thread:$0]  %s790, 16, %s801, %s792
    %s804 = sadd.s32 %s736, 4
    %s805 = sld [smem:[#allocation5 + %s804]]
    %s806 = smul.addr %s805, 16
    %s807 = scalar_lea.hbm %s1, %s806
    %s808 = scalar_lea.vmem [#allocation2], 44
    %s809 = scalar_lea.sflag [#allocation3], 44
    // Predicated region
    $region202: #{tpu_custom_call.1} parent=1 // pred_check
      _
    $region203: #{tpu_custom_call.1} parent=1 // pred_check_branch
      %811 = sbr.rel target = $region205
    $region204: #{tpu_custom_call.1} parent=1 // pred_region
      %812 = sst [smem:[#allocation14]] [#allocation103]
      %813 = sst [smem:[#allocation15]] [#allocation102]
    $region205: #{tpu_custom_call.1} parent=1 // pred_fallthru
      _
    %815 = shalt.err (0)
    %s817 = sshll.u32 %s808, 4
    %s818 = int_to_ptr.vmem [resolvable:$true] %s817
    %820 = dma.hbm_to_vmem [thread:$0]  %s807, 16, %s818, %s809
    %s821 = sadd.s32 %s736, 5
    %s822 = sld [smem:[#allocation5 + %s821]]
    %s823 = smul.addr %s822, 16
    %s824 = scalar_lea.hbm %s1, %s823
    %s825 = scalar_lea.vmem [#allocation2], 45
    %s826 = scalar_lea.sflag [#allocation3], 45
    // Predicated region
    $region206: #{tpu_custom_call.1} parent=1 // pred_check
      _
    $region207: #{tpu_custom_call.1} parent=1 // pred_check_branch
      %828 = sbr.rel target = $region209
    $region208: #{tpu_custom_call.1} parent=1 // pred_region
      %829 = sst [smem:[#allocation14]] [#allocation105]
      %830 = sst [smem:[#allocation15]] [#allocation104]
    $region209: #{tpu_custom_call.1} parent=1 // pred_fallthru
      _
    %832 = shalt.err (0)
    %s834 = sshll.u32 %s825, 4
    %s835 = int_to_ptr.vmem [resolvable:$true] %s834
    %837 = dma.hbm_to_vmem [thread:$0]  %s824, 16, %s835, %s826
    %s838 = sadd.s32 %s736, 6
    %s839 = sld [smem:[#allocation5 + %s838]]
    %s840 = smul.addr %s839, 16
    %s841 = scalar_lea.hbm %s1, %s840
    %s842 = scalar_lea.vmem [#allocation2], 46
    %s843 = scalar_lea.sflag [#allocation3], 46
    // Predicated region
    $region210: #{tpu_custom_call.1} parent=1 // pred_check
      _
    $region211: #{tpu_custom_call.1} parent=1 // pred_check_branch
      %845 = sbr.rel target = $region213
    $region212: #{tpu_custom_call.1} parent=1 // pred_region
      %846 = sst [smem:[#allocation14]] [#allocation107]
      %847 = sst [smem:[#allocation15]] [#allocation106]
    $region213: #{tpu_custom_call.1} parent=1 // pred_fallthru
      _
    %849 = shalt.err (0)
    %s851 = sshll.u32 %s842, 4
    %s852 = int_to_ptr.vmem [resolvable:$true] %s851
    %854 = dma.hbm_to_vmem [thread:$0]  %s841, 16, %s852, %s843
    %s855 = sadd.s32 %s736, 7
    %s856 = sld [smem:[#allocation5 + %s855]]
    %s857 = smul.addr %s856, 16
    %s858 = scalar_lea.hbm %s1, %s857
    %s859 = scalar_lea.vmem [#allocation2], 47
    %s860 = scalar_lea.sflag [#allocation3], 47
    // Predicated region
    $region214: #{tpu_custom_call.1} parent=1 // pred_check
      _
    $region215: #{tpu_custom_call.1} parent=1 // pred_check_branch
      %862 = sbr.rel target = $region217
    $region216: #{tpu_custom_call.1} parent=1 // pred_region
      %863 = sst [smem:[#allocation14]] [#allocation109]
      %864 = sst [smem:[#allocation15]] [#allocation108]
    $region217: #{tpu_custom_call.1} parent=1 // pred_fallthru
      _
    %866 = shalt.err (0)
    %s868 = sshll.u32 %s859, 4
    %s869 = int_to_ptr.vmem [resolvable:$true] %s868
    %871 = dma.hbm_to_vmem [thread:$0]  %s858, 16, %s869, %s860
    %s872 = sadd.s32 %s52, 6
    %s873 = smul.u32 %s872, 128
    %s874 = sld [smem:[#allocation5 + %s873]]
    %s875 = smul.addr %s874, 16
    %s876 = scalar_lea.hbm %s1, %s875
    %s877 = scalar_lea.vmem [#allocation2], 48
    %s878 = scalar_lea.sflag [#allocation3], 48
    // Predicated region
    $region218: #{tpu_custom_call.1} parent=1 // pred_check
      _
    $region219: #{tpu_custom_call.1} parent=1 // pred_check_branch
      %880 = sbr.rel target = $region221
    $region220: #{tpu_custom_call.1} parent=1 // pred_region
      %881 = sst [smem:[#allocation14]] [#allocation111]
      %882 = sst [smem:[#allocation15]] [#allocation110]
    $region221: #{tpu_custom_call.1} parent=1 // pred_fallthru
      _
    %884 = shalt.err (0)
    %s886 = sshll.u32 %s877, 4
    %s887 = int_to_ptr.vmem [resolvable:$true] %s886
    %889 = dma.hbm_to_vmem [thread:$0]  %s876, 16, %s887, %s878
    %s890 = sadd.s32 %s873, 1
    %s891 = sld [smem:[#allocation5 + %s890]]
    %s892 = smul.addr %s891, 16
    %s893 = scalar_lea.hbm %s1, %s892
    %s894 = scalar_lea.vmem [#allocation2], 49
    %s895 = scalar_lea.sflag [#allocation3], 49
    // Predicated region
    $region222: #{tpu_custom_call.1} parent=1 // pred_check
      _
    $region223: #{tpu_custom_call.1} parent=1 // pred_check_branch
      %897 = sbr.rel target = $region225
    $region224: #{tpu_custom_call.1} parent=1 // pred_region
      %898 = sst [smem:[#allocation14]] [#allocation113]
      %899 = sst [smem:[#allocation15]] [#allocation112]
    $region225: #{tpu_custom_call.1} parent=1 // pred_fallthru
      _
    %901 = shalt.err (0)
    %s903 = sshll.u32 %s894, 4
    %s904 = int_to_ptr.vmem [resolvable:$true] %s903
    %906 = dma.hbm_to_vmem [thread:$0]  %s893, 16, %s904, %s895
    %s907 = sadd.s32 %s873, 2
    %s908 = sld [smem:[#allocation5 + %s907]]
    %s909 = smul.addr %s908, 16
    %s910 = scalar_lea.hbm %s1, %s909
    %s911 = scalar_lea.vmem [#allocation2], 50
    %s912 = scalar_lea.sflag [#allocation3], 50
    // Predicated region
    $region226: #{tpu_custom_call.1} parent=1 // pred_check
      _
    $region227: #{tpu_custom_call.1} parent=1 // pred_check_branch
      %914 = sbr.rel target = $region229
    $region228: #{tpu_custom_call.1} parent=1 // pred_region
      %915 = sst [smem:[#allocation14]] [#allocation115]
      %916 = sst [smem:[#allocation15]] [#allocation114]
    $region229: #{tpu_custom_call.1} parent=1 // pred_fallthru
      _
    %918 = shalt.err (0)
    %s920 = sshll.u32 %s911, 4
    %s921 = int_to_ptr.vmem [resolvable:$true] %s920
    %923 = dma.hbm_to_vmem [thread:$0]  %s910, 16, %s921, %s912
    %s924 = sadd.s32 %s873, 3
    %s925 = sld [smem:[#allocation5 + %s924]]
    %s926 = smul.addr %s925, 16
    %s927 = scalar_lea.hbm %s1, %s926
    %s928 = scalar_lea.vmem [#allocation2], 51
    %s929 = scalar_lea.sflag [#allocation3], 51
    // Predicated region
    $region230: #{tpu_custom_call.1} parent=1 // pred_check
      _
    $region231: #{tpu_custom_call.1} parent=1 // pred_check_branch
      %931 = sbr.rel target = $region233
    $region232: #{tpu_custom_call.1} parent=1 // pred_region
      %932 = sst [smem:[#allocation14]] [#allocation117]
      %933 = sst [smem:[#allocation15]] [#allocation116]
    $region233: #{tpu_custom_call.1} parent=1 // pred_fallthru
      _
    %935 = shalt.err (0)
    %s937 = sshll.u32 %s928, 4
    %s938 = int_to_ptr.vmem [resolvable:$true] %s937
    %940 = dma.hbm_to_vmem [thread:$0]  %s927, 16, %s938, %s929
    %s941 = sadd.s32 %s873, 4
    %s942 = sld [smem:[#allocation5 + %s941]]
    %s943 = smul.addr %s942, 16
    %s944 = scalar_lea.hbm %s1, %s943
    %s945 = scalar_lea.vmem [#allocation2], 52
    %s946 = scalar_lea.sflag [#allocation3], 52
    // Predicated region
    $region234: #{tpu_custom_call.1} parent=1 // pred_check
      _
    $region235: #{tpu_custom_call.1} parent=1 // pred_check_branch
      %948 = sbr.rel target = $region237
    $region236: #{tpu_custom_call.1} parent=1 // pred_region
      %949 = sst [smem:[#allocation14]] [#allocation119]
      %950 = sst [smem:[#allocation15]] [#allocation118]
    $region237: #{tpu_custom_call.1} parent=1 // pred_fallthru
      _
    %952 = shalt.err (0)
    %s954 = sshll.u32 %s945, 4
    %s955 = int_to_ptr.vmem [resolvable:$true] %s954
    %957 = dma.hbm_to_vmem [thread:$0]  %s944, 16, %s955, %s946
    %s958 = sadd.s32 %s873, 5
    %s959 = sld [smem:[#allocation5 + %s958]]
    %s960 = smul.addr %s959, 16
    %s961 = scalar_lea.hbm %s1, %s960
    %s962 = scalar_lea.vmem [#allocation2], 53
    %s963 = scalar_lea.sflag [#allocation3], 53
    // Predicated region
    $region238: #{tpu_custom_call.1} parent=1 // pred_check
      _
    $region239: #{tpu_custom_call.1} parent=1 // pred_check_branch
      %965 = sbr.rel target = $region241
    $region240: #{tpu_custom_call.1} parent=1 // pred_region
      %966 = sst [smem:[#allocation14]] [#allocation121]
      %967 = sst [smem:[#allocation15]] [#allocation120]
    $region241: #{tpu_custom_call.1} parent=1 // pred_fallthru
      _
    %969 = shalt.err (0)
    %s971 = sshll.u32 %s962, 4
    %s972 = int_to_ptr.vmem [resolvable:$true] %s971
    %974 = dma.hbm_to_vmem [thread:$0]  %s961, 16, %s972, %s963
    %s975 = sadd.s32 %s873, 6
    %s976 = sld [smem:[#allocation5 + %s975]]
    %s977 = smul.addr %s976, 16
    %s978 = scalar_lea.hbm %s1, %s977
    %s979 = scalar_lea.vmem [#allocation2], 54
    %s980 = scalar_lea.sflag [#allocation3], 54
    // Predicated region
    $region242: #{tpu_custom_call.1} parent=1 // pred_check
      _
    $region243: #{tpu_custom_call.1} parent=1 // pred_check_branch
      %982 = sbr.rel target = $region245
    $region244: #{tpu_custom_call.1} parent=1 // pred_region
      %983 = sst [smem:[#allocation14]] [#allocation123]
      %984 = sst [smem:[#allocation15]] [#allocation122]
    $region245: #{tpu_custom_call.1} parent=1 // pred_fallthru
      _
    %986 = shalt.err (0)
    %s988 = sshll.u32 %s979, 4
    %s989 = int_to_ptr.vmem [resolvable:$true] %s988
    %991 = dma.hbm_to_vmem [thread:$0]  %s978, 16, %s989, %s980
    %s992 = sadd.s32 %s873, 7
    %s993 = sld [smem:[#allocation5 + %s992]]
    %s994 = smul.addr %s993, 16
    %s995 = scalar_lea.hbm %s1, %s994
    %s996 = scalar_lea.vmem [#allocation2], 55
    %s997 = scalar_lea.sflag [#allocation3], 55
    // Predicated region
    $region246: #{tpu_custom_call.1} parent=1 // pred_check
      _
    $region247: #{tpu_custom_call.1} parent=1 // pred_check_branch
      %999 = sbr.rel target = $region249
    $region248: #{tpu_custom_call.1} parent=1 // pred_region
      %1000 = sst [smem:[#allocation14]] [#allocation125]
      %1001 = sst [smem:[#allocation15]] [#allocation124]
    $region249: #{tpu_custom_call.1} parent=1 // pred_fallthru
      _
    %1003 = shalt.err (0)
    %s1005 = sshll.u32 %s996, 4
    %s1006 = int_to_ptr.vmem [resolvable:$true] %s1005
    %1008 = dma.hbm_to_vmem [thread:$0]  %s995, 16, %s1006, %s997
    %s1009 = sadd.s32 %s52, 7
    %s1010 = smul.u32 %s1009, 128
    %s1011 = sld [smem:[#allocation5 + %s1010]]
    %s1012 = smul.addr %s1011, 16
    %s1013 = scalar_lea.hbm %s1, %s1012
    %s1014 = scalar_lea.vmem [#allocation2], 56
    %s1015 = scalar_lea.sflag [#allocation3], 56
    // Predicated region
    $region250: #{tpu_custom_call.1} parent=1 // pred_check
      _
    $region251: #{tpu_custom_call.1} parent=1 // pred_check_branch
      %1017 = sbr.rel target = $region253
    $region252: #{tpu_custom_call.1} parent=1 // pred_region
      %1018 = sst [smem:[#allocation14]] [#allocation127]
      %1019 = sst [smem:[#allocation15]] [#allocation126]
    $region253: #{tpu_custom_call.1} parent=1 // pred_fallthru
      _
    %1021 = shalt.err (0)
    %s1023 = sshll.u32 %s1014, 4
    %s1024 = int_to_ptr.vmem [resolvable:$true] %s1023
    %1026 = dma.hbm_to_vmem [thread:$0]  %s1013, 16, %s1024, %s1015
    %s1027 = sadd.s32 %s1010, 1
    %s1028 = sld [smem:[#allocation5 + %s1027]]
    %s1029 = smul.addr %s1028, 16
    %s1030 = scalar_lea.hbm %s1, %s1029
    %s1031 = scalar_lea.vmem [#allocation2], 57
    %s1032 = scalar_lea.sflag [#allocation3], 57
    // Predicated region
    $region254: #{tpu_custom_call.1} parent=1 // pred_check
      _
    $region255: #{tpu_custom_call.1} parent=1 // pred_check_branch
      %1034 = sbr.rel target = $region257
    $region256: #{tpu_custom_call.1} parent=1 // pred_region
      %1035 = sst [smem:[#allocation14]] [#allocation129]
      %1036 = sst [smem:[#allocation15]] [#allocation128]
    $region257: #{tpu_custom_call.1} parent=1 // pred_fallthru
      _
    %1038 = shalt.err (0)
    %s1040 = sshll.u32 %s1031, 4
    %s1041 = int_to_ptr.vmem [resolvable:$true] %s1040
    %1043 = dma.hbm_to_vmem [thread:$0]  %s1030, 16, %s1041, %s1032
    %s1044 = sadd.s32 %s1010, 2
    %s1045 = sld [smem:[#allocation5 + %s1044]]
    %s1046 = smul.addr %s1045, 16
    %s1047 = scalar_lea.hbm %s1, %s1046
    %s1048 = scalar_lea.vmem [#allocation2], 58
    %s1049 = scalar_lea.sflag [#allocation3], 58
    // Predicated region
    $region258: #{tpu_custom_call.1} parent=1 // pred_check
      _
    $region259: #{tpu_custom_call.1} parent=1 // pred_check_branch
      %1051 = sbr.rel target = $region261
    $region260: #{tpu_custom_call.1} parent=1 // pred_region
      %1052 = sst [smem:[#allocation14]] [#allocation131]
      %1053 = sst [smem:[#allocation15]] [#allocation130]
    $region261: #{tpu_custom_call.1} parent=1 // pred_fallthru
      _
    %1055 = shalt.err (0)
    %s1057 = sshll.u32 %s1048, 4
    %s1058 = int_to_ptr.vmem [resolvable:$true] %s1057
    %1060 = dma.hbm_to_vmem [thread:$0]  %s1047, 16, %s1058, %s1049
    %s1061 = sadd.s32 %s1010, 3
    %s1062 = sld [smem:[#allocation5 + %s1061]]
    %s1063 = smul.addr %s1062, 16
    %s1064 = scalar_lea.hbm %s1, %s1063
    %s1065 = scalar_lea.vmem [#allocation2], 59
    %s1066 = scalar_lea.sflag [#allocation3], 59
    // Predicated region
    $region262: #{tpu_custom_call.1} parent=1 // pred_check
      _
    $region263: #{tpu_custom_call.1} parent=1 // pred_check_branch
      %1068 = sbr.rel target = $region265
    $region264: #{tpu_custom_call.1} parent=1 // pred_region
      %1069 = sst [smem:[#allocation14]] [#allocation133]
      %1070 = sst [smem:[#allocation15]] [#allocation132]
    $region265: #{tpu_custom_call.1} parent=1 // pred_fallthru
      _
    %1072 = shalt.err (0)
    %s1074 = sshll.u32 %s1065, 4
    %s1075 = int_to_ptr.vmem [resolvable:$true] %s1074
    %1077 = dma.hbm_to_vmem [thread:$0]  %s1064, 16, %s1075, %s1066
    %s1078 = sadd.s32 %s1010, 4
    %s1079 = sld [smem:[#allocation5 + %s1078]]
    %s1080 = smul.addr %s1079, 16
    %s1081 = scalar_lea.hbm %s1, %s1080
    %s1082 = scalar_lea.vmem [#allocation2], 60
    %s1083 = scalar_lea.sflag [#allocation3], 60
    // Predicated region
    $region266: #{tpu_custom_call.1} parent=1 // pred_check
      _
    $region267: #{tpu_custom_call.1} parent=1 // pred_check_branch
      %1085 = sbr.rel target = $region269
    $region268: #{tpu_custom_call.1} parent=1 // pred_region
      %1086 = sst [smem:[#allocation14]] [#allocation135]
      %1087 = sst [smem:[#allocation15]] [#allocation134]
    $region269: #{tpu_custom_call.1} parent=1 // pred_fallthru
      _
    %1089 = shalt.err (0)
    %s1091 = sshll.u32 %s1082, 4
    %s1092 = int_to_ptr.vmem [resolvable:$true] %s1091
    %1094 = dma.hbm_to_vmem [thread:$0]  %s1081, 16, %s1092, %s1083
    %s1095 = sadd.s32 %s1010, 5
    %s1096 = sld [smem:[#allocation5 + %s1095]]
    %s1097 = smul.addr %s1096, 16
    %s1098 = scalar_lea.hbm %s1, %s1097
    %s1099 = scalar_lea.vmem [#allocation2], 61
    %s1100 = scalar_lea.sflag [#allocation3], 61
    // Predicated region
    $region270: #{tpu_custom_call.1} parent=1 // pred_check
      _
    $region271: #{tpu_custom_call.1} parent=1 // pred_check_branch
      %1102 = sbr.rel target = $region273
    $region272: #{tpu_custom_call.1} parent=1 // pred_region
      %1103 = sst [smem:[#allocation14]] [#allocation137]
      %1104 = sst [smem:[#allocation15]] [#allocation136]
    $region273: #{tpu_custom_call.1} parent=1 // pred_fallthru
      _
    %1106 = shalt.err (0)
    %s1108 = sshll.u32 %s1099, 4
    %s1109 = int_to_ptr.vmem [resolvable:$true] %s1108
    %1111 = dma.hbm_to_vmem [thread:$0]  %s1098, 16, %s1109, %s1100
    %s1112 = sadd.s32 %s1010, 6
    %s1113 = sld [smem:[#allocation5 + %s1112]]
    %s1114 = smul.addr %s1113, 16
    %s1115 = scalar_lea.hbm %s1, %s1114
    %s1116 = scalar_lea.vmem [#allocation2], 62
    %s1117 = scalar_lea.sflag [#allocation3], 62
    // Predicated region
    $region274: #{tpu_custom_call.1} parent=1 // pred_check
      _
    $region275: #{tpu_custom_call.1} parent=1 // pred_check_branch
      %1119 = sbr.rel target = $region277
    $region276: #{tpu_custom_call.1} parent=1 // pred_region
      %1120 = sst [smem:[#allocation14]] [#allocation139]
      %1121 = sst [smem:[#allocation15]] [#allocation138]
    $region277: #{tpu_custom_call.1} parent=1 // pred_fallthru
      _
    %1123 = shalt.err (0)
    %s1125 = sshll.u32 %s1116, 4
    %s1126 = int_to_ptr.vmem [resolvable:$true] %s1125
    %1128 = dma.hbm_to_vmem [thread:$0]  %s1115, 16, %s1126, %s1117
    %s1129 = sadd.s32 %s1010, 7
    %s1130 = sld [smem:[#allocation5 + %s1129]]
    %s1131 = smul.addr %s1130, 16
    %s1132 = scalar_lea.hbm %s1, %s1131
    %s1133 = scalar_lea.vmem [#allocation2], 63
    %s1134 = scalar_lea.sflag [#allocation3], 63
    // Predicated region
    $region278: #{tpu_custom_call.1} parent=1 // pred_check
      _
    $region279: #{tpu_custom_call.1} parent=1 // pred_check_branch
      %1136 = sbr.rel target = $region281
    $region280: #{tpu_custom_call.1} parent=1 // pred_region
      %1137 = sst [smem:[#allocation14]] [#allocation141]
      %1138 = sst [smem:[#allocation15]] [#allocation140]
    $region281: #{tpu_custom_call.1} parent=1 // pred_fallthru
      _
    %1140 = shalt.err (0)
    %s1142 = sshll.u32 %s1133, 4
    %s1143 = int_to_ptr.vmem [resolvable:$true] %s1142
    %1145 = dma.hbm_to_vmem [thread:$0]  %s1132, 16, %s1143, %s1134
    %1147 = dma.done [#allocation3], 16
    %1149 = dma.done %s73, 16
    %1151 = dma.done %s90, 16
    %1153 = dma.done %s107, 16
    %1155 = dma.done %s124, 16
    %1157 = dma.done %s141, 16
    %1159 = dma.done %s158, 16
    %1161 = dma.done %s175, 16
    %1163 = dma.done %s193, 16
    %1165 = dma.done %s210, 16
    %1167 = dma.done %s227, 16
    %1169 = dma.done %s244, 16
    %1171 = dma.done %s261, 16
    %1173 = dma.done %s278, 16
    %1175 = dma.done %s295, 16
    %1177 = dma.done %s312, 16
    %1179 = dma.done %s330, 16
    %1181 = dma.done %s347, 16
    %1183 = dma.done %s364, 16
    %1185 = dma.done %s381, 16
    %1187 = dma.done %s398, 16
    %1189 = dma.done %s415, 16
    %1191 = dma.done %s432, 16
    %1193 = dma.done %s449, 16
    %1195 = dma.done %s467, 16
    %1197 = dma.done %s484, 16
    %1199 = dma.done %s501, 16
    %1201 = dma.done %s518, 16
    %1203 = dma.done %s535, 16
    %1205 = dma.done %s552, 16
    %1207 = dma.done %s569, 16
    %1209 = dma.done %s586, 16
    %1211 = dma.done %s604, 16
    %1213 = dma.done %s621, 16
    %1215 = dma.done %s638, 16
    %1217 = dma.done %s655, 16
    %1219 = dma.done %s672, 16
    %1221 = dma.done %s689, 16
    %1223 = dma.done %s706, 16
    %1225 = dma.done %s723, 16
    %1227 = dma.done %s741, 16
    %1229 = dma.done %s758, 16
    %1231 = dma.done %s775, 16
    %1233 = dma.done %s792, 16
    %1235 = dma.done %s809, 16
    %1237 = dma.done %s826, 16
    %1239 = dma.done %s843, 16
    %1241 = dma.done %s860, 16
    %1243 = dma.done %s878, 16
    %1245 = dma.done %s895, 16
    %1247 = dma.done %s912, 16
    %1249 = dma.done %s929, 16
    %1251 = dma.done %s946, 16
    %1253 = dma.done %s963, 16
    %1255 = dma.done %s980, 16
    %1257 = dma.done %s997, 16
    %1259 = dma.done %s1015, 16
    %1261 = dma.done %s1032, 16
    %1263 = dma.done %s1049, 16
    %1265 = dma.done %s1066, 16
    %1267 = dma.done %s1083, 16
    %1269 = dma.done %s1100, 16
    %1271 = dma.done %s1117, 16
    %1273 = dma.done %s1134, 16
    %v1274 = vld [vmem:[#allocation2] sm:$0xff]
    %v1275 = vld [vmem:[#allocation2 + $0x8] sm:$0xff]
    %v1276 = vld [vmem:[#allocation2 + $0x10] sm:$0xff]
    %v1277 = vld [vmem:[#allocation2 + $0x18] sm:$0xff]
    %v1278 = vld [vmem:[#allocation2 + $0x20] sm:$0xff]
    %v1279 = vld [vmem:[#allocation2 + $0x28] sm:$0xff]
    %v1280 = vld [vmem:[#allocation2 + $0x30] sm:$0xff]
    %v1281 = vld [vmem:[#allocation2 + $0x38] sm:$0xff]
    %v1282 = vrot.slane %v1274, 4
    %v1283 = vadd.f32 %v1274, %v1282
    %v1284 = vrot.slane %v1283, 2
    %v1285 = vadd.f32 %v1283, %v1284
    %v1286 = vrot.slane %v1285, 1
    %v1287 = vadd.f32 %v1285, %v1286
    %v1288 = vrot.slane %v1275, 4
    %v1289 = vadd.f32 %v1275, %v1288
    %v1290 = vrot.slane %v1289, 2
    %v1291 = vadd.f32 %v1289, %v1290
    %v1292 = vrot.slane %v1291, 1
    %v1293 = vadd.f32 %v1291, %v1292
    %v1294 = vrot.slane %v1276, 4
    %v1295 = vadd.f32 %v1276, %v1294
    %v1296 = vrot.slane %v1295, 2
    %v1297 = vadd.f32 %v1295, %v1296
    %v1298 = vrot.slane %v1297, 1
    %v1299 = vadd.f32 %v1297, %v1298
    %v1300 = vrot.slane %v1277, 4
    %v1301 = vadd.f32 %v1277, %v1300
    %v1302 = vrot.slane %v1301, 2
    %v1303 = vadd.f32 %v1301, %v1302
    %v1304 = vrot.slane %v1303, 1
    %v1305 = vadd.f32 %v1303, %v1304
    %v1306 = vrot.slane %v1278, 4
    %v1307 = vadd.f32 %v1278, %v1306
    %v1308 = vrot.slane %v1307, 2
    %v1309 = vadd.f32 %v1307, %v1308
    %v1310 = vrot.slane %v1309, 1
    %v1311 = vadd.f32 %v1309, %v1310
    %v1312 = vrot.slane %v1279, 4
    %v1313 = vadd.f32 %v1279, %v1312
    %v1314 = vrot.slane %v1313, 2
    %v1315 = vadd.f32 %v1313, %v1314
    %v1316 = vrot.slane %v1315, 1
    %v1317 = vadd.f32 %v1315, %v1316
    %v1318 = vrot.slane %v1280, 4
    %v1319 = vadd.f32 %v1280, %v1318
    %v1320 = vrot.slane %v1319, 2
    %v1321 = vadd.f32 %v1319, %v1320
    %v1322 = vrot.slane %v1321, 1
    %v1323 = vadd.f32 %v1321, %v1322
    %v1324 = vrot.slane %v1281, 4
    %v1325 = vadd.f32 %v1281, %v1324
    %v1326 = vrot.slane %v1325, 2
    %v1327 = vadd.f32 %v1325, %v1326
    %v1328 = vrot.slane %v1327, 1
    %v1329 = vadd.f32 %v1327, %v1328
    %v1330 = vmul.f32 %v1287, 0.125
    %v1331 = vmul.f32 %v1293, 0.125
    %v1332 = vmul.f32 %v1299, 0.125
    %v1333 = vmul.f32 %v1305, 0.125
    %v1334 = vmul.f32 %v1311, 0.125
    %v1335 = vmul.f32 %v1317, 0.125
    %v1336 = vmul.f32 %v1323, 0.125
    %v1337 = vmul.f32 %v1329, 0.125
    %v1338 = vld [vmem:[#allocation6] sm:$0xff]
    %v1339 = vld [vmem:[#allocation6 + $0x8] sm:$0xff]
    %v1340 = vld [vmem:[#allocation6 + $0x10] sm:$0xff]
    %v1341 = vld [vmem:[#allocation6 + $0x18] sm:$0xff]
    %v1342 = vld [vmem:[#allocation6 + $0x20] sm:$0xff]
    %v1343 = vld [vmem:[#allocation6 + $0x28] sm:$0xff]
    %v1344 = vld [vmem:[#allocation6 + $0x30] sm:$0xff]
    %v1345 = vld [vmem:[#allocation6 + $0x38] sm:$0xff]
    %v1346 = vld [vmem:[#allocation6 + $0x40] sm:$0xff]
    %v1347 = vld [vmem:[#allocation6 + $0x48] sm:$0xff]
    %v1348 = vld [vmem:[#allocation6 + $0x50] sm:$0xff]
    %v1349 = vld [vmem:[#allocation6 + $0x58] sm:$0xff]
    %v1350 = vld [vmem:[#allocation6 + $0x60] sm:$0xff]
    %v1351 = vld [vmem:[#allocation6 + $0x68] sm:$0xff]
    %v1352 = vld [vmem:[#allocation6 + $0x70] sm:$0xff]
    %v1353 = vld [vmem:[#allocation6 + $0x78] sm:$0xff]
    %v1354 = vld [vmem:[%s3] sm:$0x1]
    %v1356 = vlaneseq
    %v1357 = vshrl.u32 %v1356, 7
    %v1358 = vsub.s32 0, %v1357
    %v1359 = vrot.slane %v1354, %v1358
    %vm1369 = vcmask 1041409
    %v1370 = vsel %vm1369, %v1331, %v1330
    %vm1371 = vcmask 1042434
    %v1372 = vsel %vm1371, %v1332, %v1370
    %vm1373 = vcmask 1043459
    %v1374 = vsel %vm1373, %v1333, %v1372
    %vm1375 = vcmask 1044484
    %v1376 = vsel %vm1375, %v1334, %v1374
    %vm1377 = vcmask 1045509
    %v1378 = vsel %vm1377, %v1335, %v1376
    %vm1379 = vcmask 1046534
    %v1380 = vsel %vm1379, %v1336, %v1378
    %vm1381 = vcmask 1047559
    %v1382 = vsel %vm1381, %v1337, %v1380
    %1384 = vmatprep.subr.mxu0 0.0
    %1385 = vmatpush1.msra.mxu0 %v1353
    %1386 = vmatprep.subr.mxu0 0.0
    %1387 = vmatpush1.msra.mxu0 %v1352
    %1388 = vmatprep.subr.mxu0 0.0
    %1389 = vmatpush1.msra.mxu0 %v1351
    %1390 = vmatprep.subr.mxu0 0.0
    %1391 = vmatpush1.msra.mxu0 %v1350
    %1392 = vmatprep.subr.mxu0 0.0
    %1393 = vmatpush1.msra.mxu0 %v1349
    %1394 = vmatprep.subr.mxu0 0.0
    %1395 = vmatpush1.msra.mxu0 %v1348
    %1396 = vmatprep.subr.mxu0 0.0
    %1397 = vmatpush1.msra.mxu0 %v1347
    %1398 = vmatprep.subr.mxu0 0.0
    %1399 = vmatpush1.msra.mxu0 %v1346
    %1400 = vmatprep.subr.mxu0 0.0
    %1401 = vmatpush1.msra.mxu0 %v1345
    %1402 = vmatprep.subr.mxu0 0.0
    %1403 = vmatpush1.msra.mxu0 %v1344
    %1404 = vmatprep.subr.mxu0 0.0
    %1405 = vmatpush1.msra.mxu0 %v1343
    %1406 = vmatprep.subr.mxu0 0.0
    %1407 = vmatpush1.msra.mxu0 %v1342
    %1408 = vmatprep.subr.mxu0 0.0
    %1409 = vmatpush1.msra.mxu0 %v1341
    %1410 = vmatprep.subr.mxu0 0.0
    %1411 = vmatpush1.msra.mxu0 %v1340
    %1412 = vmatprep.subr.mxu0 0.0
    %1413 = vmatpush1.msra.mxu0 %v1339
    %1414 = vmatprep.subr.mxu0 0.0
    %1415 = vmatpush1.msra.mxu0 %v1338
    %1416 = vmatprep.subr.mxu0 0.0
    %1417 = vmatpush2.msra.mxu0 0.0
    %1418 = vmatprep.subr.mxu0 0.0
    %1419 = vmatpush2.msra.mxu0 0.0
    %1420 = vmatprep.subr.mxu0 0.0
    %1421 = vmatpush2.msra.mxu0 0.0
    %1422 = vmatprep.subr.mxu0 0.0
    %1423 = vmatpush2.msra.mxu0 0.0
    %1424 = vmatprep.subr.mxu0 0.0
    %1425 = vmatpush2.msra.mxu0 0.0
    %1426 = vmatprep.subr.mxu0 0.0
    %1427 = vmatpush2.msra.mxu0 0.0
    %1428 = vmatprep.subr.mxu0 0.0
    %1429 = vmatpush2.msra.mxu0 0.0
    %1430 = vmatprep.subr.mxu0 0.0
    %1431 = vmatpush2.msra.mxu0 0.0
    %1432 = vmatprep.subr.mxu0 0.0
    %1433 = vmatpush2.msra.mxu0 0.0
    %1434 = vmatprep.subr.mxu0 0.0
    %1435 = vmatpush2.msra.mxu0 0.0
    %1436 = vmatprep.subr.mxu0 0.0
    %1437 = vmatpush2.msra.mxu0 0.0
    %1438 = vmatprep.subr.mxu0 0.0
    %1439 = vmatpush2.msra.mxu0 0.0
    %1440 = vmatprep.subr.mxu0 0.0
    %1441 = vmatpush2.msra.mxu0 0.0
    %1442 = vmatprep.subr.mxu0 0.0
    %1443 = vmatpush2.msra.mxu0 0.0
    %1444 = vmatprep.subr.mxu0 0.0
    %1445 = vmatpush2.msra.mxu0 0.0
    %1446 = vmatprep.subr.mxu0 0.0
    %1447 = vmatpush2.msra.mxu0 0.0
    %1448 = vmatprep.mubr.f32.mxu0 0.0
    %1449 = vmatmul.mubr.f32.gmra.mxu0 %v1382
    %v1450 = vpop.f32.mrf.mxu0
    %v1451 = vadd.f32 %v1359, %v1450
    %v1452 = vpop.f32.mrf.mxu0
    %1453 = vdwg.mxu0
    %v1454 = vmax.f32 %v1451, 0.0
    %v1455 = vld [vmem:[#allocation9] sm:$0xff]
    %v1456 = vld [vmem:[#allocation9 + $0x8] sm:$0xff]
    %v1457 = vld [vmem:[#allocation9 + $0x10] sm:$0xff]
    %v1458 = vld [vmem:[#allocation9 + $0x18] sm:$0xff]
    %v1459 = vld [vmem:[#allocation9 + $0x20] sm:$0xff]
    %v1460 = vld [vmem:[#allocation9 + $0x28] sm:$0xff]
    %v1461 = vld [vmem:[#allocation9 + $0x30] sm:$0xff]
    %v1462 = vld [vmem:[#allocation9 + $0x38] sm:$0xff]
    %v1463 = vld [vmem:[#allocation9 + $0x40] sm:$0xff]
    %v1464 = vld [vmem:[#allocation9 + $0x48] sm:$0xff]
    %v1465 = vld [vmem:[#allocation9 + $0x50] sm:$0xff]
    %v1466 = vld [vmem:[#allocation9 + $0x58] sm:$0xff]
    %v1467 = vld [vmem:[#allocation9 + $0x60] sm:$0xff]
    %v1468 = vld [vmem:[#allocation9 + $0x68] sm:$0xff]
    %v1469 = vld [vmem:[#allocation9 + $0x70] sm:$0xff]
    %v1470 = vld [vmem:[#allocation9 + $0x78] sm:$0xff]
    %v1471 = vld [vmem:[%s5] sm:$0x1]
    %v1473 = vlaneseq
    %v1474 = vshrl.u32 %v1473, 7
    %v1475 = vsub.s32 0, %v1474
    %v1476 = vrot.slane %v1471, %v1475
    %1478 = vmatprep.subr.mxu0 0.0
    %1479 = vmatpush1.msra.mxu0 %v1470
    %1480 = vmatprep.subr.mxu0 0.0
    %1481 = vmatpush1.msra.mxu0 %v1469
    %1482 = vmatprep.subr.mxu0 0.0
    %1483 = vmatpush1.msra.mxu0 %v1468
    %1484 = vmatprep.subr.mxu0 0.0
    %1485 = vmatpush1.msra.mxu0 %v1467
    %1486 = vmatprep.subr.mxu0 0.0
    %1487 = vmatpush1.msra.mxu0 %v1466
    %1488 = vmatprep.subr.mxu0 0.0
    %1489 = vmatpush1.msra.mxu0 %v1465
    %1490 = vmatprep.subr.mxu0 0.0
    %1491 = vmatpush1.msra.mxu0 %v1464
    %1492 = vmatprep.subr.mxu0 0.0
    %1493 = vmatpush1.msra.mxu0 %v1463
    %1494 = vmatprep.subr.mxu0 0.0
    %1495 = vmatpush1.msra.mxu0 %v1462
    %1496 = vmatprep.subr.mxu0 0.0
    %1497 = vmatpush1.msra.mxu0 %v1461
    %1498 = vmatprep.subr.mxu0 0.0
    %1499 = vmatpush1.msra.mxu0 %v1460
    %1500 = vmatprep.subr.mxu0 0.0
    %1501 = vmatpush1.msra.mxu0 %v1459
    %1502 = vmatprep.subr.mxu0 0.0
    %1503 = vmatpush1.msra.mxu0 %v1458
    %1504 = vmatprep.subr.mxu0 0.0
    %1505 = vmatpush1.msra.mxu0 %v1457
    %1506 = vmatprep.subr.mxu0 0.0
    %1507 = vmatpush1.msra.mxu0 %v1456
    %1508 = vmatprep.subr.mxu0 0.0
    %1509 = vmatpush1.msra.mxu0 %v1455
    %1510 = vmatprep.subr.mxu0 0.0
    %1511 = vmatpush2.msra.mxu0 0.0
    %1512 = vmatprep.subr.mxu0 0.0
    %1513 = vmatpush2.msra.mxu0 0.0
    %1514 = vmatprep.subr.mxu0 0.0
    %1515 = vmatpush2.msra.mxu0 0.0
    %1516 = vmatprep.subr.mxu0 0.0
    %1517 = vmatpush2.msra.mxu0 0.0
    %1518 = vmatprep.subr.mxu0 0.0
    %1519 = vmatpush2.msra.mxu0 0.0
    %1520 = vmatprep.subr.mxu0 0.0
    %1521 = vmatpush2.msra.mxu0 0.0
    %1522 = vmatprep.subr.mxu0 0.0
    %1523 = vmatpush2.msra.mxu0 0.0
    %1524 = vmatprep.subr.mxu0 0.0
    %1525 = vmatpush2.msra.mxu0 0.0
    %1526 = vmatprep.subr.mxu0 0.0
    %1527 = vmatpush2.msra.mxu0 0.0
    %1528 = vmatprep.subr.mxu0 0.0
    %1529 = vmatpush2.msra.mxu0 0.0
    %1530 = vmatprep.subr.mxu0 0.0
    %1531 = vmatpush2.msra.mxu0 0.0
    %1532 = vmatprep.subr.mxu0 0.0
    %1533 = vmatpush2.msra.mxu0 0.0
    %1534 = vmatprep.subr.mxu0 0.0
    %1535 = vmatpush2.msra.mxu0 0.0
    %1536 = vmatprep.subr.mxu0 0.0
    %1537 = vmatpush2.msra.mxu0 0.0
    %1538 = vmatprep.subr.mxu0 0.0
    %1539 = vmatpush2.msra.mxu0 0.0
    %1540 = vmatprep.subr.mxu0 0.0
    %1541 = vmatpush2.msra.mxu0 0.0
    %1542 = vmatprep.mubr.f32.mxu0 0.0
    %1543 = vmatmul.mubr.f32.gmra.mxu0 %v1454
    %v1544 = vpop.f32.mrf.mxu0
    %v1545 = vadd.f32 %v1476, %v1544
    %v1546 = vpop.f32.mrf.mxu0
    %1547 = vdwg.mxu0
    %1548 = vst [vmem:[#allocation11] sm:$0xff] %v1545
    // Predicated region
    $region282: #{tpu_custom_call.1} parent=1 // pred_check
      _
    $region283: #{tpu_custom_call.1} parent=1 // pred_check_branch
      %1550 = sbr.rel (0) target = $region285
    $region284: #{tpu_custom_call.1} parent=1 // pred_region
      %s1552 = ssub.s32 128, 128
      %1553 = vsyncadd [#allocation8], %s1552
      %s1555 = sshll.u32 [#allocation11], 4
      %s1556 = int_to_ptr.vmem [resolvable:$true] %s1555
      %1558 = dma.vmem_to_hbm [thread:$0]  %s1556, 128, %s6, [#allocation8]
    $region285: #{tpu_custom_call.1} parent=1 // pred_fallthru
      _
    // Predicated region
    $region286: #{tpu_custom_call.1} parent=1 // pred_check
      _
    $region287: #{tpu_custom_call.1} parent=1 // pred_check_branch
      %1560 = sbr.rel (0) target = $region289
    $region288: #{tpu_custom_call.1} parent=1 // pred_region
      %1561 = dma.done [#allocation8], 128
    $region289: #{tpu_custom_call.1} parent=1 // pred_fallthru
      _
    %1562 = vsyncpa [#allocation7], 1
    %1563 = vsyncpa [#allocation10], 1
    %1564 = vsyncpa [#allocation8], 1
  %1565 = vsyncmov [#allocation3]
  %s1566 = vpop.sfrf %1565
  %p1567 = scmp.eq.s32.totalorder %s1566, 0
  %p1568 = pneg %p1567
  %1570 = shalt.err (%p1568)
  %s1571 = scalar_lea.sflag [#allocation3], 1
  %1572 = vsyncmov %s1571
  %s1573 = vpop.sfrf %1572
  %p1574 = scmp.eq.s32.totalorder %s1573, 0
  %p1575 = pneg %p1574
  %1577 = shalt.err (%p1575)
  %s1578 = scalar_lea.sflag [#allocation3], 2
  %1579 = vsyncmov %s1578
  %s1580 = vpop.sfrf %1579
  %p1581 = scmp.eq.s32.totalorder %s1580, 0
  %p1582 = pneg %p1581
  %1584 = shalt.err (%p1582)
  %s1585 = scalar_lea.sflag [#allocation3], 3
  %1586 = vsyncmov %s1585
  %s1587 = vpop.sfrf %1586
  %p1588 = scmp.eq.s32.totalorder %s1587, 0
  %p1589 = pneg %p1588
  %1591 = shalt.err (%p1589)
  %s1592 = scalar_lea.sflag [#allocation3], 4
  %1593 = vsyncmov %s1592
  %s1594 = vpop.sfrf %1593
  %p1595 = scmp.eq.s32.totalorder %s1594, 0
  %p1596 = pneg %p1595
  %1598 = shalt.err (%p1596)
  %s1599 = scalar_lea.sflag [#allocation3], 5
  %1600 = vsyncmov %s1599
  %s1601 = vpop.sfrf %1600
  %p1602 = scmp.eq.s32.totalorder %s1601, 0
  %p1603 = pneg %p1602
  %1605 = shalt.err (%p1603)
  %s1606 = scalar_lea.sflag [#allocation3], 6
  %1607 = vsyncmov %s1606
  %s1608 = vpop.sfrf %1607
  %p1609 = scmp.eq.s32.totalorder %s1608, 0
  %p1610 = pneg %p1609
  %1612 = shalt.err (%p1610)
  %s1613 = scalar_lea.sflag [#allocation3], 7
  %1614 = vsyncmov %s1613
  %s1615 = vpop.sfrf %1614
  %p1616 = scmp.eq.s32.totalorder %s1615, 0
  %p1617 = pneg %p1616
  %1619 = shalt.err (%p1617)
  %s1620 = scalar_lea.sflag [#allocation3], 8
  %1621 = vsyncmov %s1620
  %s1622 = vpop.sfrf %1621
  %p1623 = scmp.eq.s32.totalorder %s1622, 0
  %p1624 = pneg %p1623
  %1626 = shalt.err (%p1624)
  %s1627 = scalar_lea.sflag [#allocation3], 9
  %1628 = vsyncmov %s1627
  %s1629 = vpop.sfrf %1628
  %p1630 = scmp.eq.s32.totalorder %s1629, 0
  %p1631 = pneg %p1630
  %1633 = shalt.err (%p1631)
  %s1634 = scalar_lea.sflag [#allocation3], 10
  %1635 = vsyncmov %s1634
  %s1636 = vpop.sfrf %1635
  %p1637 = scmp.eq.s32.totalorder %s1636, 0
  %p1638 = pneg %p1637
  %1640 = shalt.err (%p1638)
  %s1641 = scalar_lea.sflag [#allocation3], 11
  %1642 = vsyncmov %s1641
  %s1643 = vpop.sfrf %1642
  %p1644 = scmp.eq.s32.totalorder %s1643, 0
  %p1645 = pneg %p1644
  %1647 = shalt.err (%p1645)
  %s1648 = scalar_lea.sflag [#allocation3], 12
  %1649 = vsyncmov %s1648
  %s1650 = vpop.sfrf %1649
  %p1651 = scmp.eq.s32.totalorder %s1650, 0
  %p1652 = pneg %p1651
  %1654 = shalt.err (%p1652)
  %s1655 = scalar_lea.sflag [#allocation3], 13
  %1656 = vsyncmov %s1655
  %s1657 = vpop.sfrf %1656
  %p1658 = scmp.eq.s32.totalorder %s1657, 0
  %p1659 = pneg %p1658
  %1661 = shalt.err (%p1659)
  %s1662 = scalar_lea.sflag [#allocation3], 14
  %1663 = vsyncmov %s1662
  %s1664 = vpop.sfrf %1663
  %p1665 = scmp.eq.s32.totalorder %s1664, 0
  %p1666 = pneg %p1665
  %1668 = shalt.err (%p1666)
  %s1669 = scalar_lea.sflag [#allocation3], 15
  %1670 = vsyncmov %s1669
  %s1671 = vpop.sfrf %1670
  %p1672 = scmp.eq.s32.totalorder %s1671, 0
  %p1673 = pneg %p1672
  %1675 = shalt.err (%p1673)
  %s1676 = scalar_lea.sflag [#allocation3], 16
  %1677 = vsyncmov %s1676
  %s1678 = vpop.sfrf %1677
  %p1679 = scmp.eq.s32.totalorder %s1678, 0
  %p1680 = pneg %p1679
  %1682 = shalt.err (%p1680)
  %s1683 = scalar_lea.sflag [#allocation3], 17
  %1684 = vsyncmov %s1683
  %s1685 = vpop.sfrf %1684
  %p1686 = scmp.eq.s32.totalorder %s1685, 0
  %p1687 = pneg %p1686
  %1689 = shalt.err (%p1687)
  %s1690 = scalar_lea.sflag [#allocation3], 18
  %1691 = vsyncmov %s1690
  %s1692 = vpop.sfrf %1691
  %p1693 = scmp.eq.s32.totalorder %s1692, 0
  %p1694 = pneg %p1693
  %1696 = shalt.err (%p1694)
  %s1697 = scalar_lea.sflag [#allocation3], 19
  %1698 = vsyncmov %s1697
  %s1699 = vpop.sfrf %1698
  %p1700 = scmp.eq.s32.totalorder %s1699, 0
  %p1701 = pneg %p1700
  %1703 = shalt.err (%p1701)
  %s1704 = scalar_lea.sflag [#allocation3], 20
  %1705 = vsyncmov %s1704
  %s1706 = vpop.sfrf %1705
  %p1707 = scmp.eq.s32.totalorder %s1706, 0
  %p1708 = pneg %p1707
  %1710 = shalt.err (%p1708)
  %s1711 = scalar_lea.sflag [#allocation3], 21
  %1712 = vsyncmov %s1711
  %s1713 = vpop.sfrf %1712
  %p1714 = scmp.eq.s32.totalorder %s1713, 0
  %p1715 = pneg %p1714
  %1717 = shalt.err (%p1715)
  %s1718 = scalar_lea.sflag [#allocation3], 22
  %1719 = vsyncmov %s1718
  %s1720 = vpop.sfrf %1719
  %p1721 = scmp.eq.s32.totalorder %s1720, 0
  %p1722 = pneg %p1721
  %1724 = shalt.err (%p1722)
  %s1725 = scalar_lea.sflag [#allocation3], 23
  %1726 = vsyncmov %s1725
  %s1727 = vpop.sfrf %1726
  %p1728 = scmp.eq.s32.totalorder %s1727, 0
  %p1729 = pneg %p1728
  %1731 = shalt.err (%p1729)
  %s1732 = scalar_lea.sflag [#allocation3], 24
  %1733 = vsyncmov %s1732
  %s1734 = vpop.sfrf %1733
  %p1735 = scmp.eq.s32.totalorder %s1734, 0
  %p1736 = pneg %p1735
  %1738 = shalt.err (%p1736)
  %s1739 = scalar_lea.sflag [#allocation3], 25
  %1740 = vsyncmov %s1739
  %s1741 = vpop.sfrf %1740
  %p1742 = scmp.eq.s32.totalorder %s1741, 0
  %p1743 = pneg %p1742
  %1745 = shalt.err (%p1743)
  %s1746 = scalar_lea.sflag [#allocation3], 26
  %1747 = vsyncmov %s1746
  %s1748 = vpop.sfrf %1747
  %p1749 = scmp.eq.s32.totalorder %s1748, 0
  %p1750 = pneg %p1749
  %1752 = shalt.err (%p1750)
  %s1753 = scalar_lea.sflag [#allocation3], 27
  %1754 = vsyncmov %s1753
  %s1755 = vpop.sfrf %1754
  %p1756 = scmp.eq.s32.totalorder %s1755, 0
  %p1757 = pneg %p1756
  %1759 = shalt.err (%p1757)
  %s1760 = scalar_lea.sflag [#allocation3], 28
  %1761 = vsyncmov %s1760
  %s1762 = vpop.sfrf %1761
  %p1763 = scmp.eq.s32.totalorder %s1762, 0
  %p1764 = pneg %p1763
  %1766 = shalt.err (%p1764)
  %s1767 = scalar_lea.sflag [#allocation3], 29
  %1768 = vsyncmov %s1767
  %s1769 = vpop.sfrf %1768
  %p1770 = scmp.eq.s32.totalorder %s1769, 0
  %p1771 = pneg %p1770
  %1773 = shalt.err (%p1771)
  %s1774 = scalar_lea.sflag [#allocation3], 30
  %1775 = vsyncmov %s1774
  %s1776 = vpop.sfrf %1775
  %p1777 = scmp.eq.s32.totalorder %s1776, 0
  %p1778 = pneg %p1777
  %1780 = shalt.err (%p1778)
  %s1781 = scalar_lea.sflag [#allocation3], 31
  %1782 = vsyncmov %s1781
  %s1783 = vpop.sfrf %1782
  %p1784 = scmp.eq.s32.totalorder %s1783, 0
  %p1785 = pneg %p1784
  %1787 = shalt.err (%p1785)
  %s1788 = scalar_lea.sflag [#allocation3], 32
  %1789 = vsyncmov %s1788
  %s1790 = vpop.sfrf %1789
  %p1791 = scmp.eq.s32.totalorder %s1790, 0
  %p1792 = pneg %p1791
  %1794 = shalt.err (%p1792)
  %s1795 = scalar_lea.sflag [#allocation3], 33
  %1796 = vsyncmov %s1795
  %s1797 = vpop.sfrf %1796
  %p1798 = scmp.eq.s32.totalorder %s1797, 0
  %p1799 = pneg %p1798
  %1801 = shalt.err (%p1799)
  %s1802 = scalar_lea.sflag [#allocation3], 34
  %1803 = vsyncmov %s1802
  %s1804 = vpop.sfrf %1803
  %p1805 = scmp.eq.s32.totalorder %s1804, 0
  %p1806 = pneg %p1805
  %1808 = shalt.err (%p1806)
  %s1809 = scalar_lea.sflag [#allocation3], 35
  %1810 = vsyncmov %s1809
  %s1811 = vpop.sfrf %1810
  %p1812 = scmp.eq.s32.totalorder %s1811, 0
  %p1813 = pneg %p1812
  %1815 = shalt.err (%p1813)
  %s1816 = scalar_lea.sflag [#allocation3], 36
  %1817 = vsyncmov %s1816
  %s1818 = vpop.sfrf %1817
  %p1819 = scmp.eq.s32.totalorder %s1818, 0
  %p1820 = pneg %p1819
  %1822 = shalt.err (%p1820)
  %s1823 = scalar_lea.sflag [#allocation3], 37
  %1824 = vsyncmov %s1823
  %s1825 = vpop.sfrf %1824
  %p1826 = scmp.eq.s32.totalorder %s1825, 0
  %p1827 = pneg %p1826
  %1829 = shalt.err (%p1827)
  %s1830 = scalar_lea.sflag [#allocation3], 38
  %1831 = vsyncmov %s1830
  %s1832 = vpop.sfrf %1831
  %p1833 = scmp.eq.s32.totalorder %s1832, 0
  %p1834 = pneg %p1833
  %1836 = shalt.err (%p1834)
  %s1837 = scalar_lea.sflag [#allocation3], 39
  %1838 = vsyncmov %s1837
  %s1839 = vpop.sfrf %1838
  %p1840 = scmp.eq.s32.totalorder %s1839, 0
  %p1841 = pneg %p1840
  %1843 = shalt.err (%p1841)
  %s1844 = scalar_lea.sflag [#allocation3], 40
  %1845 = vsyncmov %s1844
  %s1846 = vpop.sfrf %1845
  %p1847 = scmp.eq.s32.totalorder %s1846, 0
  %p1848 = pneg %p1847
  %1850 = shalt.err (%p1848)
  %s1851 = scalar_lea.sflag [#allocation3], 41
  %1852 = vsyncmov %s1851
  %s1853 = vpop.sfrf %1852
  %p1854 = scmp.eq.s32.totalorder %s1853, 0
  %p1855 = pneg %p1854
  %1857 = shalt.err (%p1855)
  %s1858 = scalar_lea.sflag [#allocation3], 42
  %1859 = vsyncmov %s1858
  %s1860 = vpop.sfrf %1859
  %p1861 = scmp.eq.s32.totalorder %s1860, 0
  %p1862 = pneg %p1861
  %1864 = shalt.err (%p1862)
  %s1865 = scalar_lea.sflag [#allocation3], 43
  %1866 = vsyncmov %s1865
  %s1867 = vpop.sfrf %1866
  %p1868 = scmp.eq.s32.totalorder %s1867, 0
  %p1869 = pneg %p1868
  %1871 = shalt.err (%p1869)
  %s1872 = scalar_lea.sflag [#allocation3], 44
  %1873 = vsyncmov %s1872
  %s1874 = vpop.sfrf %1873
  %p1875 = scmp.eq.s32.totalorder %s1874, 0
  %p1876 = pneg %p1875
  %1878 = shalt.err (%p1876)
  %s1879 = scalar_lea.sflag [#allocation3], 45
  %1880 = vsyncmov %s1879
  %s1881 = vpop.sfrf %1880
  %p1882 = scmp.eq.s32.totalorder %s1881, 0
  %p1883 = pneg %p1882
  %1885 = shalt.err (%p1883)
  %s1886 = scalar_lea.sflag [#allocation3], 46
  %1887 = vsyncmov %s1886
  %s1888 = vpop.sfrf %1887
  %p1889 = scmp.eq.s32.totalorder %s1888, 0
  %p1890 = pneg %p1889
  %1892 = shalt.err (%p1890)
  %s1893 = scalar_lea.sflag [#allocation3], 47
  %1894 = vsyncmov %s1893
  %s1895 = vpop.sfrf %1894
  %p1896 = scmp.eq.s32.totalorder %s1895, 0
  %p1897 = pneg %p1896
  %1899 = shalt.err (%p1897)
  %s1900 = scalar_lea.sflag [#allocation3], 48
  %1901 = vsyncmov %s1900
  %s1902 = vpop.sfrf %1901
  %p1903 = scmp.eq.s32.totalorder %s1902, 0
  %p1904 = pneg %p1903
  %1906 = shalt.err (%p1904)
  %s1907 = scalar_lea.sflag [#allocation3], 49
  %1908 = vsyncmov %s1907
  %s1909 = vpop.sfrf %1908
  %p1910 = scmp.eq.s32.totalorder %s1909, 0
  %p1911 = pneg %p1910
  %1913 = shalt.err (%p1911)
  %s1914 = scalar_lea.sflag [#allocation3], 50
  %1915 = vsyncmov %s1914
  %s1916 = vpop.sfrf %1915
  %p1917 = scmp.eq.s32.totalorder %s1916, 0
  %p1918 = pneg %p1917
  %1920 = shalt.err (%p1918)
  %s1921 = scalar_lea.sflag [#allocation3], 51
  %1922 = vsyncmov %s1921
  %s1923 = vpop.sfrf %1922
  %p1924 = scmp.eq.s32.totalorder %s1923, 0
  %p1925 = pneg %p1924
  %1927 = shalt.err (%p1925)
  %s1928 = scalar_lea.sflag [#allocation3], 52
  %1929 = vsyncmov %s1928
  %s1930 = vpop.sfrf %1929
  %p1931 = scmp.eq.s32.totalorder %s1930, 0
  %p1932 = pneg %p1931
  %1934 = shalt.err (%p1932)
  %s1935 = scalar_lea.sflag [#allocation3], 53
  %1936 = vsyncmov %s1935
  %s1937 = vpop.sfrf %1936
  %p1938 = scmp.eq.s32.totalorder %s1937, 0
  %p1939 = pneg %p1938
  %1941 = shalt.err (%p1939)
  %s1942 = scalar_lea.sflag [#allocation3], 54
  %1943 = vsyncmov %s1942
  %s1944 = vpop.sfrf %1943
  %p1945 = scmp.eq.s32.totalorder %s1944, 0
  %p1946 = pneg %p1945
  %1948 = shalt.err (%p1946)
  %s1949 = scalar_lea.sflag [#allocation3], 55
  %1950 = vsyncmov %s1949
  %s1951 = vpop.sfrf %1950
  %p1952 = scmp.eq.s32.totalorder %s1951, 0
  %p1953 = pneg %p1952
  %1955 = shalt.err (%p1953)
  %s1956 = scalar_lea.sflag [#allocation3], 56
  %1957 = vsyncmov %s1956
  %s1958 = vpop.sfrf %1957
  %p1959 = scmp.eq.s32.totalorder %s1958, 0
  %p1960 = pneg %p1959
  %1962 = shalt.err (%p1960)
  %s1963 = scalar_lea.sflag [#allocation3], 57
  %1964 = vsyncmov %s1963
  %s1965 = vpop.sfrf %1964
  %p1966 = scmp.eq.s32.totalorder %s1965, 0
  %p1967 = pneg %p1966
  %1969 = shalt.err (%p1967)
  %s1970 = scalar_lea.sflag [#allocation3], 58
  %1971 = vsyncmov %s1970
  %s1972 = vpop.sfrf %1971
  %p1973 = scmp.eq.s32.totalorder %s1972, 0
  %p1974 = pneg %p1973
  %1976 = shalt.err (%p1974)
  %s1977 = scalar_lea.sflag [#allocation3], 59
  %1978 = vsyncmov %s1977
  %s1979 = vpop.sfrf %1978
  %p1980 = scmp.eq.s32.totalorder %s1979, 0
  %p1981 = pneg %p1980
  %1983 = shalt.err (%p1981)
  %s1984 = scalar_lea.sflag [#allocation3], 60
  %1985 = vsyncmov %s1984
  %s1986 = vpop.sfrf %1985
  %p1987 = scmp.eq.s32.totalorder %s1986, 0
  %p1988 = pneg %p1987
  %1990 = shalt.err (%p1988)
  %s1991 = scalar_lea.sflag [#allocation3], 61
  %1992 = vsyncmov %s1991
  %s1993 = vpop.sfrf %1992
  %p1994 = scmp.eq.s32.totalorder %s1993, 0
  %p1995 = pneg %p1994
  %1997 = shalt.err (%p1995)
  %s1998 = scalar_lea.sflag [#allocation3], 62
  %1999 = vsyncmov %s1998
  %s2000 = vpop.sfrf %1999
  %p2001 = scmp.eq.s32.totalorder %s2000, 0
  %p2002 = pneg %p2001
  %2004 = shalt.err (%p2002)
  %s2005 = scalar_lea.sflag [#allocation3], 63
  %2006 = vsyncmov %s2005
  %s2007 = vpop.sfrf %2006
  %p2008 = scmp.eq.s32.totalorder %s2007, 0
  %p2009 = pneg %p2008
  %2011 = shalt.err (%p2009)

</llo_original>
